<compile_context>
chip_gen: v7x
topology: tpu7x:2x2x1
jax: 0.10.0
libtpu: 0.0.40
codegen_flags: <defaults>
</compile_context>

<pallas_src>
import jax
import jax.numpy as jnp
import numpy as np
from jax.experimental import pallas as pl
from jax.experimental.pallas import tpu as pltpu


def inner_corr_kernel(q_ref, k_ref, v_ref, w_ref, o_ref):
    # q_ref, k_ref: (B, 1, C, L)  with C = H*E  (head-major rows, L lane-dense)
    # v_ref:        (B, 1, L, C)
    # w_ref:        (1, H, E, O, L)
    # o_ref:        (B, 1, H, O, L)
    B = q_ref.shape[0]
    _, H, E, O, L = w_ref.shape

    for b in range(B):  # B is small -> static unroll (LLO sees the whole schedule)
        # ---- A[x, y] = sum_h softmax_y(|q_h^T @ k_h|)[x, y] ----
        A = None
        for h in range(H):
            qh = q_ref[b, 0, h * E:(h + 1) * E, :]   # (E, L) aligned sublane slice
            kh = k_ref[b, 0, h * E:(h + 1) * E, :]   # (E, L)
            s = jnp.abs(jnp.einsum('ex,ey->xy', qh, kh,
                                   preferred_element_type=jnp.float32))  # (L, L)
            m = jnp.max(s, axis=-1, keepdims=True)
            p = jnp.exp(s - m)
            inv = pl.reciprocal(jnp.sum(p, axis=-1, keepdims=True), approx=True)
            contrib = p * inv
            A = contrib if A is None else A + contrib          # (L, L) f32

        # ---- xqkv[x, c] = sum_y A[x, y] * v[y, c] : one MXU matmul ----
        xqkv = jnp.dot(A, v_ref[b, 0],
                       preferred_element_type=jnp.float32)     # (L, C)
        xqkv_t = xqkv.T                                        # (C, L), L lane-dense

        # ---- out[h, o, x] = sum_e xqkv_t[h*E+e, x] * W[h, e, o, x] ----
        for h in range(H):
            x_h = xqkv_t[h * E:(h + 1) * E, :]                 # (E, L)
            w_h = w_ref[0, h]                                  # (E, O, L), 32 KB live
            out_h = jnp.sum(w_h * x_h[:, None, :], axis=0)     # (O, L)
            o_ref[b, 0, h] = out_h.astype(o_ref.dtype)


def inner_correlation_pallas(q, k, v, w):
    """q, k, v: [B, N, L, H, E]; w: [N, H, E, O, L] -> out: [B, N, H, O, L]."""
    B, N, L, H, E = q.shape
    O = w.shape[3]
    assert w.shape == (N, H, E, O, L)
    C = H * E

    # q/k -> [B, N, C, L]: per-head slabs land on aligned (8,128) sublane groups
    # inside the kernel (tiny ~256 KB transpose in the wrapper).
    # v  -> [B, N, L, C]: free reshape, feeds the single (L,L)@(L,C) MXU matmul.
    qt = q.transpose(0, 1, 3, 4, 2).reshape(B, N, C, L)
    kt = k.transpose(0, 1, 3, 4, 2).reshape(B, N, C, L)
    v2 = v.reshape(B, N, L, C)

    return pl.pallas_call(
        inner_corr_kernel,
        out_shape=jax.ShapeDtypeStruct((B, N, H, O, L), q.dtype),
        grid_spec=pltpu.PrefetchScalarGridSpec(
            num_scalar_prefetch=0,
            grid=(N,),
            in_specs=[
                pl.BlockSpec((B, 1, C, L), lambda n: (0, n, 0, 0)),
                pl.BlockSpec((B, 1, C, L), lambda n: (0, n, 0, 0)),
                pl.BlockSpec((B, 1, L, C), lambda n: (0, n, 0, 0)),
                pl.BlockSpec((1, H, E, O, L), lambda n: (n, 0, 0, 0, 0)),
            ],
            out_specs=pl.BlockSpec((B, 1, H, O, L), lambda n: (0, n, 0, 0, 0)),
        ),
        compiler_params=pltpu.CompilerParams(
            dimension_semantics=("parallel",)),
    )(qt, kt, v2, w)


def inner_correlation_ref(q, k, v, w):
    """Pure-JAX mirror of the torch forward (for verification)."""
    hp = jax.lax.Precision.HIGHEST
    xq = jnp.transpose(q, (0, 1, 3, 4, 2))
    xk = jnp.transpose(k, (0, 1, 3, 4, 2))
    xv = jnp.transpose(v, (0, 1, 3, 4, 2))
    xqk = jnp.einsum('bnhex,bnhey->bnhxy', xq, xk, precision=hp)
    xqk = jax.nn.softmax(jnp.abs(xqk), axis=-1)
    xqkv = jnp.einsum('bnlxy,bnhey->bnhex', xqk, xv, precision=hp)
    return jnp.einsum('bnhex,nheox->bnhox', xqkv, w, precision=hp)


if __name__ == "__main__":
    # Small shapes consistent with the module:
    #   d_model = 64 -> H = 8 heads, E = O = d_model // 8 = 8
    #   seq_len = N = 4, len(index_len) = L = 128, batch B = 2
    B, N, L, H = 2, 4, 128, 8
    d_model = 64
    E = d_model // 8
    O = d_model // 8
    index_len = list(range(L))  # only its length matters

    key = jax.random.PRNGKey(0)
    kq, kk, kv, kw = jax.random.split(key, 4)

    q = jax.random.normal(kq, (B, N, L, H, E), dtype=jnp.float32)
    k = jax.random.normal(kk, (B, N, L, H, E), dtype=jnp.float32)
    v = jax.random.normal(kv, (B, N, L, H, E), dtype=jnp.float32)

    # weights1: scale * rand(seq_len, 8, d_model//8, d_model//8, len(index_len))
    scale = 1.0 / (d_model * d_model)
    w = scale * jax.random.uniform(kw, (N, 8, E, O, len(index_len)),
                                   dtype=jnp.float32)

    out = jax.block_until_ready(inner_correlation_pallas(q, k, v, w))
    ref = jax.block_until_ready(inner_correlation_ref(q, k, v, w))

    # Tolerance covers the EUP approximate reciprocal in the softmax denominator
    # and MXU f32 rounding differences vs. the HIGHEST-precision reference.
    np.testing.assert_allclose(np.asarray(out), np.asarray(ref),
                               rtol=2e-2, atol=1e-5)

    # TODO(synk): attn_mask and the unused `d_model` forward arg are no-ops in the
    # torch module and are therefore not modeled.
    print("KERNEL_OK")
</pallas_src>

<mosaic_0001>
module attributes {stable_mosaic.version = 11 : i64} {
  func.func @inner_corr_kernel(%arg0: i32, %arg1: memref<2x1x64x128xf32, #tpu.memory_space<vmem>>, %arg2: memref<2x1x64x128xf32, #tpu.memory_space<vmem>>, %arg3: memref<2x1x128x64xf32, #tpu.memory_space<vmem>>, %arg4: memref<1x8x8x8x128xf32, #tpu.memory_space<vmem>>, %arg5: memref<2x1x8x8x128xf32, #tpu.memory_space<vmem>>) attributes {dimension_semantics = [#tpu.dimension_semantics<parallel>], iteration_bounds = array<i64: 4>, scalar_prefetch = 0 : i64, scratch_operands = 0 : i64, tpu.core_type = #tpu.core_type<tc>, window_params = [{transform_indices = @transform_0, window_bounds = array<i64: 2, 1, 64, 128>}, {transform_indices = @transform_1, window_bounds = array<i64: 2, 1, 64, 128>}, {transform_indices = @transform_2, window_bounds = array<i64: 2, 1, 128, 64>}, {transform_indices = @transform_3, window_bounds = array<i64: 1, 8, 8, 8, 128>}, {transform_indices = @transform_4, window_bounds = array<i64: 2, 1, 8, 8, 128>}]} {
    %c0 = arith.constant 0 : index
    %c0_0 = arith.constant 0 : index
    %c0_1 = arith.constant 0 : index
    %c0_2 = arith.constant 0 : index
    %0 = vector.load %arg1[%c0, %c0_0, %c0_1, %c0_2] : memref<2x1x64x128xf32, #tpu.memory_space<vmem>>, vector<1x1x8x128xf32>
    %1 = vector.shape_cast %0 : vector<1x1x8x128xf32> to vector<8x128xf32>
    %c0_3 = arith.constant 0 : index
    %c0_4 = arith.constant 0 : index
    %c0_5 = arith.constant 0 : index
    %c0_6 = arith.constant 0 : index
    %2 = vector.load %arg2[%c0_3, %c0_4, %c0_5, %c0_6] : memref<2x1x64x128xf32, #tpu.memory_space<vmem>>, vector<1x1x8x128xf32>
    %3 = vector.shape_cast %2 : vector<1x1x8x128xf32> to vector<8x128xf32>
    "tpu.trace_start"() <{level = 10 : i32, message = "ex,ey->xy"}> : () -> ()
    %cst = arith.constant dense<0.000000e+00> : vector<128x128xf32>
    %4 = tpu.matmul %1, %3, %cst {dimension_numbers = #tpu.dot_dimension_numbers<[0], [0], [1], [1], [0, 1, 1, 1], [], []>} : vector<8x128xf32>, vector<8x128xf32>, vector<128x128xf32> -> vector<128x128xf32>
    "tpu.trace_stop"() : () -> ()
    %5 = math.absf %4 : vector<128x128xf32>
    %cst_7 = arith.constant dense<0xFF800000> : vector<128xf32>
    %6 = vector.multi_reduction <maximumf>, %5, %cst_7 [1] : vector<128x128xf32> to vector<128xf32>
    %7 = vector.shape_cast %6 : vector<128xf32> to vector<128x1xf32>
    %8 = vector.broadcast %7 : vector<128x1xf32> to vector<128x128xf32>
    %9 = arith.subf %5, %8 : vector<128x128xf32>
    %10 = math.exp %9 : vector<128x128xf32>
    %cst_8 = arith.constant dense<0.000000e+00> : vector<128xf32>
    %11 = vector.multi_reduction <add>, %10, %cst_8 [1] : vector<128x128xf32> to vector<128xf32>
    %12 = vector.shape_cast %11 : vector<128xf32> to vector<128x1xf32>
    %13 = tpu.reciprocal %12 {approx = true} : vector<128x1xf32> -> vector<128x1xf32>
    %14 = vector.broadcast %13 : vector<128x1xf32> to vector<128x128xf32>
    %15 = arith.mulf %10, %14 : vector<128x128xf32>
    %c0_9 = arith.constant 0 : index
    %c0_10 = arith.constant 0 : index
    %c8 = arith.constant 8 : index
    %c0_11 = arith.constant 0 : index
    %16 = vector.load %arg1[%c0_9, %c0_10, %c8, %c0_11] : memref<2x1x64x128xf32, #tpu.memory_space<vmem>>, vector<1x1x8x128xf32>
    %17 = vector.shape_cast %16 : vector<1x1x8x128xf32> to vector<8x128xf32>
    %c0_12 = arith.constant 0 : index
    %c0_13 = arith.constant 0 : index
    %c8_14 = arith.constant 8 : index
    %c0_15 = arith.constant 0 : index
    %18 = vector.load %arg2[%c0_12, %c0_13, %c8_14, %c0_15] : memref<2x1x64x128xf32, #tpu.memory_space<vmem>>, vector<1x1x8x128xf32>
    %19 = vector.shape_cast %18 : vector<1x1x8x128xf32> to vector<8x128xf32>
    "tpu.trace_start"() <{level = 10 : i32, message = "ex,ey->xy"}> : () -> ()
    %cst_16 = arith.constant dense<0.000000e+00> : vector<128x128xf32>
    %20 = tpu.matmul %17, %19, %cst_16 {dimension_numbers = #tpu.dot_dimension_numbers<[0], [0], [1], [1], [0, 1, 1, 1], [], []>} : vector<8x128xf32>, vector<8x128xf32>, vector<128x128xf32> -> vector<128x128xf32>
    "tpu.trace_stop"() : () -> ()
    %21 = math.absf %20 : vector<128x128xf32>
    %cst_17 = arith.constant dense<0xFF800000> : vector<128xf32>
    %22 = vector.multi_reduction <maximumf>, %21, %cst_17 [1] : vector<128x128xf32> to vector<128xf32>
    %23 = vector.shape_cast %22 : vector<128xf32> to vector<128x1xf32>
    %24 = vector.broadcast %23 : vector<128x1xf32> to vector<128x128xf32>
    %25 = arith.subf %21, %24 : vector<128x128xf32>
    %26 = math.exp %25 : vector<128x128xf32>
    %cst_18 = arith.constant dense<0.000000e+00> : vector<128xf32>
    %27 = vector.multi_reduction <add>, %26, %cst_18 [1] : vector<128x128xf32> to vector<128xf32>
    %28 = vector.shape_cast %27 : vector<128xf32> to vector<128x1xf32>
    %29 = tpu.reciprocal %28 {approx = true} : vector<128x1xf32> -> vector<128x1xf32>
    %30 = vector.broadcast %29 : vector<128x1xf32> to vector<128x128xf32>
    %31 = arith.mulf %26, %30 : vector<128x128xf32>
    %32 = arith.addf %15, %31 : vector<128x128xf32>
    %c0_19 = arith.constant 0 : index
    %c0_20 = arith.constant 0 : index
    %c16 = arith.constant 16 : index
    %c0_21 = arith.constant 0 : index
    %33 = vector.load %arg1[%c0_19, %c0_20, %c16, %c0_21] : memref<2x1x64x128xf32, #tpu.memory_space<vmem>>, vector<1x1x8x128xf32>
    %34 = vector.shape_cast %33 : vector<1x1x8x128xf32> to vector<8x128xf32>
    %c0_22 = arith.constant 0 : index
    %c0_23 = arith.constant 0 : index
    %c16_24 = arith.constant 16 : index
    %c0_25 = arith.constant 0 : index
    %35 = vector.load %arg2[%c0_22, %c0_23, %c16_24, %c0_25] : memref<2x1x64x128xf32, #tpu.memory_space<vmem>>, vector<1x1x8x128xf32>
    %36 = vector.shape_cast %35 : vector<1x1x8x128xf32> to vector<8x128xf32>
    "tpu.trace_start"() <{level = 10 : i32, message = "ex,ey->xy"}> : () -> ()
    %cst_26 = arith.constant dense<0.000000e+00> : vector<128x128xf32>
    %37 = tpu.matmul %34, %36, %cst_26 {dimension_numbers = #tpu.dot_dimension_numbers<[0], [0], [1], [1], [0, 1, 1, 1], [], []>} : vector<8x128xf32>, vector<8x128xf32>, vector<128x128xf32> -> vector<128x128xf32>
    "tpu.trace_stop"() : () -> ()
    %38 = math.absf %37 : vector<128x128xf32>
    %cst_27 = arith.constant dense<0xFF800000> : vector<128xf32>
    %39 = vector.multi_reduction <maximumf>, %38, %cst_27 [1] : vector<128x128xf32> to vector<128xf32>
    %40 = vector.shape_cast %39 : vector<128xf32> to vector<128x1xf32>
    %41 = vector.broadcast %40 : vector<128x1xf32> to vector<128x128xf32>
    %42 = arith.subf %38, %41 : vector<128x128xf32>
    %43 = math.exp %42 : vector<128x128xf32>
    %cst_28 = arith.constant dense<0.000000e+00> : vector<128xf32>
    %44 = vector.multi_reduction <add>, %43, %cst_28 [1] : vector<128x128xf32> to vector<128xf32>
    %45 = vector.shape_cast %44 : vector<128xf32> to vector<128x1xf32>
    %46 = tpu.reciprocal %45 {approx = true} : vector<128x1xf32> -> vector<128x1xf32>
    %47 = vector.broadcast %46 : vector<128x1xf32> to vector<128x128xf32>
    %48 = arith.mulf %43, %47 : vector<128x128xf32>
    %49 = arith.addf %32, %48 : vector<128x128xf32>
    %c0_29 = arith.constant 0 : index
    %c0_30 = arith.constant 0 : index
    %c24 = arith.constant 24 : index
    %c0_31 = arith.constant 0 : index
    %50 = vector.load %arg1[%c0_29, %c0_30, %c24, %c0_31] : memref<2x1x64x128xf32, #tpu.memory_space<vmem>>, vector<1x1x8x128xf32>
    %51 = vector.shape_cast %50 : vector<1x1x8x128xf32> to vector<8x128xf32>
    %c0_32 = arith.constant 0 : index
    %c0_33 = arith.constant 0 : index
    %c24_34 = arith.constant 24 : index
    %c0_35 = arith.constant 0 : index
    %52 = vector.load %arg2[%c0_32, %c0_33, %c24_34, %c0_35] : memref<2x1x64x128xf32, #tpu.memory_space<vmem>>, vector<1x1x8x128xf32>
    %53 = vector.shape_cast %52 : vector<1x1x8x128xf32> to vector<8x128xf32>
    "tpu.trace_start"() <{level = 10 : i32, message = "ex,ey->xy"}> : () -> ()
    %cst_36 = arith.constant dense<0.000000e+00> : vector<128x128xf32>
    %54 = tpu.matmul %51, %53, %cst_36 {dimension_numbers = #tpu.dot_dimension_numbers<[0], [0], [1], [1], [0, 1, 1, 1], [], []>} : vector<8x128xf32>, vector<8x128xf32>, vector<128x128xf32> -> vector<128x128xf32>
    "tpu.trace_stop"() : () -> ()
    %55 = math.absf %54 : vector<128x128xf32>
    %cst_37 = arith.constant dense<0xFF800000> : vector<128xf32>
    %56 = vector.multi_reduction <maximumf>, %55, %cst_37 [1] : vector<128x128xf32> to vector<128xf32>
    %57 = vector.shape_cast %56 : vector<128xf32> to vector<128x1xf32>
    %58 = vector.broadcast %57 : vector<128x1xf32> to vector<128x128xf32>
    %59 = arith.subf %55, %58 : vector<128x128xf32>
    %60 = math.exp %59 : vector<128x128xf32>
    %cst_38 = arith.constant dense<0.000000e+00> : vector<128xf32>
    %61 = vector.multi_reduction <add>, %60, %cst_38 [1] : vector<128x128xf32> to vector<128xf32>
    %62 = vector.shape_cast %61 : vector<128xf32> to vector<128x1xf32>
    %63 = tpu.reciprocal %62 {approx = true} : vector<128x1xf32> -> vector<128x1xf32>
    %64 = vector.broadcast %63 : vector<128x1xf32> to vector<128x128xf32>
    %65 = arith.mulf %60, %64 : vector<128x128xf32>
    %66 = arith.addf %49, %65 : vector<128x128xf32>
    %c0_39 = arith.constant 0 : index
    %c0_40 = arith.constant 0 : index
    %c32 = arith.constant 32 : index
    %c0_41 = arith.constant 0 : index
    %67 = vector.load %arg1[%c0_39, %c0_40, %c32, %c0_41] : memref<2x1x64x128xf32, #tpu.memory_space<vmem>>, vector<1x1x8x128xf32>
    %68 = vector.shape_cast %67 : vector<1x1x8x128xf32> to vector<8x128xf32>
    %c0_42 = arith.constant 0 : index
    %c0_43 = arith.constant 0 : index
    %c32_44 = arith.constant 32 : index
    %c0_45 = arith.constant 0 : index
    %69 = vector.load %arg2[%c0_42, %c0_43, %c32_44, %c0_45] : memref<2x1x64x128xf32, #tpu.memory_space<vmem>>, vector<1x1x8x128xf32>
    %70 = vector.shape_cast %69 : vector<1x1x8x128xf32> to vector<8x128xf32>
    "tpu.trace_start"() <{level = 10 : i32, message = "ex,ey->xy"}> : () -> ()
    %cst_46 = arith.constant dense<0.000000e+00> : vector<128x128xf32>
    %71 = tpu.matmul %68, %70, %cst_46 {dimension_numbers = #tpu.dot_dimension_numbers<[0], [0], [1], [1], [0, 1, 1, 1], [], []>} : vector<8x128xf32>, vector<8x128xf32>, vector<128x128xf32> -> vector<128x128xf32>
    "tpu.trace_stop"() : () -> ()
    %72 = math.absf %71 : vector<128x128xf32>
    %cst_47 = arith.constant dense<0xFF800000> : vector<128xf32>
    %73 = vector.multi_reduction <maximumf>, %72, %cst_47 [1] : vector<128x128xf32> to vector<128xf32>
    %74 = vector.shape_cast %73 : vector<128xf32> to vector<128x1xf32>
    %75 = vector.broadcast %74 : vector<128x1xf32> to vector<128x128xf32>
    %76 = arith.subf %72, %75 : vector<128x128xf32>
    %77 = math.exp %76 : vector<128x128xf32>
    %cst_48 = arith.constant dense<0.000000e+00> : vector<128xf32>
    %78 = vector.multi_reduction <add>, %77, %cst_48 [1] : vector<128x128xf32> to vector<128xf32>
    %79 = vector.shape_cast %78 : vector<128xf32> to vector<128x1xf32>
    %80 = tpu.reciprocal %79 {approx = true} : vector<128x1xf32> -> vector<128x1xf32>
    %81 = vector.broadcast %80 : vector<128x1xf32> to vector<128x128xf32>
    %82 = arith.mulf %77, %81 : vector<128x128xf32>
    %83 = arith.addf %66, %82 : vector<128x128xf32>
    %c0_49 = arith.constant 0 : index
    %c0_50 = arith.constant 0 : index
    %c40 = arith.constant 40 : index
    %c0_51 = arith.constant 0 : index
    %84 = vector.load %arg1[%c0_49, %c0_50, %c40, %c0_51] : memref<2x1x64x128xf32, #tpu.memory_space<vmem>>, vector<1x1x8x128xf32>
    %85 = vector.shape_cast %84 : vector<1x1x8x128xf32> to vector<8x128xf32>
    %c0_52 = arith.constant 0 : index
    %c0_53 = arith.constant 0 : index
    %c40_54 = arith.constant 40 : index
    %c0_55 = arith.constant 0 : index
    %86 = vector.load %arg2[%c0_52, %c0_53, %c40_54, %c0_55] : memref<2x1x64x128xf32, #tpu.memory_space<vmem>>, vector<1x1x8x128xf32>
    %87 = vector.shape_cast %86 : vector<1x1x8x128xf32> to vector<8x128xf32>
    "tpu.trace_start"() <{level = 10 : i32, message = "ex,ey->xy"}> : () -> ()
    %cst_56 = arith.constant dense<0.000000e+00> : vector<128x128xf32>
    %88 = tpu.matmul %85, %87, %cst_56 {dimension_numbers = #tpu.dot_dimension_numbers<[0], [0], [1], [1], [0, 1, 1, 1], [], []>} : vector<8x128xf32>, vector<8x128xf32>, vector<128x128xf32> -> vector<128x128xf32>
    "tpu.trace_stop"() : () -> ()
    %89 = math.absf %88 : vector<128x128xf32>
    %cst_57 = arith.constant dense<0xFF800000> : vector<128xf32>
    %90 = vector.multi_reduction <maximumf>, %89, %cst_57 [1] : vector<128x128xf32> to vector<128xf32>
    %91 = vector.shape_cast %90 : vector<128xf32> to vector<128x1xf32>
    %92 = vector.broadcast %91 : vector<128x1xf32> to vector<128x128xf32>
    %93 = arith.subf %89, %92 : vector<128x128xf32>
    %94 = math.exp %93 : vector<128x128xf32>
    %cst_58 = arith.constant dense<0.000000e+00> : vector<128xf32>
    %95 = vector.multi_reduction <add>, %94, %cst_58 [1] : vector<128x128xf32> to vector<128xf32>
    %96 = vector.shape_cast %95 : vector<128xf32> to vector<128x1xf32>
    %97 = tpu.reciprocal %96 {approx = true} : vector<128x1xf32> -> vector<128x1xf32>
    %98 = vector.broadcast %97 : vector<128x1xf32> to vector<128x128xf32>
    %99 = arith.mulf %94, %98 : vector<128x128xf32>
    %100 = arith.addf %83, %99 : vector<128x128xf32>
    %c0_59 = arith.constant 0 : index
    %c0_60 = arith.constant 0 : index
    %c48 = arith.constant 48 : index
    %c0_61 = arith.constant 0 : index
    %101 = vector.load %arg1[%c0_59, %c0_60, %c48, %c0_61] : memref<2x1x64x128xf32, #tpu.memory_space<vmem>>, vector<1x1x8x128xf32>
    %102 = vector.shape_cast %101 : vector<1x1x8x128xf32> to vector<8x128xf32>
    %c0_62 = arith.constant 0 : index
    %c0_63 = arith.constant 0 : index
    %c48_64 = arith.constant 48 : index
    %c0_65 = arith.constant 0 : index
    %103 = vector.load %arg2[%c0_62, %c0_63, %c48_64, %c0_65] : memref<2x1x64x128xf32, #tpu.memory_space<vmem>>, vector<1x1x8x128xf32>
    %104 = vector.shape_cast %103 : vector<1x1x8x128xf32> to vector<8x128xf32>
    "tpu.trace_start"() <{level = 10 : i32, message = "ex,ey->xy"}> : () -> ()
    %cst_66 = arith.constant dense<0.000000e+00> : vector<128x128xf32>
    %105 = tpu.matmul %102, %104, %cst_66 {dimension_numbers = #tpu.dot_dimension_numbers<[0], [0], [1], [1], [0, 1, 1, 1], [], []>} : vector<8x128xf32>, vector<8x128xf32>, vector<128x128xf32> -> vector<128x128xf32>
    "tpu.trace_stop"() : () -> ()
    %106 = math.absf %105 : vector<128x128xf32>
    %cst_67 = arith.constant dense<0xFF800000> : vector<128xf32>
    %107 = vector.multi_reduction <maximumf>, %106, %cst_67 [1] : vector<128x128xf32> to vector<128xf32>
    %108 = vector.shape_cast %107 : vector<128xf32> to vector<128x1xf32>
    %109 = vector.broadcast %108 : vector<128x1xf32> to vector<128x128xf32>
    %110 = arith.subf %106, %109 : vector<128x128xf32>
    %111 = math.exp %110 : vector<128x128xf32>
    %cst_68 = arith.constant dense<0.000000e+00> : vector<128xf32>
    %112 = vector.multi_reduction <add>, %111, %cst_68 [1] : vector<128x128xf32> to vector<128xf32>
    %113 = vector.shape_cast %112 : vector<128xf32> to vector<128x1xf32>
    %114 = tpu.reciprocal %113 {approx = true} : vector<128x1xf32> -> vector<128x1xf32>
    %115 = vector.broadcast %114 : vector<128x1xf32> to vector<128x128xf32>
    %116 = arith.mulf %111, %115 : vector<128x128xf32>
    %117 = arith.addf %100, %116 : vector<128x128xf32>
    %c0_69 = arith.constant 0 : index
    %c0_70 = arith.constant 0 : index
    %c56 = arith.constant 56 : index
    %c0_71 = arith.constant 0 : index
    %118 = vector.load %arg1[%c0_69, %c0_70, %c56, %c0_71] : memref<2x1x64x128xf32, #tpu.memory_space<vmem>>, vector<1x1x8x128xf32>
    %119 = vector.shape_cast %118 : vector<1x1x8x128xf32> to vector<8x128xf32>
    %c0_72 = arith.constant 0 : index
    %c0_73 = arith.constant 0 : index
    %c56_74 = arith.constant 56 : index
    %c0_75 = arith.constant 0 : index
    %120 = vector.load %arg2[%c0_72, %c0_73, %c56_74, %c0_75] : memref<2x1x64x128xf32, #tpu.memory_space<vmem>>, vector<1x1x8x128xf32>
    %121 = vector.shape_cast %120 : vector<1x1x8x128xf32> to vector<8x128xf32>
    "tpu.trace_start"() <{level = 10 : i32, message = "ex,ey->xy"}> : () -> ()
    %cst_76 = arith.constant dense<0.000000e+00> : vector<128x128xf32>
    %122 = tpu.matmul %119, %121, %cst_76 {dimension_numbers = #tpu.dot_dimension_numbers<[0], [0], [1], [1], [0, 1, 1, 1], [], []>} : vector<8x128xf32>, vector<8x128xf32>, vector<128x128xf32> -> vector<128x128xf32>
    "tpu.trace_stop"() : () -> ()
    %123 = math.absf %122 : vector<128x128xf32>
    %cst_77 = arith.constant dense<0xFF800000> : vector<128xf32>
    %124 = vector.multi_reduction <maximumf>, %123, %cst_77 [1] : vector<128x128xf32> to vector<128xf32>
    %125 = vector.shape_cast %124 : vector<128xf32> to vector<128x1xf32>
    %126 = vector.broadcast %125 : vector<128x1xf32> to vector<128x128xf32>
    %127 = arith.subf %123, %126 : vector<128x128xf32>
    %128 = math.exp %127 : vector<128x128xf32>
    %cst_78 = arith.constant dense<0.000000e+00> : vector<128xf32>
    %129 = vector.multi_reduction <add>, %128, %cst_78 [1] : vector<128x128xf32> to vector<128xf32>
    %130 = vector.shape_cast %129 : vector<128xf32> to vector<128x1xf32>
    %131 = tpu.reciprocal %130 {approx = true} : vector<128x1xf32> -> vector<128x1xf32>
    %132 = vector.broadcast %131 : vector<128x1xf32> to vector<128x128xf32>
    %133 = arith.mulf %128, %132 : vector<128x128xf32>
    %134 = arith.addf %117, %133 : vector<128x128xf32>
    %c0_79 = arith.constant 0 : index
    %c0_80 = arith.constant 0 : index
    %c0_81 = arith.constant 0 : index
    %c0_82 = arith.constant 0 : index
    %135 = vector.load %arg3[%c0_79, %c0_80, %c0_81, %c0_82] : memref<2x1x128x64xf32, #tpu.memory_space<vmem>>, vector<1x1x128x64xf32>
    %136 = vector.shape_cast %135 : vector<1x1x128x64xf32> to vector<128x64xf32>
    %cst_83 = arith.constant dense<0.000000e+00> : vector<128x64xf32>
    %137 = tpu.matmul %134, %136, %cst_83 {dimension_numbers = #tpu.dot_dimension_numbers<[1], [0], [0], [1], [0, 0, 1, 1], [], []>} : vector<128x128xf32>, vector<128x64xf32>, vector<128x64xf32> -> vector<128x64xf32>
    %138 = tpu.transpose %137, [1, 0] : vector<128x64xf32> -> vector<64x128xf32>
    %139 = vector.extract_strided_slice %138 {offsets = [0, 0], sizes = [8, 128], strides = [1, 1]} : vector<64x128xf32> to vector<8x128xf32>
    %c0_84 = arith.constant 0 : index
    %c0_85 = arith.constant 0 : index
    %c0_86 = arith.constant 0 : index
    %c0_87 = arith.constant 0 : index
    %c0_88 = arith.constant 0 : index
    %140 = vector.load %arg4[%c0_84, %c0_85, %c0_86, %c0_87, %c0_88] : memref<1x8x8x8x128xf32, #tpu.memory_space<vmem>>, vector<1x1x8x8x128xf32>
    %141 = vector.shape_cast %140 : vector<1x1x8x8x128xf32> to vector<8x8x128xf32>
    %142 = vector.shape_cast %139 : vector<8x128xf32> to vector<8x1x128xf32>
    %143 = vector.broadcast %142 : vector<8x1x128xf32> to vector<8x8x128xf32>
    %144 = arith.mulf %141, %143 : vector<8x8x128xf32>
    %cst_89 = arith.constant dense<0.000000e+00> : vector<8x128xf32>
    %145 = vector.multi_reduction <add>, %144, %cst_89 [0] : vector<8x8x128xf32> to vector<8x128xf32>
    %c0_90 = arith.constant 0 : index
    %c0_91 = arith.constant 0 : index
    %c0_92 = arith.constant 0 : index
    %c0_93 = arith.constant 0 : index
    %c0_94 = arith.constant 0 : index
    %146 = vector.load %arg5[%c0_90, %c0_91, %c0_92, %c0_93, %c0_94] : memref<2x1x8x8x128xf32, #tpu.memory_space<vmem>>, vector<1x1x1x8x128xf32>
    %147 = vector.shape_cast %146 : vector<1x1x1x8x128xf32> to vector<8x128xf32>
    %148 = vector.shape_cast %145 : vector<8x128xf32> to vector<1x1x1x8x128xf32>
    tpu.vector_store %arg5[%c0_90, %c0_91, %c0_92, %c0_93, %c0_94], %148 {strides = array<i32>} : memref<2x1x8x8x128xf32, #tpu.memory_space<vmem>>, vector<1x1x1x8x128xf32>,
    %149 = vector.extract_strided_slice %138 {offsets = [8, 0], sizes = [8, 128], strides = [1, 1]} : vector<64x128xf32> to vector<8x128xf32>
    %c0_95 = arith.constant 0 : index
    %c1 = arith.constant 1 : index
    %c0_96 = arith.constant 0 : index
    %c0_97 = arith.constant 0 : index
    %c0_98 = arith.constant 0 : index
    %150 = vector.load %arg4[%c0_95, %c1, %c0_96, %c0_97, %c0_98] : memref<1x8x8x8x128xf32, #tpu.memory_space<vmem>>, vector<1x1x8x8x128xf32>
    %151 = vector.shape_cast %150 : vector<1x1x8x8x128xf32> to vector<8x8x128xf32>
    %152 = vector.shape_cast %149 : vector<8x128xf32> to vector<8x1x128xf32>
    %153 = vector.broadcast %152 : vector<8x1x128xf32> to vector<8x8x128xf32>
    %154 = arith.mulf %151, %153 : vector<8x8x128xf32>
    %cst_99 = arith.constant dense<0.000000e+00> : vector<8x128xf32>
    %155 = vector.multi_reduction <add>, %154, %cst_99 [0] : vector<8x8x128xf32> to vector<8x128xf32>
    %c0_100 = arith.constant 0 : index
    %c0_101 = arith.constant 0 : index
    %c1_102 = arith.constant 1 : index
    %c0_103 = arith.constant 0 : index
    %c0_104 = arith.constant 0 : index
    %156 = vector.load %arg5[%c0_100, %c0_101, %c1_102, %c0_103, %c0_104] : memref<2x1x8x8x128xf32, #tpu.memory_space<vmem>>, vector<1x1x1x8x128xf32>
    %157 = vector.shape_cast %156 : vector<1x1x1x8x128xf32> to vector<8x128xf32>
    %158 = vector.shape_cast %155 : vector<8x128xf32> to vector<1x1x1x8x128xf32>
    tpu.vector_store %arg5[%c0_100, %c0_101, %c1_102, %c0_103, %c0_104], %158 {strides = array<i32>} : memref<2x1x8x8x128xf32, #tpu.memory_space<vmem>>, vector<1x1x1x8x128xf32>,
    %159 = vector.extract_strided_slice %138 {offsets = [16, 0], sizes = [8, 128], strides = [1, 1]} : vector<64x128xf32> to vector<8x128xf32>
    %c0_105 = arith.constant 0 : index
    %c2 = arith.constant 2 : index
    %c0_106 = arith.constant 0 : index
    %c0_107 = arith.constant 0 : index
    %c0_108 = arith.constant 0 : index
    %160 = vector.load %arg4[%c0_105, %c2, %c0_106, %c0_107, %c0_108] : memref<1x8x8x8x128xf32, #tpu.memory_space<vmem>>, vector<1x1x8x8x128xf32>
    %161 = vector.shape_cast %160 : vector<1x1x8x8x128xf32> to vector<8x8x128xf32>
    %162 = vector.shape_cast %159 : vector<8x128xf32> to vector<8x1x128xf32>
    %163 = vector.broadcast %162 : vector<8x1x128xf32> to vector<8x8x128xf32>
    %164 = arith.mulf %161, %163 : vector<8x8x128xf32>
    %cst_109 = arith.constant dense<0.000000e+00> : vector<8x128xf32>
    %165 = vector.multi_reduction <add>, %164, %cst_109 [0] : vector<8x8x128xf32> to vector<8x128xf32>
    %c0_110 = arith.constant 0 : index
    %c0_111 = arith.constant 0 : index
    %c2_112 = arith.constant 2 : index
    %c0_113 = arith.constant 0 : index
    %c0_114 = arith.constant 0 : index
    %166 = vector.load %arg5[%c0_110, %c0_111, %c2_112, %c0_113, %c0_114] : memref<2x1x8x8x128xf32, #tpu.memory_space<vmem>>, vector<1x1x1x8x128xf32>
    %167 = vector.shape_cast %166 : vector<1x1x1x8x128xf32> to vector<8x128xf32>
    %168 = vector.shape_cast %165 : vector<8x128xf32> to vector<1x1x1x8x128xf32>
    tpu.vector_store %arg5[%c0_110, %c0_111, %c2_112, %c0_113, %c0_114], %168 {strides = array<i32>} : memref<2x1x8x8x128xf32, #tpu.memory_space<vmem>>, vector<1x1x1x8x128xf32>,
    %169 = vector.extract_strided_slice %138 {offsets = [24, 0], sizes = [8, 128], strides = [1, 1]} : vector<64x128xf32> to vector<8x128xf32>
    %c0_115 = arith.constant 0 : index
    %c3 = arith.constant 3 : index
    %c0_116 = arith.constant 0 : index
    %c0_117 = arith.constant 0 : index
    %c0_118 = arith.constant 0 : index
    %170 = vector.load %arg4[%c0_115, %c3, %c0_116, %c0_117, %c0_118] : memref<1x8x8x8x128xf32, #tpu.memory_space<vmem>>, vector<1x1x8x8x128xf32>
    %171 = vector.shape_cast %170 : vector<1x1x8x8x128xf32> to vector<8x8x128xf32>
    %172 = vector.shape_cast %169 : vector<8x128xf32> to vector<8x1x128xf32>
    %173 = vector.broadcast %172 : vector<8x1x128xf32> to vector<8x8x128xf32>
    %174 = arith.mulf %171, %173 : vector<8x8x128xf32>
    %cst_119 = arith.constant dense<0.000000e+00> : vector<8x128xf32>
    %175 = vector.multi_reduction <add>, %174, %cst_119 [0] : vector<8x8x128xf32> to vector<8x128xf32>
    %c0_120 = arith.constant 0 : index
    %c0_121 = arith.constant 0 : index
    %c3_122 = arith.constant 3 : index
    %c0_123 = arith.constant 0 : index
    %c0_124 = arith.constant 0 : index
    %176 = vector.load %arg5[%c0_120, %c0_121, %c3_122, %c0_123, %c0_124] : memref<2x1x8x8x128xf32, #tpu.memory_space<vmem>>, vector<1x1x1x8x128xf32>
    %177 = vector.shape_cast %176 : vector<1x1x1x8x128xf32> to vector<8x128xf32>
    %178 = vector.shape_cast %175 : vector<8x128xf32> to vector<1x1x1x8x128xf32>
    tpu.vector_store %arg5[%c0_120, %c0_121, %c3_122, %c0_123, %c0_124], %178 {strides = array<i32>} : memref<2x1x8x8x128xf32, #tpu.memory_space<vmem>>, vector<1x1x1x8x128xf32>,
    %179 = vector.extract_strided_slice %138 {offsets = [32, 0], sizes = [8, 128], strides = [1, 1]} : vector<64x128xf32> to vector<8x128xf32>
    %c0_125 = arith.constant 0 : index
    %c4 = arith.constant 4 : index
    %c0_126 = arith.constant 0 : index
    %c0_127 = arith.constant 0 : index
    %c0_128 = arith.constant 0 : index
    %180 = vector.load %arg4[%c0_125, %c4, %c0_126, %c0_127, %c0_128] : memref<1x8x8x8x128xf32, #tpu.memory_space<vmem>>, vector<1x1x8x8x128xf32>
    %181 = vector.shape_cast %180 : vector<1x1x8x8x128xf32> to vector<8x8x128xf32>
    %182 = vector.shape_cast %179 : vector<8x128xf32> to vector<8x1x128xf32>
    %183 = vector.broadcast %182 : vector<8x1x128xf32> to vector<8x8x128xf32>
    %184 = arith.mulf %181, %183 : vector<8x8x128xf32>
    %cst_129 = arith.constant dense<0.000000e+00> : vector<8x128xf32>
    %185 = vector.multi_reduction <add>, %184, %cst_129 [0] : vector<8x8x128xf32> to vector<8x128xf32>
    %c0_130 = arith.constant 0 : index
    %c0_131 = arith.constant 0 : index
    %c4_132 = arith.constant 4 : index
    %c0_133 = arith.constant 0 : index
    %c0_134 = arith.constant 0 : index
    %186 = vector.load %arg5[%c0_130, %c0_131, %c4_132, %c0_133, %c0_134] : memref<2x1x8x8x128xf32, #tpu.memory_space<vmem>>, vector<1x1x1x8x128xf32>
    %187 = vector.shape_cast %186 : vector<1x1x1x8x128xf32> to vector<8x128xf32>
    %188 = vector.shape_cast %185 : vector<8x128xf32> to vector<1x1x1x8x128xf32>
    tpu.vector_store %arg5[%c0_130, %c0_131, %c4_132, %c0_133, %c0_134], %188 {strides = array<i32>} : memref<2x1x8x8x128xf32, #tpu.memory_space<vmem>>, vector<1x1x1x8x128xf32>,
    %189 = vector.extract_strided_slice %138 {offsets = [40, 0], sizes = [8, 128], strides = [1, 1]} : vector<64x128xf32> to vector<8x128xf32>
    %c0_135 = arith.constant 0 : index
    %c5 = arith.constant 5 : index
    %c0_136 = arith.constant 0 : index
    %c0_137 = arith.constant 0 : index
    %c0_138 = arith.constant 0 : index
    %190 = vector.load %arg4[%c0_135, %c5, %c0_136, %c0_137, %c0_138] : memref<1x8x8x8x128xf32, #tpu.memory_space<vmem>>, vector<1x1x8x8x128xf32>
    %191 = vector.shape_cast %190 : vector<1x1x8x8x128xf32> to vector<8x8x128xf32>
    %192 = vector.shape_cast %189 : vector<8x128xf32> to vector<8x1x128xf32>
    %193 = vector.broadcast %192 : vector<8x1x128xf32> to vector<8x8x128xf32>
    %194 = arith.mulf %191, %193 : vector<8x8x128xf32>
    %cst_139 = arith.constant dense<0.000000e+00> : vector<8x128xf32>
    %195 = vector.multi_reduction <add>, %194, %cst_139 [0] : vector<8x8x128xf32> to vector<8x128xf32>
    %c0_140 = arith.constant 0 : index
    %c0_141 = arith.constant 0 : index
    %c5_142 = arith.constant 5 : index
    %c0_143 = arith.constant 0 : index
    %c0_144 = arith.constant 0 : index
    %196 = vector.load %arg5[%c0_140, %c0_141, %c5_142, %c0_143, %c0_144] : memref<2x1x8x8x128xf32, #tpu.memory_space<vmem>>, vector<1x1x1x8x128xf32>
    %197 = vector.shape_cast %196 : vector<1x1x1x8x128xf32> to vector<8x128xf32>
    %198 = vector.shape_cast %195 : vector<8x128xf32> to vector<1x1x1x8x128xf32>
    tpu.vector_store %arg5[%c0_140, %c0_141, %c5_142, %c0_143, %c0_144], %198 {strides = array<i32>} : memref<2x1x8x8x128xf32, #tpu.memory_space<vmem>>, vector<1x1x1x8x128xf32>,
    %199 = vector.extract_strided_slice %138 {offsets = [48, 0], sizes = [8, 128], strides = [1, 1]} : vector<64x128xf32> to vector<8x128xf32>
    %c0_145 = arith.constant 0 : index
    %c6 = arith.constant 6 : index
    %c0_146 = arith.constant 0 : index
    %c0_147 = arith.constant 0 : index
    %c0_148 = arith.constant 0 : index
    %200 = vector.load %arg4[%c0_145, %c6, %c0_146, %c0_147, %c0_148] : memref<1x8x8x8x128xf32, #tpu.memory_space<vmem>>, vector<1x1x8x8x128xf32>
    %201 = vector.shape_cast %200 : vector<1x1x8x8x128xf32> to vector<8x8x128xf32>
    %202 = vector.shape_cast %199 : vector<8x128xf32> to vector<8x1x128xf32>
    %203 = vector.broadcast %202 : vector<8x1x128xf32> to vector<8x8x128xf32>
    %204 = arith.mulf %201, %203 : vector<8x8x128xf32>
    %cst_149 = arith.constant dense<0.000000e+00> : vector<8x128xf32>
    %205 = vector.multi_reduction <add>, %204, %cst_149 [0] : vector<8x8x128xf32> to vector<8x128xf32>
    %c0_150 = arith.constant 0 : index
    %c0_151 = arith.constant 0 : index
    %c6_152 = arith.constant 6 : index
    %c0_153 = arith.constant 0 : index
    %c0_154 = arith.constant 0 : index
    %206 = vector.load %arg5[%c0_150, %c0_151, %c6_152, %c0_153, %c0_154] : memref<2x1x8x8x128xf32, #tpu.memory_space<vmem>>, vector<1x1x1x8x128xf32>
    %207 = vector.shape_cast %206 : vector<1x1x1x8x128xf32> to vector<8x128xf32>
    %208 = vector.shape_cast %205 : vector<8x128xf32> to vector<1x1x1x8x128xf32>
    tpu.vector_store %arg5[%c0_150, %c0_151, %c6_152, %c0_153, %c0_154], %208 {strides = array<i32>} : memref<2x1x8x8x128xf32, #tpu.memory_space<vmem>>, vector<1x1x1x8x128xf32>,
    %209 = vector.extract_strided_slice %138 {offsets = [56, 0], sizes = [8, 128], strides = [1, 1]} : vector<64x128xf32> to vector<8x128xf32>
    %c0_155 = arith.constant 0 : index
    %c7 = arith.constant 7 : index
    %c0_156 = arith.constant 0 : index
    %c0_157 = arith.constant 0 : index
    %c0_158 = arith.constant 0 : index
    %210 = vector.load %arg4[%c0_155, %c7, %c0_156, %c0_157, %c0_158] : memref<1x8x8x8x128xf32, #tpu.memory_space<vmem>>, vector<1x1x8x8x128xf32>
    %211 = vector.shape_cast %210 : vector<1x1x8x8x128xf32> to vector<8x8x128xf32>
    %212 = vector.shape_cast %209 : vector<8x128xf32> to vector<8x1x128xf32>
    %213 = vector.broadcast %212 : vector<8x1x128xf32> to vector<8x8x128xf32>
    %214 = arith.mulf %211, %213 : vector<8x8x128xf32>
    %cst_159 = arith.constant dense<0.000000e+00> : vector<8x128xf32>
    %215 = vector.multi_reduction <add>, %214, %cst_159 [0] : vector<8x8x128xf32> to vector<8x128xf32>
    %c0_160 = arith.constant 0 : index
    %c0_161 = arith.constant 0 : index
    %c7_162 = arith.constant 7 : index
    %c0_163 = arith.constant 0 : index
    %c0_164 = arith.constant 0 : index
    %216 = vector.load %arg5[%c0_160, %c0_161, %c7_162, %c0_163, %c0_164] : memref<2x1x8x8x128xf32, #tpu.memory_space<vmem>>, vector<1x1x1x8x128xf32>
    %217 = vector.shape_cast %216 : vector<1x1x1x8x128xf32> to vector<8x128xf32>
    %218 = vector.shape_cast %215 : vector<8x128xf32> to vector<1x1x1x8x128xf32>
    tpu.vector_store %arg5[%c0_160, %c0_161, %c7_162, %c0_163, %c0_164], %218 {strides = array<i32>} : memref<2x1x8x8x128xf32, #tpu.memory_space<vmem>>, vector<1x1x1x8x128xf32>,
    %c1_165 = arith.constant 1 : index
    %c0_166 = arith.constant 0 : index
    %c0_167 = arith.constant 0 : index
    %c0_168 = arith.constant 0 : index
    %219 = vector.load %arg1[%c1_165, %c0_166, %c0_167, %c0_168] : memref<2x1x64x128xf32, #tpu.memory_space<vmem>>, vector<1x1x8x128xf32>
    %220 = vector.shape_cast %219 : vector<1x1x8x128xf32> to vector<8x128xf32>
    %c1_169 = arith.constant 1 : index
    %c0_170 = arith.constant 0 : index
    %c0_171 = arith.constant 0 : index
    %c0_172 = arith.constant 0 : index
    %221 = vector.load %arg2[%c1_169, %c0_170, %c0_171, %c0_172] : memref<2x1x64x128xf32, #tpu.memory_space<vmem>>, vector<1x1x8x128xf32>
    %222 = vector.shape_cast %221 : vector<1x1x8x128xf32> to vector<8x128xf32>
    "tpu.trace_start"() <{level = 10 : i32, message = "ex,ey->xy"}> : () -> ()
    %cst_173 = arith.constant dense<0.000000e+00> : vector<128x128xf32>
    %223 = tpu.matmul %220, %222, %cst_173 {dimension_numbers = #tpu.dot_dimension_numbers<[0], [0], [1], [1], [0, 1, 1, 1], [], []>} : vector<8x128xf32>, vector<8x128xf32>, vector<128x128xf32> -> vector<128x128xf32>
    "tpu.trace_stop"() : () -> ()
    %224 = math.absf %223 : vector<128x128xf32>
    %cst_174 = arith.constant dense<0xFF800000> : vector<128xf32>
    %225 = vector.multi_reduction <maximumf>, %224, %cst_174 [1] : vector<128x128xf32> to vector<128xf32>
    %226 = vector.shape_cast %225 : vector<128xf32> to vector<128x1xf32>
    %227 = vector.broadcast %226 : vector<128x1xf32> to vector<128x128xf32>
    %228 = arith.subf %224, %227 : vector<128x128xf32>
    %229 = math.exp %228 : vector<128x128xf32>
    %cst_175 = arith.constant dense<0.000000e+00> : vector<128xf32>
    %230 = vector.multi_reduction <add>, %229, %cst_175 [1] : vector<128x128xf32> to vector<128xf32>
    %231 = vector.shape_cast %230 : vector<128xf32> to vector<128x1xf32>
    %232 = tpu.reciprocal %231 {approx = true} : vector<128x1xf32> -> vector<128x1xf32>
    %233 = vector.broadcast %232 : vector<128x1xf32> to vector<128x128xf32>
    %234 = arith.mulf %229, %233 : vector<128x128xf32>
    %c1_176 = arith.constant 1 : index
    %c0_177 = arith.constant 0 : index
    %c8_178 = arith.constant 8 : index
    %c0_179 = arith.constant 0 : index
    %235 = vector.load %arg1[%c1_176, %c0_177, %c8_178, %c0_179] : memref<2x1x64x128xf32, #tpu.memory_space<vmem>>, vector<1x1x8x128xf32>
    %236 = vector.shape_cast %235 : vector<1x1x8x128xf32> to vector<8x128xf32>
    %c1_180 = arith.constant 1 : index
    %c0_181 = arith.constant 0 : index
    %c8_182 = arith.constant 8 : index
    %c0_183 = arith.constant 0 : index
    %237 = vector.load %arg2[%c1_180, %c0_181, %c8_182, %c0_183] : memref<2x1x64x128xf32, #tpu.memory_space<vmem>>, vector<1x1x8x128xf32>
    %238 = vector.shape_cast %237 : vector<1x1x8x128xf32> to vector<8x128xf32>
    "tpu.trace_start"() <{level = 10 : i32, message = "ex,ey->xy"}> : () -> ()
    %cst_184 = arith.constant dense<0.000000e+00> : vector<128x128xf32>
    %239 = tpu.matmul %236, %238, %cst_184 {dimension_numbers = #tpu.dot_dimension_numbers<[0], [0], [1], [1], [0, 1, 1, 1], [], []>} : vector<8x128xf32>, vector<8x128xf32>, vector<128x128xf32> -> vector<128x128xf32>
    "tpu.trace_stop"() : () -> ()
    %240 = math.absf %239 : vector<128x128xf32>
    %cst_185 = arith.constant dense<0xFF800000> : vector<128xf32>
    %241 = vector.multi_reduction <maximumf>, %240, %cst_185 [1] : vector<128x128xf32> to vector<128xf32>
    %242 = vector.shape_cast %241 : vector<128xf32> to vector<128x1xf32>
    %243 = vector.broadcast %242 : vector<128x1xf32> to vector<128x128xf32>
    %244 = arith.subf %240, %243 : vector<128x128xf32>
    %245 = math.exp %244 : vector<128x128xf32>
    %cst_186 = arith.constant dense<0.000000e+00> : vector<128xf32>
    %246 = vector.multi_reduction <add>, %245, %cst_186 [1] : vector<128x128xf32> to vector<128xf32>
    %247 = vector.shape_cast %246 : vector<128xf32> to vector<128x1xf32>
    %248 = tpu.reciprocal %247 {approx = true} : vector<128x1xf32> -> vector<128x1xf32>
    %249 = vector.broadcast %248 : vector<128x1xf32> to vector<128x128xf32>
    %250 = arith.mulf %245, %249 : vector<128x128xf32>
    %251 = arith.addf %234, %250 : vector<128x128xf32>
    %c1_187 = arith.constant 1 : index
    %c0_188 = arith.constant 0 : index
    %c16_189 = arith.constant 16 : index
    %c0_190 = arith.constant 0 : index
    %252 = vector.load %arg1[%c1_187, %c0_188, %c16_189, %c0_190] : memref<2x1x64x128xf32, #tpu.memory_space<vmem>>, vector<1x1x8x128xf32>
    %253 = vector.shape_cast %252 : vector<1x1x8x128xf32> to vector<8x128xf32>
    %c1_191 = arith.constant 1 : index
    %c0_192 = arith.constant 0 : index
    %c16_193 = arith.constant 16 : index
    %c0_194 = arith.constant 0 : index
    %254 = vector.load %arg2[%c1_191, %c0_192, %c16_193, %c0_194] : memref<2x1x64x128xf32, #tpu.memory_space<vmem>>, vector<1x1x8x128xf32>
    %255 = vector.shape_cast %254 : vector<1x1x8x128xf32> to vector<8x128xf32>
    "tpu.trace_start"() <{level = 10 : i32, message = "ex,ey->xy"}> : () -> ()
    %cst_195 = arith.constant dense<0.000000e+00> : vector<128x128xf32>
    %256 = tpu.matmul %253, %255, %cst_195 {dimension_numbers = #tpu.dot_dimension_numbers<[0], [0], [1], [1], [0, 1, 1, 1], [], []>} : vector<8x128xf32>, vector<8x128xf32>, vector<128x128xf32> -> vector<128x128xf32>
    "tpu.trace_stop"() : () -> ()
    %257 = math.absf %256 : vector<128x128xf32>
    %cst_196 = arith.constant dense<0xFF800000> : vector<128xf32>
    %258 = vector.multi_reduction <maximumf>, %257, %cst_196 [1] : vector<128x128xf32> to vector<128xf32>
    %259 = vector.shape_cast %258 : vector<128xf32> to vector<128x1xf32>
    %260 = vector.broadcast %259 : vector<128x1xf32> to vector<128x128xf32>
    %261 = arith.subf %257, %260 : vector<128x128xf32>
    %262 = math.exp %261 : vector<128x128xf32>
    %cst_197 = arith.constant dense<0.000000e+00> : vector<128xf32>
    %263 = vector.multi_reduction <add>, %262, %cst_197 [1] : vector<128x128xf32> to vector<128xf32>
    %264 = vector.shape_cast %263 : vector<128xf32> to vector<128x1xf32>
    %265 = tpu.reciprocal %264 {approx = true} : vector<128x1xf32> -> vector<128x1xf32>
    %266 = vector.broadcast %265 : vector<128x1xf32> to vector<128x128xf32>
    %267 = arith.mulf %262, %266 : vector<128x128xf32>
    %268 = arith.addf %251, %267 : vector<128x128xf32>
    %c1_198 = arith.constant 1 : index
    %c0_199 = arith.constant 0 : index
    %c24_200 = arith.constant 24 : index
    %c0_201 = arith.constant 0 : index
    %269 = vector.load %arg1[%c1_198, %c0_199, %c24_200, %c0_201] : memref<2x1x64x128xf32, #tpu.memory_space<vmem>>, vector<1x1x8x128xf32>
    %270 = vector.shape_cast %269 : vector<1x1x8x128xf32> to vector<8x128xf32>
    %c1_202 = arith.constant 1 : index
    %c0_203 = arith.constant 0 : index
    %c24_204 = arith.constant 24 : index
    %c0_205 = arith.constant 0 : index
    %271 = vector.load %arg2[%c1_202, %c0_203, %c24_204, %c0_205] : memref<2x1x64x128xf32, #tpu.memory_space<vmem>>, vector<1x1x8x128xf32>
    %272 = vector.shape_cast %271 : vector<1x1x8x128xf32> to vector<8x128xf32>
    "tpu.trace_start"() <{level = 10 : i32, message = "ex,ey->xy"}> : () -> ()
    %cst_206 = arith.constant dense<0.000000e+00> : vector<128x128xf32>
    %273 = tpu.matmul %270, %272, %cst_206 {dimension_numbers = #tpu.dot_dimension_numbers<[0], [0], [1], [1], [0, 1, 1, 1], [], []>} : vector<8x128xf32>, vector<8x128xf32>, vector<128x128xf32> -> vector<128x128xf32>
    "tpu.trace_stop"() : () -> ()
    %274 = math.absf %273 : vector<128x128xf32>
    %cst_207 = arith.constant dense<0xFF800000> : vector<128xf32>
    %275 = vector.multi_reduction <maximumf>, %274, %cst_207 [1] : vector<128x128xf32> to vector<128xf32>
    %276 = vector.shape_cast %275 : vector<128xf32> to vector<128x1xf32>
    %277 = vector.broadcast %276 : vector<128x1xf32> to vector<128x128xf32>
    %278 = arith.subf %274, %277 : vector<128x128xf32>
    %279 = math.exp %278 : vector<128x128xf32>
    %cst_208 = arith.constant dense<0.000000e+00> : vector<128xf32>
    %280 = vector.multi_reduction <add>, %279, %cst_208 [1] : vector<128x128xf32> to vector<128xf32>
    %281 = vector.shape_cast %280 : vector<128xf32> to vector<128x1xf32>
    %282 = tpu.reciprocal %281 {approx = true} : vector<128x1xf32> -> vector<128x1xf32>
    %283 = vector.broadcast %282 : vector<128x1xf32> to vector<128x128xf32>
    %284 = arith.mulf %279, %283 : vector<128x128xf32>
    %285 = arith.addf %268, %284 : vector<128x128xf32>
    %c1_209 = arith.constant 1 : index
    %c0_210 = arith.constant 0 : index
    %c32_211 = arith.constant 32 : index
    %c0_212 = arith.constant 0 : index
    %286 = vector.load %arg1[%c1_209, %c0_210, %c32_211, %c0_212] : memref<2x1x64x128xf32, #tpu.memory_space<vmem>>, vector<1x1x8x128xf32>
    %287 = vector.shape_cast %286 : vector<1x1x8x128xf32> to vector<8x128xf32>
    %c1_213 = arith.constant 1 : index
    %c0_214 = arith.constant 0 : index
    %c32_215 = arith.constant 32 : index
    %c0_216 = arith.constant 0 : index
    %288 = vector.load %arg2[%c1_213, %c0_214, %c32_215, %c0_216] : memref<2x1x64x128xf32, #tpu.memory_space<vmem>>, vector<1x1x8x128xf32>
    %289 = vector.shape_cast %288 : vector<1x1x8x128xf32> to vector<8x128xf32>
    "tpu.trace_start"() <{level = 10 : i32, message = "ex,ey->xy"}> : () -> ()
    %cst_217 = arith.constant dense<0.000000e+00> : vector<128x128xf32>
    %290 = tpu.matmul %287, %289, %cst_217 {dimension_numbers = #tpu.dot_dimension_numbers<[0], [0], [1], [1], [0, 1, 1, 1], [], []>} : vector<8x128xf32>, vector<8x128xf32>, vector<128x128xf32> -> vector<128x128xf32>
    "tpu.trace_stop"() : () -> ()
    %291 = math.absf %290 : vector<128x128xf32>
    %cst_218 = arith.constant dense<0xFF800000> : vector<128xf32>
    %292 = vector.multi_reduction <maximumf>, %291, %cst_218 [1] : vector<128x128xf32> to vector<128xf32>
    %293 = vector.shape_cast %292 : vector<128xf32> to vector<128x1xf32>
    %294 = vector.broadcast %293 : vector<128x1xf32> to vector<128x128xf32>
    %295 = arith.subf %291, %294 : vector<128x128xf32>
    %296 = math.exp %295 : vector<128x128xf32>
    %cst_219 = arith.constant dense<0.000000e+00> : vector<128xf32>
    %297 = vector.multi_reduction <add>, %296, %cst_219 [1] : vector<128x128xf32> to vector<128xf32>
    %298 = vector.shape_cast %297 : vector<128xf32> to vector<128x1xf32>
    %299 = tpu.reciprocal %298 {approx = true} : vector<128x1xf32> -> vector<128x1xf32>
    %300 = vector.broadcast %299 : vector<128x1xf32> to vector<128x128xf32>
    %301 = arith.mulf %296, %300 : vector<128x128xf32>
    %302 = arith.addf %285, %301 : vector<128x128xf32>
    %c1_220 = arith.constant 1 : index
    %c0_221 = arith.constant 0 : index
    %c40_222 = arith.constant 40 : index
    %c0_223 = arith.constant 0 : index
    %303 = vector.load %arg1[%c1_220, %c0_221, %c40_222, %c0_223] : memref<2x1x64x128xf32, #tpu.memory_space<vmem>>, vector<1x1x8x128xf32>
    %304 = vector.shape_cast %303 : vector<1x1x8x128xf32> to vector<8x128xf32>
    %c1_224 = arith.constant 1 : index
    %c0_225 = arith.constant 0 : index
    %c40_226 = arith.constant 40 : index
    %c0_227 = arith.constant 0 : index
    %305 = vector.load %arg2[%c1_224, %c0_225, %c40_226, %c0_227] : memref<2x1x64x128xf32, #tpu.memory_space<vmem>>, vector<1x1x8x128xf32>
    %306 = vector.shape_cast %305 : vector<1x1x8x128xf32> to vector<8x128xf32>
    "tpu.trace_start"() <{level = 10 : i32, message = "ex,ey->xy"}> : () -> ()
    %cst_228 = arith.constant dense<0.000000e+00> : vector<128x128xf32>
    %307 = tpu.matmul %304, %306, %cst_228 {dimension_numbers = #tpu.dot_dimension_numbers<[0], [0], [1], [1], [0, 1, 1, 1], [], []>} : vector<8x128xf32>, vector<8x128xf32>, vector<128x128xf32> -> vector<128x128xf32>
    "tpu.trace_stop"() : () -> ()
    %308 = math.absf %307 : vector<128x128xf32>
    %cst_229 = arith.constant dense<0xFF800000> : vector<128xf32>
    %309 = vector.multi_reduction <maximumf>, %308, %cst_229 [1] : vector<128x128xf32> to vector<128xf32>
    %310 = vector.shape_cast %309 : vector<128xf32> to vector<128x1xf32>
    %311 = vector.broadcast %310 : vector<128x1xf32> to vector<128x128xf32>
    %312 = arith.subf %308, %311 : vector<128x128xf32>
    %313 = math.exp %312 : vector<128x128xf32>
    %cst_230 = arith.constant dense<0.000000e+00> : vector<128xf32>
    %314 = vector.multi_reduction <add>, %313, %cst_230 [1] : vector<128x128xf32> to vector<128xf32>
    %315 = vector.shape_cast %314 : vector<128xf32> to vector<128x1xf32>
    %316 = tpu.reciprocal %315 {approx = true} : vector<128x1xf32> -> vector<128x1xf32>
    %317 = vector.broadcast %316 : vector<128x1xf32> to vector<128x128xf32>
    %318 = arith.mulf %313, %317 : vector<128x128xf32>
    %319 = arith.addf %302, %318 : vector<128x128xf32>
    %c1_231 = arith.constant 1 : index
    %c0_232 = arith.constant 0 : index
    %c48_233 = arith.constant 48 : index
    %c0_234 = arith.constant 0 : index
    %320 = vector.load %arg1[%c1_231, %c0_232, %c48_233, %c0_234] : memref<2x1x64x128xf32, #tpu.memory_space<vmem>>, vector<1x1x8x128xf32>
    %321 = vector.shape_cast %320 : vector<1x1x8x128xf32> to vector<8x128xf32>
    %c1_235 = arith.constant 1 : index
    %c0_236 = arith.constant 0 : index
    %c48_237 = arith.constant 48 : index
    %c0_238 = arith.constant 0 : index
    %322 = vector.load %arg2[%c1_235, %c0_236, %c48_237, %c0_238] : memref<2x1x64x128xf32, #tpu.memory_space<vmem>>, vector<1x1x8x128xf32>
    %323 = vector.shape_cast %322 : vector<1x1x8x128xf32> to vector<8x128xf32>
    "tpu.trace_start"() <{level = 10 : i32, message = "ex,ey->xy"}> : () -> ()
    %cst_239 = arith.constant dense<0.000000e+00> : vector<128x128xf32>
    %324 = tpu.matmul %321, %323, %cst_239 {dimension_numbers = #tpu.dot_dimension_numbers<[0], [0], [1], [1], [0, 1, 1, 1], [], []>} : vector<8x128xf32>, vector<8x128xf32>, vector<128x128xf32> -> vector<128x128xf32>
    "tpu.trace_stop"() : () -> ()
    %325 = math.absf %324 : vector<128x128xf32>
    %cst_240 = arith.constant dense<0xFF800000> : vector<128xf32>
    %326 = vector.multi_reduction <maximumf>, %325, %cst_240 [1] : vector<128x128xf32> to vector<128xf32>
    %327 = vector.shape_cast %326 : vector<128xf32> to vector<128x1xf32>
    %328 = vector.broadcast %327 : vector<128x1xf32> to vector<128x128xf32>
    %329 = arith.subf %325, %328 : vector<128x128xf32>
    %330 = math.exp %329 : vector<128x128xf32>
    %cst_241 = arith.constant dense<0.000000e+00> : vector<128xf32>
    %331 = vector.multi_reduction <add>, %330, %cst_241 [1] : vector<128x128xf32> to vector<128xf32>
    %332 = vector.shape_cast %331 : vector<128xf32> to vector<128x1xf32>
    %333 = tpu.reciprocal %332 {approx = true} : vector<128x1xf32> -> vector<128x1xf32>
    %334 = vector.broadcast %333 : vector<128x1xf32> to vector<128x128xf32>
    %335 = arith.mulf %330, %334 : vector<128x128xf32>
    %336 = arith.addf %319, %335 : vector<128x128xf32>
    %c1_242 = arith.constant 1 : index
    %c0_243 = arith.constant 0 : index
    %c56_244 = arith.constant 56 : index
    %c0_245 = arith.constant 0 : index
    %337 = vector.load %arg1[%c1_242, %c0_243, %c56_244, %c0_245] : memref<2x1x64x128xf32, #tpu.memory_space<vmem>>, vector<1x1x8x128xf32>
    %338 = vector.shape_cast %337 : vector<1x1x8x128xf32> to vector<8x128xf32>
    %c1_246 = arith.constant 1 : index
    %c0_247 = arith.constant 0 : index
    %c56_248 = arith.constant 56 : index
    %c0_249 = arith.constant 0 : index
    %339 = vector.load %arg2[%c1_246, %c0_247, %c56_248, %c0_249] : memref<2x1x64x128xf32, #tpu.memory_space<vmem>>, vector<1x1x8x128xf32>
    %340 = vector.shape_cast %339 : vector<1x1x8x128xf32> to vector<8x128xf32>
    "tpu.trace_start"() <{level = 10 : i32, message = "ex,ey->xy"}> : () -> ()
    %cst_250 = arith.constant dense<0.000000e+00> : vector<128x128xf32>
    %341 = tpu.matmul %338, %340, %cst_250 {dimension_numbers = #tpu.dot_dimension_numbers<[0], [0], [1], [1], [0, 1, 1, 1], [], []>} : vector<8x128xf32>, vector<8x128xf32>, vector<128x128xf32> -> vector<128x128xf32>
    "tpu.trace_stop"() : () -> ()
    %342 = math.absf %341 : vector<128x128xf32>
    %cst_251 = arith.constant dense<0xFF800000> : vector<128xf32>
    %343 = vector.multi_reduction <maximumf>, %342, %cst_251 [1] : vector<128x128xf32> to vector<128xf32>
    %344 = vector.shape_cast %343 : vector<128xf32> to vector<128x1xf32>
    %345 = vector.broadcast %344 : vector<128x1xf32> to vector<128x128xf32>
    %346 = arith.subf %342, %345 : vector<128x128xf32>
    %347 = math.exp %346 : vector<128x128xf32>
    %cst_252 = arith.constant dense<0.000000e+00> : vector<128xf32>
    %348 = vector.multi_reduction <add>, %347, %cst_252 [1] : vector<128x128xf32> to vector<128xf32>
    %349 = vector.shape_cast %348 : vector<128xf32> to vector<128x1xf32>
    %350 = tpu.reciprocal %349 {approx = true} : vector<128x1xf32> -> vector<128x1xf32>
    %351 = vector.broadcast %350 : vector<128x1xf32> to vector<128x128xf32>
    %352 = arith.mulf %347, %351 : vector<128x128xf32>
    %353 = arith.addf %336, %352 : vector<128x128xf32>
    %c1_253 = arith.constant 1 : index
    %c0_254 = arith.constant 0 : index
    %c0_255 = arith.constant 0 : index
    %c0_256 = arith.constant 0 : index
    %354 = vector.load %arg3[%c1_253, %c0_254, %c0_255, %c0_256] : memref<2x1x128x64xf32, #tpu.memory_space<vmem>>, vector<1x1x128x64xf32>
    %355 = vector.shape_cast %354 : vector<1x1x128x64xf32> to vector<128x64xf32>
    %cst_257 = arith.constant dense<0.000000e+00> : vector<128x64xf32>
    %356 = tpu.matmul %353, %355, %cst_257 {dimension_numbers = #tpu.dot_dimension_numbers<[1], [0], [0], [1], [0, 0, 1, 1], [], []>} : vector<128x128xf32>, vector<128x64xf32>, vector<128x64xf32> -> vector<128x64xf32>
    %357 = tpu.transpose %356, [1, 0] : vector<128x64xf32> -> vector<64x128xf32>
    %358 = vector.extract_strided_slice %357 {offsets = [0, 0], sizes = [8, 128], strides = [1, 1]} : vector<64x128xf32> to vector<8x128xf32>
    %c0_258 = arith.constant 0 : index
    %c0_259 = arith.constant 0 : index
    %c0_260 = arith.constant 0 : index
    %c0_261 = arith.constant 0 : index
    %c0_262 = arith.constant 0 : index
    %359 = vector.load %arg4[%c0_258, %c0_259, %c0_260, %c0_261, %c0_262] : memref<1x8x8x8x128xf32, #tpu.memory_space<vmem>>, vector<1x1x8x8x128xf32>
    %360 = vector.shape_cast %359 : vector<1x1x8x8x128xf32> to vector<8x8x128xf32>
    %361 = vector.shape_cast %358 : vector<8x128xf32> to vector<8x1x128xf32>
    %362 = vector.broadcast %361 : vector<8x1x128xf32> to vector<8x8x128xf32>
    %363 = arith.mulf %360, %362 : vector<8x8x128xf32>
    %cst_263 = arith.constant dense<0.000000e+00> : vector<8x128xf32>
    %364 = vector.multi_reduction <add>, %363, %cst_263 [0] : vector<8x8x128xf32> to vector<8x128xf32>
    %c1_264 = arith.constant 1 : index
    %c0_265 = arith.constant 0 : index
    %c0_266 = arith.constant 0 : index
    %c0_267 = arith.constant 0 : index
    %c0_268 = arith.constant 0 : index
    %365 = vector.load %arg5[%c1_264, %c0_265, %c0_266, %c0_267, %c0_268] : memref<2x1x8x8x128xf32, #tpu.memory_space<vmem>>, vector<1x1x1x8x128xf32>
    %366 = vector.shape_cast %365 : vector<1x1x1x8x128xf32> to vector<8x128xf32>
    %367 = vector.shape_cast %364 : vector<8x128xf32> to vector<1x1x1x8x128xf32>
    tpu.vector_store %arg5[%c1_264, %c0_265, %c0_266, %c0_267, %c0_268], %367 {strides = array<i32>} : memref<2x1x8x8x128xf32, #tpu.memory_space<vmem>>, vector<1x1x1x8x128xf32>,
    %368 = vector.extract_strided_slice %357 {offsets = [8, 0], sizes = [8, 128], strides = [1, 1]} : vector<64x128xf32> to vector<8x128xf32>
    %c0_269 = arith.constant 0 : index
    %c1_270 = arith.constant 1 : index
    %c0_271 = arith.constant 0 : index
    %c0_272 = arith.constant 0 : index
    %c0_273 = arith.constant 0 : index
    %369 = vector.load %arg4[%c0_269, %c1_270, %c0_271, %c0_272, %c0_273] : memref<1x8x8x8x128xf32, #tpu.memory_space<vmem>>, vector<1x1x8x8x128xf32>
    %370 = vector.shape_cast %369 : vector<1x1x8x8x128xf32> to vector<8x8x128xf32>
    %371 = vector.shape_cast %368 : vector<8x128xf32> to vector<8x1x128xf32>
    %372 = vector.broadcast %371 : vector<8x1x128xf32> to vector<8x8x128xf32>
    %373 = arith.mulf %370, %372 : vector<8x8x128xf32>
    %cst_274 = arith.constant dense<0.000000e+00> : vector<8x128xf32>
    %374 = vector.multi_reduction <add>, %373, %cst_274 [0] : vector<8x8x128xf32> to vector<8x128xf32>
    %c1_275 = arith.constant 1 : index
    %c0_276 = arith.constant 0 : index
    %c1_277 = arith.constant 1 : index
    %c0_278 = arith.constant 0 : index
    %c0_279 = arith.constant 0 : index
    %375 = vector.load %arg5[%c1_275, %c0_276, %c1_277, %c0_278, %c0_279] : memref<2x1x8x8x128xf32, #tpu.memory_space<vmem>>, vector<1x1x1x8x128xf32>
    %376 = vector.shape_cast %375 : vector<1x1x1x8x128xf32> to vector<8x128xf32>
    %377 = vector.shape_cast %374 : vector<8x128xf32> to vector<1x1x1x8x128xf32>
    tpu.vector_store %arg5[%c1_275, %c0_276, %c1_277, %c0_278, %c0_279], %377 {strides = array<i32>} : memref<2x1x8x8x128xf32, #tpu.memory_space<vmem>>, vector<1x1x1x8x128xf32>,
    %378 = vector.extract_strided_slice %357 {offsets = [16, 0], sizes = [8, 128], strides = [1, 1]} : vector<64x128xf32> to vector<8x128xf32>
    %c0_280 = arith.constant 0 : index
    %c2_281 = arith.constant 2 : index
    %c0_282 = arith.constant 0 : index
    %c0_283 = arith.constant 0 : index
    %c0_284 = arith.constant 0 : index
    %379 = vector.load %arg4[%c0_280, %c2_281, %c0_282, %c0_283, %c0_284] : memref<1x8x8x8x128xf32, #tpu.memory_space<vmem>>, vector<1x1x8x8x128xf32>
    %380 = vector.shape_cast %379 : vector<1x1x8x8x128xf32> to vector<8x8x128xf32>
    %381 = vector.shape_cast %378 : vector<8x128xf32> to vector<8x1x128xf32>
    %382 = vector.broadcast %381 : vector<8x1x128xf32> to vector<8x8x128xf32>
    %383 = arith.mulf %380, %382 : vector<8x8x128xf32>
    %cst_285 = arith.constant dense<0.000000e+00> : vector<8x128xf32>
    %384 = vector.multi_reduction <add>, %383, %cst_285 [0] : vector<8x8x128xf32> to vector<8x128xf32>
    %c1_286 = arith.constant 1 : index
    %c0_287 = arith.constant 0 : index
    %c2_288 = arith.constant 2 : index
    %c0_289 = arith.constant 0 : index
    %c0_290 = arith.constant 0 : index
    %385 = vector.load %arg5[%c1_286, %c0_287, %c2_288, %c0_289, %c0_290] : memref<2x1x8x8x128xf32, #tpu.memory_space<vmem>>, vector<1x1x1x8x128xf32>
    %386 = vector.shape_cast %385 : vector<1x1x1x8x128xf32> to vector<8x128xf32>
    %387 = vector.shape_cast %384 : vector<8x128xf32> to vector<1x1x1x8x128xf32>
    tpu.vector_store %arg5[%c1_286, %c0_287, %c2_288, %c0_289, %c0_290], %387 {strides = array<i32>} : memref<2x1x8x8x128xf32, #tpu.memory_space<vmem>>, vector<1x1x1x8x128xf32>,
    %388 = vector.extract_strided_slice %357 {offsets = [24, 0], sizes = [8, 128], strides = [1, 1]} : vector<64x128xf32> to vector<8x128xf32>
    %c0_291 = arith.constant 0 : index
    %c3_292 = arith.constant 3 : index
    %c0_293 = arith.constant 0 : index
    %c0_294 = arith.constant 0 : index
    %c0_295 = arith.constant 0 : index
    %389 = vector.load %arg4[%c0_291, %c3_292, %c0_293, %c0_294, %c0_295] : memref<1x8x8x8x128xf32, #tpu.memory_space<vmem>>, vector<1x1x8x8x128xf32>
    %390 = vector.shape_cast %389 : vector<1x1x8x8x128xf32> to vector<8x8x128xf32>
    %391 = vector.shape_cast %388 : vector<8x128xf32> to vector<8x1x128xf32>
    %392 = vector.broadcast %391 : vector<8x1x128xf32> to vector<8x8x128xf32>
    %393 = arith.mulf %390, %392 : vector<8x8x128xf32>
    %cst_296 = arith.constant dense<0.000000e+00> : vector<8x128xf32>
    %394 = vector.multi_reduction <add>, %393, %cst_296 [0] : vector<8x8x128xf32> to vector<8x128xf32>
    %c1_297 = arith.constant 1 : index
    %c0_298 = arith.constant 0 : index
    %c3_299 = arith.constant 3 : index
    %c0_300 = arith.constant 0 : index
    %c0_301 = arith.constant 0 : index
    %395 = vector.load %arg5[%c1_297, %c0_298, %c3_299, %c0_300, %c0_301] : memref<2x1x8x8x128xf32, #tpu.memory_space<vmem>>, vector<1x1x1x8x128xf32>
    %396 = vector.shape_cast %395 : vector<1x1x1x8x128xf32> to vector<8x128xf32>
    %397 = vector.shape_cast %394 : vector<8x128xf32> to vector<1x1x1x8x128xf32>
    tpu.vector_store %arg5[%c1_297, %c0_298, %c3_299, %c0_300, %c0_301], %397 {strides = array<i32>} : memref<2x1x8x8x128xf32, #tpu.memory_space<vmem>>, vector<1x1x1x8x128xf32>,
    %398 = vector.extract_strided_slice %357 {offsets = [32, 0], sizes = [8, 128], strides = [1, 1]} : vector<64x128xf32> to vector<8x128xf32>
    %c0_302 = arith.constant 0 : index
    %c4_303 = arith.constant 4 : index
    %c0_304 = arith.constant 0 : index
    %c0_305 = arith.constant 0 : index
    %c0_306 = arith.constant 0 : index
    %399 = vector.load %arg4[%c0_302, %c4_303, %c0_304, %c0_305, %c0_306] : memref<1x8x8x8x128xf32, #tpu.memory_space<vmem>>, vector<1x1x8x8x128xf32>
    %400 = vector.shape_cast %399 : vector<1x1x8x8x128xf32> to vector<8x8x128xf32>
    %401 = vector.shape_cast %398 : vector<8x128xf32> to vector<8x1x128xf32>
    %402 = vector.broadcast %401 : vector<8x1x128xf32> to vector<8x8x128xf32>
    %403 = arith.mulf %400, %402 : vector<8x8x128xf32>
    %cst_307 = arith.constant dense<0.000000e+00> : vector<8x128xf32>
    %404 = vector.multi_reduction <add>, %403, %cst_307 [0] : vector<8x8x128xf32> to vector<8x128xf32>
    %c1_308 = arith.constant 1 : index
    %c0_309 = arith.constant 0 : index
    %c4_310 = arith.constant 4 : index
    %c0_311 = arith.constant 0 : index
    %c0_312 = arith.constant 0 : index
    %405 = vector.load %arg5[%c1_308, %c0_309, %c4_310, %c0_311, %c0_312] : memref<2x1x8x8x128xf32, #tpu.memory_space<vmem>>, vector<1x1x1x8x128xf32>
    %406 = vector.shape_cast %405 : vector<1x1x1x8x128xf32> to vector<8x128xf32>
    %407 = vector.shape_cast %404 : vector<8x128xf32> to vector<1x1x1x8x128xf32>
    tpu.vector_store %arg5[%c1_308, %c0_309, %c4_310, %c0_311, %c0_312], %407 {strides = array<i32>} : memref<2x1x8x8x128xf32, #tpu.memory_space<vmem>>, vector<1x1x1x8x128xf32>,
    %408 = vector.extract_strided_slice %357 {offsets = [40, 0], sizes = [8, 128], strides = [1, 1]} : vector<64x128xf32> to vector<8x128xf32>
    %c0_313 = arith.constant 0 : index
    %c5_314 = arith.constant 5 : index
    %c0_315 = arith.constant 0 : index
    %c0_316 = arith.constant 0 : index
    %c0_317 = arith.constant 0 : index
    %409 = vector.load %arg4[%c0_313, %c5_314, %c0_315, %c0_316, %c0_317] : memref<1x8x8x8x128xf32, #tpu.memory_space<vmem>>, vector<1x1x8x8x128xf32>
    %410 = vector.shape_cast %409 : vector<1x1x8x8x128xf32> to vector<8x8x128xf32>
    %411 = vector.shape_cast %408 : vector<8x128xf32> to vector<8x1x128xf32>
    %412 = vector.broadcast %411 : vector<8x1x128xf32> to vector<8x8x128xf32>
    %413 = arith.mulf %410, %412 : vector<8x8x128xf32>
    %cst_318 = arith.constant dense<0.000000e+00> : vector<8x128xf32>
    %414 = vector.multi_reduction <add>, %413, %cst_318 [0] : vector<8x8x128xf32> to vector<8x128xf32>
    %c1_319 = arith.constant 1 : index
    %c0_320 = arith.constant 0 : index
    %c5_321 = arith.constant 5 : index
    %c0_322 = arith.constant 0 : index
    %c0_323 = arith.constant 0 : index
    %415 = vector.load %arg5[%c1_319, %c0_320, %c5_321, %c0_322, %c0_323] : memref<2x1x8x8x128xf32, #tpu.memory_space<vmem>>, vector<1x1x1x8x128xf32>
    %416 = vector.shape_cast %415 : vector<1x1x1x8x128xf32> to vector<8x128xf32>
    %417 = vector.shape_cast %414 : vector<8x128xf32> to vector<1x1x1x8x128xf32>
    tpu.vector_store %arg5[%c1_319, %c0_320, %c5_321, %c0_322, %c0_323], %417 {strides = array<i32>} : memref<2x1x8x8x128xf32, #tpu.memory_space<vmem>>, vector<1x1x1x8x128xf32>,
    %418 = vector.extract_strided_slice %357 {offsets = [48, 0], sizes = [8, 128], strides = [1, 1]} : vector<64x128xf32> to vector<8x128xf32>
    %c0_324 = arith.constant 0 : index
    %c6_325 = arith.constant 6 : index
    %c0_326 = arith.constant 0 : index
    %c0_327 = arith.constant 0 : index
    %c0_328 = arith.constant 0 : index
    %419 = vector.load %arg4[%c0_324, %c6_325, %c0_326, %c0_327, %c0_328] : memref<1x8x8x8x128xf32, #tpu.memory_space<vmem>>, vector<1x1x8x8x128xf32>
    %420 = vector.shape_cast %419 : vector<1x1x8x8x128xf32> to vector<8x8x128xf32>
    %421 = vector.shape_cast %418 : vector<8x128xf32> to vector<8x1x128xf32>
    %422 = vector.broadcast %421 : vector<8x1x128xf32> to vector<8x8x128xf32>
    %423 = arith.mulf %420, %422 : vector<8x8x128xf32>
    %cst_329 = arith.constant dense<0.000000e+00> : vector<8x128xf32>
    %424 = vector.multi_reduction <add>, %423, %cst_329 [0] : vector<8x8x128xf32> to vector<8x128xf32>
    %c1_330 = arith.constant 1 : index
    %c0_331 = arith.constant 0 : index
    %c6_332 = arith.constant 6 : index
    %c0_333 = arith.constant 0 : index
    %c0_334 = arith.constant 0 : index
    %425 = vector.load %arg5[%c1_330, %c0_331, %c6_332, %c0_333, %c0_334] : memref<2x1x8x8x128xf32, #tpu.memory_space<vmem>>, vector<1x1x1x8x128xf32>
    %426 = vector.shape_cast %425 : vector<1x1x1x8x128xf32> to vector<8x128xf32>
    %427 = vector.shape_cast %424 : vector<8x128xf32> to vector<1x1x1x8x128xf32>
    tpu.vector_store %arg5[%c1_330, %c0_331, %c6_332, %c0_333, %c0_334], %427 {strides = array<i32>} : memref<2x1x8x8x128xf32, #tpu.memory_space<vmem>>, vector<1x1x1x8x128xf32>,
    %428 = vector.extract_strided_slice %357 {offsets = [56, 0], sizes = [8, 128], strides = [1, 1]} : vector<64x128xf32> to vector<8x128xf32>
    %c0_335 = arith.constant 0 : index
    %c7_336 = arith.constant 7 : index
    %c0_337 = arith.constant 0 : index
    %c0_338 = arith.constant 0 : index
    %c0_339 = arith.constant 0 : index
    %429 = vector.load %arg4[%c0_335, %c7_336, %c0_337, %c0_338, %c0_339] : memref<1x8x8x8x128xf32, #tpu.memory_space<vmem>>, vector<1x1x8x8x128xf32>
    %430 = vector.shape_cast %429 : vector<1x1x8x8x128xf32> to vector<8x8x128xf32>
    %431 = vector.shape_cast %428 : vector<8x128xf32> to vector<8x1x128xf32>
    %432 = vector.broadcast %431 : vector<8x1x128xf32> to vector<8x8x128xf32>
    %433 = arith.mulf %430, %432 : vector<8x8x128xf32>
    %cst_340 = arith.constant dense<0.000000e+00> : vector<8x128xf32>
    %434 = vector.multi_reduction <add>, %433, %cst_340 [0] : vector<8x8x128xf32> to vector<8x128xf32>
    %c1_341 = arith.constant 1 : index
    %c0_342 = arith.constant 0 : index
    %c7_343 = arith.constant 7 : index
    %c0_344 = arith.constant 0 : index
    %c0_345 = arith.constant 0 : index
    %435 = vector.load %arg5[%c1_341, %c0_342, %c7_343, %c0_344, %c0_345] : memref<2x1x8x8x128xf32, #tpu.memory_space<vmem>>, vector<1x1x1x8x128xf32>
    %436 = vector.shape_cast %435 : vector<1x1x1x8x128xf32> to vector<8x128xf32>
    %437 = vector.shape_cast %434 : vector<8x128xf32> to vector<1x1x1x8x128xf32>
    tpu.vector_store %arg5[%c1_341, %c0_342, %c7_343, %c0_344, %c0_345], %437 {strides = array<i32>} : memref<2x1x8x8x128xf32, #tpu.memory_space<vmem>>, vector<1x1x1x8x128xf32>,
    return
  }
  func.func @transform_0(%arg0: i32) -> (i32, i32, i32, i32) {
    %c0_i32 = arith.constant 0 : i32
    %c0_i32_0 = arith.constant 0 : i32
    %c0_i32_1 = arith.constant 0 : i32
    %c0_i32_2 = arith.constant 0 : i32
    return %c0_i32, %arg0, %c0_i32_0, %c0_i32_1 : i32, i32, i32, i32
  }
  func.func @transform_1(%arg0: i32) -> (i32, i32, i32, i32) {
    %c0_i32 = arith.constant 0 : i32
    %c0_i32_0 = arith.constant 0 : i32
    %c0_i32_1 = arith.constant 0 : i32
    %c0_i32_2 = arith.constant 0 : i32
    return %c0_i32, %arg0, %c0_i32_0, %c0_i32_1 : i32, i32, i32, i32
  }
  func.func @transform_2(%arg0: i32) -> (i32, i32, i32, i32) {
    %c0_i32 = arith.constant 0 : i32
    %c0_i32_0 = arith.constant 0 : i32
    %c0_i32_1 = arith.constant 0 : i32
    %c0_i32_2 = arith.constant 0 : i32
    return %c0_i32, %arg0, %c0_i32_0, %c0_i32_1 : i32, i32, i32, i32
  }
  func.func @transform_3(%arg0: i32) -> (i32, i32, i32, i32, i32) {
    %c0_i32 = arith.constant 0 : i32
    %c0_i32_0 = arith.constant 0 : i32
    %c0_i32_1 = arith.constant 0 : i32
    %c0_i32_2 = arith.constant 0 : i32
    %c0_i32_3 = arith.constant 0 : i32
    return %arg0, %c0_i32, %c0_i32_0, %c0_i32_1, %c0_i32_2 : i32, i32, i32, i32, i32
  }
  func.func @transform_4(%arg0: i32) -> (i32, i32, i32, i32, i32) {
    %c0_i32 = arith.constant 0 : i32
    %c0_i32_0 = arith.constant 0 : i32
    %c0_i32_1 = arith.constant 0 : i32
    %c0_i32_2 = arith.constant 0 : i32
    %c0_i32_3 = arith.constant 0 : i32
    return %c0_i32, %arg0, %c0_i32_0, %c0_i32_1, %c0_i32_2 : i32, i32, i32, i32, i32
  }
}

</mosaic_0001>

<llo_original>
// kernel: tpu_custom_call.1
$region0: #{tpu_custom_call.1}
  #allocation0 [shape = 'u32[]', space=smem, size = 0x4, offset = 0x4, fixed_abs, tag = 'smem constant byte address 0x4 - core index']
  #allocation1 [shape = 'u32[144,128]{1,0:T(1,128)}', space=vmem, size = 0x12000, scoped, tag = 'internal scratch']
  #allocation9 [shape = 's32[]', space=sflag, size = 0x4, offset = 0, fixed_abs, tag = 'sflag constant byte address 0x0 - dummy sync flag']
  %s0 = inlined_call_operand.vmem [shape: f32[2,4,64,128], index: 0, kind: input, shape index: {}]
  %s1 = inlined_call_operand.vmem [shape: f32[2,4,64,128], index: 1, kind: input, shape index: {}]
  %s2 = inlined_call_operand.vmem [shape: f32[2,4,128,64], index: 2, kind: input, shape index: {}]
  %s3 = inlined_call_operand.hbm [shape: f32[4,8,8,8,128], index: 3, kind: input, shape index: {}]
  %s4 = inlined_call_operand.hbm [shape: f32[2,4,8,8,128], index: 4, kind: output, shape index: {}]
  %s5 = sld [smem:[#allocation0]]
  $region167: #{tpu_custom_call.1} parent=0
    _
  %s7 = ssub.s32 1, %s5
  %s8 = scalar_select 0, %s7, %s5
  $region1: #{tpu_custom_call.1} parent=0
    #allocation2 [shape = 'u8[131072]{0}', space=vmem, size = 0x20000, scoped, tag = 'input window, operand 0']
    #allocation3 [shape = 'u8[131072]{0}', space=vmem, size = 0x20000, scoped, tag = 'input window, operand 1']
    #allocation4 [shape = 'u8[262144]{0}', space=vmem, size = 0x40000, scoped, tag = 'input window, operand 2']
    #allocation5 [shape = 'u8[524288]{0}', space=vmem, size = 0x80000, scoped, tag = 'input window, operand 3']
    #allocation6 [shape = 's32[2]{0}', space=sflag, size = 0x8, scoped, tag = 'scoped memory for tpu_custom_call.1']
    #allocation7 [shape = 's32[2]{0}', space=sflag, size = 0x8, scoped, tag = 'scoped memory for tpu_custom_call.1']
    #allocation8 [shape = 'u8[131072]{0}', space=vmem, size = 0x20000, scoped, tag = 'output window, operand 0']
    %9 = vsyncpa [#allocation6], 0
    %s10 = scalar_lea.sflag [#allocation6], 1
    %11 = vsyncpa %s10, 0
    %12 = vsyncpa [#allocation7], 0
    %s13 = scalar_lea.sflag [#allocation7], 1
    %14 = vsyncpa %s13, 0
    loop: start=0, step=1, limit=6
    $region2: #{tpu_custom_call.1} parent=1 // loop_pre_header
      _
    $region3: #{tpu_custom_call.1} parent=1 // loop_header
      %s16 = sphi 0, %s20
      %p17 = scmp.ge.s32.totalorder %s16, 6
      %s26 = sphi 0, %s28
      %s29 = sphi 0, %s26
      %s30 = sphi 0, %s29
      %s46 = sphi 0, %s30
      %s52 = sphi 0, %s54
      %s55 = sphi 0, %s52
      %s56 = sphi 0, %s55
      %s72 = sphi 0, %s56
      %s78 = sphi 0, %s80
      %s81 = sphi 0, %s78
      %s82 = sphi 0, %s81
      %s98 = sphi 0, %s82
      %s104 = sphi 0, %s106
      %s107 = sphi 0, %s104
      %s108 = sphi 0, %s107
      %s124 = sphi 0, %s108
      %s130 = sphi 0, %s132
      %s133 = sphi 0, %s130
      %s134 = sphi 0, %s133
      %s150 = sphi 0, %s134
    $region4: #{tpu_custom_call.1} parent=1 // loop_header_branch
      %19 = sbr.rel (%p17) target = $region8
    $region5: #{tpu_custom_call.1} parent=1 // loop_body
      %s21 = ssub.s32 %s16, 1
      %s22 = ssub.s32 %s16, 2
      %s23 = sadd.s32 %s16, 1
      %s24 = ssub.s32 %s16, %s23
      %p25 = scmp.eq.s32.totalorder %s24, 0
      %s27 = sadd.s32 %s26, 1
      %s28 = scalar_select %p25, %s26, %s27
      %p31 = pneg %p25
      %p32 = scmp.eq.s32.totalorder %s16, 3
      %p33 = por %p31, %p32
      %p34 = scmp.ne.s32.totalorder %s26, %s29
      %p35 = scmp.eq.s32.totalorder %s16, 0
      %p36 = por %p34, %p35
      %p37 = scmp.ne.s32.totalorder %s26, %s29
      %p38 = scmp.eq.s32.totalorder %s21, 3
      %p39 = por %p37, %p38
      %p40 = scmp.ne.s32.totalorder %s29, %s30
      %p41 = scmp.eq.s32.totalorder %s21, 0
      %p42 = por %p40, %p41
      %p43 = scmp.ne.s32.totalorder %s29, %s30
      %p44 = scmp.eq.s32.totalorder %s22, 3
      %p45 = por %p43, %p44
      %p47 = scmp.ne.s32.totalorder %s30, %s46
      %p48 = scmp.eq.s32.totalorder %s22, 0
      %p49 = por %p47, %p48
      %s50 = ssub.s32 %s16, %s23
      %p51 = scmp.eq.s32.totalorder %s50, 0
      %s53 = sadd.s32 %s52, 1
      %s54 = scalar_select %p51, %s52, %s53
      %p57 = pneg %p51
      %p58 = scmp.eq.s32.totalorder %s16, 3
      %p59 = por %p57, %p58
      %p60 = scmp.ne.s32.totalorder %s52, %s55
      %p61 = scmp.eq.s32.totalorder %s16, 0
      %p62 = por %p60, %p61
      %p63 = scmp.ne.s32.totalorder %s52, %s55
      %p64 = scmp.eq.s32.totalorder %s21, 3
      %p65 = por %p63, %p64
      %p66 = scmp.ne.s32.totalorder %s55, %s56
      %p67 = scmp.eq.s32.totalorder %s21, 0
      %p68 = por %p66, %p67
      %p69 = scmp.ne.s32.totalorder %s55, %s56
      %p70 = scmp.eq.s32.totalorder %s22, 3
      %p71 = por %p69, %p70
      %p73 = scmp.ne.s32.totalorder %s56, %s72
      %p74 = scmp.eq.s32.totalorder %s22, 0
      %p75 = por %p73, %p74
      %s76 = ssub.s32 %s16, %s23
      %p77 = scmp.eq.s32.totalorder %s76, 0
      %s79 = sadd.s32 %s78, 1
      %s80 = scalar_select %p77, %s78, %s79
      %p83 = pneg %p77
      %p84 = scmp.eq.s32.totalorder %s16, 3
      %p85 = por %p83, %p84
      %p86 = scmp.ne.s32.totalorder %s78, %s81
      %p87 = scmp.eq.s32.totalorder %s16, 0
      %p88 = por %p86, %p87
      %p89 = scmp.ne.s32.totalorder %s78, %s81
      %p90 = scmp.eq.s32.totalorder %s21, 3
      %p91 = por %p89, %p90
      %p92 = scmp.ne.s32.totalorder %s81, %s82
      %p93 = scmp.eq.s32.totalorder %s21, 0
      %p94 = por %p92, %p93
      %p95 = scmp.ne.s32.totalorder %s81, %s82
      %p96 = scmp.eq.s32.totalorder %s22, 3
      %p97 = por %p95, %p96
      %p99 = scmp.ne.s32.totalorder %s82, %s98
      %p100 = scmp.eq.s32.totalorder %s22, 0
      %p101 = por %p99, %p100
      %s102 = ssub.s32 %s16, %s23
      %p103 = scmp.eq.s32.totalorder %s102, 0
      %s105 = sadd.s32 %s104, 1
      %s106 = scalar_select %p103, %s104, %s105
      %p109 = pneg %p103
      %p110 = scmp.eq.s32.totalorder %s16, 3
      %p111 = por %p109, %p110
      %p112 = scmp.ne.s32.totalorder %s104, %s107
      %p113 = scmp.eq.s32.totalorder %s16, 0
      %p114 = por %p112, %p113
      %p115 = scmp.ne.s32.totalorder %s104, %s107
      %p116 = scmp.eq.s32.totalorder %s21, 3
      %p117 = por %p115, %p116
      %p118 = scmp.ne.s32.totalorder %s107, %s108
      %p119 = scmp.eq.s32.totalorder %s21, 0
      %p120 = por %p118, %p119
      %p121 = scmp.ne.s32.totalorder %s107, %s108
      %p122 = scmp.eq.s32.totalorder %s22, 3
      %p123 = por %p121, %p122
      %p125 = scmp.ne.s32.totalorder %s108, %s124
      %p126 = scmp.eq.s32.totalorder %s22, 0
      %p127 = por %p125, %p126
      %s128 = ssub.s32 %s16, %s23
      %p129 = scmp.eq.s32.totalorder %s128, 0
      %s131 = sadd.s32 %s130, 1
      %s132 = scalar_select %p129, %s130, %s131
      %p135 = pneg %p129
      %p136 = scmp.eq.s32.totalorder %s16, 3
      %p137 = por %p135, %p136
      %p138 = scmp.ne.s32.totalorder %s130, %s133
      %p139 = scmp.eq.s32.totalorder %s16, 0
      %p140 = por %p138, %p139
      %p141 = scmp.ne.s32.totalorder %s130, %s133
      %p142 = scmp.eq.s32.totalorder %s21, 3
      %p143 = por %p141, %p142
      %p144 = scmp.ne.s32.totalorder %s133, %s134
      %p145 = scmp.eq.s32.totalorder %s21, 0
      %p146 = por %p144, %p145
      %p147 = scmp.ne.s32.totalorder %s133, %s134
      %p148 = scmp.eq.s32.totalorder %s22, 3
      %p149 = por %p147, %p148
      %p151 = scmp.ne.s32.totalorder %s134, %s150
      %p152 = scmp.eq.s32.totalorder %s22, 0
      %p153 = por %p151, %p152
      %p154 = scmp.le.s32.totalorder 1, %s16
      %p155 = scmp.lt.s32.totalorder %s16, 5
      %p156 = pnand %p154, %p155
      %p157 = pneg %p156
      // Predicated region
      $region9: #{tpu_custom_call.1} parent=5 // pred_check
        _
      $region10: #{tpu_custom_call.1} parent=5 // pred_check_branch
        %159 = sbr.rel (%p156) target = $region12
      $region11: #{tpu_custom_call.1} parent=5 // pred_region
        %s160 = ssub.s32 %s16, 1
      $region12: #{tpu_custom_call.1} parent=5 // pred_fallthru
        _
      %p161 = scmp.lt.s32.totalorder %s16, 4
      // Predicated region
      $region13: #{tpu_custom_call.1} parent=5 // pred_check
        %p162 = pneg %p161
      $region14: #{tpu_custom_call.1} parent=5 // pred_check_branch
        %164 = sbr.rel (%p162) target = $region16
      $region15: #{tpu_custom_call.1} parent=5 // pred_region
        // Predicated region
        $region17: #{tpu_custom_call.1} parent=15 // pred_check
          %p165 = pneg %p36
        $region18: #{tpu_custom_call.1} parent=15 // pred_check_branch
          %167 = sbr.rel (%p165) target = $region20
        $region19: #{tpu_custom_call.1} parent=15 // pred_region
          %s168 = sand.u32 %s26, 1
          %s169 = sand.u32 %s26, 1
          %s170 = smul.addr %s169, 128
          %s171 = scalar_lea.vmem [#allocation2], %s170
          %s172 = smul.addr %s16, 8
          %s173 = smul.addr %s172, 8
          %s174 = scalar_lea.vmem %s0, %s173
          // Predicated region
          $region21: #{tpu_custom_call.1} parent=19 // pred_check
            _
          $region22: #{tpu_custom_call.1} parent=19 // pred_check_branch
            %176 = sbr.rel (0) target = $region24
          $region23: #{tpu_custom_call.1} parent=19 // pred_region
            // Predicated region
            $region25: #{tpu_custom_call.1} parent=23 // pred_check
              _
            $region26: #{tpu_custom_call.1} parent=23 // pred_check_branch
              %178 = sbr.rel (0) target = $region28
            $region27: #{tpu_custom_call.1} parent=23 // pred_region
              // Predicated region
              $region40: #{tpu_custom_call.1} parent=27 // pred_check
                _
              $region41: #{tpu_custom_call.1} parent=27 // pred_check_branch
                %223 = sbr.rel (0) target = $region43
              $region42: #{tpu_custom_call.1} parent=27 // pred_region
                loop: start=0, step=1, limit=1
                $region44: #{tpu_custom_call.1} parent=42 // loop_pre_header
                  _
                $region45: #{tpu_custom_call.1} parent=42 // loop_header
                  %s225 = sphi 0, %s229
                  %p226 = scmp.ge.s32.totalorder %s225, 1
                  %s230 = sphi %s174, %s174
                  %s231 = sphi %s171, %s171
                $region46: #{tpu_custom_call.1} parent=42 // loop_header_branch
                  %228 = sbr.rel (%p226) target = $region50
                $region47: #{tpu_custom_call.1} parent=42 // loop_body
                  %v232 = vld [vmem:[%s230] sm:$0xff]
                  %233 = vst [vmem:[%s231] sm:$0xff] %v232
                  %v234 = vld [vmem:[%s230 + $0x8] sm:$0xff]
                  %235 = vst [vmem:[%s231 + $0x8] sm:$0xff] %v234
                  %v236 = vld [vmem:[%s230 + $0x10] sm:$0xff]
                  %237 = vst [vmem:[%s231 + $0x10] sm:$0xff] %v236
                  %v238 = vld [vmem:[%s230 + $0x18] sm:$0xff]
                  %239 = vst [vmem:[%s231 + $0x18] sm:$0xff] %v238
                  %v240 = vld [vmem:[%s230 + $0x20] sm:$0xff]
                  %241 = vst [vmem:[%s231 + $0x20] sm:$0xff] %v240
                  %v242 = vld [vmem:[%s230 + $0x28] sm:$0xff]
                  %243 = vst [vmem:[%s231 + $0x28] sm:$0xff] %v242
                  %v244 = vld [vmem:[%s230 + $0x30] sm:$0xff]
                  %245 = vst [vmem:[%s231 + $0x30] sm:$0xff] %v244
                  %v246 = vld [vmem:[%s230 + $0x38] sm:$0xff]
                  %247 = vst [vmem:[%s231 + $0x38] sm:$0xff] %v246
                  %v248 = vld [vmem:[%s230 + $0x100] sm:$0xff]
                  %249 = vst [vmem:[%s231 + $0x40] sm:$0xff] %v248
                  %v250 = vld [vmem:[%s230 + $0x108] sm:$0xff]
                  %251 = vst [vmem:[%s231 + $0x48] sm:$0xff] %v250
                  %v252 = vld [vmem:[%s230 + $0x110] sm:$0xff]
                  %253 = vst [vmem:[%s231 + $0x50] sm:$0xff] %v252
                  %v254 = vld [vmem:[%s230 + $0x118] sm:$0xff]
                  %255 = vst [vmem:[%s231 + $0x58] sm:$0xff] %v254
                  %v256 = vld [vmem:[%s230 + $0x120] sm:$0xff]
                  %257 = vst [vmem:[%s231 + $0x60] sm:$0xff] %v256
                  %v258 = vld [vmem:[%s230 + $0x128] sm:$0xff]
                  %259 = vst [vmem:[%s231 + $0x68] sm:$0xff] %v258
                  %v260 = vld [vmem:[%s230 + $0x130] sm:$0xff]
                  %261 = vst [vmem:[%s231 + $0x70] sm:$0xff] %v260
                  %v262 = vld [vmem:[%s230 + $0x138] sm:$0xff]
                  %263 = vst [vmem:[%s231 + $0x78] sm:$0xff] %v262
                $region48: #{tpu_custom_call.1} parent=42 // loop_footer
                  %s229 = sadd.s32 1, %s225
                $region49: #{tpu_custom_call.1} parent=42 // loop_footer_branch
                  %224 = sbr.rel target = $region45
                $region50: #{tpu_custom_call.1} parent=42 // loop_exit
                  _
              $region43: #{tpu_custom_call.1} parent=27 // pred_fallthru
                _
              // Predicated region
              $region51: #{tpu_custom_call.1} parent=27 // pred_check
                _
              $region52: #{tpu_custom_call.1} parent=27 // pred_check_branch
                %265 = sbr.rel target = $region54
              $region53: #{tpu_custom_call.1} parent=27 // pred_region
                _
              $region54: #{tpu_custom_call.1} parent=27 // pred_fallthru
                _
            $region28: #{tpu_custom_call.1} parent=23 // pred_fallthru
              _
            // Predicated region
            $region29: #{tpu_custom_call.1} parent=23 // pred_check
              _
            $region30: #{tpu_custom_call.1} parent=23 // pred_check_branch
              %180 = sbr.rel target = $region32
            $region31: #{tpu_custom_call.1} parent=23 // pred_region
              loop: start=0, step=1, limit=1
              $region33: #{tpu_custom_call.1} parent=31 // loop_pre_header
                _
              $region34: #{tpu_custom_call.1} parent=31 // loop_header
                %s183 = sphi 0, %s187
                %p184 = scmp.ge.s32.totalorder %s183, 1
                %s188 = sphi %s174, %s174
                %s189 = sphi %s171, %s171
              $region35: #{tpu_custom_call.1} parent=31 // loop_header_branch
                %186 = sbr.rel (%p184) target = $region39
              $region36: #{tpu_custom_call.1} parent=31 // loop_body
                %v190 = vld [vmem:[%s188] sm:$0xff]
                %191 = vst [vmem:[%s189] sm:$0xff] %v190
                %v192 = vld [vmem:[%s188 + $0x8] sm:$0xff]
                %193 = vst [vmem:[%s189 + $0x8] sm:$0xff] %v192
                %v194 = vld [vmem:[%s188 + $0x10] sm:$0xff]
                %195 = vst [vmem:[%s189 + $0x10] sm:$0xff] %v194
                %v196 = vld [vmem:[%s188 + $0x18] sm:$0xff]
                %197 = vst [vmem:[%s189 + $0x18] sm:$0xff] %v196
                %v198 = vld [vmem:[%s188 + $0x20] sm:$0xff]
                %199 = vst [vmem:[%s189 + $0x20] sm:$0xff] %v198
                %v200 = vld [vmem:[%s188 + $0x28] sm:$0xff]
                %201 = vst [vmem:[%s189 + $0x28] sm:$0xff] %v200
                %v202 = vld [vmem:[%s188 + $0x30] sm:$0xff]
                %203 = vst [vmem:[%s189 + $0x30] sm:$0xff] %v202
                %v204 = vld [vmem:[%s188 + $0x38] sm:$0xff]
                %205 = vst [vmem:[%s189 + $0x38] sm:$0xff] %v204
                %v206 = vld [vmem:[%s188 + $0x100] sm:$0xff]
                %207 = vst [vmem:[%s189 + $0x40] sm:$0xff] %v206
                %v208 = vld [vmem:[%s188 + $0x108] sm:$0xff]
                %209 = vst [vmem:[%s189 + $0x48] sm:$0xff] %v208
                %v210 = vld [vmem:[%s188 + $0x110] sm:$0xff]
                %211 = vst [vmem:[%s189 + $0x50] sm:$0xff] %v210
                %v212 = vld [vmem:[%s188 + $0x118] sm:$0xff]
                %213 = vst [vmem:[%s189 + $0x58] sm:$0xff] %v212
                %v214 = vld [vmem:[%s188 + $0x120] sm:$0xff]
                %215 = vst [vmem:[%s189 + $0x60] sm:$0xff] %v214
                %v216 = vld [vmem:[%s188 + $0x128] sm:$0xff]
                %217 = vst [vmem:[%s189 + $0x68] sm:$0xff] %v216
                %v218 = vld [vmem:[%s188 + $0x130] sm:$0xff]
                %219 = vst [vmem:[%s189 + $0x70] sm:$0xff] %v218
                %v220 = vld [vmem:[%s188 + $0x138] sm:$0xff]
                %221 = vst [vmem:[%s189 + $0x78] sm:$0xff] %v220
              $region37: #{tpu_custom_call.1} parent=31 // loop_footer
                %s187 = sadd.s32 1, %s183
              $region38: #{tpu_custom_call.1} parent=31 // loop_footer_branch
                %182 = sbr.rel target = $region34
              $region39: #{tpu_custom_call.1} parent=31 // loop_exit
                _
            $region32: #{tpu_custom_call.1} parent=23 // pred_fallthru
              _
          $region24: #{tpu_custom_call.1} parent=19 // pred_fallthru
            _
          %266 = vnop
        $region20: #{tpu_custom_call.1} parent=15 // pred_fallthru
          _
        // Predicated region
        $region55: #{tpu_custom_call.1} parent=15 // pred_check
          %p267 = pneg %p62
        $region56: #{tpu_custom_call.1} parent=15 // pred_check_branch
          %269 = sbr.rel (%p267) target = $region58
        $region57: #{tpu_custom_call.1} parent=15 // pred_region
          %s270 = sand.u32 %s52, 1
          %s271 = sand.u32 %s52, 1
          %s272 = smul.addr %s271, 128
          %s273 = scalar_lea.vmem [#allocation3], %s272
          %s274 = smul.addr %s16, 8
          %s275 = smul.addr %s274, 8
          %s276 = scalar_lea.vmem %s1, %s275
          // Predicated region
          $region59: #{tpu_custom_call.1} parent=57 // pred_check
            _
          $region60: #{tpu_custom_call.1} parent=57 // pred_check_branch
            %278 = sbr.rel (0) target = $region62
          $region61: #{tpu_custom_call.1} parent=57 // pred_region
            // Predicated region
            $region63: #{tpu_custom_call.1} parent=61 // pred_check
              _
            $region64: #{tpu_custom_call.1} parent=61 // pred_check_branch
              %280 = sbr.rel (0) target = $region66
            $region65: #{tpu_custom_call.1} parent=61 // pred_region
              // Predicated region
              $region78: #{tpu_custom_call.1} parent=65 // pred_check
                _
              $region79: #{tpu_custom_call.1} parent=65 // pred_check_branch
                %325 = sbr.rel (0) target = $region81
              $region80: #{tpu_custom_call.1} parent=65 // pred_region
                loop: start=0, step=1, limit=1
                $region82: #{tpu_custom_call.1} parent=80 // loop_pre_header
                  _
                $region83: #{tpu_custom_call.1} parent=80 // loop_header
                  %s327 = sphi 0, %s331
                  %p328 = scmp.ge.s32.totalorder %s327, 1
                  %s332 = sphi %s276, %s276
                  %s333 = sphi %s273, %s273
                $region84: #{tpu_custom_call.1} parent=80 // loop_header_branch
                  %330 = sbr.rel (%p328) target = $region88
                $region85: #{tpu_custom_call.1} parent=80 // loop_body
                  %v334 = vld [vmem:[%s332] sm:$0xff]
                  %335 = vst [vmem:[%s333] sm:$0xff] %v334
                  %v336 = vld [vmem:[%s332 + $0x8] sm:$0xff]
                  %337 = vst [vmem:[%s333 + $0x8] sm:$0xff] %v336
                  %v338 = vld [vmem:[%s332 + $0x10] sm:$0xff]
                  %339 = vst [vmem:[%s333 + $0x10] sm:$0xff] %v338
                  %v340 = vld [vmem:[%s332 + $0x18] sm:$0xff]
                  %341 = vst [vmem:[%s333 + $0x18] sm:$0xff] %v340
                  %v342 = vld [vmem:[%s332 + $0x20] sm:$0xff]
                  %343 = vst [vmem:[%s333 + $0x20] sm:$0xff] %v342
                  %v344 = vld [vmem:[%s332 + $0x28] sm:$0xff]
                  %345 = vst [vmem:[%s333 + $0x28] sm:$0xff] %v344
                  %v346 = vld [vmem:[%s332 + $0x30] sm:$0xff]
                  %347 = vst [vmem:[%s333 + $0x30] sm:$0xff] %v346
                  %v348 = vld [vmem:[%s332 + $0x38] sm:$0xff]
                  %349 = vst [vmem:[%s333 + $0x38] sm:$0xff] %v348
                  %v350 = vld [vmem:[%s332 + $0x100] sm:$0xff]
                  %351 = vst [vmem:[%s333 + $0x40] sm:$0xff] %v350
                  %v352 = vld [vmem:[%s332 + $0x108] sm:$0xff]
                  %353 = vst [vmem:[%s333 + $0x48] sm:$0xff] %v352
                  %v354 = vld [vmem:[%s332 + $0x110] sm:$0xff]
                  %355 = vst [vmem:[%s333 + $0x50] sm:$0xff] %v354
                  %v356 = vld [vmem:[%s332 + $0x118] sm:$0xff]
                  %357 = vst [vmem:[%s333 + $0x58] sm:$0xff] %v356
                  %v358 = vld [vmem:[%s332 + $0x120] sm:$0xff]
                  %359 = vst [vmem:[%s333 + $0x60] sm:$0xff] %v358
                  %v360 = vld [vmem:[%s332 + $0x128] sm:$0xff]
                  %361 = vst [vmem:[%s333 + $0x68] sm:$0xff] %v360
                  %v362 = vld [vmem:[%s332 + $0x130] sm:$0xff]
                  %363 = vst [vmem:[%s333 + $0x70] sm:$0xff] %v362
                  %v364 = vld [vmem:[%s332 + $0x138] sm:$0xff]
                  %365 = vst [vmem:[%s333 + $0x78] sm:$0xff] %v364
                $region86: #{tpu_custom_call.1} parent=80 // loop_footer
                  %s331 = sadd.s32 1, %s327
                $region87: #{tpu_custom_call.1} parent=80 // loop_footer_branch
                  %326 = sbr.rel target = $region83
                $region88: #{tpu_custom_call.1} parent=80 // loop_exit
                  _
              $region81: #{tpu_custom_call.1} parent=65 // pred_fallthru
                _
              // Predicated region
              $region89: #{tpu_custom_call.1} parent=65 // pred_check
                _
              $region90: #{tpu_custom_call.1} parent=65 // pred_check_branch
                %367 = sbr.rel target = $region92
              $region91: #{tpu_custom_call.1} parent=65 // pred_region
                _
              $region92: #{tpu_custom_call.1} parent=65 // pred_fallthru
                _
            $region66: #{tpu_custom_call.1} parent=61 // pred_fallthru
              _
            // Predicated region
            $region67: #{tpu_custom_call.1} parent=61 // pred_check
              _
            $region68: #{tpu_custom_call.1} parent=61 // pred_check_branch
              %282 = sbr.rel target = $region70
            $region69: #{tpu_custom_call.1} parent=61 // pred_region
              loop: start=0, step=1, limit=1
              $region71: #{tpu_custom_call.1} parent=69 // loop_pre_header
                _
              $region72: #{tpu_custom_call.1} parent=69 // loop_header
                %s285 = sphi 0, %s289
                %p286 = scmp.ge.s32.totalorder %s285, 1
                %s290 = sphi %s276, %s276
                %s291 = sphi %s273, %s273
              $region73: #{tpu_custom_call.1} parent=69 // loop_header_branch
                %288 = sbr.rel (%p286) target = $region77
              $region74: #{tpu_custom_call.1} parent=69 // loop_body
                %v292 = vld [vmem:[%s290] sm:$0xff]
                %293 = vst [vmem:[%s291] sm:$0xff] %v292
                %v294 = vld [vmem:[%s290 + $0x8] sm:$0xff]
                %295 = vst [vmem:[%s291 + $0x8] sm:$0xff] %v294
                %v296 = vld [vmem:[%s290 + $0x10] sm:$0xff]
                %297 = vst [vmem:[%s291 + $0x10] sm:$0xff] %v296
                %v298 = vld [vmem:[%s290 + $0x18] sm:$0xff]
                %299 = vst [vmem:[%s291 + $0x18] sm:$0xff] %v298
                %v300 = vld [vmem:[%s290 + $0x20] sm:$0xff]
                %301 = vst [vmem:[%s291 + $0x20] sm:$0xff] %v300
                %v302 = vld [vmem:[%s290 + $0x28] sm:$0xff]
                %303 = vst [vmem:[%s291 + $0x28] sm:$0xff] %v302
                %v304 = vld [vmem:[%s290 + $0x30] sm:$0xff]
                %305 = vst [vmem:[%s291 + $0x30] sm:$0xff] %v304
                %v306 = vld [vmem:[%s290 + $0x38] sm:$0xff]
                %307 = vst [vmem:[%s291 + $0x38] sm:$0xff] %v306
                %v308 = vld [vmem:[%s290 + $0x100] sm:$0xff]
                %309 = vst [vmem:[%s291 + $0x40] sm:$0xff] %v308
                %v310 = vld [vmem:[%s290 + $0x108] sm:$0xff]
                %311 = vst [vmem:[%s291 + $0x48] sm:$0xff] %v310
                %v312 = vld [vmem:[%s290 + $0x110] sm:$0xff]
                %313 = vst [vmem:[%s291 + $0x50] sm:$0xff] %v312
                %v314 = vld [vmem:[%s290 + $0x118] sm:$0xff]
                %315 = vst [vmem:[%s291 + $0x58] sm:$0xff] %v314
                %v316 = vld [vmem:[%s290 + $0x120] sm:$0xff]
                %317 = vst [vmem:[%s291 + $0x60] sm:$0xff] %v316
                %v318 = vld [vmem:[%s290 + $0x128] sm:$0xff]
                %319 = vst [vmem:[%s291 + $0x68] sm:$0xff] %v318
                %v320 = vld [vmem:[%s290 + $0x130] sm:$0xff]
                %321 = vst [vmem:[%s291 + $0x70] sm:$0xff] %v320
                %v322 = vld [vmem:[%s290 + $0x138] sm:$0xff]
                %323 = vst [vmem:[%s291 + $0x78] sm:$0xff] %v322
              $region75: #{tpu_custom_call.1} parent=69 // loop_footer
                %s289 = sadd.s32 1, %s285
              $region76: #{tpu_custom_call.1} parent=69 // loop_footer_branch
                %284 = sbr.rel target = $region72
              $region77: #{tpu_custom_call.1} parent=69 // loop_exit
                _
            $region70: #{tpu_custom_call.1} parent=61 // pred_fallthru
              _
          $region62: #{tpu_custom_call.1} parent=57 // pred_fallthru
            _
          %368 = vnop
        $region58: #{tpu_custom_call.1} parent=15 // pred_fallthru
          _
        // Predicated region
        $region93: #{tpu_custom_call.1} parent=15 // pred_check
          %p369 = pneg %p88
        $region94: #{tpu_custom_call.1} parent=15 // pred_check_branch
          %371 = sbr.rel (%p369) target = $region96
        $region95: #{tpu_custom_call.1} parent=15 // pred_region
          %s372 = sand.u32 %s78, 1
          %s373 = sand.u32 %s78, 1
          %s374 = smul.addr %s373, 256
          %s375 = scalar_lea.vmem [#allocation4], %s374
          %s376 = smul.addr %s16, 16
          %s377 = smul.addr %s376, 8
          %s378 = scalar_lea.vmem %s2, %s377
          // Predicated region
          $region97: #{tpu_custom_call.1} parent=95 // pred_check
            _
          $region98: #{tpu_custom_call.1} parent=95 // pred_check_branch
            %380 = sbr.rel (0) target = $region100
          $region99: #{tpu_custom_call.1} parent=95 // pred_region
            // Predicated region
            $region101: #{tpu_custom_call.1} parent=99 // pred_check
              _
            $region102: #{tpu_custom_call.1} parent=99 // pred_check_branch
              %382 = sbr.rel (0) target = $region104
            $region103: #{tpu_custom_call.1} parent=99 // pred_region
              // Predicated region
              $region116: #{tpu_custom_call.1} parent=103 // pred_check
                _
              $region117: #{tpu_custom_call.1} parent=103 // pred_check_branch
                %459 = sbr.rel (0) target = $region119
              $region118: #{tpu_custom_call.1} parent=103 // pred_region
                loop: start=0, step=1, limit=1
                $region120: #{tpu_custom_call.1} parent=118 // loop_pre_header
                  _
                $region121: #{tpu_custom_call.1} parent=118 // loop_header
                  %s461 = sphi 0, %s465
                  %p462 = scmp.ge.s32.totalorder %s461, 1
                  %s466 = sphi %s378, %s378
                  %s467 = sphi %s375, %s375
                $region122: #{tpu_custom_call.1} parent=118 // loop_header_branch
                  %464 = sbr.rel (%p462) target = $region126
                $region123: #{tpu_custom_call.1} parent=118 // loop_body
                  %v468 = vld [vmem:[%s466] sm:$0xff]
                  %469 = vst [vmem:[%s467] sm:$0xff] %v468
                  %v470 = vld [vmem:[%s466 + $0x8] sm:$0xff]
                  %471 = vst [vmem:[%s467 + $0x8] sm:$0xff] %v470
                  %v472 = vld [vmem:[%s466 + $0x10] sm:$0xff]
                  %473 = vst [vmem:[%s467 + $0x10] sm:$0xff] %v472
                  %v474 = vld [vmem:[%s466 + $0x18] sm:$0xff]
                  %475 = vst [vmem:[%s467 + $0x18] sm:$0xff] %v474
                  %v476 = vld [vmem:[%s466 + $0x20] sm:$0xff]
                  %477 = vst [vmem:[%s467 + $0x20] sm:$0xff] %v476
                  %v478 = vld [vmem:[%s466 + $0x28] sm:$0xff]
                  %479 = vst [vmem:[%s467 + $0x28] sm:$0xff] %v478
                  %v480 = vld [vmem:[%s466 + $0x30] sm:$0xff]
                  %481 = vst [vmem:[%s467 + $0x30] sm:$0xff] %v480
                  %v482 = vld [vmem:[%s466 + $0x38] sm:$0xff]
                  %483 = vst [vmem:[%s467 + $0x38] sm:$0xff] %v482
                  %v484 = vld [vmem:[%s466 + $0x40] sm:$0xff]
                  %485 = vst [vmem:[%s467 + $0x40] sm:$0xff] %v484
                  %v486 = vld [vmem:[%s466 + $0x48] sm:$0xff]
                  %487 = vst [vmem:[%s467 + $0x48] sm:$0xff] %v486
                  %v488 = vld [vmem:[%s466 + $0x50] sm:$0xff]
                  %489 = vst [vmem:[%s467 + $0x50] sm:$0xff] %v488
                  %v490 = vld [vmem:[%s466 + $0x58] sm:$0xff]
                  %491 = vst [vmem:[%s467 + $0x58] sm:$0xff] %v490
                  %v492 = vld [vmem:[%s466 + $0x60] sm:$0xff]
                  %493 = vst [vmem:[%s467 + $0x60] sm:$0xff] %v492
                  %v494 = vld [vmem:[%s466 + $0x68] sm:$0xff]
                  %495 = vst [vmem:[%s467 + $0x68] sm:$0xff] %v494
                  %v496 = vld [vmem:[%s466 + $0x70] sm:$0xff]
                  %497 = vst [vmem:[%s467 + $0x70] sm:$0xff] %v496
                  %v498 = vld [vmem:[%s466 + $0x78] sm:$0xff]
                  %499 = vst [vmem:[%s467 + $0x78] sm:$0xff] %v498
                  %v500 = vld [vmem:[%s466 + $0x200] sm:$0xff]
                  %501 = vst [vmem:[%s467 + $0x80] sm:$0xff] %v500
                  %v502 = vld [vmem:[%s466 + $0x208] sm:$0xff]
                  %503 = vst [vmem:[%s467 + $0x88] sm:$0xff] %v502
                  %v504 = vld [vmem:[%s466 + $0x210] sm:$0xff]
                  %505 = vst [vmem:[%s467 + $0x90] sm:$0xff] %v504
                  %v506 = vld [vmem:[%s466 + $0x218] sm:$0xff]
                  %507 = vst [vmem:[%s467 + $0x98] sm:$0xff] %v506
                  %v508 = vld [vmem:[%s466 + $0x220] sm:$0xff]
                  %509 = vst [vmem:[%s467 + $0xa0] sm:$0xff] %v508
                  %v510 = vld [vmem:[%s466 + $0x228] sm:$0xff]
                  %511 = vst [vmem:[%s467 + $0xa8] sm:$0xff] %v510
                  %v512 = vld [vmem:[%s466 + $0x230] sm:$0xff]
                  %513 = vst [vmem:[%s467 + $0xb0] sm:$0xff] %v512
                  %v514 = vld [vmem:[%s466 + $0x238] sm:$0xff]
                  %515 = vst [vmem:[%s467 + $0xb8] sm:$0xff] %v514
                  %v516 = vld [vmem:[%s466 + $0x240] sm:$0xff]
                  %517 = vst [vmem:[%s467 + $0xc0] sm:$0xff] %v516
                  %v518 = vld [vmem:[%s466 + $0x248] sm:$0xff]
                  %519 = vst [vmem:[%s467 + $0xc8] sm:$0xff] %v518
                  %v520 = vld [vmem:[%s466 + $0x250] sm:$0xff]
                  %521 = vst [vmem:[%s467 + $0xd0] sm:$0xff] %v520
                  %v522 = vld [vmem:[%s466 + $0x258] sm:$0xff]
                  %523 = vst [vmem:[%s467 + $0xd8] sm:$0xff] %v522
                  %v524 = vld [vmem:[%s466 + $0x260] sm:$0xff]
                  %525 = vst [vmem:[%s467 + $0xe0] sm:$0xff] %v524
                  %v526 = vld [vmem:[%s466 + $0x268] sm:$0xff]
                  %527 = vst [vmem:[%s467 + $0xe8] sm:$0xff] %v526
                  %v528 = vld [vmem:[%s466 + $0x270] sm:$0xff]
                  %529 = vst [vmem:[%s467 + $0xf0] sm:$0xff] %v528
                  %v530 = vld [vmem:[%s466 + $0x278] sm:$0xff]
                  %531 = vst [vmem:[%s467 + $0xf8] sm:$0xff] %v530
                $region124: #{tpu_custom_call.1} parent=118 // loop_footer
                  %s465 = sadd.s32 1, %s461
                $region125: #{tpu_custom_call.1} parent=118 // loop_footer_branch
                  %460 = sbr.rel target = $region121
                $region126: #{tpu_custom_call.1} parent=118 // loop_exit
                  _
              $region119: #{tpu_custom_call.1} parent=103 // pred_fallthru
                _
              // Predicated region
              $region127: #{tpu_custom_call.1} parent=103 // pred_check
                _
              $region128: #{tpu_custom_call.1} parent=103 // pred_check_branch
                %533 = sbr.rel target = $region130
              $region129: #{tpu_custom_call.1} parent=103 // pred_region
                _
              $region130: #{tpu_custom_call.1} parent=103 // pred_fallthru
                _
            $region104: #{tpu_custom_call.1} parent=99 // pred_fallthru
              _
            // Predicated region
            $region105: #{tpu_custom_call.1} parent=99 // pred_check
              _
            $region106: #{tpu_custom_call.1} parent=99 // pred_check_branch
              %384 = sbr.rel target = $region108
            $region107: #{tpu_custom_call.1} parent=99 // pred_region
              loop: start=0, step=1, limit=1
              $region109: #{tpu_custom_call.1} parent=107 // loop_pre_header
                _
              $region110: #{tpu_custom_call.1} parent=107 // loop_header
                %s387 = sphi 0, %s391
                %p388 = scmp.ge.s32.totalorder %s387, 1
                %s392 = sphi %s378, %s378
                %s393 = sphi %s375, %s375
              $region111: #{tpu_custom_call.1} parent=107 // loop_header_branch
                %390 = sbr.rel (%p388) target = $region115
              $region112: #{tpu_custom_call.1} parent=107 // loop_body
                %v394 = vld [vmem:[%s392] sm:$0xff]
                %395 = vst [vmem:[%s393] sm:$0xff] %v394
                %v396 = vld [vmem:[%s392 + $0x8] sm:$0xff]
                %397 = vst [vmem:[%s393 + $0x8] sm:$0xff] %v396
                %v398 = vld [vmem:[%s392 + $0x10] sm:$0xff]
                %399 = vst [vmem:[%s393 + $0x10] sm:$0xff] %v398
                %v400 = vld [vmem:[%s392 + $0x18] sm:$0xff]
                %401 = vst [vmem:[%s393 + $0x18] sm:$0xff] %v400
                %v402 = vld [vmem:[%s392 + $0x20] sm:$0xff]
                %403 = vst [vmem:[%s393 + $0x20] sm:$0xff] %v402
                %v404 = vld [vmem:[%s392 + $0x28] sm:$0xff]
                %405 = vst [vmem:[%s393 + $0x28] sm:$0xff] %v404
                %v406 = vld [vmem:[%s392 + $0x30] sm:$0xff]
                %407 = vst [vmem:[%s393 + $0x30] sm:$0xff] %v406
                %v408 = vld [vmem:[%s392 + $0x38] sm:$0xff]
                %409 = vst [vmem:[%s393 + $0x38] sm:$0xff] %v408
                %v410 = vld [vmem:[%s392 + $0x40] sm:$0xff]
                %411 = vst [vmem:[%s393 + $0x40] sm:$0xff] %v410
                %v412 = vld [vmem:[%s392 + $0x48] sm:$0xff]
                %413 = vst [vmem:[%s393 + $0x48] sm:$0xff] %v412
                %v414 = vld [vmem:[%s392 + $0x50] sm:$0xff]
                %415 = vst [vmem:[%s393 + $0x50] sm:$0xff] %v414
                %v416 = vld [vmem:[%s392 + $0x58] sm:$0xff]
                %417 = vst [vmem:[%s393 + $0x58] sm:$0xff] %v416
                %v418 = vld [vmem:[%s392 + $0x60] sm:$0xff]
                %419 = vst [vmem:[%s393 + $0x60] sm:$0xff] %v418
                %v420 = vld [vmem:[%s392 + $0x68] sm:$0xff]
                %421 = vst [vmem:[%s393 + $0x68] sm:$0xff] %v420
                %v422 = vld [vmem:[%s392 + $0x70] sm:$0xff]
                %423 = vst [vmem:[%s393 + $0x70] sm:$0xff] %v422
                %v424 = vld [vmem:[%s392 + $0x78] sm:$0xff]
                %425 = vst [vmem:[%s393 + $0x78] sm:$0xff] %v424
                %v426 = vld [vmem:[%s392 + $0x200] sm:$0xff]
                %427 = vst [vmem:[%s393 + $0x80] sm:$0xff] %v426
                %v428 = vld [vmem:[%s392 + $0x208] sm:$0xff]
                %429 = vst [vmem:[%s393 + $0x88] sm:$0xff] %v428
                %v430 = vld [vmem:[%s392 + $0x210] sm:$0xff]
                %431 = vst [vmem:[%s393 + $0x90] sm:$0xff] %v430
                %v432 = vld [vmem:[%s392 + $0x218] sm:$0xff]
                %433 = vst [vmem:[%s393 + $0x98] sm:$0xff] %v432
                %v434 = vld [vmem:[%s392 + $0x220] sm:$0xff]
                %435 = vst [vmem:[%s393 + $0xa0] sm:$0xff] %v434
                %v436 = vld [vmem:[%s392 + $0x228] sm:$0xff]
                %437 = vst [vmem:[%s393 + $0xa8] sm:$0xff] %v436
                %v438 = vld [vmem:[%s392 + $0x230] sm:$0xff]
                %439 = vst [vmem:[%s393 + $0xb0] sm:$0xff] %v438
                %v440 = vld [vmem:[%s392 + $0x238] sm:$0xff]
                %441 = vst [vmem:[%s393 + $0xb8] sm:$0xff] %v440
                %v442 = vld [vmem:[%s392 + $0x240] sm:$0xff]
                %443 = vst [vmem:[%s393 + $0xc0] sm:$0xff] %v442
                %v444 = vld [vmem:[%s392 + $0x248] sm:$0xff]
                %445 = vst [vmem:[%s393 + $0xc8] sm:$0xff] %v444
                %v446 = vld [vmem:[%s392 + $0x250] sm:$0xff]
                %447 = vst [vmem:[%s393 + $0xd0] sm:$0xff] %v446
                %v448 = vld [vmem:[%s392 + $0x258] sm:$0xff]
                %449 = vst [vmem:[%s393 + $0xd8] sm:$0xff] %v448
                %v450 = vld [vmem:[%s392 + $0x260] sm:$0xff]
                %451 = vst [vmem:[%s393 + $0xe0] sm:$0xff] %v450
                %v452 = vld [vmem:[%s392 + $0x268] sm:$0xff]
                %453 = vst [vmem:[%s393 + $0xe8] sm:$0xff] %v452
                %v454 = vld [vmem:[%s392 + $0x270] sm:$0xff]
                %455 = vst [vmem:[%s393 + $0xf0] sm:$0xff] %v454
                %v456 = vld [vmem:[%s392 + $0x278] sm:$0xff]
                %457 = vst [vmem:[%s393 + $0xf8] sm:$0xff] %v456
              $region113: #{tpu_custom_call.1} parent=107 // loop_footer
                %s391 = sadd.s32 1, %s387
              $region114: #{tpu_custom_call.1} parent=107 // loop_footer_branch
                %386 = sbr.rel target = $region110
              $region115: #{tpu_custom_call.1} parent=107 // loop_exit
                _
            $region108: #{tpu_custom_call.1} parent=99 // pred_fallthru
              _
          $region100: #{tpu_custom_call.1} parent=95 // pred_fallthru
            _
          %534 = vnop
        $region96: #{tpu_custom_call.1} parent=15 // pred_fallthru
          _
        // Predicated region
        $region131: #{tpu_custom_call.1} parent=15 // pred_check
          %p535 = pneg %p114
        $region132: #{tpu_custom_call.1} parent=15 // pred_check_branch
          %537 = sbr.rel (%p535) target = $region134
        $region133: #{tpu_custom_call.1} parent=15 // pred_region
          %s538 = sand.u32 %s104, 1
          %s539 = scalar_lea.sflag [#allocation6], %s538
          %s540 = sand.u32 %s104, 1
          %s541 = smul.addr %s540, 512
          %s542 = scalar_lea.vmem [#allocation5], %s541
          %s544 = ssub.s32 8192, 8192
          %545 = vsyncadd %s539, %s544
          %s546 = smul.addr %s16, 64
          %s547 = smul.addr %s546, 128
          %s548 = scalar_lea.hbm %s3, %s547
          %s549 = sshll.u32 %s542, 4
          %s550 = int_to_ptr.vmem [resolvable:$true] %s549
          %555 = dma.hbm_to_vmem [thread:$0]  %s548, 8192, %s550, %s539, 128, 128, 8
        $region134: #{tpu_custom_call.1} parent=15 // pred_fallthru
          _
      $region16: #{tpu_custom_call.1} parent=5 // pred_fallthru
        _
      %p556 = scmp.le.s32.totalorder 1, %s16
      %p557 = scmp.lt.s32.totalorder %s16, 5
      %p558 = pnand %p556, %p557
      %p559 = pneg %p558
      // Predicated region
      $region135: #{tpu_custom_call.1} parent=5 // pred_check
        _
      $region136: #{tpu_custom_call.1} parent=5 // pred_check_branch
        %561 = sbr.rel (%p558) target = $region138
      $region137: #{tpu_custom_call.1} parent=5 // pred_region
        %s562 = ssub.s32 %s16, 1
        %s563 = sand.u32 %s29, 1
        %s564 = sand.u32 %s29, 1
        %s565 = smul.addr %s564, 128
        %s566 = scalar_lea.vmem [#allocation2], %s565
        // Predicated region
        $region139: #{tpu_custom_call.1} parent=137 // pred_check
          %p567 = pneg %p42
        $region140: #{tpu_custom_call.1} parent=137 // pred_check_branch
          %569 = sbr.rel (%p567) target = $region142
        $region141: #{tpu_custom_call.1} parent=137 // pred_region
          _
        $region142: #{tpu_custom_call.1} parent=137 // pred_fallthru
          _
        %s570 = sand.u32 %s55, 1
        %s571 = sand.u32 %s55, 1
        %s572 = smul.addr %s571, 128
        %s573 = scalar_lea.vmem [#allocation3], %s572
        // Predicated region
        $region143: #{tpu_custom_call.1} parent=137 // pred_check
          %p574 = pneg %p68
        $region144: #{tpu_custom_call.1} parent=137 // pred_check_branch
          %576 = sbr.rel (%p574) target = $region146
        $region145: #{tpu_custom_call.1} parent=137 // pred_region
          _
        $region146: #{tpu_custom_call.1} parent=137 // pred_fallthru
          _
        %s577 = sand.u32 %s81, 1
        %s578 = sand.u32 %s81, 1
        %s579 = smul.addr %s578, 256
        %s580 = scalar_lea.vmem [#allocation4], %s579
        // Predicated region
        $region147: #{tpu_custom_call.1} parent=137 // pred_check
          %p581 = pneg %p94
        $region148: #{tpu_custom_call.1} parent=137 // pred_check_branch
          %583 = sbr.rel (%p581) target = $region150
        $region149: #{tpu_custom_call.1} parent=137 // pred_region
          _
        $region150: #{tpu_custom_call.1} parent=137 // pred_fallthru
          _
        %s584 = sand.u32 %s107, 1
        %s585 = scalar_lea.sflag [#allocation6], %s584
        %s586 = sand.u32 %s107, 1
        %s587 = smul.addr %s586, 512
        %s588 = scalar_lea.vmem [#allocation5], %s587
        // Predicated region
        $region151: #{tpu_custom_call.1} parent=137 // pred_check
          %p589 = pneg %p120
        $region152: #{tpu_custom_call.1} parent=137 // pred_check_branch
          %591 = sbr.rel (%p589) target = $region154
        $region153: #{tpu_custom_call.1} parent=137 // pred_region
          %592 = dma.done %s585, 8192
        $region154: #{tpu_custom_call.1} parent=137 // pred_fallthru
          _
        %s593 = sand.u32 %s29, 1
        %s594 = sand.u32 %s29, 1
        %s595 = smul.addr %s594, 128
        %s596 = scalar_lea.vmem [#allocation2], %s595
        %p597 = pneg %p42
        %p598 = pneg %p39
        %s599 = sand.u32 %s55, 1
        %s600 = sand.u32 %s55, 1
        %s601 = smul.addr %s600, 128
        %s602 = scalar_lea.vmem [#allocation3], %s601
        %p603 = pneg %p68
        %p604 = pneg %p65
        %s605 = sand.u32 %s81, 1
        %s606 = sand.u32 %s81, 1
        %s607 = smul.addr %s606, 256
        %s608 = scalar_lea.vmem [#allocation4], %s607
        %p609 = pneg %p94
        %p610 = pneg %p91
        %s611 = sand.u32 %s107, 1
        %s612 = scalar_lea.sflag [#allocation6], %s611
        %s613 = sand.u32 %s107, 1
        %s614 = smul.addr %s613, 512
        %s615 = scalar_lea.vmem [#allocation5], %s614
        %p616 = pneg %p120
        %p617 = pneg %p117
        %p618 = pneg %p146
        %p619 = pneg %p143
        %s620 = sand.u32 %s133, 1
        %s621 = scalar_lea.sflag [#allocation7], %s620
        %s622 = sand.u32 %s133, 1
        %s623 = smul.addr %s622, 128
        %s624 = scalar_lea.vmem [#allocation8], %s623
        %v625 = vld [vmem:[%s566] sm:$0xff]
        %v626 = vld [vmem:[%s573] sm:$0xff]
        %627 = vxpose.xlu0.b32.start [1/16] %v625, 128
        %628 = vxpose.xlu0.b32.cont [2/16] 0.0, 128
        %629 = vxpose.xlu0.b32.cont [3/16] 0.0, 128
        %630 = vxpose.xlu0.b32.cont [4/16] 0.0, 128
        %631 = vxpose.xlu0.b32.cont [5/16] 0.0, 128
        %632 = vxpose.xlu0.b32.cont [6/16] 0.0, 128
        %633 = vxpose.xlu0.b32.cont [7/16] 0.0, 128
        %634 = vxpose.xlu0.b32.cont [8/16] 0.0, 128
        %635 = vxpose.xlu0.b32.cont [9/16] 0.0, 128
        %636 = vxpose.xlu0.b32.cont [10/16] 0.0, 128
        %637 = vxpose.xlu0.b32.cont [11/16] 0.0, 128
        %638 = vxpose.xlu0.b32.cont [12/16] 0.0, 128
        %639 = vxpose.xlu0.b32.cont [13/16] 0.0, 128
        %640 = vxpose.xlu0.b32.cont [14/16] 0.0, 128
        %641 = vxpose.xlu0.b32.cont [15/16] 0.0, 128
        %642 = vxpose.xlu0.b32.end [16/16] 0.0, 128
        %v643 = vpop.trf.xlu0
        %v644 = vpop.trf.xlu0
        %v645 = vpop.trf.xlu0
        %v646 = vpop.trf.xlu0
        %v647 = vpop.trf.xlu0
        %v648 = vpop.trf.xlu0
        %v649 = vpop.trf.xlu0
        %v650 = vpop.trf.xlu0
        %v651 = vpop.trf.xlu0
        %v652 = vpop.trf.xlu0
        %v653 = vpop.trf.xlu0
        %v654 = vpop.trf.xlu0
        %v655 = vpop.trf.xlu0
        %v656 = vpop.trf.xlu0
        %v657 = vpop.trf.xlu0
        %v658 = vpop.trf.xlu0
        %vm659 = vcmask 64512
        %v661 = vsel %vm659, %v643, 0
        %v664 = vsel %vm659, %v644, 0
        %v667 = vsel %vm659, %v645, 0
        %v670 = vsel %vm659, %v646, 0
        %v673 = vsel %vm659, %v647, 0
        %v676 = vsel %vm659, %v648, 0
        %v679 = vsel %vm659, %v649, 0
        %v682 = vsel %vm659, %v650, 0
        %v685 = vsel %vm659, %v651, 0
        %v688 = vsel %vm659, %v652, 0
        %v691 = vsel %vm659, %v653, 0
        %v694 = vsel %vm659, %v654, 0
        %v697 = vsel %vm659, %v655, 0
        %v700 = vsel %vm659, %v656, 0
        %v703 = vsel %vm659, %v657, 0
        %v706 = vsel %vm659, %v658, 0
        %708 = vmatprep.subr.mxu0 0.0
        %709 = vmatpush1.msra.mxu0 %v626
        %710 = vmatprep.subr.mxu0 0.0
        %711 = vmatpush1.msra.mxu0 0.0
        %712 = vmatprep.subr.mxu0 0.0
        %713 = vmatpush1.msra.mxu0 0.0
        %714 = vmatprep.subr.mxu0 0.0
        %715 = vmatpush1.msra.mxu0 0.0
        %716 = vmatprep.subr.mxu0 0.0
        %717 = vmatpush1.msra.mxu0 0.0
        %718 = vmatprep.subr.mxu0 0.0
        %719 = vmatpush1.msra.mxu0 0.0
        %720 = vmatprep.subr.mxu0 0.0
        %721 = vmatpush1.msra.mxu0 0.0
        %722 = vmatprep.subr.mxu0 0.0
        %723 = vmatpush1.msra.mxu0 0.0
        %724 = vmatprep.subr.mxu0 0.0
        %725 = vmatpush1.msra.mxu0 0.0
        %726 = vmatprep.subr.mxu0 0.0
        %727 = vmatpush1.msra.mxu0 0.0
        %728 = vmatprep.subr.mxu0 0.0
        %729 = vmatpush1.msra.mxu0 0.0
        %730 = vmatprep.subr.mxu0 0.0
        %731 = vmatpush1.msra.mxu0 0.0
        %732 = vmatprep.subr.mxu0 0.0
        %733 = vmatpush1.msra.mxu0 0.0
        %734 = vmatprep.subr.mxu0 0.0
        %735 = vmatpush1.msra.mxu0 0.0
        %736 = vmatprep.subr.mxu0 0.0
        %737 = vmatpush1.msra.mxu0 0.0
        %738 = vmatprep.subr.mxu0 0.0
        %739 = vmatpush1.msra.mxu0 0.0
        %740 = vmatprep.subr.mxu0 0.0
        %741 = vmatpush1.msra.mxu0 0.0
        %742 = vmatprep.subr.mxu0 0.0
        %743 = vmatpush1.msra.mxu0 0.0
        %744 = vmatprep.subr.mxu0 0.0
        %745 = vmatpush1.msra.mxu0 0.0
        %746 = vmatprep.subr.mxu0 0.0
        %747 = vmatpush1.msra.mxu0 0.0
        %748 = vmatprep.subr.mxu0 0.0
        %749 = vmatpush1.msra.mxu0 0.0
        %750 = vmatprep.subr.mxu0 0.0
        %751 = vmatpush1.msra.mxu0 0.0
        %752 = vmatprep.subr.mxu0 0.0
        %753 = vmatpush1.msra.mxu0 0.0
        %754 = vmatprep.subr.mxu0 0.0
        %755 = vmatpush1.msra.mxu0 0.0
        %756 = vmatprep.subr.mxu0 0.0
        %757 = vmatpush1.msra.mxu0 0.0
        %758 = vmatprep.subr.mxu0 0.0
        %759 = vmatpush1.msra.mxu0 0.0
        %760 = vmatprep.subr.mxu0 0.0
        %761 = vmatpush1.msra.mxu0 0.0
        %762 = vmatprep.subr.mxu0 0.0
        %763 = vmatpush1.msra.mxu0 0.0
        %764 = vmatprep.subr.mxu0 0.0
        %765 = vmatpush1.msra.mxu0 0.0
        %766 = vmatprep.subr.mxu0 0.0
        %767 = vmatpush1.msra.mxu0 0.0
        %768 = vmatprep.subr.mxu0 0.0
        %769 = vmatpush1.msra.mxu0 0.0
        %770 = vmatprep.subr.mxu0 0.0
        %771 = vmatpush1.msra.mxu0 0.0
        %772 = vmatprep.mubr.f32.mxu0 0.0
        %773 = vmatmul.mubr.f32.gmra.mrb[0].mxu0 %v661
        %v774 = vpop.f32.mrb[0].mxu0
        %v775 = vadd.f32 0.0, %v774
        %v776 = vpop.f32.mrb[0].mxu0
        %777 = vmatprep.mubr.f32.mxu0 0.0
        %778 = vmatmul.mubr.f32.gmra.mrb[0].mxu0 %v664
        %v779 = vpop.f32.mrb[0].mxu0
        %v780 = vadd.f32 0.0, %v779
        %v781 = vpop.f32.mrb[0].mxu0
        %782 = vmatprep.mubr.f32.mxu0 0.0
        %783 = vmatmul.mubr.f32.gmra.mrb[0].mxu0 %v667
        %v784 = vpop.f32.mrb[0].mxu0
        %v785 = vadd.f32 0.0, %v784
        %v786 = vpop.f32.mrb[0].mxu0
        %787 = vmatprep.mubr.f32.mxu0 0.0
        %788 = vmatmul.mubr.f32.gmra.mrb[0].mxu0 %v670
        %v789 = vpop.f32.mrb[0].mxu0
        %v790 = vadd.f32 0.0, %v789
        %v791 = vpop.f32.mrb[0].mxu0
        %792 = vmatprep.mubr.f32.mxu0 0.0
        %793 = vmatmul.mubr.f32.gmra.mrb[0].mxu0 %v673
        %v794 = vpop.f32.mrb[0].mxu0
        %v795 = vadd.f32 0.0, %v794
        %v796 = vpop.f32.mrb[0].mxu0
        %797 = vmatprep.mubr.f32.mxu0 0.0
        %798 = vmatmul.mubr.f32.gmra.mrb[0].mxu0 %v676
        %v799 = vpop.f32.mrb[0].mxu0
        %v800 = vadd.f32 0.0, %v799
        %v801 = vpop.f32.mrb[0].mxu0
        %802 = vmatprep.mubr.f32.mxu0 0.0
        %803 = vmatmul.mubr.f32.gmra.mrb[0].mxu0 %v679
        %v804 = vpop.f32.mrb[0].mxu0
        %v805 = vadd.f32 0.0, %v804
        %v806 = vpop.f32.mrb[0].mxu0
        %807 = vmatprep.mubr.f32.mxu0 0.0
        %808 = vmatmul.mubr.f32.gmra.mrb[0].mxu0 %v682
        %v809 = vpop.f32.mrb[0].mxu0
        %v810 = vadd.f32 0.0, %v809
        %v811 = vpop.f32.mrb[0].mxu0
        %812 = vmatprep.mubr.f32.mxu0 0.0
        %813 = vmatmul.mubr.f32.gmra.mrb[0].mxu0 %v685
        %v814 = vpop.f32.mrb[0].mxu0
        %v815 = vadd.f32 0.0, %v814
        %v816 = vpop.f32.mrb[0].mxu0
        %817 = vmatprep.mubr.f32.mxu0 0.0
        %818 = vmatmul.mubr.f32.gmra.mrb[0].mxu0 %v688
        %v819 = vpop.f32.mrb[0].mxu0
        %v820 = vadd.f32 0.0, %v819
        %v821 = vpop.f32.mrb[0].mxu0
        %822 = vmatprep.mubr.f32.mxu0 0.0
        %823 = vmatmul.mubr.f32.gmra.mrb[0].mxu0 %v691
        %v824 = vpop.f32.mrb[0].mxu0
        %v825 = vadd.f32 0.0, %v824
        %v826 = vpop.f32.mrb[0].mxu0
        %827 = vmatprep.mubr.f32.mxu0 0.0
        %828 = vmatmul.mubr.f32.gmra.mrb[0].mxu0 %v694
        %v829 = vpop.f32.mrb[0].mxu0
        %v830 = vadd.f32 0.0, %v829
        %v831 = vpop.f32.mrb[0].mxu0
        %832 = vmatprep.mubr.f32.mxu0 0.0
        %833 = vmatmul.mubr.f32.gmra.mrb[0].mxu0 %v697
        %v834 = vpop.f32.mrb[0].mxu0
        %v835 = vadd.f32 0.0, %v834
        %v836 = vpop.f32.mrb[0].mxu0
        %837 = vmatprep.mubr.f32.mxu0 0.0
        %838 = vmatmul.mubr.f32.gmra.mrb[0].mxu0 %v700
        %v839 = vpop.f32.mrb[0].mxu0
        %v840 = vadd.f32 0.0, %v839
        %v841 = vpop.f32.mrb[0].mxu0
        %842 = vmatprep.mubr.f32.mxu0 0.0
        %843 = vmatmul.mubr.f32.gmra.mrb[0].mxu0 %v703
        %v844 = vpop.f32.mrb[0].mxu0
        %v845 = vadd.f32 0.0, %v844
        %v846 = vpop.f32.mrb[0].mxu0
        %847 = vmatprep.mubr.f32.mxu0 0.0
        %848 = vmatmul.mubr.f32.gmra.mrb[0].mxu0 %v706
        %v849 = vpop.f32.mrb[0].mxu0
        %v850 = vadd.f32 0.0, %v849
        %v851 = vpop.f32.mrb[0].mxu0
        %852 = vdwg.mxu0
        %v853 = vand.u32 2147483647, %v775
        %v854 = vand.u32 2147483647, %v780
        %v855 = vand.u32 2147483647, %v785
        %v856 = vand.u32 2147483647, %v790
        %v857 = vand.u32 2147483647, %v795
        %v858 = vand.u32 2147483647, %v800
        %v859 = vand.u32 2147483647, %v805
        %v860 = vand.u32 2147483647, %v810
        %v861 = vand.u32 2147483647, %v815
        %v862 = vand.u32 2147483647, %v820
        %v863 = vand.u32 2147483647, %v825
        %v864 = vand.u32 2147483647, %v830
        %v865 = vand.u32 2147483647, %v835
        %v866 = vand.u32 2147483647, %v840
        %v867 = vand.u32 2147483647, %v845
        %v868 = vand.u32 2147483647, %v850
        %869 = vmax.xlane.f32.xlu0 %v853
        %v870 = vpop.xlane.xlu0 %869
        %871 = vmax.xlane.f32.xlu0 %v854
        %v872 = vpop.xlane.xlu0 %871
        %873 = vmax.xlane.f32.xlu0 %v855
        %v874 = vpop.xlane.xlu0 %873
        %875 = vmax.xlane.f32.xlu0 %v856
        %v876 = vpop.xlane.xlu0 %875
        %877 = vmax.xlane.f32.xlu0 %v857
        %v878 = vpop.xlane.xlu0 %877
        %879 = vmax.xlane.f32.xlu0 %v858
        %v880 = vpop.xlane.xlu0 %879
        %881 = vmax.xlane.f32.xlu0 %v859
        %v882 = vpop.xlane.xlu0 %881
        %883 = vmax.xlane.f32.xlu0 %v860
        %v884 = vpop.xlane.xlu0 %883
        %885 = vmax.xlane.f32.xlu0 %v861
        %v886 = vpop.xlane.xlu0 %885
        %887 = vmax.xlane.f32.xlu0 %v862
        %v888 = vpop.xlane.xlu0 %887
        %889 = vmax.xlane.f32.xlu0 %v863
        %v890 = vpop.xlane.xlu0 %889
        %891 = vmax.xlane.f32.xlu0 %v864
        %v892 = vpop.xlane.xlu0 %891
        %893 = vmax.xlane.f32.xlu0 %v865
        %v894 = vpop.xlane.xlu0 %893
        %895 = vmax.xlane.f32.xlu0 %v866
        %v896 = vpop.xlane.xlu0 %895
        %897 = vmax.xlane.f32.xlu0 %v867
        %v898 = vpop.xlane.xlu0 %897
        %899 = vmax.xlane.f32.xlu0 %v868
        %v900 = vpop.xlane.xlu0 %899
        %v901 = vsub.f32 %v853, %v870
        %v902 = vsub.f32 %v854, %v872
        %v903 = vsub.f32 %v855, %v874
        %v904 = vsub.f32 %v856, %v876
        %v905 = vsub.f32 %v857, %v878
        %v906 = vsub.f32 %v858, %v880
        %v907 = vsub.f32 %v859, %v882
        %v908 = vsub.f32 %v860, %v884
        %v909 = vsub.f32 %v861, %v886
        %v910 = vsub.f32 %v862, %v888
        %v911 = vsub.f32 %v863, %v890
        %v912 = vsub.f32 %v864, %v892
        %v913 = vsub.f32 %v865, %v894
        %v914 = vsub.f32 %v866, %v896
        %v915 = vsub.f32 %v867, %v898
        %v916 = vsub.f32 %v868, %v900
        %v917 = vmul.f32 %v901, 1.442695
        %v918 = vpow.pop %v917
        %v919 = vmul.f32 %v902, 1.442695
        %v920 = vpow.pop %v919
        %v921 = vmul.f32 %v903, 1.442695
        %v922 = vpow.pop %v921
        %v923 = vmul.f32 %v904, 1.442695
        %v924 = vpow.pop %v923
        %v925 = vmul.f32 %v905, 1.442695
        %v926 = vpow.pop %v925
        %v927 = vmul.f32 %v906, 1.442695
        %v928 = vpow.pop %v927
        %v929 = vmul.f32 %v907, 1.442695
        %v930 = vpow.pop %v929
        %v931 = vmul.f32 %v908, 1.442695
        %v932 = vpow.pop %v931
        %v933 = vmul.f32 %v909, 1.442695
        %v934 = vpow.pop %v933
        %v935 = vmul.f32 %v910, 1.442695
        %v936 = vpow.pop %v935
        %v937 = vmul.f32 %v911, 1.442695
        %v938 = vpow.pop %v937
        %v939 = vmul.f32 %v912, 1.442695
        %v940 = vpow.pop %v939
        %v941 = vmul.f32 %v913, 1.442695
        %v942 = vpow.pop %v941
        %v943 = vmul.f32 %v914, 1.442695
        %v944 = vpow.pop %v943
        %v945 = vmul.f32 %v915, 1.442695
        %v946 = vpow.pop %v945
        %v947 = vmul.f32 %v916, 1.442695
        %v948 = vpow.pop %v947
        %949 = vadd.xlane.f32.xlu0 %v918
        %v950 = vpop.xlane.xlu0 %949
        %951 = vadd.xlane.f32.xlu0 %v920
        %v952 = vpop.xlane.xlu0 %951
        %953 = vadd.xlane.f32.xlu0 %v922
        %v954 = vpop.xlane.xlu0 %953
        %955 = vadd.xlane.f32.xlu0 %v924
        %v956 = vpop.xlane.xlu0 %955
        %957 = vadd.xlane.f32.xlu0 %v926
        %v958 = vpop.xlane.xlu0 %957
        %959 = vadd.xlane.f32.xlu0 %v928
        %v960 = vpop.xlane.xlu0 %959
        %961 = vadd.xlane.f32.xlu0 %v930
        %v962 = vpop.xlane.xlu0 %961
        %963 = vadd.xlane.f32.xlu0 %v932
        %v964 = vpop.xlane.xlu0 %963
        %965 = vadd.xlane.f32.xlu0 %v934
        %v966 = vpop.xlane.xlu0 %965
        %967 = vadd.xlane.f32.xlu0 %v936
        %v968 = vpop.xlane.xlu0 %967
        %969 = vadd.xlane.f32.xlu0 %v938
        %v970 = vpop.xlane.xlu0 %969
        %971 = vadd.xlane.f32.xlu0 %v940
        %v972 = vpop.xlane.xlu0 %971
        %973 = vadd.xlane.f32.xlu0 %v942
        %v974 = vpop.xlane.xlu0 %973
        %975 = vadd.xlane.f32.xlu0 %v944
        %v976 = vpop.xlane.xlu0 %975
        %977 = vadd.xlane.f32.xlu0 %v946
        %v978 = vpop.xlane.xlu0 %977
        %979 = vadd.xlane.f32.xlu0 %v948
        %v980 = vpop.xlane.xlu0 %979
        %v981 = vrcp.pop %v950
        %v982 = vrcp.pop %v952
        %v983 = vrcp.pop %v954
        %v984 = vrcp.pop %v956
        %v985 = vrcp.pop %v958
        %v986 = vrcp.pop %v960
        %v987 = vrcp.pop %v962
        %v988 = vrcp.pop %v964
        %v989 = vrcp.pop %v966
        %v990 = vrcp.pop %v968
        %v991 = vrcp.pop %v970
        %v992 = vrcp.pop %v972
        %v993 = vrcp.pop %v974
        %v994 = vrcp.pop %v976
        %v995 = vrcp.pop %v978
        %v996 = vrcp.pop %v980
        %v997 = vmul.f32 %v918, %v981
        %v998 = vmul.f32 %v920, %v982
        %v999 = vmul.f32 %v922, %v983
        %v1000 = vmul.f32 %v924, %v984
        %v1001 = vmul.f32 %v926, %v985
        %v1002 = vmul.f32 %v928, %v986
        %v1003 = vmul.f32 %v930, %v987
        %v1004 = vmul.f32 %v932, %v988
        %v1005 = vmul.f32 %v934, %v989
        %v1006 = vmul.f32 %v936, %v990
        %v1007 = vmul.f32 %v938, %v991
        %v1008 = vmul.f32 %v940, %v992
        %v1009 = vmul.f32 %v942, %v993
        %v1010 = vmul.f32 %v944, %v994
        %v1011 = vmul.f32 %v946, %v995
        %v1012 = vmul.f32 %v948, %v996
        %v1013 = vld [vmem:[%s566 + $0x8] sm:$0xff]
        %v1014 = vld [vmem:[%s573 + $0x8] sm:$0xff]
        %1015 = vxpose.xlu0.b32.start [1/16] %v1013, 128
        %1016 = vxpose.xlu0.b32.cont [2/16] 0.0, 128
        %1017 = vxpose.xlu0.b32.cont [3/16] 0.0, 128
        %1018 = vxpose.xlu0.b32.cont [4/16] 0.0, 128
        %1019 = vxpose.xlu0.b32.cont [5/16] 0.0, 128
        %1020 = vxpose.xlu0.b32.cont [6/16] 0.0, 128
        %1021 = vxpose.xlu0.b32.cont [7/16] 0.0, 128
        %1022 = vxpose.xlu0.b32.cont [8/16] 0.0, 128
        %1023 = vxpose.xlu0.b32.cont [9/16] 0.0, 128
        %1024 = vxpose.xlu0.b32.cont [10/16] 0.0, 128
        %1025 = vxpose.xlu0.b32.cont [11/16] 0.0, 128
        %1026 = vxpose.xlu0.b32.cont [12/16] 0.0, 128
        %1027 = vxpose.xlu0.b32.cont [13/16] 0.0, 128
        %1028 = vxpose.xlu0.b32.cont [14/16] 0.0, 128
        %1029 = vxpose.xlu0.b32.cont [15/16] 0.0, 128
        %1030 = vxpose.xlu0.b32.end [16/16] 0.0, 128
        %v1031 = vpop.trf.xlu0
        %v1032 = vpop.trf.xlu0
        %v1033 = vpop.trf.xlu0
        %v1034 = vpop.trf.xlu0
        %v1035 = vpop.trf.xlu0
        %v1036 = vpop.trf.xlu0
        %v1037 = vpop.trf.xlu0
        %v1038 = vpop.trf.xlu0
        %v1039 = vpop.trf.xlu0
        %v1040 = vpop.trf.xlu0
        %v1041 = vpop.trf.xlu0
        %v1042 = vpop.trf.xlu0
        %v1043 = vpop.trf.xlu0
        %v1044 = vpop.trf.xlu0
        %v1045 = vpop.trf.xlu0
        %v1046 = vpop.trf.xlu0
        %v1048 = vsel %vm659, %v1031, 0
        %v1051 = vsel %vm659, %v1032, 0
        %v1054 = vsel %vm659, %v1033, 0
        %v1057 = vsel %vm659, %v1034, 0
        %v1060 = vsel %vm659, %v1035, 0
        %v1063 = vsel %vm659, %v1036, 0
        %v1066 = vsel %vm659, %v1037, 0
        %v1069 = vsel %vm659, %v1038, 0
        %v1072 = vsel %vm659, %v1039, 0
        %v1075 = vsel %vm659, %v1040, 0
        %v1078 = vsel %vm659, %v1041, 0
        %v1081 = vsel %vm659, %v1042, 0
        %v1084 = vsel %vm659, %v1043, 0
        %v1087 = vsel %vm659, %v1044, 0
        %v1090 = vsel %vm659, %v1045, 0
        %v1093 = vsel %vm659, %v1046, 0
        %1095 = vmatprep.subr.mxu0 0.0
        %1096 = vmatpush1.msra.mxu0 %v1014
        %1097 = vmatprep.subr.mxu0 0.0
        %1098 = vmatpush1.msra.mxu0 0.0
        %1099 = vmatprep.subr.mxu0 0.0
        %1100 = vmatpush1.msra.mxu0 0.0
        %1101 = vmatprep.subr.mxu0 0.0
        %1102 = vmatpush1.msra.mxu0 0.0
        %1103 = vmatprep.subr.mxu0 0.0
        %1104 = vmatpush1.msra.mxu0 0.0
        %1105 = vmatprep.subr.mxu0 0.0
        %1106 = vmatpush1.msra.mxu0 0.0
        %1107 = vmatprep.subr.mxu0 0.0
        %1108 = vmatpush1.msra.mxu0 0.0
        %1109 = vmatprep.subr.mxu0 0.0
        %1110 = vmatpush1.msra.mxu0 0.0
        %1111 = vmatprep.subr.mxu0 0.0
        %1112 = vmatpush1.msra.mxu0 0.0
        %1113 = vmatprep.subr.mxu0 0.0
        %1114 = vmatpush1.msra.mxu0 0.0
        %1115 = vmatprep.subr.mxu0 0.0
        %1116 = vmatpush1.msra.mxu0 0.0
        %1117 = vmatprep.subr.mxu0 0.0
        %1118 = vmatpush1.msra.mxu0 0.0
        %1119 = vmatprep.subr.mxu0 0.0
        %1120 = vmatpush1.msra.mxu0 0.0
        %1121 = vmatprep.subr.mxu0 0.0
        %1122 = vmatpush1.msra.mxu0 0.0
        %1123 = vmatprep.subr.mxu0 0.0
        %1124 = vmatpush1.msra.mxu0 0.0
        %1125 = vmatprep.subr.mxu0 0.0
        %1126 = vmatpush1.msra.mxu0 0.0
        %1127 = vmatprep.subr.mxu0 0.0
        %1128 = vmatpush1.msra.mxu0 0.0
        %1129 = vmatprep.subr.mxu0 0.0
        %1130 = vmatpush1.msra.mxu0 0.0
        %1131 = vmatprep.subr.mxu0 0.0
        %1132 = vmatpush1.msra.mxu0 0.0
        %1133 = vmatprep.subr.mxu0 0.0
        %1134 = vmatpush1.msra.mxu0 0.0
        %1135 = vmatprep.subr.mxu0 0.0
        %1136 = vmatpush1.msra.mxu0 0.0
        %1137 = vmatprep.subr.mxu0 0.0
        %1138 = vmatpush1.msra.mxu0 0.0
        %1139 = vmatprep.subr.mxu0 0.0
        %1140 = vmatpush1.msra.mxu0 0.0
        %1141 = vmatprep.subr.mxu0 0.0
        %1142 = vmatpush1.msra.mxu0 0.0
        %1143 = vmatprep.subr.mxu0 0.0
        %1144 = vmatpush1.msra.mxu0 0.0
        %1145 = vmatprep.subr.mxu0 0.0
        %1146 = vmatpush1.msra.mxu0 0.0
        %1147 = vmatprep.subr.mxu0 0.0
        %1148 = vmatpush1.msra.mxu0 0.0
        %1149 = vmatprep.subr.mxu0 0.0
        %1150 = vmatpush1.msra.mxu0 0.0
        %1151 = vmatprep.subr.mxu0 0.0
        %1152 = vmatpush1.msra.mxu0 0.0
        %1153 = vmatprep.subr.mxu0 0.0
        %1154 = vmatpush1.msra.mxu0 0.0
        %1155 = vmatprep.subr.mxu0 0.0
        %1156 = vmatpush1.msra.mxu0 0.0
        %1157 = vmatprep.subr.mxu0 0.0
        %1158 = vmatpush1.msra.mxu0 0.0
        %1159 = vmatprep.mubr.f32.mxu0 0.0
        %1160 = vmatmul.mubr.f32.gmra.mrb[0].mxu0 %v1048
        %v1161 = vpop.f32.mrb[0].mxu0
        %v1162 = vadd.f32 0.0, %v1161
        %v1163 = vpop.f32.mrb[0].mxu0
        %1164 = vmatprep.mubr.f32.mxu0 0.0
        %1165 = vmatmul.mubr.f32.gmra.mrb[0].mxu0 %v1051
        %v1166 = vpop.f32.mrb[0].mxu0
        %v1167 = vadd.f32 0.0, %v1166
        %v1168 = vpop.f32.mrb[0].mxu0
        %1169 = vmatprep.mubr.f32.mxu0 0.0
        %1170 = vmatmul.mubr.f32.gmra.mrb[0].mxu0 %v1054
        %v1171 = vpop.f32.mrb[0].mxu0
        %v1172 = vadd.f32 0.0, %v1171
        %v1173 = vpop.f32.mrb[0].mxu0
        %1174 = vmatprep.mubr.f32.mxu0 0.0
        %1175 = vmatmul.mubr.f32.gmra.mrb[0].mxu0 %v1057
        %v1176 = vpop.f32.mrb[0].mxu0
        %v1177 = vadd.f32 0.0, %v1176
        %v1178 = vpop.f32.mrb[0].mxu0
        %1179 = vmatprep.mubr.f32.mxu0 0.0
        %1180 = vmatmul.mubr.f32.gmra.mrb[0].mxu0 %v1060
        %v1181 = vpop.f32.mrb[0].mxu0
        %v1182 = vadd.f32 0.0, %v1181
        %v1183 = vpop.f32.mrb[0].mxu0
        %1184 = vmatprep.mubr.f32.mxu0 0.0
        %1185 = vmatmul.mubr.f32.gmra.mrb[0].mxu0 %v1063
        %v1186 = vpop.f32.mrb[0].mxu0
        %v1187 = vadd.f32 0.0, %v1186
        %v1188 = vpop.f32.mrb[0].mxu0
        %1189 = vmatprep.mubr.f32.mxu0 0.0
        %1190 = vmatmul.mubr.f32.gmra.mrb[0].mxu0 %v1066
        %v1191 = vpop.f32.mrb[0].mxu0
        %v1192 = vadd.f32 0.0, %v1191
        %v1193 = vpop.f32.mrb[0].mxu0
        %1194 = vmatprep.mubr.f32.mxu0 0.0
        %1195 = vmatmul.mubr.f32.gmra.mrb[0].mxu0 %v1069
        %v1196 = vpop.f32.mrb[0].mxu0
        %v1197 = vadd.f32 0.0, %v1196
        %v1198 = vpop.f32.mrb[0].mxu0
        %1199 = vmatprep.mubr.f32.mxu0 0.0
        %1200 = vmatmul.mubr.f32.gmra.mrb[0].mxu0 %v1072
        %v1201 = vpop.f32.mrb[0].mxu0
        %v1202 = vadd.f32 0.0, %v1201
        %v1203 = vpop.f32.mrb[0].mxu0
        %1204 = vmatprep.mubr.f32.mxu0 0.0
        %1205 = vmatmul.mubr.f32.gmra.mrb[0].mxu0 %v1075
        %v1206 = vpop.f32.mrb[0].mxu0
        %v1207 = vadd.f32 0.0, %v1206
        %v1208 = vpop.f32.mrb[0].mxu0
        %1209 = vmatprep.mubr.f32.mxu0 0.0
        %1210 = vmatmul.mubr.f32.gmra.mrb[0].mxu0 %v1078
        %v1211 = vpop.f32.mrb[0].mxu0
        %v1212 = vadd.f32 0.0, %v1211
        %v1213 = vpop.f32.mrb[0].mxu0
        %1214 = vmatprep.mubr.f32.mxu0 0.0
        %1215 = vmatmul.mubr.f32.gmra.mrb[0].mxu0 %v1081
        %v1216 = vpop.f32.mrb[0].mxu0
        %v1217 = vadd.f32 0.0, %v1216
        %v1218 = vpop.f32.mrb[0].mxu0
        %1219 = vmatprep.mubr.f32.mxu0 0.0
        %1220 = vmatmul.mubr.f32.gmra.mrb[0].mxu0 %v1084
        %v1221 = vpop.f32.mrb[0].mxu0
        %v1222 = vadd.f32 0.0, %v1221
        %v1223 = vpop.f32.mrb[0].mxu0
        %1224 = vmatprep.mubr.f32.mxu0 0.0
        %1225 = vmatmul.mubr.f32.gmra.mrb[0].mxu0 %v1087
        %v1226 = vpop.f32.mrb[0].mxu0
        %v1227 = vadd.f32 0.0, %v1226
        %v1228 = vpop.f32.mrb[0].mxu0
        %1229 = vmatprep.mubr.f32.mxu0 0.0
        %1230 = vmatmul.mubr.f32.gmra.mrb[0].mxu0 %v1090
        %v1231 = vpop.f32.mrb[0].mxu0
        %v1232 = vadd.f32 0.0, %v1231
        %v1233 = vpop.f32.mrb[0].mxu0
        %1234 = vmatprep.mubr.f32.mxu0 0.0
        %1235 = vmatmul.mubr.f32.gmra.mrb[0].mxu0 %v1093
        %v1236 = vpop.f32.mrb[0].mxu0
        %v1237 = vadd.f32 0.0, %v1236
        %v1238 = vpop.f32.mrb[0].mxu0
        %1239 = vdwg.mxu0
        %v1240 = vand.u32 2147483647, %v1162
        %v1241 = vand.u32 2147483647, %v1167
        %v1242 = vand.u32 2147483647, %v1172
        %v1243 = vand.u32 2147483647, %v1177
        %v1244 = vand.u32 2147483647, %v1182
        %v1245 = vand.u32 2147483647, %v1187
        %v1246 = vand.u32 2147483647, %v1192
        %v1247 = vand.u32 2147483647, %v1197
        %v1248 = vand.u32 2147483647, %v1202
        %v1249 = vand.u32 2147483647, %v1207
        %v1250 = vand.u32 2147483647, %v1212
        %v1251 = vand.u32 2147483647, %v1217
        %v1252 = vand.u32 2147483647, %v1222
        %v1253 = vand.u32 2147483647, %v1227
        %v1254 = vand.u32 2147483647, %v1232
        %v1255 = vand.u32 2147483647, %v1237
        %1256 = vmax.xlane.f32.xlu0 %v1240
        %v1257 = vpop.xlane.xlu0 %1256
        %1258 = vmax.xlane.f32.xlu0 %v1241
        %v1259 = vpop.xlane.xlu0 %1258
        %1260 = vmax.xlane.f32.xlu0 %v1242
        %v1261 = vpop.xlane.xlu0 %1260
        %1262 = vmax.xlane.f32.xlu0 %v1243
        %v1263 = vpop.xlane.xlu0 %1262
        %1264 = vmax.xlane.f32.xlu0 %v1244
        %v1265 = vpop.xlane.xlu0 %1264
        %1266 = vmax.xlane.f32.xlu0 %v1245
        %v1267 = vpop.xlane.xlu0 %1266
        %1268 = vmax.xlane.f32.xlu0 %v1246
        %v1269 = vpop.xlane.xlu0 %1268
        %1270 = vmax.xlane.f32.xlu0 %v1247
        %v1271 = vpop.xlane.xlu0 %1270
        %1272 = vmax.xlane.f32.xlu0 %v1248
        %v1273 = vpop.xlane.xlu0 %1272
        %1274 = vmax.xlane.f32.xlu0 %v1249
        %v1275 = vpop.xlane.xlu0 %1274
        %1276 = vmax.xlane.f32.xlu0 %v1250
        %v1277 = vpop.xlane.xlu0 %1276
        %1278 = vmax.xlane.f32.xlu0 %v1251
        %v1279 = vpop.xlane.xlu0 %1278
        %1280 = vmax.xlane.f32.xlu0 %v1252
        %v1281 = vpop.xlane.xlu0 %1280
        %1282 = vmax.xlane.f32.xlu0 %v1253
        %v1283 = vpop.xlane.xlu0 %1282
        %1284 = vmax.xlane.f32.xlu0 %v1254
        %v1285 = vpop.xlane.xlu0 %1284
        %1286 = vmax.xlane.f32.xlu0 %v1255
        %v1287 = vpop.xlane.xlu0 %1286
        %v1288 = vsub.f32 %v1240, %v1257
        %v1289 = vsub.f32 %v1241, %v1259
        %v1290 = vsub.f32 %v1242, %v1261
        %v1291 = vsub.f32 %v1243, %v1263
        %v1292 = vsub.f32 %v1244, %v1265
        %v1293 = vsub.f32 %v1245, %v1267
        %v1294 = vsub.f32 %v1246, %v1269
        %v1295 = vsub.f32 %v1247, %v1271
        %v1296 = vsub.f32 %v1248, %v1273
        %v1297 = vsub.f32 %v1249, %v1275
        %v1298 = vsub.f32 %v1250, %v1277
        %v1299 = vsub.f32 %v1251, %v1279
        %v1300 = vsub.f32 %v1252, %v1281
        %v1301 = vsub.f32 %v1253, %v1283
        %v1302 = vsub.f32 %v1254, %v1285
        %v1303 = vsub.f32 %v1255, %v1287
        %v1304 = vmul.f32 %v1288, 1.442695
        %v1305 = vpow.pop %v1304
        %v1306 = vmul.f32 %v1289, 1.442695
        %v1307 = vpow.pop %v1306
        %v1308 = vmul.f32 %v1290, 1.442695
        %v1309 = vpow.pop %v1308
        %v1310 = vmul.f32 %v1291, 1.442695
        %v1311 = vpow.pop %v1310
        %v1312 = vmul.f32 %v1292, 1.442695
        %v1313 = vpow.pop %v1312
        %v1314 = vmul.f32 %v1293, 1.442695
        %v1315 = vpow.pop %v1314
        %v1316 = vmul.f32 %v1294, 1.442695
        %v1317 = vpow.pop %v1316
        %v1318 = vmul.f32 %v1295, 1.442695
        %v1319 = vpow.pop %v1318
        %v1320 = vmul.f32 %v1296, 1.442695
        %v1321 = vpow.pop %v1320
        %v1322 = vmul.f32 %v1297, 1.442695
        %v1323 = vpow.pop %v1322
        %v1324 = vmul.f32 %v1298, 1.442695
        %v1325 = vpow.pop %v1324
        %v1326 = vmul.f32 %v1299, 1.442695
        %v1327 = vpow.pop %v1326
        %v1328 = vmul.f32 %v1300, 1.442695
        %v1329 = vpow.pop %v1328
        %v1330 = vmul.f32 %v1301, 1.442695
        %v1331 = vpow.pop %v1330
        %v1332 = vmul.f32 %v1302, 1.442695
        %v1333 = vpow.pop %v1332
        %v1334 = vmul.f32 %v1303, 1.442695
        %v1335 = vpow.pop %v1334
        %1336 = vadd.xlane.f32.xlu0 %v1305
        %v1337 = vpop.xlane.xlu0 %1336
        %1338 = vadd.xlane.f32.xlu0 %v1307
        %v1339 = vpop.xlane.xlu0 %1338
        %1340 = vadd.xlane.f32.xlu0 %v1309
        %v1341 = vpop.xlane.xlu0 %1340
        %1342 = vadd.xlane.f32.xlu0 %v1311
        %v1343 = vpop.xlane.xlu0 %1342
        %1344 = vadd.xlane.f32.xlu0 %v1313
        %v1345 = vpop.xlane.xlu0 %1344
        %1346 = vadd.xlane.f32.xlu0 %v1315
        %v1347 = vpop.xlane.xlu0 %1346
        %1348 = vadd.xlane.f32.xlu0 %v1317
        %v1349 = vpop.xlane.xlu0 %1348
        %1350 = vadd.xlane.f32.xlu0 %v1319
        %v1351 = vpop.xlane.xlu0 %1350
        %1352 = vadd.xlane.f32.xlu0 %v1321
        %v1353 = vpop.xlane.xlu0 %1352
        %1354 = vadd.xlane.f32.xlu0 %v1323
        %v1355 = vpop.xlane.xlu0 %1354
        %1356 = vadd.xlane.f32.xlu0 %v1325
        %v1357 = vpop.xlane.xlu0 %1356
        %1358 = vadd.xlane.f32.xlu0 %v1327
        %v1359 = vpop.xlane.xlu0 %1358
        %1360 = vadd.xlane.f32.xlu0 %v1329
        %v1361 = vpop.xlane.xlu0 %1360
        %1362 = vadd.xlane.f32.xlu0 %v1331
        %v1363 = vpop.xlane.xlu0 %1362
        %1364 = vadd.xlane.f32.xlu0 %v1333
        %v1365 = vpop.xlane.xlu0 %1364
        %1366 = vadd.xlane.f32.xlu0 %v1335
        %v1367 = vpop.xlane.xlu0 %1366
        %v1368 = vrcp.pop %v1337
        %v1369 = vrcp.pop %v1339
        %v1370 = vrcp.pop %v1341
        %v1371 = vrcp.pop %v1343
        %v1372 = vrcp.pop %v1345
        %v1373 = vrcp.pop %v1347
        %v1374 = vrcp.pop %v1349
        %v1375 = vrcp.pop %v1351
        %v1376 = vrcp.pop %v1353
        %v1377 = vrcp.pop %v1355
        %v1378 = vrcp.pop %v1357
        %v1379 = vrcp.pop %v1359
        %v1380 = vrcp.pop %v1361
        %v1381 = vrcp.pop %v1363
        %v1382 = vrcp.pop %v1365
        %v1383 = vrcp.pop %v1367
        %v1384 = vmul.f32 %v1305, %v1368
        %v1385 = vmul.f32 %v1307, %v1369
        %v1386 = vmul.f32 %v1309, %v1370
        %v1387 = vmul.f32 %v1311, %v1371
        %v1388 = vmul.f32 %v1313, %v1372
        %v1389 = vmul.f32 %v1315, %v1373
        %v1390 = vmul.f32 %v1317, %v1374
        %v1391 = vmul.f32 %v1319, %v1375
        %v1392 = vmul.f32 %v1321, %v1376
        %v1393 = vmul.f32 %v1323, %v1377
        %v1394 = vmul.f32 %v1325, %v1378
        %v1395 = vmul.f32 %v1327, %v1379
        %v1396 = vmul.f32 %v1329, %v1380
        %v1397 = vmul.f32 %v1331, %v1381
        %v1398 = vmul.f32 %v1333, %v1382
        %v1399 = vmul.f32 %v1335, %v1383
        %v1400 = vadd.f32 %v997, %v1384
        %v1401 = vadd.f32 %v998, %v1385
        %v1402 = vadd.f32 %v999, %v1386
        %v1403 = vadd.f32 %v1000, %v1387
        %v1404 = vadd.f32 %v1001, %v1388
        %v1405 = vadd.f32 %v1002, %v1389
        %v1406 = vadd.f32 %v1003, %v1390
        %v1407 = vadd.f32 %v1004, %v1391
        %v1408 = vadd.f32 %v1005, %v1392
        %v1409 = vadd.f32 %v1006, %v1393
        %v1410 = vadd.f32 %v1007, %v1394
        %v1411 = vadd.f32 %v1008, %v1395
        %v1412 = vadd.f32 %v1009, %v1396
        %v1413 = vadd.f32 %v1010, %v1397
        %v1414 = vadd.f32 %v1011, %v1398
        %v1415 = vadd.f32 %v1012, %v1399
        %v1416 = vld [vmem:[%s566 + $0x10] sm:$0xff]
        %v1417 = vld [vmem:[%s573 + $0x10] sm:$0xff]
        %1418 = vxpose.xlu0.b32.start [1/16] %v1416, 128
        %1419 = vxpose.xlu0.b32.cont [2/16] 0.0, 128
        %1420 = vxpose.xlu0.b32.cont [3/16] 0.0, 128
        %1421 = vxpose.xlu0.b32.cont [4/16] 0.0, 128
        %1422 = vxpose.xlu0.b32.cont [5/16] 0.0, 128
        %1423 = vxpose.xlu0.b32.cont [6/16] 0.0, 128
        %1424 = vxpose.xlu0.b32.cont [7/16] 0.0, 128
        %1425 = vxpose.xlu0.b32.cont [8/16] 0.0, 128
        %1426 = vxpose.xlu0.b32.cont [9/16] 0.0, 128
        %1427 = vxpose.xlu0.b32.cont [10/16] 0.0, 128
        %1428 = vxpose.xlu0.b32.cont [11/16] 0.0, 128
        %1429 = vxpose.xlu0.b32.cont [12/16] 0.0, 128
        %1430 = vxpose.xlu0.b32.cont [13/16] 0.0, 128
        %1431 = vxpose.xlu0.b32.cont [14/16] 0.0, 128
        %1432 = vxpose.xlu0.b32.cont [15/16] 0.0, 128
        %1433 = vxpose.xlu0.b32.end [16/16] 0.0, 128
        %v1434 = vpop.trf.xlu0
        %v1435 = vpop.trf.xlu0
        %v1436 = vpop.trf.xlu0
        %v1437 = vpop.trf.xlu0
        %v1438 = vpop.trf.xlu0
        %v1439 = vpop.trf.xlu0
        %v1440 = vpop.trf.xlu0
        %v1441 = vpop.trf.xlu0
        %v1442 = vpop.trf.xlu0
        %v1443 = vpop.trf.xlu0
        %v1444 = vpop.trf.xlu0
        %v1445 = vpop.trf.xlu0
        %v1446 = vpop.trf.xlu0
        %v1447 = vpop.trf.xlu0
        %v1448 = vpop.trf.xlu0
        %v1449 = vpop.trf.xlu0
        %v1451 = vsel %vm659, %v1434, 0
        %v1454 = vsel %vm659, %v1435, 0
        %v1457 = vsel %vm659, %v1436, 0
        %v1460 = vsel %vm659, %v1437, 0
        %v1463 = vsel %vm659, %v1438, 0
        %v1466 = vsel %vm659, %v1439, 0
        %v1469 = vsel %vm659, %v1440, 0
        %v1472 = vsel %vm659, %v1441, 0
        %v1475 = vsel %vm659, %v1442, 0
        %v1478 = vsel %vm659, %v1443, 0
        %v1481 = vsel %vm659, %v1444, 0
        %v1484 = vsel %vm659, %v1445, 0
        %v1487 = vsel %vm659, %v1446, 0
        %v1490 = vsel %vm659, %v1447, 0
        %v1493 = vsel %vm659, %v1448, 0
        %v1496 = vsel %vm659, %v1449, 0
        %1498 = vmatprep.subr.mxu0 0.0
        %1499 = vmatpush1.msra.mxu0 %v1417
        %1500 = vmatprep.subr.mxu0 0.0
        %1501 = vmatpush1.msra.mxu0 0.0
        %1502 = vmatprep.subr.mxu0 0.0
        %1503 = vmatpush1.msra.mxu0 0.0
        %1504 = vmatprep.subr.mxu0 0.0
        %1505 = vmatpush1.msra.mxu0 0.0
        %1506 = vmatprep.subr.mxu0 0.0
        %1507 = vmatpush1.msra.mxu0 0.0
        %1508 = vmatprep.subr.mxu0 0.0
        %1509 = vmatpush1.msra.mxu0 0.0
        %1510 = vmatprep.subr.mxu0 0.0
        %1511 = vmatpush1.msra.mxu0 0.0
        %1512 = vmatprep.subr.mxu0 0.0
        %1513 = vmatpush1.msra.mxu0 0.0
        %1514 = vmatprep.subr.mxu0 0.0
        %1515 = vmatpush1.msra.mxu0 0.0
        %1516 = vmatprep.subr.mxu0 0.0
        %1517 = vmatpush1.msra.mxu0 0.0
        %1518 = vmatprep.subr.mxu0 0.0
        %1519 = vmatpush1.msra.mxu0 0.0
        %1520 = vmatprep.subr.mxu0 0.0
        %1521 = vmatpush1.msra.mxu0 0.0
        %1522 = vmatprep.subr.mxu0 0.0
        %1523 = vmatpush1.msra.mxu0 0.0
        %1524 = vmatprep.subr.mxu0 0.0
        %1525 = vmatpush1.msra.mxu0 0.0
        %1526 = vmatprep.subr.mxu0 0.0
        %1527 = vmatpush1.msra.mxu0 0.0
        %1528 = vmatprep.subr.mxu0 0.0
        %1529 = vmatpush1.msra.mxu0 0.0
        %1530 = vmatprep.subr.mxu0 0.0
        %1531 = vmatpush1.msra.mxu0 0.0
        %1532 = vmatprep.subr.mxu0 0.0
        %1533 = vmatpush1.msra.mxu0 0.0
        %1534 = vmatprep.subr.mxu0 0.0
        %1535 = vmatpush1.msra.mxu0 0.0
        %1536 = vmatprep.subr.mxu0 0.0
        %1537 = vmatpush1.msra.mxu0 0.0
        %1538 = vmatprep.subr.mxu0 0.0
        %1539 = vmatpush1.msra.mxu0 0.0
        %1540 = vmatprep.subr.mxu0 0.0
        %1541 = vmatpush1.msra.mxu0 0.0
        %1542 = vmatprep.subr.mxu0 0.0
        %1543 = vmatpush1.msra.mxu0 0.0
        %1544 = vmatprep.subr.mxu0 0.0
        %1545 = vmatpush1.msra.mxu0 0.0
        %1546 = vmatprep.subr.mxu0 0.0
        %1547 = vmatpush1.msra.mxu0 0.0
        %1548 = vmatprep.subr.mxu0 0.0
        %1549 = vmatpush1.msra.mxu0 0.0
        %1550 = vmatprep.subr.mxu0 0.0
        %1551 = vmatpush1.msra.mxu0 0.0
        %1552 = vmatprep.subr.mxu0 0.0
        %1553 = vmatpush1.msra.mxu0 0.0
        %1554 = vmatprep.subr.mxu0 0.0
        %1555 = vmatpush1.msra.mxu0 0.0
        %1556 = vmatprep.subr.mxu0 0.0
        %1557 = vmatpush1.msra.mxu0 0.0
        %1558 = vmatprep.subr.mxu0 0.0
        %1559 = vmatpush1.msra.mxu0 0.0
        %1560 = vmatprep.subr.mxu0 0.0
        %1561 = vmatpush1.msra.mxu0 0.0
        %1562 = vmatprep.mubr.f32.mxu0 0.0
        %1563 = vmatmul.mubr.f32.gmra.mrb[0].mxu0 %v1451
        %v1564 = vpop.f32.mrb[0].mxu0
        %v1565 = vadd.f32 0.0, %v1564
        %v1566 = vpop.f32.mrb[0].mxu0
        %1567 = vmatprep.mubr.f32.mxu0 0.0
        %1568 = vmatmul.mubr.f32.gmra.mrb[0].mxu0 %v1454
        %v1569 = vpop.f32.mrb[0].mxu0
        %v1570 = vadd.f32 0.0, %v1569
        %v1571 = vpop.f32.mrb[0].mxu0
        %1572 = vmatprep.mubr.f32.mxu0 0.0
        %1573 = vmatmul.mubr.f32.gmra.mrb[0].mxu0 %v1457
        %v1574 = vpop.f32.mrb[0].mxu0
        %v1575 = vadd.f32 0.0, %v1574
        %v1576 = vpop.f32.mrb[0].mxu0
        %1577 = vmatprep.mubr.f32.mxu0 0.0
        %1578 = vmatmul.mubr.f32.gmra.mrb[0].mxu0 %v1460
        %v1579 = vpop.f32.mrb[0].mxu0
        %v1580 = vadd.f32 0.0, %v1579
        %v1581 = vpop.f32.mrb[0].mxu0
        %1582 = vmatprep.mubr.f32.mxu0 0.0
        %1583 = vmatmul.mubr.f32.gmra.mrb[0].mxu0 %v1463
        %v1584 = vpop.f32.mrb[0].mxu0
        %v1585 = vadd.f32 0.0, %v1584
        %v1586 = vpop.f32.mrb[0].mxu0
        %1587 = vmatprep.mubr.f32.mxu0 0.0
        %1588 = vmatmul.mubr.f32.gmra.mrb[0].mxu0 %v1466
        %v1589 = vpop.f32.mrb[0].mxu0
        %v1590 = vadd.f32 0.0, %v1589
        %v1591 = vpop.f32.mrb[0].mxu0
        %1592 = vmatprep.mubr.f32.mxu0 0.0
        %1593 = vmatmul.mubr.f32.gmra.mrb[0].mxu0 %v1469
        %v1594 = vpop.f32.mrb[0].mxu0
        %v1595 = vadd.f32 0.0, %v1594
        %v1596 = vpop.f32.mrb[0].mxu0
        %1597 = vmatprep.mubr.f32.mxu0 0.0
        %1598 = vmatmul.mubr.f32.gmra.mrb[0].mxu0 %v1472
        %v1599 = vpop.f32.mrb[0].mxu0
        %v1600 = vadd.f32 0.0, %v1599
        %v1601 = vpop.f32.mrb[0].mxu0
        %1602 = vmatprep.mubr.f32.mxu0 0.0
        %1603 = vmatmul.mubr.f32.gmra.mrb[0].mxu0 %v1475
        %v1604 = vpop.f32.mrb[0].mxu0
        %v1605 = vadd.f32 0.0, %v1604
        %v1606 = vpop.f32.mrb[0].mxu0
        %1607 = vmatprep.mubr.f32.mxu0 0.0
        %1608 = vmatmul.mubr.f32.gmra.mrb[0].mxu0 %v1478
        %v1609 = vpop.f32.mrb[0].mxu0
        %v1610 = vadd.f32 0.0, %v1609
        %v1611 = vpop.f32.mrb[0].mxu0
        %1612 = vmatprep.mubr.f32.mxu0 0.0
        %1613 = vmatmul.mubr.f32.gmra.mrb[0].mxu0 %v1481
        %v1614 = vpop.f32.mrb[0].mxu0
        %v1615 = vadd.f32 0.0, %v1614
        %v1616 = vpop.f32.mrb[0].mxu0
        %1617 = vmatprep.mubr.f32.mxu0 0.0
        %1618 = vmatmul.mubr.f32.gmra.mrb[0].mxu0 %v1484
        %v1619 = vpop.f32.mrb[0].mxu0
        %v1620 = vadd.f32 0.0, %v1619
        %v1621 = vpop.f32.mrb[0].mxu0
        %1622 = vmatprep.mubr.f32.mxu0 0.0
        %1623 = vmatmul.mubr.f32.gmra.mrb[0].mxu0 %v1487
        %v1624 = vpop.f32.mrb[0].mxu0
        %v1625 = vadd.f32 0.0, %v1624
        %v1626 = vpop.f32.mrb[0].mxu0
        %1627 = vmatprep.mubr.f32.mxu0 0.0
        %1628 = vmatmul.mubr.f32.gmra.mrb[0].mxu0 %v1490
        %v1629 = vpop.f32.mrb[0].mxu0
        %v1630 = vadd.f32 0.0, %v1629
        %v1631 = vpop.f32.mrb[0].mxu0
        %1632 = vmatprep.mubr.f32.mxu0 0.0
        %1633 = vmatmul.mubr.f32.gmra.mrb[0].mxu0 %v1493
        %v1634 = vpop.f32.mrb[0].mxu0
        %v1635 = vadd.f32 0.0, %v1634
        %v1636 = vpop.f32.mrb[0].mxu0
        %1637 = vmatprep.mubr.f32.mxu0 0.0
        %1638 = vmatmul.mubr.f32.gmra.mrb[0].mxu0 %v1496
        %v1639 = vpop.f32.mrb[0].mxu0
        %v1640 = vadd.f32 0.0, %v1639
        %v1641 = vpop.f32.mrb[0].mxu0
        %1642 = vdwg.mxu0
        %v1643 = vand.u32 2147483647, %v1565
        %v1644 = vand.u32 2147483647, %v1570
        %v1645 = vand.u32 2147483647, %v1575
        %v1646 = vand.u32 2147483647, %v1580
        %v1647 = vand.u32 2147483647, %v1585
        %v1648 = vand.u32 2147483647, %v1590
        %v1649 = vand.u32 2147483647, %v1595
        %v1650 = vand.u32 2147483647, %v1600
        %v1651 = vand.u32 2147483647, %v1605
        %v1652 = vand.u32 2147483647, %v1610
        %v1653 = vand.u32 2147483647, %v1615
        %v1654 = vand.u32 2147483647, %v1620
        %v1655 = vand.u32 2147483647, %v1625
        %v1656 = vand.u32 2147483647, %v1630
        %v1657 = vand.u32 2147483647, %v1635
        %v1658 = vand.u32 2147483647, %v1640
        %1659 = vmax.xlane.f32.xlu0 %v1643
        %v1660 = vpop.xlane.xlu0 %1659
        %1661 = vmax.xlane.f32.xlu0 %v1644
        %v1662 = vpop.xlane.xlu0 %1661
        %1663 = vmax.xlane.f32.xlu0 %v1645
        %v1664 = vpop.xlane.xlu0 %1663
        %1665 = vmax.xlane.f32.xlu0 %v1646
        %v1666 = vpop.xlane.xlu0 %1665
        %1667 = vmax.xlane.f32.xlu0 %v1647
        %v1668 = vpop.xlane.xlu0 %1667
        %1669 = vmax.xlane.f32.xlu0 %v1648
        %v1670 = vpop.xlane.xlu0 %1669
        %1671 = vmax.xlane.f32.xlu0 %v1649
        %v1672 = vpop.xlane.xlu0 %1671
        %1673 = vmax.xlane.f32.xlu0 %v1650
        %v1674 = vpop.xlane.xlu0 %1673
        %1675 = vmax.xlane.f32.xlu0 %v1651
        %v1676 = vpop.xlane.xlu0 %1675
        %1677 = vmax.xlane.f32.xlu0 %v1652
        %v1678 = vpop.xlane.xlu0 %1677
        %1679 = vmax.xlane.f32.xlu0 %v1653
        %v1680 = vpop.xlane.xlu0 %1679
        %1681 = vmax.xlane.f32.xlu0 %v1654
        %v1682 = vpop.xlane.xlu0 %1681
        %1683 = vmax.xlane.f32.xlu0 %v1655
        %v1684 = vpop.xlane.xlu0 %1683
        %1685 = vmax.xlane.f32.xlu0 %v1656
        %v1686 = vpop.xlane.xlu0 %1685
        %1687 = vmax.xlane.f32.xlu0 %v1657
        %v1688 = vpop.xlane.xlu0 %1687
        %1689 = vmax.xlane.f32.xlu0 %v1658
        %v1690 = vpop.xlane.xlu0 %1689
        %v1691 = vsub.f32 %v1643, %v1660
        %v1692 = vsub.f32 %v1644, %v1662
        %v1693 = vsub.f32 %v1645, %v1664
        %v1694 = vsub.f32 %v1646, %v1666
        %v1695 = vsub.f32 %v1647, %v1668
        %v1696 = vsub.f32 %v1648, %v1670
        %v1697 = vsub.f32 %v1649, %v1672
        %v1698 = vsub.f32 %v1650, %v1674
        %v1699 = vsub.f32 %v1651, %v1676
        %v1700 = vsub.f32 %v1652, %v1678
        %v1701 = vsub.f32 %v1653, %v1680
        %v1702 = vsub.f32 %v1654, %v1682
        %v1703 = vsub.f32 %v1655, %v1684
        %v1704 = vsub.f32 %v1656, %v1686
        %v1705 = vsub.f32 %v1657, %v1688
        %v1706 = vsub.f32 %v1658, %v1690
        %v1707 = vmul.f32 %v1691, 1.442695
        %v1708 = vpow.pop %v1707
        %v1709 = vmul.f32 %v1692, 1.442695
        %v1710 = vpow.pop %v1709
        %v1711 = vmul.f32 %v1693, 1.442695
        %v1712 = vpow.pop %v1711
        %v1713 = vmul.f32 %v1694, 1.442695
        %v1714 = vpow.pop %v1713
        %v1715 = vmul.f32 %v1695, 1.442695
        %v1716 = vpow.pop %v1715
        %v1717 = vmul.f32 %v1696, 1.442695
        %v1718 = vpow.pop %v1717
        %v1719 = vmul.f32 %v1697, 1.442695
        %v1720 = vpow.pop %v1719
        %v1721 = vmul.f32 %v1698, 1.442695
        %v1722 = vpow.pop %v1721
        %v1723 = vmul.f32 %v1699, 1.442695
        %v1724 = vpow.pop %v1723
        %v1725 = vmul.f32 %v1700, 1.442695
        %v1726 = vpow.pop %v1725
        %v1727 = vmul.f32 %v1701, 1.442695
        %v1728 = vpow.pop %v1727
        %v1729 = vmul.f32 %v1702, 1.442695
        %v1730 = vpow.pop %v1729
        %v1731 = vmul.f32 %v1703, 1.442695
        %v1732 = vpow.pop %v1731
        %v1733 = vmul.f32 %v1704, 1.442695
        %v1734 = vpow.pop %v1733
        %v1735 = vmul.f32 %v1705, 1.442695
        %v1736 = vpow.pop %v1735
        %v1737 = vmul.f32 %v1706, 1.442695
        %v1738 = vpow.pop %v1737
        %1739 = vadd.xlane.f32.xlu0 %v1708
        %v1740 = vpop.xlane.xlu0 %1739
        %1741 = vadd.xlane.f32.xlu0 %v1710
        %v1742 = vpop.xlane.xlu0 %1741
        %1743 = vadd.xlane.f32.xlu0 %v1712
        %v1744 = vpop.xlane.xlu0 %1743
        %1745 = vadd.xlane.f32.xlu0 %v1714
        %v1746 = vpop.xlane.xlu0 %1745
        %1747 = vadd.xlane.f32.xlu0 %v1716
        %v1748 = vpop.xlane.xlu0 %1747
        %1749 = vadd.xlane.f32.xlu0 %v1718
        %v1750 = vpop.xlane.xlu0 %1749
        %1751 = vadd.xlane.f32.xlu0 %v1720
        %v1752 = vpop.xlane.xlu0 %1751
        %1753 = vadd.xlane.f32.xlu0 %v1722
        %v1754 = vpop.xlane.xlu0 %1753
        %1755 = vadd.xlane.f32.xlu0 %v1724
        %v1756 = vpop.xlane.xlu0 %1755
        %1757 = vadd.xlane.f32.xlu0 %v1726
        %v1758 = vpop.xlane.xlu0 %1757
        %1759 = vadd.xlane.f32.xlu0 %v1728
        %v1760 = vpop.xlane.xlu0 %1759
        %1761 = vadd.xlane.f32.xlu0 %v1730
        %v1762 = vpop.xlane.xlu0 %1761
        %1763 = vadd.xlane.f32.xlu0 %v1732
        %v1764 = vpop.xlane.xlu0 %1763
        %1765 = vadd.xlane.f32.xlu0 %v1734
        %v1766 = vpop.xlane.xlu0 %1765
        %1767 = vadd.xlane.f32.xlu0 %v1736
        %v1768 = vpop.xlane.xlu0 %1767
        %1769 = vadd.xlane.f32.xlu0 %v1738
        %v1770 = vpop.xlane.xlu0 %1769
        %v1771 = vrcp.pop %v1740
        %v1772 = vrcp.pop %v1742
        %v1773 = vrcp.pop %v1744
        %v1774 = vrcp.pop %v1746
        %v1775 = vrcp.pop %v1748
        %v1776 = vrcp.pop %v1750
        %v1777 = vrcp.pop %v1752
        %v1778 = vrcp.pop %v1754
        %v1779 = vrcp.pop %v1756
        %v1780 = vrcp.pop %v1758
        %v1781 = vrcp.pop %v1760
        %v1782 = vrcp.pop %v1762
        %v1783 = vrcp.pop %v1764
        %v1784 = vrcp.pop %v1766
        %v1785 = vrcp.pop %v1768
        %v1786 = vrcp.pop %v1770
        %v1787 = vmul.f32 %v1708, %v1771
        %v1788 = vmul.f32 %v1710, %v1772
        %v1789 = vmul.f32 %v1712, %v1773
        %v1790 = vmul.f32 %v1714, %v1774
        %v1791 = vmul.f32 %v1716, %v1775
        %v1792 = vmul.f32 %v1718, %v1776
        %v1793 = vmul.f32 %v1720, %v1777
        %v1794 = vmul.f32 %v1722, %v1778
        %v1795 = vmul.f32 %v1724, %v1779
        %v1796 = vmul.f32 %v1726, %v1780
        %v1797 = vmul.f32 %v1728, %v1781
        %v1798 = vmul.f32 %v1730, %v1782
        %v1799 = vmul.f32 %v1732, %v1783
        %v1800 = vmul.f32 %v1734, %v1784
        %v1801 = vmul.f32 %v1736, %v1785
        %v1802 = vmul.f32 %v1738, %v1786
        %v1803 = vadd.f32 %v1400, %v1787
        %v1804 = vadd.f32 %v1401, %v1788
        %v1805 = vadd.f32 %v1402, %v1789
        %v1806 = vadd.f32 %v1403, %v1790
        %v1807 = vadd.f32 %v1404, %v1791
        %v1808 = vadd.f32 %v1405, %v1792
        %v1809 = vadd.f32 %v1406, %v1793
        %v1810 = vadd.f32 %v1407, %v1794
        %v1811 = vadd.f32 %v1408, %v1795
        %v1812 = vadd.f32 %v1409, %v1796
        %v1813 = vadd.f32 %v1410, %v1797
        %v1814 = vadd.f32 %v1411, %v1798
        %v1815 = vadd.f32 %v1412, %v1799
        %v1816 = vadd.f32 %v1413, %v1800
        %v1817 = vadd.f32 %v1414, %v1801
        %v1818 = vadd.f32 %v1415, %v1802
        %v1819 = vld [vmem:[%s566 + $0x18] sm:$0xff]
        %v1820 = vld [vmem:[%s573 + $0x18] sm:$0xff]
        %1821 = vxpose.xlu0.b32.start [1/16] %v1819, 128
        %1822 = vxpose.xlu0.b32.cont [2/16] 0.0, 128
        %1823 = vxpose.xlu0.b32.cont [3/16] 0.0, 128
        %1824 = vxpose.xlu0.b32.cont [4/16] 0.0, 128
        %1825 = vxpose.xlu0.b32.cont [5/16] 0.0, 128
        %1826 = vxpose.xlu0.b32.cont [6/16] 0.0, 128
        %1827 = vxpose.xlu0.b32.cont [7/16] 0.0, 128
        %1828 = vxpose.xlu0.b32.cont [8/16] 0.0, 128
        %1829 = vxpose.xlu0.b32.cont [9/16] 0.0, 128
        %1830 = vxpose.xlu0.b32.cont [10/16] 0.0, 128
        %1831 = vxpose.xlu0.b32.cont [11/16] 0.0, 128
        %1832 = vxpose.xlu0.b32.cont [12/16] 0.0, 128
        %1833 = vxpose.xlu0.b32.cont [13/16] 0.0, 128
        %1834 = vxpose.xlu0.b32.cont [14/16] 0.0, 128
        %1835 = vxpose.xlu0.b32.cont [15/16] 0.0, 128
        %1836 = vxpose.xlu0.b32.end [16/16] 0.0, 128
        %v1837 = vpop.trf.xlu0
        %v1838 = vpop.trf.xlu0
        %v1839 = vpop.trf.xlu0
        %v1840 = vpop.trf.xlu0
        %v1841 = vpop.trf.xlu0
        %v1842 = vpop.trf.xlu0
        %v1843 = vpop.trf.xlu0
        %v1844 = vpop.trf.xlu0
        %v1845 = vpop.trf.xlu0
        %v1846 = vpop.trf.xlu0
        %v1847 = vpop.trf.xlu0
        %v1848 = vpop.trf.xlu0
        %v1849 = vpop.trf.xlu0
        %v1850 = vpop.trf.xlu0
        %v1851 = vpop.trf.xlu0
        %v1852 = vpop.trf.xlu0
        %v1854 = vsel %vm659, %v1837, 0
        %v1857 = vsel %vm659, %v1838, 0
        %v1860 = vsel %vm659, %v1839, 0
        %v1863 = vsel %vm659, %v1840, 0
        %v1866 = vsel %vm659, %v1841, 0
        %v1869 = vsel %vm659, %v1842, 0
        %v1872 = vsel %vm659, %v1843, 0
        %v1875 = vsel %vm659, %v1844, 0
        %v1878 = vsel %vm659, %v1845, 0
        %v1881 = vsel %vm659, %v1846, 0
        %v1884 = vsel %vm659, %v1847, 0
        %v1887 = vsel %vm659, %v1848, 0
        %v1890 = vsel %vm659, %v1849, 0
        %v1893 = vsel %vm659, %v1850, 0
        %v1896 = vsel %vm659, %v1851, 0
        %v1899 = vsel %vm659, %v1852, 0
        %1901 = vmatprep.subr.mxu0 0.0
        %1902 = vmatpush1.msra.mxu0 %v1820
        %1903 = vmatprep.subr.mxu0 0.0
        %1904 = vmatpush1.msra.mxu0 0.0
        %1905 = vmatprep.subr.mxu0 0.0
        %1906 = vmatpush1.msra.mxu0 0.0
        %1907 = vmatprep.subr.mxu0 0.0
        %1908 = vmatpush1.msra.mxu0 0.0
        %1909 = vmatprep.subr.mxu0 0.0
        %1910 = vmatpush1.msra.mxu0 0.0
        %1911 = vmatprep.subr.mxu0 0.0
        %1912 = vmatpush1.msra.mxu0 0.0
        %1913 = vmatprep.subr.mxu0 0.0
        %1914 = vmatpush1.msra.mxu0 0.0
        %1915 = vmatprep.subr.mxu0 0.0
        %1916 = vmatpush1.msra.mxu0 0.0
        %1917 = vmatprep.subr.mxu0 0.0
        %1918 = vmatpush1.msra.mxu0 0.0
        %1919 = vmatprep.subr.mxu0 0.0
        %1920 = vmatpush1.msra.mxu0 0.0
        %1921 = vmatprep.subr.mxu0 0.0
        %1922 = vmatpush1.msra.mxu0 0.0
        %1923 = vmatprep.subr.mxu0 0.0
        %1924 = vmatpush1.msra.mxu0 0.0
        %1925 = vmatprep.subr.mxu0 0.0
        %1926 = vmatpush1.msra.mxu0 0.0
        %1927 = vmatprep.subr.mxu0 0.0
        %1928 = vmatpush1.msra.mxu0 0.0
        %1929 = vmatprep.subr.mxu0 0.0
        %1930 = vmatpush1.msra.mxu0 0.0
        %1931 = vmatprep.subr.mxu0 0.0
        %1932 = vmatpush1.msra.mxu0 0.0
        %1933 = vmatprep.subr.mxu0 0.0
        %1934 = vmatpush1.msra.mxu0 0.0
        %1935 = vmatprep.subr.mxu0 0.0
        %1936 = vmatpush1.msra.mxu0 0.0
        %1937 = vmatprep.subr.mxu0 0.0
        %1938 = vmatpush1.msra.mxu0 0.0
        %1939 = vmatprep.subr.mxu0 0.0
        %1940 = vmatpush1.msra.mxu0 0.0
        %1941 = vmatprep.subr.mxu0 0.0
        %1942 = vmatpush1.msra.mxu0 0.0
        %1943 = vmatprep.subr.mxu0 0.0
        %1944 = vmatpush1.msra.mxu0 0.0
        %1945 = vmatprep.subr.mxu0 0.0
        %1946 = vmatpush1.msra.mxu0 0.0
        %1947 = vmatprep.subr.mxu0 0.0
        %1948 = vmatpush1.msra.mxu0 0.0
        %1949 = vmatprep.subr.mxu0 0.0
        %1950 = vmatpush1.msra.mxu0 0.0
        %1951 = vmatprep.subr.mxu0 0.0
        %1952 = vmatpush1.msra.mxu0 0.0
        %1953 = vmatprep.subr.mxu0 0.0
        %1954 = vmatpush1.msra.mxu0 0.0
        %1955 = vmatprep.subr.mxu0 0.0
        %1956 = vmatpush1.msra.mxu0 0.0
        %1957 = vmatprep.subr.mxu0 0.0
        %1958 = vmatpush1.msra.mxu0 0.0
        %1959 = vmatprep.subr.mxu0 0.0
        %1960 = vmatpush1.msra.mxu0 0.0
        %1961 = vmatprep.subr.mxu0 0.0
        %1962 = vmatpush1.msra.mxu0 0.0
        %1963 = vmatprep.subr.mxu0 0.0
        %1964 = vmatpush1.msra.mxu0 0.0
        %1965 = vmatprep.mubr.f32.mxu0 0.0
        %1966 = vmatmul.mubr.f32.gmra.mrb[0].mxu0 %v1854
        %v1967 = vpop.f32.mrb[0].mxu0
        %v1968 = vadd.f32 0.0, %v1967
        %v1969 = vpop.f32.mrb[0].mxu0
        %1970 = vmatprep.mubr.f32.mxu0 0.0
        %1971 = vmatmul.mubr.f32.gmra.mrb[0].mxu0 %v1857
        %v1972 = vpop.f32.mrb[0].mxu0
        %v1973 = vadd.f32 0.0, %v1972
        %v1974 = vpop.f32.mrb[0].mxu0
        %1975 = vmatprep.mubr.f32.mxu0 0.0
        %1976 = vmatmul.mubr.f32.gmra.mrb[0].mxu0 %v1860
        %v1977 = vpop.f32.mrb[0].mxu0
        %v1978 = vadd.f32 0.0, %v1977
        %v1979 = vpop.f32.mrb[0].mxu0
        %1980 = vmatprep.mubr.f32.mxu0 0.0
        %1981 = vmatmul.mubr.f32.gmra.mrb[0].mxu0 %v1863
        %v1982 = vpop.f32.mrb[0].mxu0
        %v1983 = vadd.f32 0.0, %v1982
        %v1984 = vpop.f32.mrb[0].mxu0
        %1985 = vmatprep.mubr.f32.mxu0 0.0
        %1986 = vmatmul.mubr.f32.gmra.mrb[0].mxu0 %v1866
        %v1987 = vpop.f32.mrb[0].mxu0
        %v1988 = vadd.f32 0.0, %v1987
        %v1989 = vpop.f32.mrb[0].mxu0
        %1990 = vmatprep.mubr.f32.mxu0 0.0
        %1991 = vmatmul.mubr.f32.gmra.mrb[0].mxu0 %v1869
        %v1992 = vpop.f32.mrb[0].mxu0
        %v1993 = vadd.f32 0.0, %v1992
        %v1994 = vpop.f32.mrb[0].mxu0
        %1995 = vmatprep.mubr.f32.mxu0 0.0
        %1996 = vmatmul.mubr.f32.gmra.mrb[0].mxu0 %v1872
        %v1997 = vpop.f32.mrb[0].mxu0
        %v1998 = vadd.f32 0.0, %v1997
        %v1999 = vpop.f32.mrb[0].mxu0
        %2000 = vmatprep.mubr.f32.mxu0 0.0
        %2001 = vmatmul.mubr.f32.gmra.mrb[0].mxu0 %v1875
        %v2002 = vpop.f32.mrb[0].mxu0
        %v2003 = vadd.f32 0.0, %v2002
        %v2004 = vpop.f32.mrb[0].mxu0
        %2005 = vmatprep.mubr.f32.mxu0 0.0
        %2006 = vmatmul.mubr.f32.gmra.mrb[0].mxu0 %v1878
        %v2007 = vpop.f32.mrb[0].mxu0
        %v2008 = vadd.f32 0.0, %v2007
        %v2009 = vpop.f32.mrb[0].mxu0
        %2010 = vmatprep.mubr.f32.mxu0 0.0
        %2011 = vmatmul.mubr.f32.gmra.mrb[0].mxu0 %v1881
        %v2012 = vpop.f32.mrb[0].mxu0
        %v2013 = vadd.f32 0.0, %v2012
        %v2014 = vpop.f32.mrb[0].mxu0
        %2015 = vmatprep.mubr.f32.mxu0 0.0
        %2016 = vmatmul.mubr.f32.gmra.mrb[0].mxu0 %v1884
        %v2017 = vpop.f32.mrb[0].mxu0
        %v2018 = vadd.f32 0.0, %v2017
        %v2019 = vpop.f32.mrb[0].mxu0
        %2020 = vmatprep.mubr.f32.mxu0 0.0
        %2021 = vmatmul.mubr.f32.gmra.mrb[0].mxu0 %v1887
        %v2022 = vpop.f32.mrb[0].mxu0
        %v2023 = vadd.f32 0.0, %v2022
        %v2024 = vpop.f32.mrb[0].mxu0
        %2025 = vmatprep.mubr.f32.mxu0 0.0
        %2026 = vmatmul.mubr.f32.gmra.mrb[0].mxu0 %v1890
        %v2027 = vpop.f32.mrb[0].mxu0
        %v2028 = vadd.f32 0.0, %v2027
        %v2029 = vpop.f32.mrb[0].mxu0
        %2030 = vmatprep.mubr.f32.mxu0 0.0
        %2031 = vmatmul.mubr.f32.gmra.mrb[0].mxu0 %v1893
        %v2032 = vpop.f32.mrb[0].mxu0
        %v2033 = vadd.f32 0.0, %v2032
        %v2034 = vpop.f32.mrb[0].mxu0
        %2035 = vmatprep.mubr.f32.mxu0 0.0
        %2036 = vmatmul.mubr.f32.gmra.mrb[0].mxu0 %v1896
        %v2037 = vpop.f32.mrb[0].mxu0
        %v2038 = vadd.f32 0.0, %v2037
        %v2039 = vpop.f32.mrb[0].mxu0
        %2040 = vmatprep.mubr.f32.mxu0 0.0
        %2041 = vmatmul.mubr.f32.gmra.mrb[0].mxu0 %v1899
        %v2042 = vpop.f32.mrb[0].mxu0
        %v2043 = vadd.f32 0.0, %v2042
        %v2044 = vpop.f32.mrb[0].mxu0
        %2045 = vdwg.mxu0
        %v2046 = vand.u32 2147483647, %v1968
        %v2047 = vand.u32 2147483647, %v1973
        %v2048 = vand.u32 2147483647, %v1978
        %v2049 = vand.u32 2147483647, %v1983
        %v2050 = vand.u32 2147483647, %v1988
        %v2051 = vand.u32 2147483647, %v1993
        %v2052 = vand.u32 2147483647, %v1998
        %v2053 = vand.u32 2147483647, %v2003
        %v2054 = vand.u32 2147483647, %v2008
        %v2055 = vand.u32 2147483647, %v2013
        %v2056 = vand.u32 2147483647, %v2018
        %v2057 = vand.u32 2147483647, %v2023
        %v2058 = vand.u32 2147483647, %v2028
        %v2059 = vand.u32 2147483647, %v2033
        %v2060 = vand.u32 2147483647, %v2038
        %v2061 = vand.u32 2147483647, %v2043
        %2062 = vmax.xlane.f32.xlu0 %v2046
        %v2063 = vpop.xlane.xlu0 %2062
        %2064 = vmax.xlane.f32.xlu0 %v2047
        %v2065 = vpop.xlane.xlu0 %2064
        %2066 = vmax.xlane.f32.xlu0 %v2048
        %v2067 = vpop.xlane.xlu0 %2066
        %2068 = vmax.xlane.f32.xlu0 %v2049
        %v2069 = vpop.xlane.xlu0 %2068
        %2070 = vmax.xlane.f32.xlu0 %v2050
        %v2071 = vpop.xlane.xlu0 %2070
        %2072 = vmax.xlane.f32.xlu0 %v2051
        %v2073 = vpop.xlane.xlu0 %2072
        %2074 = vmax.xlane.f32.xlu0 %v2052
        %v2075 = vpop.xlane.xlu0 %2074
        %2076 = vmax.xlane.f32.xlu0 %v2053
        %v2077 = vpop.xlane.xlu0 %2076
        %2078 = vmax.xlane.f32.xlu0 %v2054
        %v2079 = vpop.xlane.xlu0 %2078
        %2080 = vmax.xlane.f32.xlu0 %v2055
        %v2081 = vpop.xlane.xlu0 %2080
        %2082 = vmax.xlane.f32.xlu0 %v2056
        %v2083 = vpop.xlane.xlu0 %2082
        %2084 = vmax.xlane.f32.xlu0 %v2057
        %v2085 = vpop.xlane.xlu0 %2084
        %2086 = vmax.xlane.f32.xlu0 %v2058
        %v2087 = vpop.xlane.xlu0 %2086
        %2088 = vmax.xlane.f32.xlu0 %v2059
        %v2089 = vpop.xlane.xlu0 %2088
        %2090 = vmax.xlane.f32.xlu0 %v2060
        %v2091 = vpop.xlane.xlu0 %2090
        %2092 = vmax.xlane.f32.xlu0 %v2061
        %v2093 = vpop.xlane.xlu0 %2092
        %v2094 = vsub.f32 %v2046, %v2063
        %v2095 = vsub.f32 %v2047, %v2065
        %v2096 = vsub.f32 %v2048, %v2067
        %v2097 = vsub.f32 %v2049, %v2069
        %v2098 = vsub.f32 %v2050, %v2071
        %v2099 = vsub.f32 %v2051, %v2073
        %v2100 = vsub.f32 %v2052, %v2075
        %v2101 = vsub.f32 %v2053, %v2077
        %v2102 = vsub.f32 %v2054, %v2079
        %v2103 = vsub.f32 %v2055, %v2081
        %v2104 = vsub.f32 %v2056, %v2083
        %v2105 = vsub.f32 %v2057, %v2085
        %v2106 = vsub.f32 %v2058, %v2087
        %v2107 = vsub.f32 %v2059, %v2089
        %v2108 = vsub.f32 %v2060, %v2091
        %v2109 = vsub.f32 %v2061, %v2093
        %v2110 = vmul.f32 %v2094, 1.442695
        %v2111 = vpow.pop %v2110
        %v2112 = vmul.f32 %v2095, 1.442695
        %v2113 = vpow.pop %v2112
        %v2114 = vmul.f32 %v2096, 1.442695
        %v2115 = vpow.pop %v2114
        %v2116 = vmul.f32 %v2097, 1.442695
        %v2117 = vpow.pop %v2116
        %v2118 = vmul.f32 %v2098, 1.442695
        %v2119 = vpow.pop %v2118
        %v2120 = vmul.f32 %v2099, 1.442695
        %v2121 = vpow.pop %v2120
        %v2122 = vmul.f32 %v2100, 1.442695
        %v2123 = vpow.pop %v2122
        %v2124 = vmul.f32 %v2101, 1.442695
        %v2125 = vpow.pop %v2124
        %v2126 = vmul.f32 %v2102, 1.442695
        %v2127 = vpow.pop %v2126
        %v2128 = vmul.f32 %v2103, 1.442695
        %v2129 = vpow.pop %v2128
        %v2130 = vmul.f32 %v2104, 1.442695
        %v2131 = vpow.pop %v2130
        %v2132 = vmul.f32 %v2105, 1.442695
        %v2133 = vpow.pop %v2132
        %v2134 = vmul.f32 %v2106, 1.442695
        %v2135 = vpow.pop %v2134
        %v2136 = vmul.f32 %v2107, 1.442695
        %v2137 = vpow.pop %v2136
        %v2138 = vmul.f32 %v2108, 1.442695
        %v2139 = vpow.pop %v2138
        %v2140 = vmul.f32 %v2109, 1.442695
        %v2141 = vpow.pop %v2140
        %2142 = vadd.xlane.f32.xlu0 %v2111
        %v2143 = vpop.xlane.xlu0 %2142
        %2144 = vadd.xlane.f32.xlu0 %v2113
        %v2145 = vpop.xlane.xlu0 %2144
        %2146 = vadd.xlane.f32.xlu0 %v2115
        %v2147 = vpop.xlane.xlu0 %2146
        %2148 = vadd.xlane.f32.xlu0 %v2117
        %v2149 = vpop.xlane.xlu0 %2148
        %2150 = vadd.xlane.f32.xlu0 %v2119
        %v2151 = vpop.xlane.xlu0 %2150
        %2152 = vadd.xlane.f32.xlu0 %v2121
        %v2153 = vpop.xlane.xlu0 %2152
        %2154 = vadd.xlane.f32.xlu0 %v2123
        %v2155 = vpop.xlane.xlu0 %2154
        %2156 = vadd.xlane.f32.xlu0 %v2125
        %v2157 = vpop.xlane.xlu0 %2156
        %2158 = vadd.xlane.f32.xlu0 %v2127
        %v2159 = vpop.xlane.xlu0 %2158
        %2160 = vadd.xlane.f32.xlu0 %v2129
        %v2161 = vpop.xlane.xlu0 %2160
        %2162 = vadd.xlane.f32.xlu0 %v2131
        %v2163 = vpop.xlane.xlu0 %2162
        %2164 = vadd.xlane.f32.xlu0 %v2133
        %v2165 = vpop.xlane.xlu0 %2164
        %2166 = vadd.xlane.f32.xlu0 %v2135
        %v2167 = vpop.xlane.xlu0 %2166
        %2168 = vadd.xlane.f32.xlu0 %v2137
        %v2169 = vpop.xlane.xlu0 %2168
        %2170 = vadd.xlane.f32.xlu0 %v2139
        %v2171 = vpop.xlane.xlu0 %2170
        %2172 = vadd.xlane.f32.xlu0 %v2141
        %v2173 = vpop.xlane.xlu0 %2172
        %v2174 = vrcp.pop %v2143
        %v2175 = vrcp.pop %v2145
        %v2176 = vrcp.pop %v2147
        %v2177 = vrcp.pop %v2149
        %v2178 = vrcp.pop %v2151
        %v2179 = vrcp.pop %v2153
        %v2180 = vrcp.pop %v2155
        %v2181 = vrcp.pop %v2157
        %v2182 = vrcp.pop %v2159
        %v2183 = vrcp.pop %v2161
        %v2184 = vrcp.pop %v2163
        %v2185 = vrcp.pop %v2165
        %v2186 = vrcp.pop %v2167
        %v2187 = vrcp.pop %v2169
        %v2188 = vrcp.pop %v2171
        %v2189 = vrcp.pop %v2173
        %v2190 = vmul.f32 %v2111, %v2174
        %v2191 = vmul.f32 %v2113, %v2175
        %v2192 = vmul.f32 %v2115, %v2176
        %v2193 = vmul.f32 %v2117, %v2177
        %v2194 = vmul.f32 %v2119, %v2178
        %v2195 = vmul.f32 %v2121, %v2179
        %v2196 = vmul.f32 %v2123, %v2180
        %v2197 = vmul.f32 %v2125, %v2181
        %v2198 = vmul.f32 %v2127, %v2182
        %v2199 = vmul.f32 %v2129, %v2183
        %v2200 = vmul.f32 %v2131, %v2184
        %v2201 = vmul.f32 %v2133, %v2185
        %v2202 = vmul.f32 %v2135, %v2186
        %v2203 = vmul.f32 %v2137, %v2187
        %v2204 = vmul.f32 %v2139, %v2188
        %v2205 = vmul.f32 %v2141, %v2189
        %v2206 = vadd.f32 %v1803, %v2190
        %v2207 = vadd.f32 %v1804, %v2191
        %v2208 = vadd.f32 %v1805, %v2192
        %v2209 = vadd.f32 %v1806, %v2193
        %v2210 = vadd.f32 %v1807, %v2194
        %v2211 = vadd.f32 %v1808, %v2195
        %v2212 = vadd.f32 %v1809, %v2196
        %v2213 = vadd.f32 %v1810, %v2197
        %v2214 = vadd.f32 %v1811, %v2198
        %v2215 = vadd.f32 %v1812, %v2199
        %v2216 = vadd.f32 %v1813, %v2200
        %v2217 = vadd.f32 %v1814, %v2201
        %v2218 = vadd.f32 %v1815, %v2202
        %v2219 = vadd.f32 %v1816, %v2203
        %v2220 = vadd.f32 %v1817, %v2204
        %v2221 = vadd.f32 %v1818, %v2205
        %v2222 = vld [vmem:[%s566 + $0x20] sm:$0xff]
        %v2223 = vld [vmem:[%s573 + $0x20] sm:$0xff]
        %2224 = vxpose.xlu0.b32.start [1/16] %v2222, 128
        %2225 = vxpose.xlu0.b32.cont [2/16] 0.0, 128
        %2226 = vxpose.xlu0.b32.cont [3/16] 0.0, 128
        %2227 = vxpose.xlu0.b32.cont [4/16] 0.0, 128
        %2228 = vxpose.xlu0.b32.cont [5/16] 0.0, 128
        %2229 = vxpose.xlu0.b32.cont [6/16] 0.0, 128
        %2230 = vxpose.xlu0.b32.cont [7/16] 0.0, 128
        %2231 = vxpose.xlu0.b32.cont [8/16] 0.0, 128
        %2232 = vxpose.xlu0.b32.cont [9/16] 0.0, 128
        %2233 = vxpose.xlu0.b32.cont [10/16] 0.0, 128
        %2234 = vxpose.xlu0.b32.cont [11/16] 0.0, 128
        %2235 = vxpose.xlu0.b32.cont [12/16] 0.0, 128
        %2236 = vxpose.xlu0.b32.cont [13/16] 0.0, 128
        %2237 = vxpose.xlu0.b32.cont [14/16] 0.0, 128
        %2238 = vxpose.xlu0.b32.cont [15/16] 0.0, 128
        %2239 = vxpose.xlu0.b32.end [16/16] 0.0, 128
        %v2240 = vpop.trf.xlu0
        %v2241 = vpop.trf.xlu0
        %v2242 = vpop.trf.xlu0
        %v2243 = vpop.trf.xlu0
        %v2244 = vpop.trf.xlu0
        %v2245 = vpop.trf.xlu0
        %v2246 = vpop.trf.xlu0
        %v2247 = vpop.trf.xlu0
        %v2248 = vpop.trf.xlu0
        %v2249 = vpop.trf.xlu0
        %v2250 = vpop.trf.xlu0
        %v2251 = vpop.trf.xlu0
        %v2252 = vpop.trf.xlu0
        %v2253 = vpop.trf.xlu0
        %v2254 = vpop.trf.xlu0
        %v2255 = vpop.trf.xlu0
        %v2257 = vsel %vm659, %v2240, 0
        %v2260 = vsel %vm659, %v2241, 0
        %v2263 = vsel %vm659, %v2242, 0
        %v2266 = vsel %vm659, %v2243, 0
        %v2269 = vsel %vm659, %v2244, 0
        %v2272 = vsel %vm659, %v2245, 0
        %v2275 = vsel %vm659, %v2246, 0
        %v2278 = vsel %vm659, %v2247, 0
        %v2281 = vsel %vm659, %v2248, 0
        %v2284 = vsel %vm659, %v2249, 0
        %v2287 = vsel %vm659, %v2250, 0
        %v2290 = vsel %vm659, %v2251, 0
        %v2293 = vsel %vm659, %v2252, 0
        %v2296 = vsel %vm659, %v2253, 0
        %v2299 = vsel %vm659, %v2254, 0
        %v2302 = vsel %vm659, %v2255, 0
        %2304 = vmatprep.subr.mxu0 0.0
        %2305 = vmatpush1.msra.mxu0 %v2223
        %2306 = vmatprep.subr.mxu0 0.0
        %2307 = vmatpush1.msra.mxu0 0.0
        %2308 = vmatprep.subr.mxu0 0.0
        %2309 = vmatpush1.msra.mxu0 0.0
        %2310 = vmatprep.subr.mxu0 0.0
        %2311 = vmatpush1.msra.mxu0 0.0
        %2312 = vmatprep.subr.mxu0 0.0
        %2313 = vmatpush1.msra.mxu0 0.0
        %2314 = vmatprep.subr.mxu0 0.0
        %2315 = vmatpush1.msra.mxu0 0.0
        %2316 = vmatprep.subr.mxu0 0.0
        %2317 = vmatpush1.msra.mxu0 0.0
        %2318 = vmatprep.subr.mxu0 0.0
        %2319 = vmatpush1.msra.mxu0 0.0
        %2320 = vmatprep.subr.mxu0 0.0
        %2321 = vmatpush1.msra.mxu0 0.0
        %2322 = vmatprep.subr.mxu0 0.0
        %2323 = vmatpush1.msra.mxu0 0.0
        %2324 = vmatprep.subr.mxu0 0.0
        %2325 = vmatpush1.msra.mxu0 0.0
        %2326 = vmatprep.subr.mxu0 0.0
        %2327 = vmatpush1.msra.mxu0 0.0
        %2328 = vmatprep.subr.mxu0 0.0
        %2329 = vmatpush1.msra.mxu0 0.0
        %2330 = vmatprep.subr.mxu0 0.0
        %2331 = vmatpush1.msra.mxu0 0.0
        %2332 = vmatprep.subr.mxu0 0.0
        %2333 = vmatpush1.msra.mxu0 0.0
        %2334 = vmatprep.subr.mxu0 0.0
        %2335 = vmatpush1.msra.mxu0 0.0
        %2336 = vmatprep.subr.mxu0 0.0
        %2337 = vmatpush1.msra.mxu0 0.0
        %2338 = vmatprep.subr.mxu0 0.0
        %2339 = vmatpush1.msra.mxu0 0.0
        %2340 = vmatprep.subr.mxu0 0.0
        %2341 = vmatpush1.msra.mxu0 0.0
        %2342 = vmatprep.subr.mxu0 0.0
        %2343 = vmatpush1.msra.mxu0 0.0
        %2344 = vmatprep.subr.mxu0 0.0
        %2345 = vmatpush1.msra.mxu0 0.0
        %2346 = vmatprep.subr.mxu0 0.0
        %2347 = vmatpush1.msra.mxu0 0.0
        %2348 = vmatprep.subr.mxu0 0.0
        %2349 = vmatpush1.msra.mxu0 0.0
        %2350 = vmatprep.subr.mxu0 0.0
        %2351 = vmatpush1.msra.mxu0 0.0
        %2352 = vmatprep.subr.mxu0 0.0
        %2353 = vmatpush1.msra.mxu0 0.0
        %2354 = vmatprep.subr.mxu0 0.0
        %2355 = vmatpush1.msra.mxu0 0.0
        %2356 = vmatprep.subr.mxu0 0.0
        %2357 = vmatpush1.msra.mxu0 0.0
        %2358 = vmatprep.subr.mxu0 0.0
        %2359 = vmatpush1.msra.mxu0 0.0
        %2360 = vmatprep.subr.mxu0 0.0
        %2361 = vmatpush1.msra.mxu0 0.0
        %2362 = vmatprep.subr.mxu0 0.0
        %2363 = vmatpush1.msra.mxu0 0.0
        %2364 = vmatprep.subr.mxu0 0.0
        %2365 = vmatpush1.msra.mxu0 0.0
        %2366 = vmatprep.subr.mxu0 0.0
        %2367 = vmatpush1.msra.mxu0 0.0
        %2368 = vmatprep.mubr.f32.mxu0 0.0
        %2369 = vmatmul.mubr.f32.gmra.mrb[0].mxu0 %v2257
        %v2370 = vpop.f32.mrb[0].mxu0
        %v2371 = vadd.f32 0.0, %v2370
        %v2372 = vpop.f32.mrb[0].mxu0
        %2373 = vmatprep.mubr.f32.mxu0 0.0
        %2374 = vmatmul.mubr.f32.gmra.mrb[0].mxu0 %v2260
        %v2375 = vpop.f32.mrb[0].mxu0
        %v2376 = vadd.f32 0.0, %v2375
        %v2377 = vpop.f32.mrb[0].mxu0
        %2378 = vmatprep.mubr.f32.mxu0 0.0
        %2379 = vmatmul.mubr.f32.gmra.mrb[0].mxu0 %v2263
        %v2380 = vpop.f32.mrb[0].mxu0
        %v2381 = vadd.f32 0.0, %v2380
        %v2382 = vpop.f32.mrb[0].mxu0
        %2383 = vmatprep.mubr.f32.mxu0 0.0
        %2384 = vmatmul.mubr.f32.gmra.mrb[0].mxu0 %v2266
        %v2385 = vpop.f32.mrb[0].mxu0
        %v2386 = vadd.f32 0.0, %v2385
        %v2387 = vpop.f32.mrb[0].mxu0
        %2388 = vmatprep.mubr.f32.mxu0 0.0
        %2389 = vmatmul.mubr.f32.gmra.mrb[0].mxu0 %v2269
        %v2390 = vpop.f32.mrb[0].mxu0
        %v2391 = vadd.f32 0.0, %v2390
        %v2392 = vpop.f32.mrb[0].mxu0
        %2393 = vmatprep.mubr.f32.mxu0 0.0
        %2394 = vmatmul.mubr.f32.gmra.mrb[0].mxu0 %v2272
        %v2395 = vpop.f32.mrb[0].mxu0
        %v2396 = vadd.f32 0.0, %v2395
        %v2397 = vpop.f32.mrb[0].mxu0
        %2398 = vmatprep.mubr.f32.mxu0 0.0
        %2399 = vmatmul.mubr.f32.gmra.mrb[0].mxu0 %v2275
        %v2400 = vpop.f32.mrb[0].mxu0
        %v2401 = vadd.f32 0.0, %v2400
        %v2402 = vpop.f32.mrb[0].mxu0
        %2403 = vmatprep.mubr.f32.mxu0 0.0
        %2404 = vmatmul.mubr.f32.gmra.mrb[0].mxu0 %v2278
        %v2405 = vpop.f32.mrb[0].mxu0
        %v2406 = vadd.f32 0.0, %v2405
        %v2407 = vpop.f32.mrb[0].mxu0
        %2408 = vmatprep.mubr.f32.mxu0 0.0
        %2409 = vmatmul.mubr.f32.gmra.mrb[0].mxu0 %v2281
        %v2410 = vpop.f32.mrb[0].mxu0
        %v2411 = vadd.f32 0.0, %v2410
        %v2412 = vpop.f32.mrb[0].mxu0
        %2413 = vmatprep.mubr.f32.mxu0 0.0
        %2414 = vmatmul.mubr.f32.gmra.mrb[0].mxu0 %v2284
        %v2415 = vpop.f32.mrb[0].mxu0
        %v2416 = vadd.f32 0.0, %v2415
        %v2417 = vpop.f32.mrb[0].mxu0
        %2418 = vmatprep.mubr.f32.mxu0 0.0
        %2419 = vmatmul.mubr.f32.gmra.mrb[0].mxu0 %v2287
        %v2420 = vpop.f32.mrb[0].mxu0
        %v2421 = vadd.f32 0.0, %v2420
        %v2422 = vpop.f32.mrb[0].mxu0
        %2423 = vmatprep.mubr.f32.mxu0 0.0
        %2424 = vmatmul.mubr.f32.gmra.mrb[0].mxu0 %v2290
        %v2425 = vpop.f32.mrb[0].mxu0
        %v2426 = vadd.f32 0.0, %v2425
        %v2427 = vpop.f32.mrb[0].mxu0
        %2428 = vmatprep.mubr.f32.mxu0 0.0
        %2429 = vmatmul.mubr.f32.gmra.mrb[0].mxu0 %v2293
        %v2430 = vpop.f32.mrb[0].mxu0
        %v2431 = vadd.f32 0.0, %v2430
        %v2432 = vpop.f32.mrb[0].mxu0
        %2433 = vmatprep.mubr.f32.mxu0 0.0
        %2434 = vmatmul.mubr.f32.gmra.mrb[0].mxu0 %v2296
        %v2435 = vpop.f32.mrb[0].mxu0
        %v2436 = vadd.f32 0.0, %v2435
        %v2437 = vpop.f32.mrb[0].mxu0
        %2438 = vmatprep.mubr.f32.mxu0 0.0
        %2439 = vmatmul.mubr.f32.gmra.mrb[0].mxu0 %v2299
        %v2440 = vpop.f32.mrb[0].mxu0
        %v2441 = vadd.f32 0.0, %v2440
        %v2442 = vpop.f32.mrb[0].mxu0
        %2443 = vmatprep.mubr.f32.mxu0 0.0
        %2444 = vmatmul.mubr.f32.gmra.mrb[0].mxu0 %v2302
        %v2445 = vpop.f32.mrb[0].mxu0
        %v2446 = vadd.f32 0.0, %v2445
        %v2447 = vpop.f32.mrb[0].mxu0
        %2448 = vdwg.mxu0
        %v2449 = vand.u32 2147483647, %v2371
        %v2450 = vand.u32 2147483647, %v2376
        %v2451 = vand.u32 2147483647, %v2381
        %v2452 = vand.u32 2147483647, %v2386
        %v2453 = vand.u32 2147483647, %v2391
        %v2454 = vand.u32 2147483647, %v2396
        %v2455 = vand.u32 2147483647, %v2401
        %v2456 = vand.u32 2147483647, %v2406
        %v2457 = vand.u32 2147483647, %v2411
        %v2458 = vand.u32 2147483647, %v2416
        %v2459 = vand.u32 2147483647, %v2421
        %v2460 = vand.u32 2147483647, %v2426
        %v2461 = vand.u32 2147483647, %v2431
        %v2462 = vand.u32 2147483647, %v2436
        %v2463 = vand.u32 2147483647, %v2441
        %v2464 = vand.u32 2147483647, %v2446
        %2465 = vmax.xlane.f32.xlu0 %v2449
        %v2466 = vpop.xlane.xlu0 %2465
        %2467 = vmax.xlane.f32.xlu0 %v2450
        %v2468 = vpop.xlane.xlu0 %2467
        %2469 = vmax.xlane.f32.xlu0 %v2451
        %v2470 = vpop.xlane.xlu0 %2469
        %2471 = vmax.xlane.f32.xlu0 %v2452
        %v2472 = vpop.xlane.xlu0 %2471
        %2473 = vmax.xlane.f32.xlu0 %v2453
        %v2474 = vpop.xlane.xlu0 %2473
        %2475 = vmax.xlane.f32.xlu0 %v2454
        %v2476 = vpop.xlane.xlu0 %2475
        %2477 = vmax.xlane.f32.xlu0 %v2455
        %v2478 = vpop.xlane.xlu0 %2477
        %2479 = vmax.xlane.f32.xlu0 %v2456
        %v2480 = vpop.xlane.xlu0 %2479
        %2481 = vmax.xlane.f32.xlu0 %v2457
        %v2482 = vpop.xlane.xlu0 %2481
        %2483 = vmax.xlane.f32.xlu0 %v2458
        %v2484 = vpop.xlane.xlu0 %2483
        %2485 = vmax.xlane.f32.xlu0 %v2459
        %v2486 = vpop.xlane.xlu0 %2485
        %2487 = vmax.xlane.f32.xlu0 %v2460
        %v2488 = vpop.xlane.xlu0 %2487
        %2489 = vmax.xlane.f32.xlu0 %v2461
        %v2490 = vpop.xlane.xlu0 %2489
        %2491 = vmax.xlane.f32.xlu0 %v2462
        %v2492 = vpop.xlane.xlu0 %2491
        %2493 = vmax.xlane.f32.xlu0 %v2463
        %v2494 = vpop.xlane.xlu0 %2493
        %2495 = vmax.xlane.f32.xlu0 %v2464
        %v2496 = vpop.xlane.xlu0 %2495
        %v2497 = vsub.f32 %v2449, %v2466
        %v2498 = vsub.f32 %v2450, %v2468
        %v2499 = vsub.f32 %v2451, %v2470
        %v2500 = vsub.f32 %v2452, %v2472
        %v2501 = vsub.f32 %v2453, %v2474
        %v2502 = vsub.f32 %v2454, %v2476
        %v2503 = vsub.f32 %v2455, %v2478
        %v2504 = vsub.f32 %v2456, %v2480
        %v2505 = vsub.f32 %v2457, %v2482
        %v2506 = vsub.f32 %v2458, %v2484
        %v2507 = vsub.f32 %v2459, %v2486
        %v2508 = vsub.f32 %v2460, %v2488
        %v2509 = vsub.f32 %v2461, %v2490
        %v2510 = vsub.f32 %v2462, %v2492
        %v2511 = vsub.f32 %v2463, %v2494
        %v2512 = vsub.f32 %v2464, %v2496
        %v2513 = vmul.f32 %v2497, 1.442695
        %v2514 = vpow.pop %v2513
        %v2515 = vmul.f32 %v2498, 1.442695
        %v2516 = vpow.pop %v2515
        %v2517 = vmul.f32 %v2499, 1.442695
        %v2518 = vpow.pop %v2517
        %v2519 = vmul.f32 %v2500, 1.442695
        %v2520 = vpow.pop %v2519
        %v2521 = vmul.f32 %v2501, 1.442695
        %v2522 = vpow.pop %v2521
        %v2523 = vmul.f32 %v2502, 1.442695
        %v2524 = vpow.pop %v2523
        %v2525 = vmul.f32 %v2503, 1.442695
        %v2526 = vpow.pop %v2525
        %v2527 = vmul.f32 %v2504, 1.442695
        %v2528 = vpow.pop %v2527
        %v2529 = vmul.f32 %v2505, 1.442695
        %v2530 = vpow.pop %v2529
        %v2531 = vmul.f32 %v2506, 1.442695
        %v2532 = vpow.pop %v2531
        %v2533 = vmul.f32 %v2507, 1.442695
        %v2534 = vpow.pop %v2533
        %v2535 = vmul.f32 %v2508, 1.442695
        %v2536 = vpow.pop %v2535
        %v2537 = vmul.f32 %v2509, 1.442695
        %v2538 = vpow.pop %v2537
        %v2539 = vmul.f32 %v2510, 1.442695
        %v2540 = vpow.pop %v2539
        %v2541 = vmul.f32 %v2511, 1.442695
        %v2542 = vpow.pop %v2541
        %v2543 = vmul.f32 %v2512, 1.442695
        %v2544 = vpow.pop %v2543
        %2545 = vadd.xlane.f32.xlu0 %v2514
        %v2546 = vpop.xlane.xlu0 %2545
        %2547 = vadd.xlane.f32.xlu0 %v2516
        %v2548 = vpop.xlane.xlu0 %2547
        %2549 = vadd.xlane.f32.xlu0 %v2518
        %v2550 = vpop.xlane.xlu0 %2549
        %2551 = vadd.xlane.f32.xlu0 %v2520
        %v2552 = vpop.xlane.xlu0 %2551
        %2553 = vadd.xlane.f32.xlu0 %v2522
        %v2554 = vpop.xlane.xlu0 %2553
        %2555 = vadd.xlane.f32.xlu0 %v2524
        %v2556 = vpop.xlane.xlu0 %2555
        %2557 = vadd.xlane.f32.xlu0 %v2526
        %v2558 = vpop.xlane.xlu0 %2557
        %2559 = vadd.xlane.f32.xlu0 %v2528
        %v2560 = vpop.xlane.xlu0 %2559
        %2561 = vadd.xlane.f32.xlu0 %v2530
        %v2562 = vpop.xlane.xlu0 %2561
        %2563 = vadd.xlane.f32.xlu0 %v2532
        %v2564 = vpop.xlane.xlu0 %2563
        %2565 = vadd.xlane.f32.xlu0 %v2534
        %v2566 = vpop.xlane.xlu0 %2565
        %2567 = vadd.xlane.f32.xlu0 %v2536
        %v2568 = vpop.xlane.xlu0 %2567
        %2569 = vadd.xlane.f32.xlu0 %v2538
        %v2570 = vpop.xlane.xlu0 %2569
        %2571 = vadd.xlane.f32.xlu0 %v2540
        %v2572 = vpop.xlane.xlu0 %2571
        %2573 = vadd.xlane.f32.xlu0 %v2542
        %v2574 = vpop.xlane.xlu0 %2573
        %2575 = vadd.xlane.f32.xlu0 %v2544
        %v2576 = vpop.xlane.xlu0 %2575
        %v2577 = vrcp.pop %v2546
        %v2578 = vrcp.pop %v2548
        %v2579 = vrcp.pop %v2550
        %v2580 = vrcp.pop %v2552
        %v2581 = vrcp.pop %v2554
        %v2582 = vrcp.pop %v2556
        %v2583 = vrcp.pop %v2558
        %v2584 = vrcp.pop %v2560
        %v2585 = vrcp.pop %v2562
        %v2586 = vrcp.pop %v2564
        %v2587 = vrcp.pop %v2566
        %v2588 = vrcp.pop %v2568
        %v2589 = vrcp.pop %v2570
        %v2590 = vrcp.pop %v2572
        %v2591 = vrcp.pop %v2574
        %v2592 = vrcp.pop %v2576
        %v2593 = vmul.f32 %v2514, %v2577
        %v2594 = vmul.f32 %v2516, %v2578
        %v2595 = vmul.f32 %v2518, %v2579
        %v2596 = vmul.f32 %v2520, %v2580
        %v2597 = vmul.f32 %v2522, %v2581
        %v2598 = vmul.f32 %v2524, %v2582
        %v2599 = vmul.f32 %v2526, %v2583
        %v2600 = vmul.f32 %v2528, %v2584
        %v2601 = vmul.f32 %v2530, %v2585
        %v2602 = vmul.f32 %v2532, %v2586
        %v2603 = vmul.f32 %v2534, %v2587
        %v2604 = vmul.f32 %v2536, %v2588
        %v2605 = vmul.f32 %v2538, %v2589
        %v2606 = vmul.f32 %v2540, %v2590
        %v2607 = vmul.f32 %v2542, %v2591
        %v2608 = vmul.f32 %v2544, %v2592
        %v2609 = vadd.f32 %v2206, %v2593
        %v2610 = vadd.f32 %v2207, %v2594
        %v2611 = vadd.f32 %v2208, %v2595
        %v2612 = vadd.f32 %v2209, %v2596
        %v2613 = vadd.f32 %v2210, %v2597
        %v2614 = vadd.f32 %v2211, %v2598
        %v2615 = vadd.f32 %v2212, %v2599
        %v2616 = vadd.f32 %v2213, %v2600
        %v2617 = vadd.f32 %v2214, %v2601
        %v2618 = vadd.f32 %v2215, %v2602
        %v2619 = vadd.f32 %v2216, %v2603
        %v2620 = vadd.f32 %v2217, %v2604
        %v2621 = vadd.f32 %v2218, %v2605
        %v2622 = vadd.f32 %v2219, %v2606
        %v2623 = vadd.f32 %v2220, %v2607
        %v2624 = vadd.f32 %v2221, %v2608
        %v2625 = vld [vmem:[%s566 + $0x28] sm:$0xff]
        %v2626 = vld [vmem:[%s573 + $0x28] sm:$0xff]
        %2627 = vxpose.xlu0.b32.start [1/16] %v2625, 128
        %2628 = vxpose.xlu0.b32.cont [2/16] 0.0, 128
        %2629 = vxpose.xlu0.b32.cont [3/16] 0.0, 128
        %2630 = vxpose.xlu0.b32.cont [4/16] 0.0, 128
        %2631 = vxpose.xlu0.b32.cont [5/16] 0.0, 128
        %2632 = vxpose.xlu0.b32.cont [6/16] 0.0, 128
        %2633 = vxpose.xlu0.b32.cont [7/16] 0.0, 128
        %2634 = vxpose.xlu0.b32.cont [8/16] 0.0, 128
        %2635 = vxpose.xlu0.b32.cont [9/16] 0.0, 128
        %2636 = vxpose.xlu0.b32.cont [10/16] 0.0, 128
        %2637 = vxpose.xlu0.b32.cont [11/16] 0.0, 128
        %2638 = vxpose.xlu0.b32.cont [12/16] 0.0, 128
        %2639 = vxpose.xlu0.b32.cont [13/16] 0.0, 128
        %2640 = vxpose.xlu0.b32.cont [14/16] 0.0, 128
        %2641 = vxpose.xlu0.b32.cont [15/16] 0.0, 128
        %2642 = vxpose.xlu0.b32.end [16/16] 0.0, 128
        %v2643 = vpop.trf.xlu0
        %v2644 = vpop.trf.xlu0
        %v2645 = vpop.trf.xlu0
        %v2646 = vpop.trf.xlu0
        %v2647 = vpop.trf.xlu0
        %v2648 = vpop.trf.xlu0
        %v2649 = vpop.trf.xlu0
        %v2650 = vpop.trf.xlu0
        %v2651 = vpop.trf.xlu0
        %v2652 = vpop.trf.xlu0
        %v2653 = vpop.trf.xlu0
        %v2654 = vpop.trf.xlu0
        %v2655 = vpop.trf.xlu0
        %v2656 = vpop.trf.xlu0
        %v2657 = vpop.trf.xlu0
        %v2658 = vpop.trf.xlu0
        %v2660 = vsel %vm659, %v2643, 0
        %v2663 = vsel %vm659, %v2644, 0
        %v2666 = vsel %vm659, %v2645, 0
        %v2669 = vsel %vm659, %v2646, 0
        %v2672 = vsel %vm659, %v2647, 0
        %v2675 = vsel %vm659, %v2648, 0
        %v2678 = vsel %vm659, %v2649, 0
        %v2681 = vsel %vm659, %v2650, 0
        %v2684 = vsel %vm659, %v2651, 0
        %v2687 = vsel %vm659, %v2652, 0
        %v2690 = vsel %vm659, %v2653, 0
        %v2693 = vsel %vm659, %v2654, 0
        %v2696 = vsel %vm659, %v2655, 0
        %v2699 = vsel %vm659, %v2656, 0
        %v2702 = vsel %vm659, %v2657, 0
        %v2705 = vsel %vm659, %v2658, 0
        %2707 = vmatprep.subr.mxu0 0.0
        %2708 = vmatpush1.msra.mxu0 %v2626
        %2709 = vmatprep.subr.mxu0 0.0
        %2710 = vmatpush1.msra.mxu0 0.0
        %2711 = vmatprep.subr.mxu0 0.0
        %2712 = vmatpush1.msra.mxu0 0.0
        %2713 = vmatprep.subr.mxu0 0.0
        %2714 = vmatpush1.msra.mxu0 0.0
        %2715 = vmatprep.subr.mxu0 0.0
        %2716 = vmatpush1.msra.mxu0 0.0
        %2717 = vmatprep.subr.mxu0 0.0
        %2718 = vmatpush1.msra.mxu0 0.0
        %2719 = vmatprep.subr.mxu0 0.0
        %2720 = vmatpush1.msra.mxu0 0.0
        %2721 = vmatprep.subr.mxu0 0.0
        %2722 = vmatpush1.msra.mxu0 0.0
        %2723 = vmatprep.subr.mxu0 0.0
        %2724 = vmatpush1.msra.mxu0 0.0
        %2725 = vmatprep.subr.mxu0 0.0
        %2726 = vmatpush1.msra.mxu0 0.0
        %2727 = vmatprep.subr.mxu0 0.0
        %2728 = vmatpush1.msra.mxu0 0.0
        %2729 = vmatprep.subr.mxu0 0.0
        %2730 = vmatpush1.msra.mxu0 0.0
        %2731 = vmatprep.subr.mxu0 0.0
        %2732 = vmatpush1.msra.mxu0 0.0
        %2733 = vmatprep.subr.mxu0 0.0
        %2734 = vmatpush1.msra.mxu0 0.0
        %2735 = vmatprep.subr.mxu0 0.0
        %2736 = vmatpush1.msra.mxu0 0.0
        %2737 = vmatprep.subr.mxu0 0.0
        %2738 = vmatpush1.msra.mxu0 0.0
        %2739 = vmatprep.subr.mxu0 0.0
        %2740 = vmatpush1.msra.mxu0 0.0
        %2741 = vmatprep.subr.mxu0 0.0
        %2742 = vmatpush1.msra.mxu0 0.0
        %2743 = vmatprep.subr.mxu0 0.0
        %2744 = vmatpush1.msra.mxu0 0.0
        %2745 = vmatprep.subr.mxu0 0.0
        %2746 = vmatpush1.msra.mxu0 0.0
        %2747 = vmatprep.subr.mxu0 0.0
        %2748 = vmatpush1.msra.mxu0 0.0
        %2749 = vmatprep.subr.mxu0 0.0
        %2750 = vmatpush1.msra.mxu0 0.0
        %2751 = vmatprep.subr.mxu0 0.0
        %2752 = vmatpush1.msra.mxu0 0.0
        %2753 = vmatprep.subr.mxu0 0.0
        %2754 = vmatpush1.msra.mxu0 0.0
        %2755 = vmatprep.subr.mxu0 0.0
        %2756 = vmatpush1.msra.mxu0 0.0
        %2757 = vmatprep.subr.mxu0 0.0
        %2758 = vmatpush1.msra.mxu0 0.0
        %2759 = vmatprep.subr.mxu0 0.0
        %2760 = vmatpush1.msra.mxu0 0.0
        %2761 = vmatprep.subr.mxu0 0.0
        %2762 = vmatpush1.msra.mxu0 0.0
        %2763 = vmatprep.subr.mxu0 0.0
        %2764 = vmatpush1.msra.mxu0 0.0
        %2765 = vmatprep.subr.mxu0 0.0
        %2766 = vmatpush1.msra.mxu0 0.0
        %2767 = vmatprep.subr.mxu0 0.0
        %2768 = vmatpush1.msra.mxu0 0.0
        %2769 = vmatprep.subr.mxu0 0.0
        %2770 = vmatpush1.msra.mxu0 0.0
        %2771 = vmatprep.mubr.f32.mxu0 0.0
        %2772 = vmatmul.mubr.f32.gmra.mrb[0].mxu0 %v2660
        %v2773 = vpop.f32.mrb[0].mxu0
        %v2774 = vadd.f32 0.0, %v2773
        %v2775 = vpop.f32.mrb[0].mxu0
        %2776 = vmatprep.mubr.f32.mxu0 0.0
        %2777 = vmatmul.mubr.f32.gmra.mrb[0].mxu0 %v2663
        %v2778 = vpop.f32.mrb[0].mxu0
        %v2779 = vadd.f32 0.0, %v2778
        %v2780 = vpop.f32.mrb[0].mxu0
        %2781 = vmatprep.mubr.f32.mxu0 0.0
        %2782 = vmatmul.mubr.f32.gmra.mrb[0].mxu0 %v2666
        %v2783 = vpop.f32.mrb[0].mxu0
        %v2784 = vadd.f32 0.0, %v2783
        %v2785 = vpop.f32.mrb[0].mxu0
        %2786 = vmatprep.mubr.f32.mxu0 0.0
        %2787 = vmatmul.mubr.f32.gmra.mrb[0].mxu0 %v2669
        %v2788 = vpop.f32.mrb[0].mxu0
        %v2789 = vadd.f32 0.0, %v2788
        %v2790 = vpop.f32.mrb[0].mxu0
        %2791 = vmatprep.mubr.f32.mxu0 0.0
        %2792 = vmatmul.mubr.f32.gmra.mrb[0].mxu0 %v2672
        %v2793 = vpop.f32.mrb[0].mxu0
        %v2794 = vadd.f32 0.0, %v2793
        %v2795 = vpop.f32.mrb[0].mxu0
        %2796 = vmatprep.mubr.f32.mxu0 0.0
        %2797 = vmatmul.mubr.f32.gmra.mrb[0].mxu0 %v2675
        %v2798 = vpop.f32.mrb[0].mxu0
        %v2799 = vadd.f32 0.0, %v2798
        %v2800 = vpop.f32.mrb[0].mxu0
        %2801 = vmatprep.mubr.f32.mxu0 0.0
        %2802 = vmatmul.mubr.f32.gmra.mrb[0].mxu0 %v2678
        %v2803 = vpop.f32.mrb[0].mxu0
        %v2804 = vadd.f32 0.0, %v2803
        %v2805 = vpop.f32.mrb[0].mxu0
        %2806 = vmatprep.mubr.f32.mxu0 0.0
        %2807 = vmatmul.mubr.f32.gmra.mrb[0].mxu0 %v2681
        %v2808 = vpop.f32.mrb[0].mxu0
        %v2809 = vadd.f32 0.0, %v2808
        %v2810 = vpop.f32.mrb[0].mxu0
        %2811 = vmatprep.mubr.f32.mxu0 0.0
        %2812 = vmatmul.mubr.f32.gmra.mrb[0].mxu0 %v2684
        %v2813 = vpop.f32.mrb[0].mxu0
        %v2814 = vadd.f32 0.0, %v2813
        %v2815 = vpop.f32.mrb[0].mxu0
        %2816 = vmatprep.mubr.f32.mxu0 0.0
        %2817 = vmatmul.mubr.f32.gmra.mrb[0].mxu0 %v2687
        %v2818 = vpop.f32.mrb[0].mxu0
        %v2819 = vadd.f32 0.0, %v2818
        %v2820 = vpop.f32.mrb[0].mxu0
        %2821 = vmatprep.mubr.f32.mxu0 0.0
        %2822 = vmatmul.mubr.f32.gmra.mrb[0].mxu0 %v2690
        %v2823 = vpop.f32.mrb[0].mxu0
        %v2824 = vadd.f32 0.0, %v2823
        %v2825 = vpop.f32.mrb[0].mxu0
        %2826 = vmatprep.mubr.f32.mxu0 0.0
        %2827 = vmatmul.mubr.f32.gmra.mrb[0].mxu0 %v2693
        %v2828 = vpop.f32.mrb[0].mxu0
        %v2829 = vadd.f32 0.0, %v2828
        %v2830 = vpop.f32.mrb[0].mxu0
        %2831 = vmatprep.mubr.f32.mxu0 0.0
        %2832 = vmatmul.mubr.f32.gmra.mrb[0].mxu0 %v2696
        %v2833 = vpop.f32.mrb[0].mxu0
        %v2834 = vadd.f32 0.0, %v2833
        %v2835 = vpop.f32.mrb[0].mxu0
        %2836 = vmatprep.mubr.f32.mxu0 0.0
        %2837 = vmatmul.mubr.f32.gmra.mrb[0].mxu0 %v2699
        %v2838 = vpop.f32.mrb[0].mxu0
        %v2839 = vadd.f32 0.0, %v2838
        %v2840 = vpop.f32.mrb[0].mxu0
        %2841 = vmatprep.mubr.f32.mxu0 0.0
        %2842 = vmatmul.mubr.f32.gmra.mrb[0].mxu0 %v2702
        %v2843 = vpop.f32.mrb[0].mxu0
        %v2844 = vadd.f32 0.0, %v2843
        %v2845 = vpop.f32.mrb[0].mxu0
        %2846 = vmatprep.mubr.f32.mxu0 0.0
        %2847 = vmatmul.mubr.f32.gmra.mrb[0].mxu0 %v2705
        %v2848 = vpop.f32.mrb[0].mxu0
        %v2849 = vadd.f32 0.0, %v2848
        %v2850 = vpop.f32.mrb[0].mxu0
        %2851 = vdwg.mxu0
        %v2852 = vand.u32 2147483647, %v2774
        %v2853 = vand.u32 2147483647, %v2779
        %v2854 = vand.u32 2147483647, %v2784
        %v2855 = vand.u32 2147483647, %v2789
        %v2856 = vand.u32 2147483647, %v2794
        %v2857 = vand.u32 2147483647, %v2799
        %v2858 = vand.u32 2147483647, %v2804
        %v2859 = vand.u32 2147483647, %v2809
        %v2860 = vand.u32 2147483647, %v2814
        %v2861 = vand.u32 2147483647, %v2819
        %v2862 = vand.u32 2147483647, %v2824
        %v2863 = vand.u32 2147483647, %v2829
        %v2864 = vand.u32 2147483647, %v2834
        %v2865 = vand.u32 2147483647, %v2839
        %v2866 = vand.u32 2147483647, %v2844
        %v2867 = vand.u32 2147483647, %v2849
        %2868 = vmax.xlane.f32.xlu0 %v2852
        %v2869 = vpop.xlane.xlu0 %2868
        %2870 = vmax.xlane.f32.xlu0 %v2853
        %v2871 = vpop.xlane.xlu0 %2870
        %2872 = vmax.xlane.f32.xlu0 %v2854
        %v2873 = vpop.xlane.xlu0 %2872
        %2874 = vmax.xlane.f32.xlu0 %v2855
        %v2875 = vpop.xlane.xlu0 %2874
        %2876 = vmax.xlane.f32.xlu0 %v2856
        %v2877 = vpop.xlane.xlu0 %2876
        %2878 = vmax.xlane.f32.xlu0 %v2857
        %v2879 = vpop.xlane.xlu0 %2878
        %2880 = vmax.xlane.f32.xlu0 %v2858
        %v2881 = vpop.xlane.xlu0 %2880
        %2882 = vmax.xlane.f32.xlu0 %v2859
        %v2883 = vpop.xlane.xlu0 %2882
        %2884 = vmax.xlane.f32.xlu0 %v2860
        %v2885 = vpop.xlane.xlu0 %2884
        %2886 = vmax.xlane.f32.xlu0 %v2861
        %v2887 = vpop.xlane.xlu0 %2886
        %2888 = vmax.xlane.f32.xlu0 %v2862
        %v2889 = vpop.xlane.xlu0 %2888
        %2890 = vmax.xlane.f32.xlu0 %v2863
        %v2891 = vpop.xlane.xlu0 %2890
        %2892 = vmax.xlane.f32.xlu0 %v2864
        %v2893 = vpop.xlane.xlu0 %2892
        %2894 = vmax.xlane.f32.xlu0 %v2865
        %v2895 = vpop.xlane.xlu0 %2894
        %2896 = vmax.xlane.f32.xlu0 %v2866
        %v2897 = vpop.xlane.xlu0 %2896
        %2898 = vmax.xlane.f32.xlu0 %v2867
        %v2899 = vpop.xlane.xlu0 %2898
        %v2900 = vsub.f32 %v2852, %v2869
        %v2901 = vsub.f32 %v2853, %v2871
        %v2902 = vsub.f32 %v2854, %v2873
        %v2903 = vsub.f32 %v2855, %v2875
        %v2904 = vsub.f32 %v2856, %v2877
        %v2905 = vsub.f32 %v2857, %v2879
        %v2906 = vsub.f32 %v2858, %v2881
        %v2907 = vsub.f32 %v2859, %v2883
        %v2908 = vsub.f32 %v2860, %v2885
        %v2909 = vsub.f32 %v2861, %v2887
        %v2910 = vsub.f32 %v2862, %v2889
        %v2911 = vsub.f32 %v2863, %v2891
        %v2912 = vsub.f32 %v2864, %v2893
        %v2913 = vsub.f32 %v2865, %v2895
        %v2914 = vsub.f32 %v2866, %v2897
        %v2915 = vsub.f32 %v2867, %v2899
        %v2916 = vmul.f32 %v2900, 1.442695
        %v2917 = vpow.pop %v2916
        %v2918 = vmul.f32 %v2901, 1.442695
        %v2919 = vpow.pop %v2918
        %v2920 = vmul.f32 %v2902, 1.442695
        %v2921 = vpow.pop %v2920
        %v2922 = vmul.f32 %v2903, 1.442695
        %v2923 = vpow.pop %v2922
        %v2924 = vmul.f32 %v2904, 1.442695
        %v2925 = vpow.pop %v2924
        %v2926 = vmul.f32 %v2905, 1.442695
        %v2927 = vpow.pop %v2926
        %v2928 = vmul.f32 %v2906, 1.442695
        %v2929 = vpow.pop %v2928
        %v2930 = vmul.f32 %v2907, 1.442695
        %v2931 = vpow.pop %v2930
        %v2932 = vmul.f32 %v2908, 1.442695
        %v2933 = vpow.pop %v2932
        %v2934 = vmul.f32 %v2909, 1.442695
        %v2935 = vpow.pop %v2934
        %v2936 = vmul.f32 %v2910, 1.442695
        %v2937 = vpow.pop %v2936
        %v2938 = vmul.f32 %v2911, 1.442695
        %v2939 = vpow.pop %v2938
        %v2940 = vmul.f32 %v2912, 1.442695
        %v2941 = vpow.pop %v2940
        %v2942 = vmul.f32 %v2913, 1.442695
        %v2943 = vpow.pop %v2942
        %v2944 = vmul.f32 %v2914, 1.442695
        %v2945 = vpow.pop %v2944
        %v2946 = vmul.f32 %v2915, 1.442695
        %v2947 = vpow.pop %v2946
        %2948 = vadd.xlane.f32.xlu0 %v2917
        %v2949 = vpop.xlane.xlu0 %2948
        %2950 = vadd.xlane.f32.xlu0 %v2919
        %v2951 = vpop.xlane.xlu0 %2950
        %2952 = vadd.xlane.f32.xlu0 %v2921
        %v2953 = vpop.xlane.xlu0 %2952
        %2954 = vadd.xlane.f32.xlu0 %v2923
        %v2955 = vpop.xlane.xlu0 %2954
        %2956 = vadd.xlane.f32.xlu0 %v2925
        %v2957 = vpop.xlane.xlu0 %2956
        %2958 = vadd.xlane.f32.xlu0 %v2927
        %v2959 = vpop.xlane.xlu0 %2958
        %2960 = vadd.xlane.f32.xlu0 %v2929
        %v2961 = vpop.xlane.xlu0 %2960
        %2962 = vadd.xlane.f32.xlu0 %v2931
        %v2963 = vpop.xlane.xlu0 %2962
        %2964 = vadd.xlane.f32.xlu0 %v2933
        %v2965 = vpop.xlane.xlu0 %2964
        %2966 = vadd.xlane.f32.xlu0 %v2935
        %v2967 = vpop.xlane.xlu0 %2966
        %2968 = vadd.xlane.f32.xlu0 %v2937
        %v2969 = vpop.xlane.xlu0 %2968
        %2970 = vadd.xlane.f32.xlu0 %v2939
        %v2971 = vpop.xlane.xlu0 %2970
        %2972 = vadd.xlane.f32.xlu0 %v2941
        %v2973 = vpop.xlane.xlu0 %2972
        %2974 = vadd.xlane.f32.xlu0 %v2943
        %v2975 = vpop.xlane.xlu0 %2974
        %2976 = vadd.xlane.f32.xlu0 %v2945
        %v2977 = vpop.xlane.xlu0 %2976
        %2978 = vadd.xlane.f32.xlu0 %v2947
        %v2979 = vpop.xlane.xlu0 %2978
        %v2980 = vrcp.pop %v2949
        %v2981 = vrcp.pop %v2951
        %v2982 = vrcp.pop %v2953
        %v2983 = vrcp.pop %v2955
        %v2984 = vrcp.pop %v2957
        %v2985 = vrcp.pop %v2959
        %v2986 = vrcp.pop %v2961
        %v2987 = vrcp.pop %v2963
        %v2988 = vrcp.pop %v2965
        %v2989 = vrcp.pop %v2967
        %v2990 = vrcp.pop %v2969
        %v2991 = vrcp.pop %v2971
        %v2992 = vrcp.pop %v2973
        %v2993 = vrcp.pop %v2975
        %v2994 = vrcp.pop %v2977
        %v2995 = vrcp.pop %v2979
        %v2996 = vmul.f32 %v2917, %v2980
        %v2997 = vmul.f32 %v2919, %v2981
        %v2998 = vmul.f32 %v2921, %v2982
        %v2999 = vmul.f32 %v2923, %v2983
        %v3000 = vmul.f32 %v2925, %v2984
        %v3001 = vmul.f32 %v2927, %v2985
        %v3002 = vmul.f32 %v2929, %v2986
        %v3003 = vmul.f32 %v2931, %v2987
        %v3004 = vmul.f32 %v2933, %v2988
        %v3005 = vmul.f32 %v2935, %v2989
        %v3006 = vmul.f32 %v2937, %v2990
        %v3007 = vmul.f32 %v2939, %v2991
        %v3008 = vmul.f32 %v2941, %v2992
        %v3009 = vmul.f32 %v2943, %v2993
        %v3010 = vmul.f32 %v2945, %v2994
        %v3011 = vmul.f32 %v2947, %v2995
        %v3012 = vadd.f32 %v2609, %v2996
        %v3013 = vadd.f32 %v2610, %v2997
        %v3014 = vadd.f32 %v2611, %v2998
        %v3015 = vadd.f32 %v2612, %v2999
        %v3016 = vadd.f32 %v2613, %v3000
        %v3017 = vadd.f32 %v2614, %v3001
        %v3018 = vadd.f32 %v2615, %v3002
        %v3019 = vadd.f32 %v2616, %v3003
        %v3020 = vadd.f32 %v2617, %v3004
        %v3021 = vadd.f32 %v2618, %v3005
        %v3022 = vadd.f32 %v2619, %v3006
        %v3023 = vadd.f32 %v2620, %v3007
        %v3024 = vadd.f32 %v2621, %v3008
        %v3025 = vadd.f32 %v2622, %v3009
        %v3026 = vadd.f32 %v2623, %v3010
        %v3027 = vadd.f32 %v2624, %v3011
        %v3028 = vld [vmem:[%s566 + $0x30] sm:$0xff]
        %v3029 = vld [vmem:[%s573 + $0x30] sm:$0xff]
        %3030 = vxpose.xlu0.b32.start [1/16] %v3028, 128
        %3031 = vxpose.xlu0.b32.cont [2/16] 0.0, 128
        %3032 = vxpose.xlu0.b32.cont [3/16] 0.0, 128
        %3033 = vxpose.xlu0.b32.cont [4/16] 0.0, 128
        %3034 = vxpose.xlu0.b32.cont [5/16] 0.0, 128
        %3035 = vxpose.xlu0.b32.cont [6/16] 0.0, 128
        %3036 = vxpose.xlu0.b32.cont [7/16] 0.0, 128
        %3037 = vxpose.xlu0.b32.cont [8/16] 0.0, 128
        %3038 = vxpose.xlu0.b32.cont [9/16] 0.0, 128
        %3039 = vxpose.xlu0.b32.cont [10/16] 0.0, 128
        %3040 = vxpose.xlu0.b32.cont [11/16] 0.0, 128
        %3041 = vxpose.xlu0.b32.cont [12/16] 0.0, 128
        %3042 = vxpose.xlu0.b32.cont [13/16] 0.0, 128
        %3043 = vxpose.xlu0.b32.cont [14/16] 0.0, 128
        %3044 = vxpose.xlu0.b32.cont [15/16] 0.0, 128
        %3045 = vxpose.xlu0.b32.end [16/16] 0.0, 128
        %v3046 = vpop.trf.xlu0
        %v3047 = vpop.trf.xlu0
        %v3048 = vpop.trf.xlu0
        %v3049 = vpop.trf.xlu0
        %v3050 = vpop.trf.xlu0
        %v3051 = vpop.trf.xlu0
        %v3052 = vpop.trf.xlu0
        %v3053 = vpop.trf.xlu0
        %v3054 = vpop.trf.xlu0
        %v3055 = vpop.trf.xlu0
        %v3056 = vpop.trf.xlu0
        %v3057 = vpop.trf.xlu0
        %v3058 = vpop.trf.xlu0
        %v3059 = vpop.trf.xlu0
        %v3060 = vpop.trf.xlu0
        %v3061 = vpop.trf.xlu0
        %v3063 = vsel %vm659, %v3046, 0
        %v3066 = vsel %vm659, %v3047, 0
        %v3069 = vsel %vm659, %v3048, 0
        %v3072 = vsel %vm659, %v3049, 0
        %v3075 = vsel %vm659, %v3050, 0
        %v3078 = vsel %vm659, %v3051, 0
        %v3081 = vsel %vm659, %v3052, 0
        %v3084 = vsel %vm659, %v3053, 0
        %v3087 = vsel %vm659, %v3054, 0
        %v3090 = vsel %vm659, %v3055, 0
        %v3093 = vsel %vm659, %v3056, 0
        %v3096 = vsel %vm659, %v3057, 0
        %v3099 = vsel %vm659, %v3058, 0
        %v3102 = vsel %vm659, %v3059, 0
        %v3105 = vsel %vm659, %v3060, 0
        %v3108 = vsel %vm659, %v3061, 0
        %3110 = vmatprep.subr.mxu0 0.0
        %3111 = vmatpush1.msra.mxu0 %v3029
        %3112 = vmatprep.subr.mxu0 0.0
        %3113 = vmatpush1.msra.mxu0 0.0
        %3114 = vmatprep.subr.mxu0 0.0
        %3115 = vmatpush1.msra.mxu0 0.0
        %3116 = vmatprep.subr.mxu0 0.0
        %3117 = vmatpush1.msra.mxu0 0.0
        %3118 = vmatprep.subr.mxu0 0.0
        %3119 = vmatpush1.msra.mxu0 0.0
        %3120 = vmatprep.subr.mxu0 0.0
        %3121 = vmatpush1.msra.mxu0 0.0
        %3122 = vmatprep.subr.mxu0 0.0
        %3123 = vmatpush1.msra.mxu0 0.0
        %3124 = vmatprep.subr.mxu0 0.0
        %3125 = vmatpush1.msra.mxu0 0.0
        %3126 = vmatprep.subr.mxu0 0.0
        %3127 = vmatpush1.msra.mxu0 0.0
        %3128 = vmatprep.subr.mxu0 0.0
        %3129 = vmatpush1.msra.mxu0 0.0
        %3130 = vmatprep.subr.mxu0 0.0
        %3131 = vmatpush1.msra.mxu0 0.0
        %3132 = vmatprep.subr.mxu0 0.0
        %3133 = vmatpush1.msra.mxu0 0.0
        %3134 = vmatprep.subr.mxu0 0.0
        %3135 = vmatpush1.msra.mxu0 0.0
        %3136 = vmatprep.subr.mxu0 0.0
        %3137 = vmatpush1.msra.mxu0 0.0
        %3138 = vmatprep.subr.mxu0 0.0
        %3139 = vmatpush1.msra.mxu0 0.0
        %3140 = vmatprep.subr.mxu0 0.0
        %3141 = vmatpush1.msra.mxu0 0.0
        %3142 = vmatprep.subr.mxu0 0.0
        %3143 = vmatpush1.msra.mxu0 0.0
        %3144 = vmatprep.subr.mxu0 0.0
        %3145 = vmatpush1.msra.mxu0 0.0
        %3146 = vmatprep.subr.mxu0 0.0
        %3147 = vmatpush1.msra.mxu0 0.0
        %3148 = vmatprep.subr.mxu0 0.0
        %3149 = vmatpush1.msra.mxu0 0.0
        %3150 = vmatprep.subr.mxu0 0.0
        %3151 = vmatpush1.msra.mxu0 0.0
        %3152 = vmatprep.subr.mxu0 0.0
        %3153 = vmatpush1.msra.mxu0 0.0
        %3154 = vmatprep.subr.mxu0 0.0
        %3155 = vmatpush1.msra.mxu0 0.0
        %3156 = vmatprep.subr.mxu0 0.0
        %3157 = vmatpush1.msra.mxu0 0.0
        %3158 = vmatprep.subr.mxu0 0.0
        %3159 = vmatpush1.msra.mxu0 0.0
        %3160 = vmatprep.subr.mxu0 0.0
        %3161 = vmatpush1.msra.mxu0 0.0
        %3162 = vmatprep.subr.mxu0 0.0
        %3163 = vmatpush1.msra.mxu0 0.0
        %3164 = vmatprep.subr.mxu0 0.0
        %3165 = vmatpush1.msra.mxu0 0.0
        %3166 = vmatprep.subr.mxu0 0.0
        %3167 = vmatpush1.msra.mxu0 0.0
        %3168 = vmatprep.subr.mxu0 0.0
        %3169 = vmatpush1.msra.mxu0 0.0
        %3170 = vmatprep.subr.mxu0 0.0
        %3171 = vmatpush1.msra.mxu0 0.0
        %3172 = vmatprep.subr.mxu0 0.0
        %3173 = vmatpush1.msra.mxu0 0.0
        %3174 = vmatprep.mubr.f32.mxu0 0.0
        %3175 = vmatmul.mubr.f32.gmra.mrb[0].mxu0 %v3063
        %v3176 = vpop.f32.mrb[0].mxu0
        %v3177 = vadd.f32 0.0, %v3176
        %v3178 = vpop.f32.mrb[0].mxu0
        %3179 = vmatprep.mubr.f32.mxu0 0.0
        %3180 = vmatmul.mubr.f32.gmra.mrb[0].mxu0 %v3066
        %v3181 = vpop.f32.mrb[0].mxu0
        %v3182 = vadd.f32 0.0, %v3181
        %v3183 = vpop.f32.mrb[0].mxu0
        %3184 = vmatprep.mubr.f32.mxu0 0.0
        %3185 = vmatmul.mubr.f32.gmra.mrb[0].mxu0 %v3069
        %v3186 = vpop.f32.mrb[0].mxu0
        %v3187 = vadd.f32 0.0, %v3186
        %v3188 = vpop.f32.mrb[0].mxu0
        %3189 = vmatprep.mubr.f32.mxu0 0.0
        %3190 = vmatmul.mubr.f32.gmra.mrb[0].mxu0 %v3072
        %v3191 = vpop.f32.mrb[0].mxu0
        %v3192 = vadd.f32 0.0, %v3191
        %v3193 = vpop.f32.mrb[0].mxu0
        %3194 = vmatprep.mubr.f32.mxu0 0.0
        %3195 = vmatmul.mubr.f32.gmra.mrb[0].mxu0 %v3075
        %v3196 = vpop.f32.mrb[0].mxu0
        %v3197 = vadd.f32 0.0, %v3196
        %v3198 = vpop.f32.mrb[0].mxu0
        %3199 = vmatprep.mubr.f32.mxu0 0.0
        %3200 = vmatmul.mubr.f32.gmra.mrb[0].mxu0 %v3078
        %v3201 = vpop.f32.mrb[0].mxu0
        %v3202 = vadd.f32 0.0, %v3201
        %v3203 = vpop.f32.mrb[0].mxu0
        %3204 = vmatprep.mubr.f32.mxu0 0.0
        %3205 = vmatmul.mubr.f32.gmra.mrb[0].mxu0 %v3081
        %v3206 = vpop.f32.mrb[0].mxu0
        %v3207 = vadd.f32 0.0, %v3206
        %v3208 = vpop.f32.mrb[0].mxu0
        %3209 = vmatprep.mubr.f32.mxu0 0.0
        %3210 = vmatmul.mubr.f32.gmra.mrb[0].mxu0 %v3084
        %v3211 = vpop.f32.mrb[0].mxu0
        %v3212 = vadd.f32 0.0, %v3211
        %v3213 = vpop.f32.mrb[0].mxu0
        %3214 = vmatprep.mubr.f32.mxu0 0.0
        %3215 = vmatmul.mubr.f32.gmra.mrb[0].mxu0 %v3087
        %v3216 = vpop.f32.mrb[0].mxu0
        %v3217 = vadd.f32 0.0, %v3216
        %v3218 = vpop.f32.mrb[0].mxu0
        %3219 = vmatprep.mubr.f32.mxu0 0.0
        %3220 = vmatmul.mubr.f32.gmra.mrb[0].mxu0 %v3090
        %v3221 = vpop.f32.mrb[0].mxu0
        %v3222 = vadd.f32 0.0, %v3221
        %v3223 = vpop.f32.mrb[0].mxu0
        %3224 = vmatprep.mubr.f32.mxu0 0.0
        %3225 = vmatmul.mubr.f32.gmra.mrb[0].mxu0 %v3093
        %v3226 = vpop.f32.mrb[0].mxu0
        %v3227 = vadd.f32 0.0, %v3226
        %v3228 = vpop.f32.mrb[0].mxu0
        %3229 = vmatprep.mubr.f32.mxu0 0.0
        %3230 = vmatmul.mubr.f32.gmra.mrb[0].mxu0 %v3096
        %v3231 = vpop.f32.mrb[0].mxu0
        %v3232 = vadd.f32 0.0, %v3231
        %v3233 = vpop.f32.mrb[0].mxu0
        %3234 = vmatprep.mubr.f32.mxu0 0.0
        %3235 = vmatmul.mubr.f32.gmra.mrb[0].mxu0 %v3099
        %v3236 = vpop.f32.mrb[0].mxu0
        %v3237 = vadd.f32 0.0, %v3236
        %v3238 = vpop.f32.mrb[0].mxu0
        %3239 = vmatprep.mubr.f32.mxu0 0.0
        %3240 = vmatmul.mubr.f32.gmra.mrb[0].mxu0 %v3102
        %v3241 = vpop.f32.mrb[0].mxu0
        %v3242 = vadd.f32 0.0, %v3241
        %v3243 = vpop.f32.mrb[0].mxu0
        %3244 = vmatprep.mubr.f32.mxu0 0.0
        %3245 = vmatmul.mubr.f32.gmra.mrb[0].mxu0 %v3105
        %v3246 = vpop.f32.mrb[0].mxu0
        %v3247 = vadd.f32 0.0, %v3246
        %v3248 = vpop.f32.mrb[0].mxu0
        %3249 = vmatprep.mubr.f32.mxu0 0.0
        %3250 = vmatmul.mubr.f32.gmra.mrb[0].mxu0 %v3108
        %v3251 = vpop.f32.mrb[0].mxu0
        %v3252 = vadd.f32 0.0, %v3251
        %v3253 = vpop.f32.mrb[0].mxu0
        %3254 = vdwg.mxu0
        %v3255 = vand.u32 2147483647, %v3177
        %v3256 = vand.u32 2147483647, %v3182
        %v3257 = vand.u32 2147483647, %v3187
        %v3258 = vand.u32 2147483647, %v3192
        %v3259 = vand.u32 2147483647, %v3197
        %v3260 = vand.u32 2147483647, %v3202
        %v3261 = vand.u32 2147483647, %v3207
        %v3262 = vand.u32 2147483647, %v3212
        %v3263 = vand.u32 2147483647, %v3217
        %v3264 = vand.u32 2147483647, %v3222
        %v3265 = vand.u32 2147483647, %v3227
        %v3266 = vand.u32 2147483647, %v3232
        %v3267 = vand.u32 2147483647, %v3237
        %v3268 = vand.u32 2147483647, %v3242
        %v3269 = vand.u32 2147483647, %v3247
        %v3270 = vand.u32 2147483647, %v3252
        %3271 = vmax.xlane.f32.xlu0 %v3255
        %v3272 = vpop.xlane.xlu0 %3271
        %3273 = vmax.xlane.f32.xlu0 %v3256
        %v3274 = vpop.xlane.xlu0 %3273
        %3275 = vmax.xlane.f32.xlu0 %v3257
        %v3276 = vpop.xlane.xlu0 %3275
        %3277 = vmax.xlane.f32.xlu0 %v3258
        %v3278 = vpop.xlane.xlu0 %3277
        %3279 = vmax.xlane.f32.xlu0 %v3259
        %v3280 = vpop.xlane.xlu0 %3279
        %3281 = vmax.xlane.f32.xlu0 %v3260
        %v3282 = vpop.xlane.xlu0 %3281
        %3283 = vmax.xlane.f32.xlu0 %v3261
        %v3284 = vpop.xlane.xlu0 %3283
        %3285 = vmax.xlane.f32.xlu0 %v3262
        %v3286 = vpop.xlane.xlu0 %3285
        %3287 = vmax.xlane.f32.xlu0 %v3263
        %v3288 = vpop.xlane.xlu0 %3287
        %3289 = vmax.xlane.f32.xlu0 %v3264
        %v3290 = vpop.xlane.xlu0 %3289
        %3291 = vmax.xlane.f32.xlu0 %v3265
        %v3292 = vpop.xlane.xlu0 %3291
        %3293 = vmax.xlane.f32.xlu0 %v3266
        %v3294 = vpop.xlane.xlu0 %3293
        %3295 = vmax.xlane.f32.xlu0 %v3267
        %v3296 = vpop.xlane.xlu0 %3295
        %3297 = vmax.xlane.f32.xlu0 %v3268
        %v3298 = vpop.xlane.xlu0 %3297
        %3299 = vmax.xlane.f32.xlu0 %v3269
        %v3300 = vpop.xlane.xlu0 %3299
        %3301 = vmax.xlane.f32.xlu0 %v3270
        %v3302 = vpop.xlane.xlu0 %3301
        %v3303 = vsub.f32 %v3255, %v3272
        %v3304 = vsub.f32 %v3256, %v3274
        %v3305 = vsub.f32 %v3257, %v3276
        %v3306 = vsub.f32 %v3258, %v3278
        %v3307 = vsub.f32 %v3259, %v3280
        %v3308 = vsub.f32 %v3260, %v3282
        %v3309 = vsub.f32 %v3261, %v3284
        %v3310 = vsub.f32 %v3262, %v3286
        %v3311 = vsub.f32 %v3263, %v3288
        %v3312 = vsub.f32 %v3264, %v3290
        %v3313 = vsub.f32 %v3265, %v3292
        %v3314 = vsub.f32 %v3266, %v3294
        %v3315 = vsub.f32 %v3267, %v3296
        %v3316 = vsub.f32 %v3268, %v3298
        %v3317 = vsub.f32 %v3269, %v3300
        %v3318 = vsub.f32 %v3270, %v3302
        %v3319 = vmul.f32 %v3303, 1.442695
        %v3320 = vpow.pop %v3319
        %v3321 = vmul.f32 %v3304, 1.442695
        %v3322 = vpow.pop %v3321
        %v3323 = vmul.f32 %v3305, 1.442695
        %v3324 = vpow.pop %v3323
        %v3325 = vmul.f32 %v3306, 1.442695
        %v3326 = vpow.pop %v3325
        %v3327 = vmul.f32 %v3307, 1.442695
        %v3328 = vpow.pop %v3327
        %v3329 = vmul.f32 %v3308, 1.442695
        %v3330 = vpow.pop %v3329
        %v3331 = vmul.f32 %v3309, 1.442695
        %v3332 = vpow.pop %v3331
        %v3333 = vmul.f32 %v3310, 1.442695
        %v3334 = vpow.pop %v3333
        %v3335 = vmul.f32 %v3311, 1.442695
        %v3336 = vpow.pop %v3335
        %v3337 = vmul.f32 %v3312, 1.442695
        %v3338 = vpow.pop %v3337
        %v3339 = vmul.f32 %v3313, 1.442695
        %v3340 = vpow.pop %v3339
        %v3341 = vmul.f32 %v3314, 1.442695
        %v3342 = vpow.pop %v3341
        %v3343 = vmul.f32 %v3315, 1.442695
        %v3344 = vpow.pop %v3343
        %v3345 = vmul.f32 %v3316, 1.442695
        %v3346 = vpow.pop %v3345
        %v3347 = vmul.f32 %v3317, 1.442695
        %v3348 = vpow.pop %v3347
        %v3349 = vmul.f32 %v3318, 1.442695
        %v3350 = vpow.pop %v3349
        %3351 = vadd.xlane.f32.xlu0 %v3320
        %v3352 = vpop.xlane.xlu0 %3351
        %3353 = vadd.xlane.f32.xlu0 %v3322
        %v3354 = vpop.xlane.xlu0 %3353
        %3355 = vadd.xlane.f32.xlu0 %v3324
        %v3356 = vpop.xlane.xlu0 %3355
        %3357 = vadd.xlane.f32.xlu0 %v3326
        %v3358 = vpop.xlane.xlu0 %3357
        %3359 = vadd.xlane.f32.xlu0 %v3328
        %v3360 = vpop.xlane.xlu0 %3359
        %3361 = vadd.xlane.f32.xlu0 %v3330
        %v3362 = vpop.xlane.xlu0 %3361
        %3363 = vadd.xlane.f32.xlu0 %v3332
        %v3364 = vpop.xlane.xlu0 %3363
        %3365 = vadd.xlane.f32.xlu0 %v3334
        %v3366 = vpop.xlane.xlu0 %3365
        %3367 = vadd.xlane.f32.xlu0 %v3336
        %v3368 = vpop.xlane.xlu0 %3367
        %3369 = vadd.xlane.f32.xlu0 %v3338
        %v3370 = vpop.xlane.xlu0 %3369
        %3371 = vadd.xlane.f32.xlu0 %v3340
        %v3372 = vpop.xlane.xlu0 %3371
        %3373 = vadd.xlane.f32.xlu0 %v3342
        %v3374 = vpop.xlane.xlu0 %3373
        %3375 = vadd.xlane.f32.xlu0 %v3344
        %v3376 = vpop.xlane.xlu0 %3375
        %3377 = vadd.xlane.f32.xlu0 %v3346
        %v3378 = vpop.xlane.xlu0 %3377
        %3379 = vadd.xlane.f32.xlu0 %v3348
        %v3380 = vpop.xlane.xlu0 %3379
        %3381 = vadd.xlane.f32.xlu0 %v3350
        %v3382 = vpop.xlane.xlu0 %3381
        %v3383 = vrcp.pop %v3352
        %v3384 = vrcp.pop %v3354
        %v3385 = vrcp.pop %v3356
        %v3386 = vrcp.pop %v3358
        %v3387 = vrcp.pop %v3360
        %v3388 = vrcp.pop %v3362
        %v3389 = vrcp.pop %v3364
        %v3390 = vrcp.pop %v3366
        %v3391 = vrcp.pop %v3368
        %v3392 = vrcp.pop %v3370
        %v3393 = vrcp.pop %v3372
        %v3394 = vrcp.pop %v3374
        %v3395 = vrcp.pop %v3376
        %v3396 = vrcp.pop %v3378
        %v3397 = vrcp.pop %v3380
        %v3398 = vrcp.pop %v3382
        %v3399 = vmul.f32 %v3320, %v3383
        %v3400 = vmul.f32 %v3322, %v3384
        %v3401 = vmul.f32 %v3324, %v3385
        %v3402 = vmul.f32 %v3326, %v3386
        %v3403 = vmul.f32 %v3328, %v3387
        %v3404 = vmul.f32 %v3330, %v3388
        %v3405 = vmul.f32 %v3332, %v3389
        %v3406 = vmul.f32 %v3334, %v3390
        %v3407 = vmul.f32 %v3336, %v3391
        %v3408 = vmul.f32 %v3338, %v3392
        %v3409 = vmul.f32 %v3340, %v3393
        %v3410 = vmul.f32 %v3342, %v3394
        %v3411 = vmul.f32 %v3344, %v3395
        %v3412 = vmul.f32 %v3346, %v3396
        %v3413 = vmul.f32 %v3348, %v3397
        %v3414 = vmul.f32 %v3350, %v3398
        %v3415 = vadd.f32 %v3012, %v3399
        %v3416 = vadd.f32 %v3013, %v3400
        %v3417 = vadd.f32 %v3014, %v3401
        %v3418 = vadd.f32 %v3015, %v3402
        %v3419 = vadd.f32 %v3016, %v3403
        %v3420 = vadd.f32 %v3017, %v3404
        %v3421 = vadd.f32 %v3018, %v3405
        %v3422 = vadd.f32 %v3019, %v3406
        %v3423 = vadd.f32 %v3020, %v3407
        %v3424 = vadd.f32 %v3021, %v3408
        %v3425 = vadd.f32 %v3022, %v3409
        %v3426 = vadd.f32 %v3023, %v3410
        %v3427 = vadd.f32 %v3024, %v3411
        %v3428 = vadd.f32 %v3025, %v3412
        %v3429 = vadd.f32 %v3026, %v3413
        %v3430 = vadd.f32 %v3027, %v3414
        %v3431 = vld [vmem:[%s566 + $0x38] sm:$0xff]
        %v3432 = vld [vmem:[%s573 + $0x38] sm:$0xff]
        %3433 = vxpose.xlu0.b32.start [1/16] %v3431, 128
        %3434 = vxpose.xlu0.b32.cont [2/16] 0.0, 128
        %3435 = vxpose.xlu0.b32.cont [3/16] 0.0, 128
        %3436 = vxpose.xlu0.b32.cont [4/16] 0.0, 128
        %3437 = vxpose.xlu0.b32.cont [5/16] 0.0, 128
        %3438 = vxpose.xlu0.b32.cont [6/16] 0.0, 128
        %3439 = vxpose.xlu0.b32.cont [7/16] 0.0, 128
        %3440 = vxpose.xlu0.b32.cont [8/16] 0.0, 128
        %3441 = vxpose.xlu0.b32.cont [9/16] 0.0, 128
        %3442 = vxpose.xlu0.b32.cont [10/16] 0.0, 128
        %3443 = vxpose.xlu0.b32.cont [11/16] 0.0, 128
        %3444 = vxpose.xlu0.b32.cont [12/16] 0.0, 128
        %3445 = vxpose.xlu0.b32.cont [13/16] 0.0, 128
        %3446 = vxpose.xlu0.b32.cont [14/16] 0.0, 128
        %3447 = vxpose.xlu0.b32.cont [15/16] 0.0, 128
        %3448 = vxpose.xlu0.b32.end [16/16] 0.0, 128
        %v3449 = vpop.trf.xlu0
        %v3450 = vpop.trf.xlu0
        %v3451 = vpop.trf.xlu0
        %v3452 = vpop.trf.xlu0
        %v3453 = vpop.trf.xlu0
        %v3454 = vpop.trf.xlu0
        %v3455 = vpop.trf.xlu0
        %v3456 = vpop.trf.xlu0
        %v3457 = vpop.trf.xlu0
        %v3458 = vpop.trf.xlu0
        %v3459 = vpop.trf.xlu0
        %v3460 = vpop.trf.xlu0
        %v3461 = vpop.trf.xlu0
        %v3462 = vpop.trf.xlu0
        %v3463 = vpop.trf.xlu0
        %v3464 = vpop.trf.xlu0
        %v3466 = vsel %vm659, %v3449, 0
        %v3469 = vsel %vm659, %v3450, 0
        %v3472 = vsel %vm659, %v3451, 0
        %v3475 = vsel %vm659, %v3452, 0
        %v3478 = vsel %vm659, %v3453, 0
        %v3481 = vsel %vm659, %v3454, 0
        %v3484 = vsel %vm659, %v3455, 0
        %v3487 = vsel %vm659, %v3456, 0
        %v3490 = vsel %vm659, %v3457, 0
        %v3493 = vsel %vm659, %v3458, 0
        %v3496 = vsel %vm659, %v3459, 0
        %v3499 = vsel %vm659, %v3460, 0
        %v3502 = vsel %vm659, %v3461, 0
        %v3505 = vsel %vm659, %v3462, 0
        %v3508 = vsel %vm659, %v3463, 0
        %v3511 = vsel %vm659, %v3464, 0
        %3513 = vmatprep.subr.mxu0 0.0
        %3514 = vmatpush1.msra.mxu0 %v3432
        %3515 = vmatprep.subr.mxu0 0.0
        %3516 = vmatpush1.msra.mxu0 0.0
        %3517 = vmatprep.subr.mxu0 0.0
        %3518 = vmatpush1.msra.mxu0 0.0
        %3519 = vmatprep.subr.mxu0 0.0
        %3520 = vmatpush1.msra.mxu0 0.0
        %3521 = vmatprep.subr.mxu0 0.0
        %3522 = vmatpush1.msra.mxu0 0.0
        %3523 = vmatprep.subr.mxu0 0.0
        %3524 = vmatpush1.msra.mxu0 0.0
        %3525 = vmatprep.subr.mxu0 0.0
        %3526 = vmatpush1.msra.mxu0 0.0
        %3527 = vmatprep.subr.mxu0 0.0
        %3528 = vmatpush1.msra.mxu0 0.0
        %3529 = vmatprep.subr.mxu0 0.0
        %3530 = vmatpush1.msra.mxu0 0.0
        %3531 = vmatprep.subr.mxu0 0.0
        %3532 = vmatpush1.msra.mxu0 0.0
        %3533 = vmatprep.subr.mxu0 0.0
        %3534 = vmatpush1.msra.mxu0 0.0
        %3535 = vmatprep.subr.mxu0 0.0
        %3536 = vmatpush1.msra.mxu0 0.0
        %3537 = vmatprep.subr.mxu0 0.0
        %3538 = vmatpush1.msra.mxu0 0.0
        %3539 = vmatprep.subr.mxu0 0.0
        %3540 = vmatpush1.msra.mxu0 0.0
        %3541 = vmatprep.subr.mxu0 0.0
        %3542 = vmatpush1.msra.mxu0 0.0
        %3543 = vmatprep.subr.mxu0 0.0
        %3544 = vmatpush1.msra.mxu0 0.0
        %3545 = vmatprep.subr.mxu0 0.0
        %3546 = vmatpush1.msra.mxu0 0.0
        %3547 = vmatprep.subr.mxu0 0.0
        %3548 = vmatpush1.msra.mxu0 0.0
        %3549 = vmatprep.subr.mxu0 0.0
        %3550 = vmatpush1.msra.mxu0 0.0
        %3551 = vmatprep.subr.mxu0 0.0
        %3552 = vmatpush1.msra.mxu0 0.0
        %3553 = vmatprep.subr.mxu0 0.0
        %3554 = vmatpush1.msra.mxu0 0.0
        %3555 = vmatprep.subr.mxu0 0.0
        %3556 = vmatpush1.msra.mxu0 0.0
        %3557 = vmatprep.subr.mxu0 0.0
        %3558 = vmatpush1.msra.mxu0 0.0
        %3559 = vmatprep.subr.mxu0 0.0
        %3560 = vmatpush1.msra.mxu0 0.0
        %3561 = vmatprep.subr.mxu0 0.0
        %3562 = vmatpush1.msra.mxu0 0.0
        %3563 = vmatprep.subr.mxu0 0.0
        %3564 = vmatpush1.msra.mxu0 0.0
        %3565 = vmatprep.subr.mxu0 0.0
        %3566 = vmatpush1.msra.mxu0 0.0
        %3567 = vmatprep.subr.mxu0 0.0
        %3568 = vmatpush1.msra.mxu0 0.0
        %3569 = vmatprep.subr.mxu0 0.0
        %3570 = vmatpush1.msra.mxu0 0.0
        %3571 = vmatprep.subr.mxu0 0.0
        %3572 = vmatpush1.msra.mxu0 0.0
        %3573 = vmatprep.subr.mxu0 0.0
        %3574 = vmatpush1.msra.mxu0 0.0
        %3575 = vmatprep.subr.mxu0 0.0
        %3576 = vmatpush1.msra.mxu0 0.0
        %3577 = vmatprep.mubr.f32.mxu0 0.0
        %3578 = vmatmul.mubr.f32.gmra.mrb[0].mxu0 %v3466
        %v3579 = vpop.f32.mrb[0].mxu0
        %v3580 = vadd.f32 0.0, %v3579
        %v3581 = vpop.f32.mrb[0].mxu0
        %3582 = vmatprep.mubr.f32.mxu0 0.0
        %3583 = vmatmul.mubr.f32.gmra.mrb[0].mxu0 %v3469
        %v3584 = vpop.f32.mrb[0].mxu0
        %v3585 = vadd.f32 0.0, %v3584
        %v3586 = vpop.f32.mrb[0].mxu0
        %3587 = vmatprep.mubr.f32.mxu0 0.0
        %3588 = vmatmul.mubr.f32.gmra.mrb[0].mxu0 %v3472
        %v3589 = vpop.f32.mrb[0].mxu0
        %v3590 = vadd.f32 0.0, %v3589
        %v3591 = vpop.f32.mrb[0].mxu0
        %3592 = vmatprep.mubr.f32.mxu0 0.0
        %3593 = vmatmul.mubr.f32.gmra.mrb[0].mxu0 %v3475
        %v3594 = vpop.f32.mrb[0].mxu0
        %v3595 = vadd.f32 0.0, %v3594
        %v3596 = vpop.f32.mrb[0].mxu0
        %3597 = vmatprep.mubr.f32.mxu0 0.0
        %3598 = vmatmul.mubr.f32.gmra.mrb[0].mxu0 %v3478
        %v3599 = vpop.f32.mrb[0].mxu0
        %v3600 = vadd.f32 0.0, %v3599
        %v3601 = vpop.f32.mrb[0].mxu0
        %3602 = vmatprep.mubr.f32.mxu0 0.0
        %3603 = vmatmul.mubr.f32.gmra.mrb[0].mxu0 %v3481
        %v3604 = vpop.f32.mrb[0].mxu0
        %v3605 = vadd.f32 0.0, %v3604
        %v3606 = vpop.f32.mrb[0].mxu0
        %3607 = vmatprep.mubr.f32.mxu0 0.0
        %3608 = vmatmul.mubr.f32.gmra.mrb[0].mxu0 %v3484
        %v3609 = vpop.f32.mrb[0].mxu0
        %v3610 = vadd.f32 0.0, %v3609
        %v3611 = vpop.f32.mrb[0].mxu0
        %3612 = vmatprep.mubr.f32.mxu0 0.0
        %3613 = vmatmul.mubr.f32.gmra.mrb[0].mxu0 %v3487
        %v3614 = vpop.f32.mrb[0].mxu0
        %v3615 = vadd.f32 0.0, %v3614
        %v3616 = vpop.f32.mrb[0].mxu0
        %3617 = vmatprep.mubr.f32.mxu0 0.0
        %3618 = vmatmul.mubr.f32.gmra.mrb[0].mxu0 %v3490
        %v3619 = vpop.f32.mrb[0].mxu0
        %v3620 = vadd.f32 0.0, %v3619
        %v3621 = vpop.f32.mrb[0].mxu0
        %3622 = vmatprep.mubr.f32.mxu0 0.0
        %3623 = vmatmul.mubr.f32.gmra.mrb[0].mxu0 %v3493
        %v3624 = vpop.f32.mrb[0].mxu0
        %v3625 = vadd.f32 0.0, %v3624
        %v3626 = vpop.f32.mrb[0].mxu0
        %3627 = vmatprep.mubr.f32.mxu0 0.0
        %3628 = vmatmul.mubr.f32.gmra.mrb[0].mxu0 %v3496
        %v3629 = vpop.f32.mrb[0].mxu0
        %v3630 = vadd.f32 0.0, %v3629
        %v3631 = vpop.f32.mrb[0].mxu0
        %3632 = vmatprep.mubr.f32.mxu0 0.0
        %3633 = vmatmul.mubr.f32.gmra.mrb[0].mxu0 %v3499
        %v3634 = vpop.f32.mrb[0].mxu0
        %v3635 = vadd.f32 0.0, %v3634
        %v3636 = vpop.f32.mrb[0].mxu0
        %3637 = vmatprep.mubr.f32.mxu0 0.0
        %3638 = vmatmul.mubr.f32.gmra.mrb[0].mxu0 %v3502
        %v3639 = vpop.f32.mrb[0].mxu0
        %v3640 = vadd.f32 0.0, %v3639
        %v3641 = vpop.f32.mrb[0].mxu0
        %3642 = vmatprep.mubr.f32.mxu0 0.0
        %3643 = vmatmul.mubr.f32.gmra.mrb[0].mxu0 %v3505
        %v3644 = vpop.f32.mrb[0].mxu0
        %v3645 = vadd.f32 0.0, %v3644
        %v3646 = vpop.f32.mrb[0].mxu0
        %3647 = vmatprep.mubr.f32.mxu0 0.0
        %3648 = vmatmul.mubr.f32.gmra.mrb[0].mxu0 %v3508
        %v3649 = vpop.f32.mrb[0].mxu0
        %v3650 = vadd.f32 0.0, %v3649
        %v3651 = vpop.f32.mrb[0].mxu0
        %3652 = vmatprep.mubr.f32.mxu0 0.0
        %3653 = vmatmul.mubr.f32.gmra.mrb[0].mxu0 %v3511
        %v3654 = vpop.f32.mrb[0].mxu0
        %v3655 = vadd.f32 0.0, %v3654
        %v3656 = vpop.f32.mrb[0].mxu0
        %3657 = vdwg.mxu0
        %v3658 = vand.u32 2147483647, %v3580
        %v3659 = vand.u32 2147483647, %v3585
        %v3660 = vand.u32 2147483647, %v3590
        %v3661 = vand.u32 2147483647, %v3595
        %v3662 = vand.u32 2147483647, %v3600
        %v3663 = vand.u32 2147483647, %v3605
        %v3664 = vand.u32 2147483647, %v3610
        %v3665 = vand.u32 2147483647, %v3615
        %v3666 = vand.u32 2147483647, %v3620
        %v3667 = vand.u32 2147483647, %v3625
        %v3668 = vand.u32 2147483647, %v3630
        %v3669 = vand.u32 2147483647, %v3635
        %v3670 = vand.u32 2147483647, %v3640
        %v3671 = vand.u32 2147483647, %v3645
        %v3672 = vand.u32 2147483647, %v3650
        %v3673 = vand.u32 2147483647, %v3655
        %3674 = vmax.xlane.f32.xlu0 %v3658
        %v3675 = vpop.xlane.xlu0 %3674
        %3676 = vmax.xlane.f32.xlu0 %v3659
        %v3677 = vpop.xlane.xlu0 %3676
        %3678 = vmax.xlane.f32.xlu0 %v3660
        %v3679 = vpop.xlane.xlu0 %3678
        %3680 = vmax.xlane.f32.xlu0 %v3661
        %v3681 = vpop.xlane.xlu0 %3680
        %3682 = vmax.xlane.f32.xlu0 %v3662
        %v3683 = vpop.xlane.xlu0 %3682
        %3684 = vmax.xlane.f32.xlu0 %v3663
        %v3685 = vpop.xlane.xlu0 %3684
        %3686 = vmax.xlane.f32.xlu0 %v3664
        %v3687 = vpop.xlane.xlu0 %3686
        %3688 = vmax.xlane.f32.xlu0 %v3665
        %v3689 = vpop.xlane.xlu0 %3688
        %3690 = vmax.xlane.f32.xlu0 %v3666
        %v3691 = vpop.xlane.xlu0 %3690
        %3692 = vmax.xlane.f32.xlu0 %v3667
        %v3693 = vpop.xlane.xlu0 %3692
        %3694 = vmax.xlane.f32.xlu0 %v3668
        %v3695 = vpop.xlane.xlu0 %3694
        %3696 = vmax.xlane.f32.xlu0 %v3669
        %v3697 = vpop.xlane.xlu0 %3696
        %3698 = vmax.xlane.f32.xlu0 %v3670
        %v3699 = vpop.xlane.xlu0 %3698
        %3700 = vmax.xlane.f32.xlu0 %v3671
        %v3701 = vpop.xlane.xlu0 %3700
        %3702 = vmax.xlane.f32.xlu0 %v3672
        %v3703 = vpop.xlane.xlu0 %3702
        %3704 = vmax.xlane.f32.xlu0 %v3673
        %v3705 = vpop.xlane.xlu0 %3704
        %v3706 = vsub.f32 %v3658, %v3675
        %v3707 = vsub.f32 %v3659, %v3677
        %v3708 = vsub.f32 %v3660, %v3679
        %v3709 = vsub.f32 %v3661, %v3681
        %v3710 = vsub.f32 %v3662, %v3683
        %v3711 = vsub.f32 %v3663, %v3685
        %v3712 = vsub.f32 %v3664, %v3687
        %v3713 = vsub.f32 %v3665, %v3689
        %v3714 = vsub.f32 %v3666, %v3691
        %v3715 = vsub.f32 %v3667, %v3693
        %v3716 = vsub.f32 %v3668, %v3695
        %v3717 = vsub.f32 %v3669, %v3697
        %v3718 = vsub.f32 %v3670, %v3699
        %v3719 = vsub.f32 %v3671, %v3701
        %v3720 = vsub.f32 %v3672, %v3703
        %v3721 = vsub.f32 %v3673, %v3705
        %v3722 = vmul.f32 %v3706, 1.442695
        %v3723 = vpow.pop %v3722
        %v3724 = vmul.f32 %v3707, 1.442695
        %v3725 = vpow.pop %v3724
        %v3726 = vmul.f32 %v3708, 1.442695
        %v3727 = vpow.pop %v3726
        %v3728 = vmul.f32 %v3709, 1.442695
        %v3729 = vpow.pop %v3728
        %v3730 = vmul.f32 %v3710, 1.442695
        %v3731 = vpow.pop %v3730
        %v3732 = vmul.f32 %v3711, 1.442695
        %v3733 = vpow.pop %v3732
        %v3734 = vmul.f32 %v3712, 1.442695
        %v3735 = vpow.pop %v3734
        %v3736 = vmul.f32 %v3713, 1.442695
        %v3737 = vpow.pop %v3736
        %v3738 = vmul.f32 %v3714, 1.442695
        %v3739 = vpow.pop %v3738
        %v3740 = vmul.f32 %v3715, 1.442695
        %v3741 = vpow.pop %v3740
        %v3742 = vmul.f32 %v3716, 1.442695
        %v3743 = vpow.pop %v3742
        %v3744 = vmul.f32 %v3717, 1.442695
        %v3745 = vpow.pop %v3744
        %v3746 = vmul.f32 %v3718, 1.442695
        %v3747 = vpow.pop %v3746
        %v3748 = vmul.f32 %v3719, 1.442695
        %v3749 = vpow.pop %v3748
        %v3750 = vmul.f32 %v3720, 1.442695
        %v3751 = vpow.pop %v3750
        %v3752 = vmul.f32 %v3721, 1.442695
        %v3753 = vpow.pop %v3752
        %3754 = vadd.xlane.f32.xlu0 %v3723
        %v3755 = vpop.xlane.xlu0 %3754
        %3756 = vadd.xlane.f32.xlu0 %v3725
        %v3757 = vpop.xlane.xlu0 %3756
        %3758 = vadd.xlane.f32.xlu0 %v3727
        %v3759 = vpop.xlane.xlu0 %3758
        %3760 = vadd.xlane.f32.xlu0 %v3729
        %v3761 = vpop.xlane.xlu0 %3760
        %3762 = vadd.xlane.f32.xlu0 %v3731
        %v3763 = vpop.xlane.xlu0 %3762
        %3764 = vadd.xlane.f32.xlu0 %v3733
        %v3765 = vpop.xlane.xlu0 %3764
        %3766 = vadd.xlane.f32.xlu0 %v3735
        %v3767 = vpop.xlane.xlu0 %3766
        %3768 = vadd.xlane.f32.xlu0 %v3737
        %v3769 = vpop.xlane.xlu0 %3768
        %3770 = vadd.xlane.f32.xlu0 %v3739
        %v3771 = vpop.xlane.xlu0 %3770
        %3772 = vadd.xlane.f32.xlu0 %v3741
        %v3773 = vpop.xlane.xlu0 %3772
        %3774 = vadd.xlane.f32.xlu0 %v3743
        %v3775 = vpop.xlane.xlu0 %3774
        %3776 = vadd.xlane.f32.xlu0 %v3745
        %v3777 = vpop.xlane.xlu0 %3776
        %3778 = vadd.xlane.f32.xlu0 %v3747
        %v3779 = vpop.xlane.xlu0 %3778
        %3780 = vadd.xlane.f32.xlu0 %v3749
        %v3781 = vpop.xlane.xlu0 %3780
        %3782 = vadd.xlane.f32.xlu0 %v3751
        %v3783 = vpop.xlane.xlu0 %3782
        %3784 = vadd.xlane.f32.xlu0 %v3753
        %v3785 = vpop.xlane.xlu0 %3784
        %v3786 = vrcp.pop %v3755
        %v3787 = vrcp.pop %v3757
        %v3788 = vrcp.pop %v3759
        %v3789 = vrcp.pop %v3761
        %v3790 = vrcp.pop %v3763
        %v3791 = vrcp.pop %v3765
        %v3792 = vrcp.pop %v3767
        %v3793 = vrcp.pop %v3769
        %v3794 = vrcp.pop %v3771
        %v3795 = vrcp.pop %v3773
        %v3796 = vrcp.pop %v3775
        %v3797 = vrcp.pop %v3777
        %v3798 = vrcp.pop %v3779
        %v3799 = vrcp.pop %v3781
        %v3800 = vrcp.pop %v3783
        %v3801 = vrcp.pop %v3785
        %v3802 = vmul.f32 %v3723, %v3786
        %v3803 = vmul.f32 %v3725, %v3787
        %v3804 = vmul.f32 %v3727, %v3788
        %v3805 = vmul.f32 %v3729, %v3789
        %v3806 = vmul.f32 %v3731, %v3790
        %v3807 = vmul.f32 %v3733, %v3791
        %v3808 = vmul.f32 %v3735, %v3792
        %v3809 = vmul.f32 %v3737, %v3793
        %v3810 = vmul.f32 %v3739, %v3794
        %v3811 = vmul.f32 %v3741, %v3795
        %v3812 = vmul.f32 %v3743, %v3796
        %v3813 = vmul.f32 %v3745, %v3797
        %v3814 = vmul.f32 %v3747, %v3798
        %v3815 = vmul.f32 %v3749, %v3799
        %v3816 = vmul.f32 %v3751, %v3800
        %v3817 = vmul.f32 %v3753, %v3801
        %v3818 = vadd.f32 %v3415, %v3802
        %v3819 = vadd.f32 %v3416, %v3803
        %v3820 = vadd.f32 %v3417, %v3804
        %v3821 = vadd.f32 %v3418, %v3805
        %v3822 = vadd.f32 %v3419, %v3806
        %v3823 = vadd.f32 %v3420, %v3807
        %v3824 = vadd.f32 %v3421, %v3808
        %v3825 = vadd.f32 %v3422, %v3809
        %v3826 = vadd.f32 %v3423, %v3810
        %v3827 = vadd.f32 %v3424, %v3811
        %v3828 = vadd.f32 %v3425, %v3812
        %v3829 = vadd.f32 %v3426, %v3813
        %v3830 = vadd.f32 %v3427, %v3814
        %v3831 = vadd.f32 %v3428, %v3815
        %v3832 = vadd.f32 %v3429, %v3816
        %v3833 = vadd.f32 %v3430, %v3817
        %v3834 = vld [vmem:[%s580] sm:$0xff]
        %v3835 = vld [vmem:[%s580 + $0x8] sm:$0xff]
        %v3836 = vld [vmem:[%s580 + $0x10] sm:$0xff]
        %v3837 = vld [vmem:[%s580 + $0x18] sm:$0xff]
        %v3838 = vld [vmem:[%s580 + $0x20] sm:$0xff]
        %v3839 = vld [vmem:[%s580 + $0x28] sm:$0xff]
        %v3840 = vld [vmem:[%s580 + $0x30] sm:$0xff]
        %v3841 = vld [vmem:[%s580 + $0x38] sm:$0xff]
        %v3842 = vld [vmem:[%s580 + $0x40] sm:$0xff]
        %v3843 = vld [vmem:[%s580 + $0x48] sm:$0xff]
        %v3844 = vld [vmem:[%s580 + $0x50] sm:$0xff]
        %v3845 = vld [vmem:[%s580 + $0x58] sm:$0xff]
        %v3846 = vld [vmem:[%s580 + $0x60] sm:$0xff]
        %v3847 = vld [vmem:[%s580 + $0x68] sm:$0xff]
        %v3848 = vld [vmem:[%s580 + $0x70] sm:$0xff]
        %v3849 = vld [vmem:[%s580 + $0x78] sm:$0xff]
        %3850 = vmatprep.subr.mxu0 0.0
        %3851 = vmatpush1.msra.mxu0 %v3834
        %3852 = vmatprep.subr.mxu0 0.0
        %3853 = vmatpush1.msra.mxu0 %v3835
        %3854 = vmatprep.subr.mxu0 0.0
        %3855 = vmatpush1.msra.mxu0 %v3836
        %3856 = vmatprep.subr.mxu0 0.0
        %3857 = vmatpush1.msra.mxu0 %v3837
        %3858 = vmatprep.subr.mxu0 0.0
        %3859 = vmatpush1.msra.mxu0 %v3838
        %3860 = vmatprep.subr.mxu0 0.0
        %3861 = vmatpush1.msra.mxu0 %v3839
        %3862 = vmatprep.subr.mxu0 0.0
        %3863 = vmatpush1.msra.mxu0 %v3840
        %3864 = vmatprep.subr.mxu0 0.0
        %3865 = vmatpush1.msra.mxu0 %v3841
        %3866 = vmatprep.subr.mxu0 0.0
        %3867 = vmatpush1.msra.mxu0 %v3842
        %3868 = vmatprep.subr.mxu0 0.0
        %3869 = vmatpush1.msra.mxu0 %v3843
        %3870 = vmatprep.subr.mxu0 0.0
        %3871 = vmatpush1.msra.mxu0 %v3844
        %3872 = vmatprep.subr.mxu0 0.0
        %3873 = vmatpush1.msra.mxu0 %v3845
        %3874 = vmatprep.subr.mxu0 0.0
        %3875 = vmatpush1.msra.mxu0 %v3846
        %3876 = vmatprep.subr.mxu0 0.0
        %3877 = vmatpush1.msra.mxu0 %v3847
        %3878 = vmatprep.subr.mxu0 0.0
        %3879 = vmatpush1.msra.mxu0 %v3848
        %3880 = vmatprep.subr.mxu0 0.0
        %3881 = vmatpush1.msra.mxu0 %v3849
        %3882 = vmatprep.subr.mxu0 0.0
        %3883 = vmatpush1.msra.mxu0 0.0
        %3884 = vmatprep.subr.mxu0 0.0
        %3885 = vmatpush1.msra.mxu0 0.0
        %3886 = vmatprep.subr.mxu0 0.0
        %3887 = vmatpush1.msra.mxu0 0.0
        %3888 = vmatprep.subr.mxu0 0.0
        %3889 = vmatpush1.msra.mxu0 0.0
        %3890 = vmatprep.subr.mxu0 0.0
        %3891 = vmatpush1.msra.mxu0 0.0
        %3892 = vmatprep.subr.mxu0 0.0
        %3893 = vmatpush1.msra.mxu0 0.0
        %3894 = vmatprep.subr.mxu0 0.0
        %3895 = vmatpush1.msra.mxu0 0.0
        %3896 = vmatprep.subr.mxu0 0.0
        %3897 = vmatpush1.msra.mxu0 0.0
        %3898 = vmatprep.subr.mxu0 0.0
        %3899 = vmatpush1.msra.mxu0 0.0
        %3900 = vmatprep.subr.mxu0 0.0
        %3901 = vmatpush1.msra.mxu0 0.0
        %3902 = vmatprep.subr.mxu0 0.0
        %3903 = vmatpush1.msra.mxu0 0.0
        %3904 = vmatprep.subr.mxu0 0.0
        %3905 = vmatpush1.msra.mxu0 0.0
        %3906 = vmatprep.subr.mxu0 0.0
        %3907 = vmatpush1.msra.mxu0 0.0
        %3908 = vmatprep.subr.mxu0 0.0
        %3909 = vmatpush1.msra.mxu0 0.0
        %3910 = vmatprep.subr.mxu0 0.0
        %3911 = vmatpush1.msra.mxu0 0.0
        %3912 = vmatprep.subr.mxu0 0.0
        %3913 = vmatpush1.msra.mxu0 0.0
        %3914 = vmatprep.mubr.f32.mxu0 0.0
        %3915 = vmatmul.mubr.f32.gmra.mrb[0].mxu0 %v3818
        %v3916 = vpop.f32.mrb[0].mxu0
        %v3917 = vadd.f32 0.0, %v3916
        %v3918 = vpop.f32.mrb[0].mxu0
        %3919 = vmatprep.mubr.f32.mxu0 0.0
        %3920 = vmatmul.mubr.f32.gmra.mrb[0].mxu0 %v3819
        %v3921 = vpop.f32.mrb[0].mxu0
        %v3922 = vadd.f32 0.0, %v3921
        %v3923 = vpop.f32.mrb[0].mxu0
        %3924 = vmatprep.mubr.f32.mxu0 0.0
        %3925 = vmatmul.mubr.f32.gmra.mrb[0].mxu0 %v3820
        %v3926 = vpop.f32.mrb[0].mxu0
        %v3927 = vadd.f32 0.0, %v3926
        %v3928 = vpop.f32.mrb[0].mxu0
        %3929 = vmatprep.mubr.f32.mxu0 0.0
        %3930 = vmatmul.mubr.f32.gmra.mrb[0].mxu0 %v3821
        %v3931 = vpop.f32.mrb[0].mxu0
        %v3932 = vadd.f32 0.0, %v3931
        %v3933 = vpop.f32.mrb[0].mxu0
        %3934 = vmatprep.mubr.f32.mxu0 0.0
        %3935 = vmatmul.mubr.f32.gmra.mrb[0].mxu0 %v3822
        %v3936 = vpop.f32.mrb[0].mxu0
        %v3937 = vadd.f32 0.0, %v3936
        %v3938 = vpop.f32.mrb[0].mxu0
        %3939 = vmatprep.mubr.f32.mxu0 0.0
        %3940 = vmatmul.mubr.f32.gmra.mrb[0].mxu0 %v3823
        %v3941 = vpop.f32.mrb[0].mxu0
        %v3942 = vadd.f32 0.0, %v3941
        %v3943 = vpop.f32.mrb[0].mxu0
        %3944 = vmatprep.mubr.f32.mxu0 0.0
        %3945 = vmatmul.mubr.f32.gmra.mrb[0].mxu0 %v3824
        %v3946 = vpop.f32.mrb[0].mxu0
        %v3947 = vadd.f32 0.0, %v3946
        %v3948 = vpop.f32.mrb[0].mxu0
        %3949 = vmatprep.mubr.f32.mxu0 0.0
        %3950 = vmatmul.mubr.f32.gmra.mrb[0].mxu0 %v3825
        %v3951 = vpop.f32.mrb[0].mxu0
        %v3952 = vadd.f32 0.0, %v3951
        %v3953 = vpop.f32.mrb[0].mxu0
        %3954 = vmatprep.mubr.f32.mxu0 0.0
        %3955 = vmatmul.mubr.f32.gmra.mrb[0].mxu0 %v3826
        %v3956 = vpop.f32.mrb[0].mxu0
        %v3957 = vadd.f32 0.0, %v3956
        %v3958 = vpop.f32.mrb[0].mxu0
        %3959 = vmatprep.mubr.f32.mxu0 0.0
        %3960 = vmatmul.mubr.f32.gmra.mrb[0].mxu0 %v3827
        %v3961 = vpop.f32.mrb[0].mxu0
        %v3962 = vadd.f32 0.0, %v3961
        %v3963 = vpop.f32.mrb[0].mxu0
        %3964 = vmatprep.mubr.f32.mxu0 0.0
        %3965 = vmatmul.mubr.f32.gmra.mrb[0].mxu0 %v3828
        %v3966 = vpop.f32.mrb[0].mxu0
        %v3967 = vadd.f32 0.0, %v3966
        %v3968 = vpop.f32.mrb[0].mxu0
        %3969 = vmatprep.mubr.f32.mxu0 0.0
        %3970 = vmatmul.mubr.f32.gmra.mrb[0].mxu0 %v3829
        %v3971 = vpop.f32.mrb[0].mxu0
        %v3972 = vadd.f32 0.0, %v3971
        %v3973 = vpop.f32.mrb[0].mxu0
        %3974 = vmatprep.mubr.f32.mxu0 0.0
        %3975 = vmatmul.mubr.f32.gmra.mrb[0].mxu0 %v3830
        %v3976 = vpop.f32.mrb[0].mxu0
        %v3977 = vadd.f32 0.0, %v3976
        %v3978 = vpop.f32.mrb[0].mxu0
        %3979 = vmatprep.mubr.f32.mxu0 0.0
        %3980 = vmatmul.mubr.f32.gmra.mrb[0].mxu0 %v3831
        %v3981 = vpop.f32.mrb[0].mxu0
        %v3982 = vadd.f32 0.0, %v3981
        %v3983 = vpop.f32.mrb[0].mxu0
        %3984 = vmatprep.mubr.f32.mxu0 0.0
        %3985 = vmatmul.mubr.f32.gmra.mrb[0].mxu0 %v3832
        %v3986 = vpop.f32.mrb[0].mxu0
        %v3987 = vadd.f32 0.0, %v3986
        %v3988 = vpop.f32.mrb[0].mxu0
        %3989 = vmatprep.mubr.f32.mxu0 0.0
        %3990 = vmatmul.mubr.f32.gmra.mrb[0].mxu0 %v3833
        %v3991 = vpop.f32.mrb[0].mxu0
        %v3992 = vadd.f32 0.0, %v3991
        %v3993 = vpop.f32.mrb[0].mxu0
        %3994 = vdwg.mxu0
        %3995 = vxpose.xlu0.b32.start [1/16] %v3917, 128
        %3996 = vxpose.xlu0.b32.cont [2/16] %v3922, 128
        %3997 = vxpose.xlu0.b32.cont [3/16] %v3927, 128
        %3998 = vxpose.xlu0.b32.cont [4/16] %v3932, 128
        %3999 = vxpose.xlu0.b32.cont [5/16] %v3937, 128
        %4000 = vxpose.xlu0.b32.cont [6/16] %v3942, 128
        %4001 = vxpose.xlu0.b32.cont [7/16] %v3947, 128
        %4002 = vxpose.xlu0.b32.cont [8/16] %v3952, 128
        %4003 = vxpose.xlu0.b32.cont [9/16] %v3957, 128
        %4004 = vxpose.xlu0.b32.cont [10/16] %v3962, 128
        %4005 = vxpose.xlu0.b32.cont [11/16] %v3967, 128
        %4006 = vxpose.xlu0.b32.cont [12/16] %v3972, 128
        %4007 = vxpose.xlu0.b32.cont [13/16] %v3977, 128
        %4008 = vxpose.xlu0.b32.cont [14/16] %v3982, 128
        %4009 = vxpose.xlu0.b32.cont [15/16] %v3987, 128
        %4010 = vxpose.xlu0.b32.end [16/16] %v3992, 128
        %v4011 = vpop.trf.xlu0
        %v4012 = vpop.trf.xlu0
        %v4013 = vpop.trf.xlu0
        %v4014 = vpop.trf.xlu0
        %v4015 = vpop.trf.xlu0
        %v4016 = vpop.trf.xlu0
        %v4017 = vpop.trf.xlu0
        %v4018 = vpop.trf.xlu0
        %v4019 = vpop.trf.xlu0
        %v4020 = vpop.trf.xlu0
        %v4021 = vpop.trf.xlu0
        %v4022 = vpop.trf.xlu0
        %v4023 = vpop.trf.xlu0
        %v4024 = vpop.trf.xlu0
        %v4025 = vpop.trf.xlu0
        %v4026 = vpop.trf.xlu0
        %v4027 = vld [vmem:[%s588] sm:$0xff]
        %v4028 = vld [vmem:[%s588 + $0x8] sm:$0xff]
        %v4029 = vld [vmem:[%s588 + $0x10] sm:$0xff]
        %v4030 = vld [vmem:[%s588 + $0x18] sm:$0xff]
        %v4031 = vld [vmem:[%s588 + $0x20] sm:$0xff]
        %v4032 = vld [vmem:[%s588 + $0x28] sm:$0xff]
        %v4033 = vld [vmem:[%s588 + $0x30] sm:$0xff]
        %v4034 = vld [vmem:[%s588 + $0x38] sm:$0xff]
        %v4036 = vcombine.high %v4011, %v4011
        %v4038 = vunpack.c.l.s4 1966171168
        %v4039 = vunpack.c.0.s8 %v4038
        %v4040 = vlaneseq
        %v4041 = vshrl.u32 %v4040, 7
        %v4042 = vsub.s32 %v4039, %v4041
        %v4043 = vrot.slane %v4011, %v4042
        %v4045 = vunpack.c.l.s4 1966171168
        %v4046 = vunpack.c.0.s8 %v4045
        %v4047 = vlaneseq
        %v4048 = vshrl.u32 %v4047, 7
        %v4049 = vsub.s32 %v4046, %v4048
        %v4050 = vrot.slane %v4036, %v4049
        %v4051 = vcombine.high %v4043, %v4043
        %v4052 = vcombine.high %v4050, %v4050
        %v4054 = vunpack.c.l.s4 1966171168
        %v4055 = vunpack.c.0.s8 %v4054
        %v4056 = vlaneseq
        %v4057 = vshrl.u32 %v4056, 7
        %v4058 = vsub.s32 %v4055, %v4057
        %v4059 = vrot.slane %v4043, %v4058
        %v4061 = vunpack.c.l.s4 1966171168
        %v4062 = vunpack.c.0.s8 %v4061
        %v4063 = vlaneseq
        %v4064 = vshrl.u32 %v4063, 7
        %v4065 = vsub.s32 %v4062, %v4064
        %v4066 = vrot.slane %v4050, %v4065
        %v4068 = vunpack.c.l.s4 1966171168
        %v4069 = vunpack.c.0.s8 %v4068
        %v4070 = vlaneseq
        %v4071 = vshrl.u32 %v4070, 7
        %v4072 = vsub.s32 %v4069, %v4071
        %v4073 = vrot.slane %v4051, %v4072
        %v4075 = vunpack.c.l.s4 1966171168
        %v4076 = vunpack.c.0.s8 %v4075
        %v4077 = vlaneseq
        %v4078 = vshrl.u32 %v4077, 7
        %v4079 = vsub.s32 %v4076, %v4078
        %v4080 = vrot.slane %v4052, %v4079
        %v4081 = vcombine.high %v4059, %v4059
        %v4082 = vcombine.high %v4066, %v4066
        %v4083 = vcombine.high %v4073, %v4073
        %v4084 = vcombine.high %v4080, %v4080
        %v4085 = vlaneseq
        %v4086 = vshrl.u32 %v4085, 7
        %v4087 = vsub.s32 0, %v4086
        %v4088 = vrot.slane %v4059, %v4087
        %v4089 = vlaneseq
        %v4090 = vshrl.u32 %v4089, 7
        %v4091 = vsub.s32 0, %v4090
        %v4092 = vrot.slane %v4073, %v4091
        %v4093 = vlaneseq
        %v4094 = vshrl.u32 %v4093, 7
        %v4095 = vsub.s32 0, %v4094
        %v4096 = vrot.slane %v4081, %v4095
        %v4097 = vlaneseq
        %v4098 = vshrl.u32 %v4097, 7
        %v4099 = vsub.s32 0, %v4098
        %v4100 = vrot.slane %v4083, %v4099
        %v4101 = vlaneseq
        %v4102 = vshrl.u32 %v4101, 7
        %v4103 = vsub.s32 0, %v4102
        %v4104 = vrot.slane %v4066, %v4103
        %v4105 = vlaneseq
        %v4106 = vshrl.u32 %v4105, 7
        %v4107 = vsub.s32 0, %v4106
        %v4108 = vrot.slane %v4080, %v4107
        %v4109 = vlaneseq
        %v4110 = vshrl.u32 %v4109, 7
        %v4111 = vsub.s32 0, %v4110
        %v4112 = vrot.slane %v4082, %v4111
        %v4113 = vlaneseq
        %v4114 = vshrl.u32 %v4113, 7
        %v4115 = vsub.s32 0, %v4114
        %v4116 = vrot.slane %v4084, %v4115
        %v4125 = vmul.f32 %v4027, %v4088
        %v4126 = vmul.f32 %v4028, %v4092
        %v4127 = vmul.f32 %v4029, %v4096
        %v4128 = vmul.f32 %v4030, %v4100
        %v4129 = vmul.f32 %v4031, %v4104
        %v4130 = vmul.f32 %v4032, %v4108
        %v4131 = vmul.f32 %v4033, %v4112
        %v4132 = vmul.f32 %v4034, %v4116
        %v4133 = vadd.f32 %v4125, %v4126
        %v4134 = vadd.f32 %v4133, %v4127
        %v4135 = vadd.f32 %v4134, %v4128
        %v4136 = vadd.f32 %v4135, %v4129
        %v4137 = vadd.f32 %v4136, %v4130
        %v4138 = vadd.f32 %v4137, %v4131
        %v4139 = vadd.f32 %v4138, %v4132
        %4140 = vst [vmem:[%s624] sm:$0xff] %v4139
        %s4141 = scalar_lea.vmem %s588, 64 [#allocation5]
        %v4142 = vld [vmem:[%s4141] sm:$0xff]
        %v4143 = vld [vmem:[%s4141 + $0x8] sm:$0xff]
        %v4144 = vld [vmem:[%s4141 + $0x10] sm:$0xff]
        %v4145 = vld [vmem:[%s4141 + $0x18] sm:$0xff]
        %v4146 = vld [vmem:[%s4141 + $0x20] sm:$0xff]
        %v4147 = vld [vmem:[%s4141 + $0x28] sm:$0xff]
        %v4148 = vld [vmem:[%s4141 + $0x30] sm:$0xff]
        %v4149 = vld [vmem:[%s4141 + $0x38] sm:$0xff]
        %v4151 = vcombine.high %v4012, %v4012
        %v4153 = vunpack.c.l.s4 1966171168
        %v4154 = vunpack.c.0.s8 %v4153
        %v4155 = vlaneseq
        %v4156 = vshrl.u32 %v4155, 7
        %v4157 = vsub.s32 %v4154, %v4156
        %v4158 = vrot.slane %v4012, %v4157
        %v4160 = vunpack.c.l.s4 1966171168
        %v4161 = vunpack.c.0.s8 %v4160
        %v4162 = vlaneseq
        %v4163 = vshrl.u32 %v4162, 7
        %v4164 = vsub.s32 %v4161, %v4163
        %v4165 = vrot.slane %v4151, %v4164
        %v4166 = vcombine.high %v4158, %v4158
        %v4167 = vcombine.high %v4165, %v4165
        %v4169 = vunpack.c.l.s4 1966171168
        %v4170 = vunpack.c.0.s8 %v4169
        %v4171 = vlaneseq
        %v4172 = vshrl.u32 %v4171, 7
        %v4173 = vsub.s32 %v4170, %v4172
        %v4174 = vrot.slane %v4158, %v4173
        %v4176 = vunpack.c.l.s4 1966171168
        %v4177 = vunpack.c.0.s8 %v4176
        %v4178 = vlaneseq
        %v4179 = vshrl.u32 %v4178, 7
        %v4180 = vsub.s32 %v4177, %v4179
        %v4181 = vrot.slane %v4165, %v4180
        %v4183 = vunpack.c.l.s4 1966171168
        %v4184 = vunpack.c.0.s8 %v4183
        %v4185 = vlaneseq
        %v4186 = vshrl.u32 %v4185, 7
        %v4187 = vsub.s32 %v4184, %v4186
        %v4188 = vrot.slane %v4166, %v4187
        %v4190 = vunpack.c.l.s4 1966171168
        %v4191 = vunpack.c.0.s8 %v4190
        %v4192 = vlaneseq
        %v4193 = vshrl.u32 %v4192, 7
        %v4194 = vsub.s32 %v4191, %v4193
        %v4195 = vrot.slane %v4167, %v4194
        %v4196 = vcombine.high %v4174, %v4174
        %v4197 = vcombine.high %v4181, %v4181
        %v4198 = vcombine.high %v4188, %v4188
        %v4199 = vcombine.high %v4195, %v4195
        %v4200 = vlaneseq
        %v4201 = vshrl.u32 %v4200, 7
        %v4202 = vsub.s32 0, %v4201
        %v4203 = vrot.slane %v4174, %v4202
        %v4204 = vlaneseq
        %v4205 = vshrl.u32 %v4204, 7
        %v4206 = vsub.s32 0, %v4205
        %v4207 = vrot.slane %v4188, %v4206
        %v4208 = vlaneseq
        %v4209 = vshrl.u32 %v4208, 7
        %v4210 = vsub.s32 0, %v4209
        %v4211 = vrot.slane %v4196, %v4210
        %v4212 = vlaneseq
        %v4213 = vshrl.u32 %v4212, 7
        %v4214 = vsub.s32 0, %v4213
        %v4215 = vrot.slane %v4198, %v4214
        %v4216 = vlaneseq
        %v4217 = vshrl.u32 %v4216, 7
        %v4218 = vsub.s32 0, %v4217
        %v4219 = vrot.slane %v4181, %v4218
        %v4220 = vlaneseq
        %v4221 = vshrl.u32 %v4220, 7
        %v4222 = vsub.s32 0, %v4221
        %v4223 = vrot.slane %v4195, %v4222
        %v4224 = vlaneseq
        %v4225 = vshrl.u32 %v4224, 7
        %v4226 = vsub.s32 0, %v4225
        %v4227 = vrot.slane %v4197, %v4226
        %v4228 = vlaneseq
        %v4229 = vshrl.u32 %v4228, 7
        %v4230 = vsub.s32 0, %v4229
        %v4231 = vrot.slane %v4199, %v4230
        %v4240 = vmul.f32 %v4142, %v4203
        %v4241 = vmul.f32 %v4143, %v4207
        %v4242 = vmul.f32 %v4144, %v4211
        %v4243 = vmul.f32 %v4145, %v4215
        %v4244 = vmul.f32 %v4146, %v4219
        %v4245 = vmul.f32 %v4147, %v4223
        %v4246 = vmul.f32 %v4148, %v4227
        %v4247 = vmul.f32 %v4149, %v4231
        %v4248 = vadd.f32 %v4240, %v4241
        %v4249 = vadd.f32 %v4248, %v4242
        %v4250 = vadd.f32 %v4249, %v4243
        %v4251 = vadd.f32 %v4250, %v4244
        %v4252 = vadd.f32 %v4251, %v4245
        %v4253 = vadd.f32 %v4252, %v4246
        %v4254 = vadd.f32 %v4253, %v4247
        %s4255 = scalar_lea.vmem %s624, 8 [#allocation8]
        %4256 = vst [vmem:[%s4255] sm:$0xff] %v4254
        %s4257 = scalar_lea.vmem %s588, 128 [#allocation5]
        %v4258 = vld [vmem:[%s4257] sm:$0xff]
        %v4259 = vld [vmem:[%s4257 + $0x8] sm:$0xff]
        %v4260 = vld [vmem:[%s4257 + $0x10] sm:$0xff]
        %v4261 = vld [vmem:[%s4257 + $0x18] sm:$0xff]
        %v4262 = vld [vmem:[%s4257 + $0x20] sm:$0xff]
        %v4263 = vld [vmem:[%s4257 + $0x28] sm:$0xff]
        %v4264 = vld [vmem:[%s4257 + $0x30] sm:$0xff]
        %v4265 = vld [vmem:[%s4257 + $0x38] sm:$0xff]
        %v4267 = vcombine.high %v4013, %v4013
        %v4269 = vunpack.c.l.s4 1966171168
        %v4270 = vunpack.c.0.s8 %v4269
        %v4271 = vlaneseq
        %v4272 = vshrl.u32 %v4271, 7
        %v4273 = vsub.s32 %v4270, %v4272
        %v4274 = vrot.slane %v4013, %v4273
        %v4276 = vunpack.c.l.s4 1966171168
        %v4277 = vunpack.c.0.s8 %v4276
        %v4278 = vlaneseq
        %v4279 = vshrl.u32 %v4278, 7
        %v4280 = vsub.s32 %v4277, %v4279
        %v4281 = vrot.slane %v4267, %v4280
        %v4282 = vcombine.high %v4274, %v4274
        %v4283 = vcombine.high %v4281, %v4281
        %v4285 = vunpack.c.l.s4 1966171168
        %v4286 = vunpack.c.0.s8 %v4285
        %v4287 = vlaneseq
        %v4288 = vshrl.u32 %v4287, 7
        %v4289 = vsub.s32 %v4286, %v4288
        %v4290 = vrot.slane %v4274, %v4289
        %v4292 = vunpack.c.l.s4 1966171168
        %v4293 = vunpack.c.0.s8 %v4292
        %v4294 = vlaneseq
        %v4295 = vshrl.u32 %v4294, 7
        %v4296 = vsub.s32 %v4293, %v4295
        %v4297 = vrot.slane %v4281, %v4296
        %v4299 = vunpack.c.l.s4 1966171168
        %v4300 = vunpack.c.0.s8 %v4299
        %v4301 = vlaneseq
        %v4302 = vshrl.u32 %v4301, 7
        %v4303 = vsub.s32 %v4300, %v4302
        %v4304 = vrot.slane %v4282, %v4303
        %v4306 = vunpack.c.l.s4 1966171168
        %v4307 = vunpack.c.0.s8 %v4306
        %v4308 = vlaneseq
        %v4309 = vshrl.u32 %v4308, 7
        %v4310 = vsub.s32 %v4307, %v4309
        %v4311 = vrot.slane %v4283, %v4310
        %v4312 = vcombine.high %v4290, %v4290
        %v4313 = vcombine.high %v4297, %v4297
        %v4314 = vcombine.high %v4304, %v4304
        %v4315 = vcombine.high %v4311, %v4311
        %v4316 = vlaneseq
        %v4317 = vshrl.u32 %v4316, 7
        %v4318 = vsub.s32 0, %v4317
        %v4319 = vrot.slane %v4290, %v4318
        %v4320 = vlaneseq
        %v4321 = vshrl.u32 %v4320, 7
        %v4322 = vsub.s32 0, %v4321
        %v4323 = vrot.slane %v4304, %v4322
        %v4324 = vlaneseq
        %v4325 = vshrl.u32 %v4324, 7
        %v4326 = vsub.s32 0, %v4325
        %v4327 = vrot.slane %v4312, %v4326
        %v4328 = vlaneseq
        %v4329 = vshrl.u32 %v4328, 7
        %v4330 = vsub.s32 0, %v4329
        %v4331 = vrot.slane %v4314, %v4330
        %v4332 = vlaneseq
        %v4333 = vshrl.u32 %v4332, 7
        %v4334 = vsub.s32 0, %v4333
        %v4335 = vrot.slane %v4297, %v4334
        %v4336 = vlaneseq
        %v4337 = vshrl.u32 %v4336, 7
        %v4338 = vsub.s32 0, %v4337
        %v4339 = vrot.slane %v4311, %v4338
        %v4340 = vlaneseq
        %v4341 = vshrl.u32 %v4340, 7
        %v4342 = vsub.s32 0, %v4341
        %v4343 = vrot.slane %v4313, %v4342
        %v4344 = vlaneseq
        %v4345 = vshrl.u32 %v4344, 7
        %v4346 = vsub.s32 0, %v4345
        %v4347 = vrot.slane %v4315, %v4346
        %v4356 = vmul.f32 %v4258, %v4319
        %v4357 = vmul.f32 %v4259, %v4323
        %v4358 = vmul.f32 %v4260, %v4327
        %v4359 = vmul.f32 %v4261, %v4331
        %v4360 = vmul.f32 %v4262, %v4335
        %v4361 = vmul.f32 %v4263, %v4339
        %v4362 = vmul.f32 %v4264, %v4343
        %v4363 = vmul.f32 %v4265, %v4347
        %v4364 = vadd.f32 %v4356, %v4357
        %v4365 = vadd.f32 %v4364, %v4358
        %v4366 = vadd.f32 %v4365, %v4359
        %v4367 = vadd.f32 %v4366, %v4360
        %v4368 = vadd.f32 %v4367, %v4361
        %v4369 = vadd.f32 %v4368, %v4362
        %v4370 = vadd.f32 %v4369, %v4363
        %s4371 = scalar_lea.vmem %s624, 16 [#allocation8]
        %4372 = vst [vmem:[%s4371] sm:$0xff] %v4370
        %s4373 = scalar_lea.vmem %s588, 192 [#allocation5]
        %v4374 = vld [vmem:[%s4373] sm:$0xff]
        %v4375 = vld [vmem:[%s4373 + $0x8] sm:$0xff]
        %v4376 = vld [vmem:[%s4373 + $0x10] sm:$0xff]
        %v4377 = vld [vmem:[%s4373 + $0x18] sm:$0xff]
        %v4378 = vld [vmem:[%s4373 + $0x20] sm:$0xff]
        %v4379 = vld [vmem:[%s4373 + $0x28] sm:$0xff]
        %v4380 = vld [vmem:[%s4373 + $0x30] sm:$0xff]
        %v4381 = vld [vmem:[%s4373 + $0x38] sm:$0xff]
        %v4383 = vcombine.high %v4014, %v4014
        %v4385 = vunpack.c.l.s4 1966171168
        %v4386 = vunpack.c.0.s8 %v4385
        %v4387 = vlaneseq
        %v4388 = vshrl.u32 %v4387, 7
        %v4389 = vsub.s32 %v4386, %v4388
        %v4390 = vrot.slane %v4014, %v4389
        %v4392 = vunpack.c.l.s4 1966171168
        %v4393 = vunpack.c.0.s8 %v4392
        %v4394 = vlaneseq
        %v4395 = vshrl.u32 %v4394, 7
        %v4396 = vsub.s32 %v4393, %v4395
        %v4397 = vrot.slane %v4383, %v4396
        %v4398 = vcombine.high %v4390, %v4390
        %v4399 = vcombine.high %v4397, %v4397
        %v4401 = vunpack.c.l.s4 1966171168
        %v4402 = vunpack.c.0.s8 %v4401
        %v4403 = vlaneseq
        %v4404 = vshrl.u32 %v4403, 7
        %v4405 = vsub.s32 %v4402, %v4404
        %v4406 = vrot.slane %v4390, %v4405
        %v4408 = vunpack.c.l.s4 1966171168
        %v4409 = vunpack.c.0.s8 %v4408
        %v4410 = vlaneseq
        %v4411 = vshrl.u32 %v4410, 7
        %v4412 = vsub.s32 %v4409, %v4411
        %v4413 = vrot.slane %v4397, %v4412
        %v4415 = vunpack.c.l.s4 1966171168
        %v4416 = vunpack.c.0.s8 %v4415
        %v4417 = vlaneseq
        %v4418 = vshrl.u32 %v4417, 7
        %v4419 = vsub.s32 %v4416, %v4418
        %v4420 = vrot.slane %v4398, %v4419
        %v4422 = vunpack.c.l.s4 1966171168
        %v4423 = vunpack.c.0.s8 %v4422
        %v4424 = vlaneseq
        %v4425 = vshrl.u32 %v4424, 7
        %v4426 = vsub.s32 %v4423, %v4425
        %v4427 = vrot.slane %v4399, %v4426
        %v4428 = vcombine.high %v4406, %v4406
        %v4429 = vcombine.high %v4413, %v4413
        %v4430 = vcombine.high %v4420, %v4420
        %v4431 = vcombine.high %v4427, %v4427
        %v4432 = vlaneseq
        %v4433 = vshrl.u32 %v4432, 7
        %v4434 = vsub.s32 0, %v4433
        %v4435 = vrot.slane %v4406, %v4434
        %v4436 = vlaneseq
        %v4437 = vshrl.u32 %v4436, 7
        %v4438 = vsub.s32 0, %v4437
        %v4439 = vrot.slane %v4420, %v4438
        %v4440 = vlaneseq
        %v4441 = vshrl.u32 %v4440, 7
        %v4442 = vsub.s32 0, %v4441
        %v4443 = vrot.slane %v4428, %v4442
        %v4444 = vlaneseq
        %v4445 = vshrl.u32 %v4444, 7
        %v4446 = vsub.s32 0, %v4445
        %v4447 = vrot.slane %v4430, %v4446
        %v4448 = vlaneseq
        %v4449 = vshrl.u32 %v4448, 7
        %v4450 = vsub.s32 0, %v4449
        %v4451 = vrot.slane %v4413, %v4450
        %v4452 = vlaneseq
        %v4453 = vshrl.u32 %v4452, 7
        %v4454 = vsub.s32 0, %v4453
        %v4455 = vrot.slane %v4427, %v4454
        %v4456 = vlaneseq
        %v4457 = vshrl.u32 %v4456, 7
        %v4458 = vsub.s32 0, %v4457
        %v4459 = vrot.slane %v4429, %v4458
        %v4460 = vlaneseq
        %v4461 = vshrl.u32 %v4460, 7
        %v4462 = vsub.s32 0, %v4461
        %v4463 = vrot.slane %v4431, %v4462
        %v4472 = vmul.f32 %v4374, %v4435
        %v4473 = vmul.f32 %v4375, %v4439
        %v4474 = vmul.f32 %v4376, %v4443
        %v4475 = vmul.f32 %v4377, %v4447
        %v4476 = vmul.f32 %v4378, %v4451
        %v4477 = vmul.f32 %v4379, %v4455
        %v4478 = vmul.f32 %v4380, %v4459
        %v4479 = vmul.f32 %v4381, %v4463
        %v4480 = vadd.f32 %v4472, %v4473
        %v4481 = vadd.f32 %v4480, %v4474
        %v4482 = vadd.f32 %v4481, %v4475
        %v4483 = vadd.f32 %v4482, %v4476
        %v4484 = vadd.f32 %v4483, %v4477
        %v4485 = vadd.f32 %v4484, %v4478
        %v4486 = vadd.f32 %v4485, %v4479
        %s4487 = scalar_lea.vmem %s624, 24 [#allocation8]
        %4488 = vst [vmem:[%s4487] sm:$0xff] %v4486
        %s4489 = scalar_lea.vmem %s588, 256 [#allocation5]
        %v4490 = vld [vmem:[%s4489] sm:$0xff]
        %v4491 = vld [vmem:[%s4489 + $0x8] sm:$0xff]
        %v4492 = vld [vmem:[%s4489 + $0x10] sm:$0xff]
        %v4493 = vld [vmem:[%s4489 + $0x18] sm:$0xff]
        %v4494 = vld [vmem:[%s4489 + $0x20] sm:$0xff]
        %v4495 = vld [vmem:[%s4489 + $0x28] sm:$0xff]
        %v4496 = vld [vmem:[%s4489 + $0x30] sm:$0xff]
        %v4497 = vld [vmem:[%s4489 + $0x38] sm:$0xff]
        %v4499 = vcombine.high %v4015, %v4015
        %v4501 = vunpack.c.l.s4 1966171168
        %v4502 = vunpack.c.0.s8 %v4501
        %v4503 = vlaneseq
        %v4504 = vshrl.u32 %v4503, 7
        %v4505 = vsub.s32 %v4502, %v4504
        %v4506 = vrot.slane %v4015, %v4505
        %v4508 = vunpack.c.l.s4 1966171168
        %v4509 = vunpack.c.0.s8 %v4508
        %v4510 = vlaneseq
        %v4511 = vshrl.u32 %v4510, 7
        %v4512 = vsub.s32 %v4509, %v4511
        %v4513 = vrot.slane %v4499, %v4512
        %v4514 = vcombine.high %v4506, %v4506
        %v4515 = vcombine.high %v4513, %v4513
        %v4517 = vunpack.c.l.s4 1966171168
        %v4518 = vunpack.c.0.s8 %v4517
        %v4519 = vlaneseq
        %v4520 = vshrl.u32 %v4519, 7
        %v4521 = vsub.s32 %v4518, %v4520
        %v4522 = vrot.slane %v4506, %v4521
        %v4524 = vunpack.c.l.s4 1966171168
        %v4525 = vunpack.c.0.s8 %v4524
        %v4526 = vlaneseq
        %v4527 = vshrl.u32 %v4526, 7
        %v4528 = vsub.s32 %v4525, %v4527
        %v4529 = vrot.slane %v4513, %v4528
        %v4531 = vunpack.c.l.s4 1966171168
        %v4532 = vunpack.c.0.s8 %v4531
        %v4533 = vlaneseq
        %v4534 = vshrl.u32 %v4533, 7
        %v4535 = vsub.s32 %v4532, %v4534
        %v4536 = vrot.slane %v4514, %v4535
        %v4538 = vunpack.c.l.s4 1966171168
        %v4539 = vunpack.c.0.s8 %v4538
        %v4540 = vlaneseq
        %v4541 = vshrl.u32 %v4540, 7
        %v4542 = vsub.s32 %v4539, %v4541
        %v4543 = vrot.slane %v4515, %v4542
        %v4544 = vcombine.high %v4522, %v4522
        %v4545 = vcombine.high %v4529, %v4529
        %v4546 = vcombine.high %v4536, %v4536
        %v4547 = vcombine.high %v4543, %v4543
        %v4548 = vlaneseq
        %v4549 = vshrl.u32 %v4548, 7
        %v4550 = vsub.s32 0, %v4549
        %v4551 = vrot.slane %v4522, %v4550
        %v4552 = vlaneseq
        %v4553 = vshrl.u32 %v4552, 7
        %v4554 = vsub.s32 0, %v4553
        %v4555 = vrot.slane %v4536, %v4554
        %v4556 = vlaneseq
        %v4557 = vshrl.u32 %v4556, 7
        %v4558 = vsub.s32 0, %v4557
        %v4559 = vrot.slane %v4544, %v4558
        %v4560 = vlaneseq
        %v4561 = vshrl.u32 %v4560, 7
        %v4562 = vsub.s32 0, %v4561
        %v4563 = vrot.slane %v4546, %v4562
        %v4564 = vlaneseq
        %v4565 = vshrl.u32 %v4564, 7
        %v4566 = vsub.s32 0, %v4565
        %v4567 = vrot.slane %v4529, %v4566
        %v4568 = vlaneseq
        %v4569 = vshrl.u32 %v4568, 7
        %v4570 = vsub.s32 0, %v4569
        %v4571 = vrot.slane %v4543, %v4570
        %v4572 = vlaneseq
        %v4573 = vshrl.u32 %v4572, 7
        %v4574 = vsub.s32 0, %v4573
        %v4575 = vrot.slane %v4545, %v4574
        %v4576 = vlaneseq
        %v4577 = vshrl.u32 %v4576, 7
        %v4578 = vsub.s32 0, %v4577
        %v4579 = vrot.slane %v4547, %v4578
        %v4588 = vmul.f32 %v4490, %v4551
        %v4589 = vmul.f32 %v4491, %v4555
        %v4590 = vmul.f32 %v4492, %v4559
        %v4591 = vmul.f32 %v4493, %v4563
        %v4592 = vmul.f32 %v4494, %v4567
        %v4593 = vmul.f32 %v4495, %v4571
        %v4594 = vmul.f32 %v4496, %v4575
        %v4595 = vmul.f32 %v4497, %v4579
        %v4596 = vadd.f32 %v4588, %v4589
        %v4597 = vadd.f32 %v4596, %v4590
        %v4598 = vadd.f32 %v4597, %v4591
        %v4599 = vadd.f32 %v4598, %v4592
        %v4600 = vadd.f32 %v4599, %v4593
        %v4601 = vadd.f32 %v4600, %v4594
        %v4602 = vadd.f32 %v4601, %v4595
        %s4603 = scalar_lea.vmem %s624, 32 [#allocation8]
        %4604 = vst [vmem:[%s4603] sm:$0xff] %v4602
        %s4605 = scalar_lea.vmem %s588, 320 [#allocation5]
        %v4606 = vld [vmem:[%s4605] sm:$0xff]
        %v4607 = vld [vmem:[%s4605 + $0x8] sm:$0xff]
        %v4608 = vld [vmem:[%s4605 + $0x10] sm:$0xff]
        %v4609 = vld [vmem:[%s4605 + $0x18] sm:$0xff]
        %v4610 = vld [vmem:[%s4605 + $0x20] sm:$0xff]
        %v4611 = vld [vmem:[%s4605 + $0x28] sm:$0xff]
        %v4612 = vld [vmem:[%s4605 + $0x30] sm:$0xff]
        %v4613 = vld [vmem:[%s4605 + $0x38] sm:$0xff]
        %v4615 = vcombine.high %v4016, %v4016
        %v4617 = vunpack.c.l.s4 1966171168
        %v4618 = vunpack.c.0.s8 %v4617
        %v4619 = vlaneseq
        %v4620 = vshrl.u32 %v4619, 7
        %v4621 = vsub.s32 %v4618, %v4620
        %v4622 = vrot.slane %v4016, %v4621
        %v4624 = vunpack.c.l.s4 1966171168
        %v4625 = vunpack.c.0.s8 %v4624
        %v4626 = vlaneseq
        %v4627 = vshrl.u32 %v4626, 7
        %v4628 = vsub.s32 %v4625, %v4627
        %v4629 = vrot.slane %v4615, %v4628
        %v4630 = vcombine.high %v4622, %v4622
        %v4631 = vcombine.high %v4629, %v4629
        %v4633 = vunpack.c.l.s4 1966171168
        %v4634 = vunpack.c.0.s8 %v4633
        %v4635 = vlaneseq
        %v4636 = vshrl.u32 %v4635, 7
        %v4637 = vsub.s32 %v4634, %v4636
        %v4638 = vrot.slane %v4622, %v4637
        %v4640 = vunpack.c.l.s4 1966171168
        %v4641 = vunpack.c.0.s8 %v4640
        %v4642 = vlaneseq
        %v4643 = vshrl.u32 %v4642, 7
        %v4644 = vsub.s32 %v4641, %v4643
        %v4645 = vrot.slane %v4629, %v4644
        %v4647 = vunpack.c.l.s4 1966171168
        %v4648 = vunpack.c.0.s8 %v4647
        %v4649 = vlaneseq
        %v4650 = vshrl.u32 %v4649, 7
        %v4651 = vsub.s32 %v4648, %v4650
        %v4652 = vrot.slane %v4630, %v4651
        %v4654 = vunpack.c.l.s4 1966171168
        %v4655 = vunpack.c.0.s8 %v4654
        %v4656 = vlaneseq
        %v4657 = vshrl.u32 %v4656, 7
        %v4658 = vsub.s32 %v4655, %v4657
        %v4659 = vrot.slane %v4631, %v4658
        %v4660 = vcombine.high %v4638, %v4638
        %v4661 = vcombine.high %v4645, %v4645
        %v4662 = vcombine.high %v4652, %v4652
        %v4663 = vcombine.high %v4659, %v4659
        %v4664 = vlaneseq
        %v4665 = vshrl.u32 %v4664, 7
        %v4666 = vsub.s32 0, %v4665
        %v4667 = vrot.slane %v4638, %v4666
        %v4668 = vlaneseq
        %v4669 = vshrl.u32 %v4668, 7
        %v4670 = vsub.s32 0, %v4669
        %v4671 = vrot.slane %v4652, %v4670
        %v4672 = vlaneseq
        %v4673 = vshrl.u32 %v4672, 7
        %v4674 = vsub.s32 0, %v4673
        %v4675 = vrot.slane %v4660, %v4674
        %v4676 = vlaneseq
        %v4677 = vshrl.u32 %v4676, 7
        %v4678 = vsub.s32 0, %v4677
        %v4679 = vrot.slane %v4662, %v4678
        %v4680 = vlaneseq
        %v4681 = vshrl.u32 %v4680, 7
        %v4682 = vsub.s32 0, %v4681
        %v4683 = vrot.slane %v4645, %v4682
        %v4684 = vlaneseq
        %v4685 = vshrl.u32 %v4684, 7
        %v4686 = vsub.s32 0, %v4685
        %v4687 = vrot.slane %v4659, %v4686
        %v4688 = vlaneseq
        %v4689 = vshrl.u32 %v4688, 7
        %v4690 = vsub.s32 0, %v4689
        %v4691 = vrot.slane %v4661, %v4690
        %v4692 = vlaneseq
        %v4693 = vshrl.u32 %v4692, 7
        %v4694 = vsub.s32 0, %v4693
        %v4695 = vrot.slane %v4663, %v4694
        %v4704 = vmul.f32 %v4606, %v4667
        %v4705 = vmul.f32 %v4607, %v4671
        %v4706 = vmul.f32 %v4608, %v4675
        %v4707 = vmul.f32 %v4609, %v4679
        %v4708 = vmul.f32 %v4610, %v4683
        %v4709 = vmul.f32 %v4611, %v4687
        %v4710 = vmul.f32 %v4612, %v4691
        %v4711 = vmul.f32 %v4613, %v4695
        %v4712 = vadd.f32 %v4704, %v4705
        %v4713 = vadd.f32 %v4712, %v4706
        %v4714 = vadd.f32 %v4713, %v4707
        %v4715 = vadd.f32 %v4714, %v4708
        %v4716 = vadd.f32 %v4715, %v4709
        %v4717 = vadd.f32 %v4716, %v4710
        %v4718 = vadd.f32 %v4717, %v4711
        %s4719 = scalar_lea.vmem %s624, 40 [#allocation8]
        %4720 = vst [vmem:[%s4719] sm:$0xff] %v4718
        %s4721 = scalar_lea.vmem %s588, 384 [#allocation5]
        %v4722 = vld [vmem:[%s4721] sm:$0xff]
        %v4723 = vld [vmem:[%s4721 + $0x8] sm:$0xff]
        %v4724 = vld [vmem:[%s4721 + $0x10] sm:$0xff]
        %v4725 = vld [vmem:[%s4721 + $0x18] sm:$0xff]
        %v4726 = vld [vmem:[%s4721 + $0x20] sm:$0xff]
        %v4727 = vld [vmem:[%s4721 + $0x28] sm:$0xff]
        %v4728 = vld [vmem:[%s4721 + $0x30] sm:$0xff]
        %v4729 = vld [vmem:[%s4721 + $0x38] sm:$0xff]
        %v4731 = vcombine.high %v4017, %v4017
        %v4733 = vunpack.c.l.s4 1966171168
        %v4734 = vunpack.c.0.s8 %v4733
        %v4735 = vlaneseq
        %v4736 = vshrl.u32 %v4735, 7
        %v4737 = vsub.s32 %v4734, %v4736
        %v4738 = vrot.slane %v4017, %v4737
        %v4740 = vunpack.c.l.s4 1966171168
        %v4741 = vunpack.c.0.s8 %v4740
        %v4742 = vlaneseq
        %v4743 = vshrl.u32 %v4742, 7
        %v4744 = vsub.s32 %v4741, %v4743
        %v4745 = vrot.slane %v4731, %v4744
        %v4746 = vcombine.high %v4738, %v4738
        %v4747 = vcombine.high %v4745, %v4745
        %v4749 = vunpack.c.l.s4 1966171168
        %v4750 = vunpack.c.0.s8 %v4749
        %v4751 = vlaneseq
        %v4752 = vshrl.u32 %v4751, 7
        %v4753 = vsub.s32 %v4750, %v4752
        %v4754 = vrot.slane %v4738, %v4753
        %v4756 = vunpack.c.l.s4 1966171168
        %v4757 = vunpack.c.0.s8 %v4756
        %v4758 = vlaneseq
        %v4759 = vshrl.u32 %v4758, 7
        %v4760 = vsub.s32 %v4757, %v4759
        %v4761 = vrot.slane %v4745, %v4760
        %v4763 = vunpack.c.l.s4 1966171168
        %v4764 = vunpack.c.0.s8 %v4763
        %v4765 = vlaneseq
        %v4766 = vshrl.u32 %v4765, 7
        %v4767 = vsub.s32 %v4764, %v4766
        %v4768 = vrot.slane %v4746, %v4767
        %v4770 = vunpack.c.l.s4 1966171168
        %v4771 = vunpack.c.0.s8 %v4770
        %v4772 = vlaneseq
        %v4773 = vshrl.u32 %v4772, 7
        %v4774 = vsub.s32 %v4771, %v4773
        %v4775 = vrot.slane %v4747, %v4774
        %v4776 = vcombine.high %v4754, %v4754
        %v4777 = vcombine.high %v4761, %v4761
        %v4778 = vcombine.high %v4768, %v4768
        %v4779 = vcombine.high %v4775, %v4775
        %v4780 = vlaneseq
        %v4781 = vshrl.u32 %v4780, 7
        %v4782 = vsub.s32 0, %v4781
        %v4783 = vrot.slane %v4754, %v4782
        %v4784 = vlaneseq
        %v4785 = vshrl.u32 %v4784, 7
        %v4786 = vsub.s32 0, %v4785
        %v4787 = vrot.slane %v4768, %v4786
        %v4788 = vlaneseq
        %v4789 = vshrl.u32 %v4788, 7
        %v4790 = vsub.s32 0, %v4789
        %v4791 = vrot.slane %v4776, %v4790
        %v4792 = vlaneseq
        %v4793 = vshrl.u32 %v4792, 7
        %v4794 = vsub.s32 0, %v4793
        %v4795 = vrot.slane %v4778, %v4794
        %v4796 = vlaneseq
        %v4797 = vshrl.u32 %v4796, 7
        %v4798 = vsub.s32 0, %v4797
        %v4799 = vrot.slane %v4761, %v4798
        %v4800 = vlaneseq
        %v4801 = vshrl.u32 %v4800, 7
        %v4802 = vsub.s32 0, %v4801
        %v4803 = vrot.slane %v4775, %v4802
        %v4804 = vlaneseq
        %v4805 = vshrl.u32 %v4804, 7
        %v4806 = vsub.s32 0, %v4805
        %v4807 = vrot.slane %v4777, %v4806
        %v4808 = vlaneseq
        %v4809 = vshrl.u32 %v4808, 7
        %v4810 = vsub.s32 0, %v4809
        %v4811 = vrot.slane %v4779, %v4810
        %v4820 = vmul.f32 %v4722, %v4783
        %v4821 = vmul.f32 %v4723, %v4787
        %v4822 = vmul.f32 %v4724, %v4791
        %v4823 = vmul.f32 %v4725, %v4795
        %v4824 = vmul.f32 %v4726, %v4799
        %v4825 = vmul.f32 %v4727, %v4803
        %v4826 = vmul.f32 %v4728, %v4807
        %v4827 = vmul.f32 %v4729, %v4811
        %v4828 = vadd.f32 %v4820, %v4821
        %v4829 = vadd.f32 %v4828, %v4822
        %v4830 = vadd.f32 %v4829, %v4823
        %v4831 = vadd.f32 %v4830, %v4824
        %v4832 = vadd.f32 %v4831, %v4825
        %v4833 = vadd.f32 %v4832, %v4826
        %v4834 = vadd.f32 %v4833, %v4827
        %s4835 = scalar_lea.vmem %s624, 48 [#allocation8]
        %4836 = vst [vmem:[%s4835] sm:$0xff] %v4834
        %s4837 = scalar_lea.vmem %s588, 448 [#allocation5]
        %v4838 = vld [vmem:[%s4837] sm:$0xff]
        %v4839 = vld [vmem:[%s4837 + $0x8] sm:$0xff]
        %v4840 = vld [vmem:[%s4837 + $0x10] sm:$0xff]
        %v4841 = vld [vmem:[%s4837 + $0x18] sm:$0xff]
        %v4842 = vld [vmem:[%s4837 + $0x20] sm:$0xff]
        %v4843 = vld [vmem:[%s4837 + $0x28] sm:$0xff]
        %v4844 = vld [vmem:[%s4837 + $0x30] sm:$0xff]
        %v4845 = vld [vmem:[%s4837 + $0x38] sm:$0xff]
        %v4847 = vcombine.high %v4018, %v4018
        %v4849 = vunpack.c.l.s4 1966171168
        %v4850 = vunpack.c.0.s8 %v4849
        %v4851 = vlaneseq
        %v4852 = vshrl.u32 %v4851, 7
        %v4853 = vsub.s32 %v4850, %v4852
        %v4854 = vrot.slane %v4018, %v4853
        %v4856 = vunpack.c.l.s4 1966171168
        %v4857 = vunpack.c.0.s8 %v4856
        %v4858 = vlaneseq
        %v4859 = vshrl.u32 %v4858, 7
        %v4860 = vsub.s32 %v4857, %v4859
        %v4861 = vrot.slane %v4847, %v4860
        %v4862 = vcombine.high %v4854, %v4854
        %v4863 = vcombine.high %v4861, %v4861
        %v4865 = vunpack.c.l.s4 1966171168
        %v4866 = vunpack.c.0.s8 %v4865
        %v4867 = vlaneseq
        %v4868 = vshrl.u32 %v4867, 7
        %v4869 = vsub.s32 %v4866, %v4868
        %v4870 = vrot.slane %v4854, %v4869
        %v4872 = vunpack.c.l.s4 1966171168
        %v4873 = vunpack.c.0.s8 %v4872
        %v4874 = vlaneseq
        %v4875 = vshrl.u32 %v4874, 7
        %v4876 = vsub.s32 %v4873, %v4875
        %v4877 = vrot.slane %v4861, %v4876
        %v4879 = vunpack.c.l.s4 1966171168
        %v4880 = vunpack.c.0.s8 %v4879
        %v4881 = vlaneseq
        %v4882 = vshrl.u32 %v4881, 7
        %v4883 = vsub.s32 %v4880, %v4882
        %v4884 = vrot.slane %v4862, %v4883
        %v4886 = vunpack.c.l.s4 1966171168
        %v4887 = vunpack.c.0.s8 %v4886
        %v4888 = vlaneseq
        %v4889 = vshrl.u32 %v4888, 7
        %v4890 = vsub.s32 %v4887, %v4889
        %v4891 = vrot.slane %v4863, %v4890
        %v4892 = vcombine.high %v4870, %v4870
        %v4893 = vcombine.high %v4877, %v4877
        %v4894 = vcombine.high %v4884, %v4884
        %v4895 = vcombine.high %v4891, %v4891
        %v4896 = vlaneseq
        %v4897 = vshrl.u32 %v4896, 7
        %v4898 = vsub.s32 0, %v4897
        %v4899 = vrot.slane %v4870, %v4898
        %v4900 = vlaneseq
        %v4901 = vshrl.u32 %v4900, 7
        %v4902 = vsub.s32 0, %v4901
        %v4903 = vrot.slane %v4884, %v4902
        %v4904 = vlaneseq
        %v4905 = vshrl.u32 %v4904, 7
        %v4906 = vsub.s32 0, %v4905
        %v4907 = vrot.slane %v4892, %v4906
        %v4908 = vlaneseq
        %v4909 = vshrl.u32 %v4908, 7
        %v4910 = vsub.s32 0, %v4909
        %v4911 = vrot.slane %v4894, %v4910
        %v4912 = vlaneseq
        %v4913 = vshrl.u32 %v4912, 7
        %v4914 = vsub.s32 0, %v4913
        %v4915 = vrot.slane %v4877, %v4914
        %v4916 = vlaneseq
        %v4917 = vshrl.u32 %v4916, 7
        %v4918 = vsub.s32 0, %v4917
        %v4919 = vrot.slane %v4891, %v4918
        %v4920 = vlaneseq
        %v4921 = vshrl.u32 %v4920, 7
        %v4922 = vsub.s32 0, %v4921
        %v4923 = vrot.slane %v4893, %v4922
        %v4924 = vlaneseq
        %v4925 = vshrl.u32 %v4924, 7
        %v4926 = vsub.s32 0, %v4925
        %v4927 = vrot.slane %v4895, %v4926
        %v4936 = vmul.f32 %v4838, %v4899
        %v4937 = vmul.f32 %v4839, %v4903
        %v4938 = vmul.f32 %v4840, %v4907
        %v4939 = vmul.f32 %v4841, %v4911
        %v4940 = vmul.f32 %v4842, %v4915
        %v4941 = vmul.f32 %v4843, %v4919
        %v4942 = vmul.f32 %v4844, %v4923
        %v4943 = vmul.f32 %v4845, %v4927
        %v4944 = vadd.f32 %v4936, %v4937
        %v4945 = vadd.f32 %v4944, %v4938
        %v4946 = vadd.f32 %v4945, %v4939
        %v4947 = vadd.f32 %v4946, %v4940
        %v4948 = vadd.f32 %v4947, %v4941
        %v4949 = vadd.f32 %v4948, %v4942
        %v4950 = vadd.f32 %v4949, %v4943
        %s4951 = scalar_lea.vmem %s624, 56 [#allocation8]
        %4952 = vst [vmem:[%s4951] sm:$0xff] %v4950
        %s4953 = scalar_lea.vmem %s566, 64 [#allocation2]
        %v4954 = vld [vmem:[%s4953] sm:$0xff]
        %s4955 = scalar_lea.vmem %s573, 64 [#allocation3]
        %v4956 = vld [vmem:[%s4955] sm:$0xff]
        %4957 = vxpose.xlu0.b32.start [1/16] %v4954, 128
        %4958 = vxpose.xlu0.b32.cont [2/16] 0.0, 128
        %4959 = vxpose.xlu0.b32.cont [3/16] 0.0, 128
        %4960 = vxpose.xlu0.b32.cont [4/16] 0.0, 128
        %4961 = vxpose.xlu0.b32.cont [5/16] 0.0, 128
        %4962 = vxpose.xlu0.b32.cont [6/16] 0.0, 128
        %4963 = vxpose.xlu0.b32.cont [7/16] 0.0, 128
        %4964 = vxpose.xlu0.b32.cont [8/16] 0.0, 128
        %4965 = vxpose.xlu0.b32.cont [9/16] 0.0, 128
        %4966 = vxpose.xlu0.b32.cont [10/16] 0.0, 128
        %4967 = vxpose.xlu0.b32.cont [11/16] 0.0, 128
        %4968 = vxpose.xlu0.b32.cont [12/16] 0.0, 128
        %4969 = vxpose.xlu0.b32.cont [13/16] 0.0, 128
        %4970 = vxpose.xlu0.b32.cont [14/16] 0.0, 128
        %4971 = vxpose.xlu0.b32.cont [15/16] 0.0, 128
        %4972 = vxpose.xlu0.b32.end [16/16] 0.0, 128
        %v4973 = vpop.trf.xlu0
        %v4974 = vpop.trf.xlu0
        %v4975 = vpop.trf.xlu0
        %v4976 = vpop.trf.xlu0
        %v4977 = vpop.trf.xlu0
        %v4978 = vpop.trf.xlu0
        %v4979 = vpop.trf.xlu0
        %v4980 = vpop.trf.xlu0
        %v4981 = vpop.trf.xlu0
        %v4982 = vpop.trf.xlu0
        %v4983 = vpop.trf.xlu0
        %v4984 = vpop.trf.xlu0
        %v4985 = vpop.trf.xlu0
        %v4986 = vpop.trf.xlu0
        %v4987 = vpop.trf.xlu0
        %v4988 = vpop.trf.xlu0
        %v4990 = vsel %vm659, %v4973, 0
        %v4993 = vsel %vm659, %v4974, 0
        %v4996 = vsel %vm659, %v4975, 0
        %v4999 = vsel %vm659, %v4976, 0
        %v5002 = vsel %vm659, %v4977, 0
        %v5005 = vsel %vm659, %v4978, 0
        %v5008 = vsel %vm659, %v4979, 0
        %v5011 = vsel %vm659, %v4980, 0
        %v5014 = vsel %vm659, %v4981, 0
        %v5017 = vsel %vm659, %v4982, 0
        %v5020 = vsel %vm659, %v4983, 0
        %v5023 = vsel %vm659, %v4984, 0
        %v5026 = vsel %vm659, %v4985, 0
        %v5029 = vsel %vm659, %v4986, 0
        %v5032 = vsel %vm659, %v4987, 0
        %v5035 = vsel %vm659, %v4988, 0
        %5037 = vmatprep.subr.mxu0 0.0
        %5038 = vmatpush1.msra.mxu0 %v4956
        %5039 = vmatprep.subr.mxu0 0.0
        %5040 = vmatpush1.msra.mxu0 0.0
        %5041 = vmatprep.subr.mxu0 0.0
        %5042 = vmatpush1.msra.mxu0 0.0
        %5043 = vmatprep.subr.mxu0 0.0
        %5044 = vmatpush1.msra.mxu0 0.0
        %5045 = vmatprep.subr.mxu0 0.0
        %5046 = vmatpush1.msra.mxu0 0.0
        %5047 = vmatprep.subr.mxu0 0.0
        %5048 = vmatpush1.msra.mxu0 0.0
        %5049 = vmatprep.subr.mxu0 0.0
        %5050 = vmatpush1.msra.mxu0 0.0
        %5051 = vmatprep.subr.mxu0 0.0
        %5052 = vmatpush1.msra.mxu0 0.0
        %5053 = vmatprep.subr.mxu0 0.0
        %5054 = vmatpush1.msra.mxu0 0.0
        %5055 = vmatprep.subr.mxu0 0.0
        %5056 = vmatpush1.msra.mxu0 0.0
        %5057 = vmatprep.subr.mxu0 0.0
        %5058 = vmatpush1.msra.mxu0 0.0
        %5059 = vmatprep.subr.mxu0 0.0
        %5060 = vmatpush1.msra.mxu0 0.0
        %5061 = vmatprep.subr.mxu0 0.0
        %5062 = vmatpush1.msra.mxu0 0.0
        %5063 = vmatprep.subr.mxu0 0.0
        %5064 = vmatpush1.msra.mxu0 0.0
        %5065 = vmatprep.subr.mxu0 0.0
        %5066 = vmatpush1.msra.mxu0 0.0
        %5067 = vmatprep.subr.mxu0 0.0
        %5068 = vmatpush1.msra.mxu0 0.0
        %5069 = vmatprep.subr.mxu0 0.0
        %5070 = vmatpush1.msra.mxu0 0.0
        %5071 = vmatprep.subr.mxu0 0.0
        %5072 = vmatpush1.msra.mxu0 0.0
        %5073 = vmatprep.subr.mxu0 0.0
        %5074 = vmatpush1.msra.mxu0 0.0
        %5075 = vmatprep.subr.mxu0 0.0
        %5076 = vmatpush1.msra.mxu0 0.0
        %5077 = vmatprep.subr.mxu0 0.0
        %5078 = vmatpush1.msra.mxu0 0.0
        %5079 = vmatprep.subr.mxu0 0.0
        %5080 = vmatpush1.msra.mxu0 0.0
        %5081 = vmatprep.subr.mxu0 0.0
        %5082 = vmatpush1.msra.mxu0 0.0
        %5083 = vmatprep.subr.mxu0 0.0
        %5084 = vmatpush1.msra.mxu0 0.0
        %5085 = vmatprep.subr.mxu0 0.0
        %5086 = vmatpush1.msra.mxu0 0.0
        %5087 = vmatprep.subr.mxu0 0.0
        %5088 = vmatpush1.msra.mxu0 0.0
        %5089 = vmatprep.subr.mxu0 0.0
        %5090 = vmatpush1.msra.mxu0 0.0
        %5091 = vmatprep.subr.mxu0 0.0
        %5092 = vmatpush1.msra.mxu0 0.0
        %5093 = vmatprep.subr.mxu0 0.0
        %5094 = vmatpush1.msra.mxu0 0.0
        %5095 = vmatprep.subr.mxu0 0.0
        %5096 = vmatpush1.msra.mxu0 0.0
        %5097 = vmatprep.subr.mxu0 0.0
        %5098 = vmatpush1.msra.mxu0 0.0
        %5099 = vmatprep.subr.mxu0 0.0
        %5100 = vmatpush1.msra.mxu0 0.0
        %5101 = vmatprep.mubr.f32.mxu0 0.0
        %5102 = vmatmul.mubr.f32.gmra.mrb[0].mxu0 %v4990
        %v5103 = vpop.f32.mrb[0].mxu0
        %v5104 = vadd.f32 0.0, %v5103
        %v5105 = vpop.f32.mrb[0].mxu0
        %5106 = vmatprep.mubr.f32.mxu0 0.0
        %5107 = vmatmul.mubr.f32.gmra.mrb[0].mxu0 %v4993
        %v5108 = vpop.f32.mrb[0].mxu0
        %v5109 = vadd.f32 0.0, %v5108
        %v5110 = vpop.f32.mrb[0].mxu0
        %5111 = vmatprep.mubr.f32.mxu0 0.0
        %5112 = vmatmul.mubr.f32.gmra.mrb[0].mxu0 %v4996
        %v5113 = vpop.f32.mrb[0].mxu0
        %v5114 = vadd.f32 0.0, %v5113
        %v5115 = vpop.f32.mrb[0].mxu0
        %5116 = vmatprep.mubr.f32.mxu0 0.0
        %5117 = vmatmul.mubr.f32.gmra.mrb[0].mxu0 %v4999
        %v5118 = vpop.f32.mrb[0].mxu0
        %v5119 = vadd.f32 0.0, %v5118
        %v5120 = vpop.f32.mrb[0].mxu0
        %5121 = vmatprep.mubr.f32.mxu0 0.0
        %5122 = vmatmul.mubr.f32.gmra.mrb[0].mxu0 %v5002
        %v5123 = vpop.f32.mrb[0].mxu0
        %v5124 = vadd.f32 0.0, %v5123
        %v5125 = vpop.f32.mrb[0].mxu0
        %5126 = vmatprep.mubr.f32.mxu0 0.0
        %5127 = vmatmul.mubr.f32.gmra.mrb[0].mxu0 %v5005
        %v5128 = vpop.f32.mrb[0].mxu0
        %v5129 = vadd.f32 0.0, %v5128
        %v5130 = vpop.f32.mrb[0].mxu0
        %5131 = vmatprep.mubr.f32.mxu0 0.0
        %5132 = vmatmul.mubr.f32.gmra.mrb[0].mxu0 %v5008
        %v5133 = vpop.f32.mrb[0].mxu0
        %v5134 = vadd.f32 0.0, %v5133
        %v5135 = vpop.f32.mrb[0].mxu0
        %5136 = vmatprep.mubr.f32.mxu0 0.0
        %5137 = vmatmul.mubr.f32.gmra.mrb[0].mxu0 %v5011
        %v5138 = vpop.f32.mrb[0].mxu0
        %v5139 = vadd.f32 0.0, %v5138
        %v5140 = vpop.f32.mrb[0].mxu0
        %5141 = vmatprep.mubr.f32.mxu0 0.0
        %5142 = vmatmul.mubr.f32.gmra.mrb[0].mxu0 %v5014
        %v5143 = vpop.f32.mrb[0].mxu0
        %v5144 = vadd.f32 0.0, %v5143
        %v5145 = vpop.f32.mrb[0].mxu0
        %5146 = vmatprep.mubr.f32.mxu0 0.0
        %5147 = vmatmul.mubr.f32.gmra.mrb[0].mxu0 %v5017
        %v5148 = vpop.f32.mrb[0].mxu0
        %v5149 = vadd.f32 0.0, %v5148
        %v5150 = vpop.f32.mrb[0].mxu0
        %5151 = vmatprep.mubr.f32.mxu0 0.0
        %5152 = vmatmul.mubr.f32.gmra.mrb[0].mxu0 %v5020
        %v5153 = vpop.f32.mrb[0].mxu0
        %v5154 = vadd.f32 0.0, %v5153
        %v5155 = vpop.f32.mrb[0].mxu0
        %5156 = vmatprep.mubr.f32.mxu0 0.0
        %5157 = vmatmul.mubr.f32.gmra.mrb[0].mxu0 %v5023
        %v5158 = vpop.f32.mrb[0].mxu0
        %v5159 = vadd.f32 0.0, %v5158
        %v5160 = vpop.f32.mrb[0].mxu0
        %5161 = vmatprep.mubr.f32.mxu0 0.0
        %5162 = vmatmul.mubr.f32.gmra.mrb[0].mxu0 %v5026
        %v5163 = vpop.f32.mrb[0].mxu0
        %v5164 = vadd.f32 0.0, %v5163
        %v5165 = vpop.f32.mrb[0].mxu0
        %5166 = vmatprep.mubr.f32.mxu0 0.0
        %5167 = vmatmul.mubr.f32.gmra.mrb[0].mxu0 %v5029
        %v5168 = vpop.f32.mrb[0].mxu0
        %v5169 = vadd.f32 0.0, %v5168
        %v5170 = vpop.f32.mrb[0].mxu0
        %5171 = vmatprep.mubr.f32.mxu0 0.0
        %5172 = vmatmul.mubr.f32.gmra.mrb[0].mxu0 %v5032
        %v5173 = vpop.f32.mrb[0].mxu0
        %v5174 = vadd.f32 0.0, %v5173
        %v5175 = vpop.f32.mrb[0].mxu0
        %5176 = vmatprep.mubr.f32.mxu0 0.0
        %5177 = vmatmul.mubr.f32.gmra.mrb[0].mxu0 %v5035
        %v5178 = vpop.f32.mrb[0].mxu0
        %v5179 = vadd.f32 0.0, %v5178
        %v5180 = vpop.f32.mrb[0].mxu0
        %5181 = vdwg.mxu0
        %v5182 = vand.u32 2147483647, %v5104
        %v5183 = vand.u32 2147483647, %v5109
        %v5184 = vand.u32 2147483647, %v5114
        %v5185 = vand.u32 2147483647, %v5119
        %v5186 = vand.u32 2147483647, %v5124
        %v5187 = vand.u32 2147483647, %v5129
        %v5188 = vand.u32 2147483647, %v5134
        %v5189 = vand.u32 2147483647, %v5139
        %v5190 = vand.u32 2147483647, %v5144
        %v5191 = vand.u32 2147483647, %v5149
        %v5192 = vand.u32 2147483647, %v5154
        %v5193 = vand.u32 2147483647, %v5159
        %v5194 = vand.u32 2147483647, %v5164
        %v5195 = vand.u32 2147483647, %v5169
        %v5196 = vand.u32 2147483647, %v5174
        %v5197 = vand.u32 2147483647, %v5179
        %5198 = vmax.xlane.f32.xlu0 %v5182
        %v5199 = vpop.xlane.xlu0 %5198
        %5200 = vmax.xlane.f32.xlu0 %v5183
        %v5201 = vpop.xlane.xlu0 %5200
        %5202 = vmax.xlane.f32.xlu0 %v5184
        %v5203 = vpop.xlane.xlu0 %5202
        %5204 = vmax.xlane.f32.xlu0 %v5185
        %v5205 = vpop.xlane.xlu0 %5204
        %5206 = vmax.xlane.f32.xlu0 %v5186
        %v5207 = vpop.xlane.xlu0 %5206
        %5208 = vmax.xlane.f32.xlu0 %v5187
        %v5209 = vpop.xlane.xlu0 %5208
        %5210 = vmax.xlane.f32.xlu0 %v5188
        %v5211 = vpop.xlane.xlu0 %5210
        %5212 = vmax.xlane.f32.xlu0 %v5189
        %v5213 = vpop.xlane.xlu0 %5212
        %5214 = vmax.xlane.f32.xlu0 %v5190
        %v5215 = vpop.xlane.xlu0 %5214
        %5216 = vmax.xlane.f32.xlu0 %v5191
        %v5217 = vpop.xlane.xlu0 %5216
        %5218 = vmax.xlane.f32.xlu0 %v5192
        %v5219 = vpop.xlane.xlu0 %5218
        %5220 = vmax.xlane.f32.xlu0 %v5193
        %v5221 = vpop.xlane.xlu0 %5220
        %5222 = vmax.xlane.f32.xlu0 %v5194
        %v5223 = vpop.xlane.xlu0 %5222
        %5224 = vmax.xlane.f32.xlu0 %v5195
        %v5225 = vpop.xlane.xlu0 %5224
        %5226 = vmax.xlane.f32.xlu0 %v5196
        %v5227 = vpop.xlane.xlu0 %5226
        %5228 = vmax.xlane.f32.xlu0 %v5197
        %v5229 = vpop.xlane.xlu0 %5228
        %v5230 = vsub.f32 %v5182, %v5199
        %v5231 = vsub.f32 %v5183, %v5201
        %v5232 = vsub.f32 %v5184, %v5203
        %v5233 = vsub.f32 %v5185, %v5205
        %v5234 = vsub.f32 %v5186, %v5207
        %v5235 = vsub.f32 %v5187, %v5209
        %v5236 = vsub.f32 %v5188, %v5211
        %v5237 = vsub.f32 %v5189, %v5213
        %v5238 = vsub.f32 %v5190, %v5215
        %v5239 = vsub.f32 %v5191, %v5217
        %v5240 = vsub.f32 %v5192, %v5219
        %v5241 = vsub.f32 %v5193, %v5221
        %v5242 = vsub.f32 %v5194, %v5223
        %v5243 = vsub.f32 %v5195, %v5225
        %v5244 = vsub.f32 %v5196, %v5227
        %v5245 = vsub.f32 %v5197, %v5229
        %v5246 = vmul.f32 %v5230, 1.442695
        %v5247 = vpow.pop %v5246
        %v5248 = vmul.f32 %v5231, 1.442695
        %v5249 = vpow.pop %v5248
        %v5250 = vmul.f32 %v5232, 1.442695
        %v5251 = vpow.pop %v5250
        %v5252 = vmul.f32 %v5233, 1.442695
        %v5253 = vpow.pop %v5252
        %v5254 = vmul.f32 %v5234, 1.442695
        %v5255 = vpow.pop %v5254
        %v5256 = vmul.f32 %v5235, 1.442695
        %v5257 = vpow.pop %v5256
        %v5258 = vmul.f32 %v5236, 1.442695
        %v5259 = vpow.pop %v5258
        %v5260 = vmul.f32 %v5237, 1.442695
        %v5261 = vpow.pop %v5260
        %v5262 = vmul.f32 %v5238, 1.442695
        %v5263 = vpow.pop %v5262
        %v5264 = vmul.f32 %v5239, 1.442695
        %v5265 = vpow.pop %v5264
        %v5266 = vmul.f32 %v5240, 1.442695
        %v5267 = vpow.pop %v5266
        %v5268 = vmul.f32 %v5241, 1.442695
        %v5269 = vpow.pop %v5268
        %v5270 = vmul.f32 %v5242, 1.442695
        %v5271 = vpow.pop %v5270
        %v5272 = vmul.f32 %v5243, 1.442695
        %v5273 = vpow.pop %v5272
        %v5274 = vmul.f32 %v5244, 1.442695
        %v5275 = vpow.pop %v5274
        %v5276 = vmul.f32 %v5245, 1.442695
        %v5277 = vpow.pop %v5276
        %5278 = vadd.xlane.f32.xlu0 %v5247
        %v5279 = vpop.xlane.xlu0 %5278
        %5280 = vadd.xlane.f32.xlu0 %v5249
        %v5281 = vpop.xlane.xlu0 %5280
        %5282 = vadd.xlane.f32.xlu0 %v5251
        %v5283 = vpop.xlane.xlu0 %5282
        %5284 = vadd.xlane.f32.xlu0 %v5253
        %v5285 = vpop.xlane.xlu0 %5284
        %5286 = vadd.xlane.f32.xlu0 %v5255
        %v5287 = vpop.xlane.xlu0 %5286
        %5288 = vadd.xlane.f32.xlu0 %v5257
        %v5289 = vpop.xlane.xlu0 %5288
        %5290 = vadd.xlane.f32.xlu0 %v5259
        %v5291 = vpop.xlane.xlu0 %5290
        %5292 = vadd.xlane.f32.xlu0 %v5261
        %v5293 = vpop.xlane.xlu0 %5292
        %5294 = vadd.xlane.f32.xlu0 %v5263
        %v5295 = vpop.xlane.xlu0 %5294
        %5296 = vadd.xlane.f32.xlu0 %v5265
        %v5297 = vpop.xlane.xlu0 %5296
        %5298 = vadd.xlane.f32.xlu0 %v5267
        %v5299 = vpop.xlane.xlu0 %5298
        %5300 = vadd.xlane.f32.xlu0 %v5269
        %v5301 = vpop.xlane.xlu0 %5300
        %5302 = vadd.xlane.f32.xlu0 %v5271
        %v5303 = vpop.xlane.xlu0 %5302
        %5304 = vadd.xlane.f32.xlu0 %v5273
        %v5305 = vpop.xlane.xlu0 %5304
        %5306 = vadd.xlane.f32.xlu0 %v5275
        %v5307 = vpop.xlane.xlu0 %5306
        %5308 = vadd.xlane.f32.xlu0 %v5277
        %v5309 = vpop.xlane.xlu0 %5308
        %v5310 = vrcp.pop %v5279
        %v5311 = vrcp.pop %v5281
        %v5312 = vrcp.pop %v5283
        %v5313 = vrcp.pop %v5285
        %v5314 = vrcp.pop %v5287
        %v5315 = vrcp.pop %v5289
        %v5316 = vrcp.pop %v5291
        %v5317 = vrcp.pop %v5293
        %v5318 = vrcp.pop %v5295
        %v5319 = vrcp.pop %v5297
        %v5320 = vrcp.pop %v5299
        %v5321 = vrcp.pop %v5301
        %v5322 = vrcp.pop %v5303
        %v5323 = vrcp.pop %v5305
        %v5324 = vrcp.pop %v5307
        %v5325 = vrcp.pop %v5309
        %v5326 = vmul.f32 %v5247, %v5310
        %v5327 = vmul.f32 %v5249, %v5311
        %v5328 = vmul.f32 %v5251, %v5312
        %v5329 = vmul.f32 %v5253, %v5313
        %v5330 = vmul.f32 %v5255, %v5314
        %v5331 = vmul.f32 %v5257, %v5315
        %v5332 = vmul.f32 %v5259, %v5316
        %v5333 = vmul.f32 %v5261, %v5317
        %v5334 = vmul.f32 %v5263, %v5318
        %v5335 = vmul.f32 %v5265, %v5319
        %v5336 = vmul.f32 %v5267, %v5320
        %v5337 = vmul.f32 %v5269, %v5321
        %v5338 = vmul.f32 %v5271, %v5322
        %v5339 = vmul.f32 %v5273, %v5323
        %v5340 = vmul.f32 %v5275, %v5324
        %v5341 = vmul.f32 %v5277, %v5325
        %v5342 = vld [vmem:[%s4953 + $0x8] sm:$0xff]
        %v5343 = vld [vmem:[%s4955 + $0x8] sm:$0xff]
        %5344 = vxpose.xlu0.b32.start [1/16] %v5342, 128
        %5345 = vxpose.xlu0.b32.cont [2/16] 0.0, 128
        %5346 = vxpose.xlu0.b32.cont [3/16] 0.0, 128
        %5347 = vxpose.xlu0.b32.cont [4/16] 0.0, 128
        %5348 = vxpose.xlu0.b32.cont [5/16] 0.0, 128
        %5349 = vxpose.xlu0.b32.cont [6/16] 0.0, 128
        %5350 = vxpose.xlu0.b32.cont [7/16] 0.0, 128
        %5351 = vxpose.xlu0.b32.cont [8/16] 0.0, 128
        %5352 = vxpose.xlu0.b32.cont [9/16] 0.0, 128
        %5353 = vxpose.xlu0.b32.cont [10/16] 0.0, 128
        %5354 = vxpose.xlu0.b32.cont [11/16] 0.0, 128
        %5355 = vxpose.xlu0.b32.cont [12/16] 0.0, 128
        %5356 = vxpose.xlu0.b32.cont [13/16] 0.0, 128
        %5357 = vxpose.xlu0.b32.cont [14/16] 0.0, 128
        %5358 = vxpose.xlu0.b32.cont [15/16] 0.0, 128
        %5359 = vxpose.xlu0.b32.end [16/16] 0.0, 128
        %v5360 = vpop.trf.xlu0
        %v5361 = vpop.trf.xlu0
        %v5362 = vpop.trf.xlu0
        %v5363 = vpop.trf.xlu0
        %v5364 = vpop.trf.xlu0
        %v5365 = vpop.trf.xlu0
        %v5366 = vpop.trf.xlu0
        %v5367 = vpop.trf.xlu0
        %v5368 = vpop.trf.xlu0
        %v5369 = vpop.trf.xlu0
        %v5370 = vpop.trf.xlu0
        %v5371 = vpop.trf.xlu0
        %v5372 = vpop.trf.xlu0
        %v5373 = vpop.trf.xlu0
        %v5374 = vpop.trf.xlu0
        %v5375 = vpop.trf.xlu0
        %v5377 = vsel %vm659, %v5360, 0
        %v5380 = vsel %vm659, %v5361, 0
        %v5383 = vsel %vm659, %v5362, 0
        %v5386 = vsel %vm659, %v5363, 0
        %v5389 = vsel %vm659, %v5364, 0
        %v5392 = vsel %vm659, %v5365, 0
        %v5395 = vsel %vm659, %v5366, 0
        %v5398 = vsel %vm659, %v5367, 0
        %v5401 = vsel %vm659, %v5368, 0
        %v5404 = vsel %vm659, %v5369, 0
        %v5407 = vsel %vm659, %v5370, 0
        %v5410 = vsel %vm659, %v5371, 0
        %v5413 = vsel %vm659, %v5372, 0
        %v5416 = vsel %vm659, %v5373, 0
        %v5419 = vsel %vm659, %v5374, 0
        %v5422 = vsel %vm659, %v5375, 0
        %5424 = vmatprep.subr.mxu0 0.0
        %5425 = vmatpush1.msra.mxu0 %v5343
        %5426 = vmatprep.subr.mxu0 0.0
        %5427 = vmatpush1.msra.mxu0 0.0
        %5428 = vmatprep.subr.mxu0 0.0
        %5429 = vmatpush1.msra.mxu0 0.0
        %5430 = vmatprep.subr.mxu0 0.0
        %5431 = vmatpush1.msra.mxu0 0.0
        %5432 = vmatprep.subr.mxu0 0.0
        %5433 = vmatpush1.msra.mxu0 0.0
        %5434 = vmatprep.subr.mxu0 0.0
        %5435 = vmatpush1.msra.mxu0 0.0
        %5436 = vmatprep.subr.mxu0 0.0
        %5437 = vmatpush1.msra.mxu0 0.0
        %5438 = vmatprep.subr.mxu0 0.0
        %5439 = vmatpush1.msra.mxu0 0.0
        %5440 = vmatprep.subr.mxu0 0.0
        %5441 = vmatpush1.msra.mxu0 0.0
        %5442 = vmatprep.subr.mxu0 0.0
        %5443 = vmatpush1.msra.mxu0 0.0
        %5444 = vmatprep.subr.mxu0 0.0
        %5445 = vmatpush1.msra.mxu0 0.0
        %5446 = vmatprep.subr.mxu0 0.0
        %5447 = vmatpush1.msra.mxu0 0.0
        %5448 = vmatprep.subr.mxu0 0.0
        %5449 = vmatpush1.msra.mxu0 0.0
        %5450 = vmatprep.subr.mxu0 0.0
        %5451 = vmatpush1.msra.mxu0 0.0
        %5452 = vmatprep.subr.mxu0 0.0
        %5453 = vmatpush1.msra.mxu0 0.0
        %5454 = vmatprep.subr.mxu0 0.0
        %5455 = vmatpush1.msra.mxu0 0.0
        %5456 = vmatprep.subr.mxu0 0.0
        %5457 = vmatpush1.msra.mxu0 0.0
        %5458 = vmatprep.subr.mxu0 0.0
        %5459 = vmatpush1.msra.mxu0 0.0
        %5460 = vmatprep.subr.mxu0 0.0
        %5461 = vmatpush1.msra.mxu0 0.0
        %5462 = vmatprep.subr.mxu0 0.0
        %5463 = vmatpush1.msra.mxu0 0.0
        %5464 = vmatprep.subr.mxu0 0.0
        %5465 = vmatpush1.msra.mxu0 0.0
        %5466 = vmatprep.subr.mxu0 0.0
        %5467 = vmatpush1.msra.mxu0 0.0
        %5468 = vmatprep.subr.mxu0 0.0
        %5469 = vmatpush1.msra.mxu0 0.0
        %5470 = vmatprep.subr.mxu0 0.0
        %5471 = vmatpush1.msra.mxu0 0.0
        %5472 = vmatprep.subr.mxu0 0.0
        %5473 = vmatpush1.msra.mxu0 0.0
        %5474 = vmatprep.subr.mxu0 0.0
        %5475 = vmatpush1.msra.mxu0 0.0
        %5476 = vmatprep.subr.mxu0 0.0
        %5477 = vmatpush1.msra.mxu0 0.0
        %5478 = vmatprep.subr.mxu0 0.0
        %5479 = vmatpush1.msra.mxu0 0.0
        %5480 = vmatprep.subr.mxu0 0.0
        %5481 = vmatpush1.msra.mxu0 0.0
        %5482 = vmatprep.subr.mxu0 0.0
        %5483 = vmatpush1.msra.mxu0 0.0
        %5484 = vmatprep.subr.mxu0 0.0
        %5485 = vmatpush1.msra.mxu0 0.0
        %5486 = vmatprep.subr.mxu0 0.0
        %5487 = vmatpush1.msra.mxu0 0.0
        %5488 = vmatprep.mubr.f32.mxu0 0.0
        %5489 = vmatmul.mubr.f32.gmra.mrb[0].mxu0 %v5377
        %v5490 = vpop.f32.mrb[0].mxu0
        %v5491 = vadd.f32 0.0, %v5490
        %v5492 = vpop.f32.mrb[0].mxu0
        %5493 = vmatprep.mubr.f32.mxu0 0.0
        %5494 = vmatmul.mubr.f32.gmra.mrb[0].mxu0 %v5380
        %v5495 = vpop.f32.mrb[0].mxu0
        %v5496 = vadd.f32 0.0, %v5495
        %v5497 = vpop.f32.mrb[0].mxu0
        %5498 = vmatprep.mubr.f32.mxu0 0.0
        %5499 = vmatmul.mubr.f32.gmra.mrb[0].mxu0 %v5383
        %v5500 = vpop.f32.mrb[0].mxu0
        %v5501 = vadd.f32 0.0, %v5500
        %v5502 = vpop.f32.mrb[0].mxu0
        %5503 = vmatprep.mubr.f32.mxu0 0.0
        %5504 = vmatmul.mubr.f32.gmra.mrb[0].mxu0 %v5386
        %v5505 = vpop.f32.mrb[0].mxu0
        %v5506 = vadd.f32 0.0, %v5505
        %v5507 = vpop.f32.mrb[0].mxu0
        %5508 = vmatprep.mubr.f32.mxu0 0.0
        %5509 = vmatmul.mubr.f32.gmra.mrb[0].mxu0 %v5389
        %v5510 = vpop.f32.mrb[0].mxu0
        %v5511 = vadd.f32 0.0, %v5510
        %v5512 = vpop.f32.mrb[0].mxu0
        %5513 = vmatprep.mubr.f32.mxu0 0.0
        %5514 = vmatmul.mubr.f32.gmra.mrb[0].mxu0 %v5392
        %v5515 = vpop.f32.mrb[0].mxu0
        %v5516 = vadd.f32 0.0, %v5515
        %v5517 = vpop.f32.mrb[0].mxu0
        %5518 = vmatprep.mubr.f32.mxu0 0.0
        %5519 = vmatmul.mubr.f32.gmra.mrb[0].mxu0 %v5395
        %v5520 = vpop.f32.mrb[0].mxu0
        %v5521 = vadd.f32 0.0, %v5520
        %v5522 = vpop.f32.mrb[0].mxu0
        %5523 = vmatprep.mubr.f32.mxu0 0.0
        %5524 = vmatmul.mubr.f32.gmra.mrb[0].mxu0 %v5398
        %v5525 = vpop.f32.mrb[0].mxu0
        %v5526 = vadd.f32 0.0, %v5525
        %v5527 = vpop.f32.mrb[0].mxu0
        %5528 = vmatprep.mubr.f32.mxu0 0.0
        %5529 = vmatmul.mubr.f32.gmra.mrb[0].mxu0 %v5401
        %v5530 = vpop.f32.mrb[0].mxu0
        %v5531 = vadd.f32 0.0, %v5530
        %v5532 = vpop.f32.mrb[0].mxu0
        %5533 = vmatprep.mubr.f32.mxu0 0.0
        %5534 = vmatmul.mubr.f32.gmra.mrb[0].mxu0 %v5404
        %v5535 = vpop.f32.mrb[0].mxu0
        %v5536 = vadd.f32 0.0, %v5535
        %v5537 = vpop.f32.mrb[0].mxu0
        %5538 = vmatprep.mubr.f32.mxu0 0.0
        %5539 = vmatmul.mubr.f32.gmra.mrb[0].mxu0 %v5407
        %v5540 = vpop.f32.mrb[0].mxu0
        %v5541 = vadd.f32 0.0, %v5540
        %v5542 = vpop.f32.mrb[0].mxu0
        %5543 = vmatprep.mubr.f32.mxu0 0.0
        %5544 = vmatmul.mubr.f32.gmra.mrb[0].mxu0 %v5410
        %v5545 = vpop.f32.mrb[0].mxu0
        %v5546 = vadd.f32 0.0, %v5545
        %v5547 = vpop.f32.mrb[0].mxu0
        %5548 = vmatprep.mubr.f32.mxu0 0.0
        %5549 = vmatmul.mubr.f32.gmra.mrb[0].mxu0 %v5413
        %v5550 = vpop.f32.mrb[0].mxu0
        %v5551 = vadd.f32 0.0, %v5550
        %v5552 = vpop.f32.mrb[0].mxu0
        %5553 = vmatprep.mubr.f32.mxu0 0.0
        %5554 = vmatmul.mubr.f32.gmra.mrb[0].mxu0 %v5416
        %v5555 = vpop.f32.mrb[0].mxu0
        %v5556 = vadd.f32 0.0, %v5555
        %v5557 = vpop.f32.mrb[0].mxu0
        %5558 = vmatprep.mubr.f32.mxu0 0.0
        %5559 = vmatmul.mubr.f32.gmra.mrb[0].mxu0 %v5419
        %v5560 = vpop.f32.mrb[0].mxu0
        %v5561 = vadd.f32 0.0, %v5560
        %v5562 = vpop.f32.mrb[0].mxu0
        %5563 = vmatprep.mubr.f32.mxu0 0.0
        %5564 = vmatmul.mubr.f32.gmra.mrb[0].mxu0 %v5422
        %v5565 = vpop.f32.mrb[0].mxu0
        %v5566 = vadd.f32 0.0, %v5565
        %v5567 = vpop.f32.mrb[0].mxu0
        %5568 = vdwg.mxu0
        %v5569 = vand.u32 2147483647, %v5491
        %v5570 = vand.u32 2147483647, %v5496
        %v5571 = vand.u32 2147483647, %v5501
        %v5572 = vand.u32 2147483647, %v5506
        %v5573 = vand.u32 2147483647, %v5511
        %v5574 = vand.u32 2147483647, %v5516
        %v5575 = vand.u32 2147483647, %v5521
        %v5576 = vand.u32 2147483647, %v5526
        %v5577 = vand.u32 2147483647, %v5531
        %v5578 = vand.u32 2147483647, %v5536
        %v5579 = vand.u32 2147483647, %v5541
        %v5580 = vand.u32 2147483647, %v5546
        %v5581 = vand.u32 2147483647, %v5551
        %v5582 = vand.u32 2147483647, %v5556
        %v5583 = vand.u32 2147483647, %v5561
        %v5584 = vand.u32 2147483647, %v5566
        %5585 = vmax.xlane.f32.xlu0 %v5569
        %v5586 = vpop.xlane.xlu0 %5585
        %5587 = vmax.xlane.f32.xlu0 %v5570
        %v5588 = vpop.xlane.xlu0 %5587
        %5589 = vmax.xlane.f32.xlu0 %v5571
        %v5590 = vpop.xlane.xlu0 %5589
        %5591 = vmax.xlane.f32.xlu0 %v5572
        %v5592 = vpop.xlane.xlu0 %5591
        %5593 = vmax.xlane.f32.xlu0 %v5573
        %v5594 = vpop.xlane.xlu0 %5593
        %5595 = vmax.xlane.f32.xlu0 %v5574
        %v5596 = vpop.xlane.xlu0 %5595
        %5597 = vmax.xlane.f32.xlu0 %v5575
        %v5598 = vpop.xlane.xlu0 %5597
        %5599 = vmax.xlane.f32.xlu0 %v5576
        %v5600 = vpop.xlane.xlu0 %5599
        %5601 = vmax.xlane.f32.xlu0 %v5577
        %v5602 = vpop.xlane.xlu0 %5601
        %5603 = vmax.xlane.f32.xlu0 %v5578
        %v5604 = vpop.xlane.xlu0 %5603
        %5605 = vmax.xlane.f32.xlu0 %v5579
        %v5606 = vpop.xlane.xlu0 %5605
        %5607 = vmax.xlane.f32.xlu0 %v5580
        %v5608 = vpop.xlane.xlu0 %5607
        %5609 = vmax.xlane.f32.xlu0 %v5581
        %v5610 = vpop.xlane.xlu0 %5609
        %5611 = vmax.xlane.f32.xlu0 %v5582
        %v5612 = vpop.xlane.xlu0 %5611
        %5613 = vmax.xlane.f32.xlu0 %v5583
        %v5614 = vpop.xlane.xlu0 %5613
        %5615 = vmax.xlane.f32.xlu0 %v5584
        %v5616 = vpop.xlane.xlu0 %5615
        %v5617 = vsub.f32 %v5569, %v5586
        %v5618 = vsub.f32 %v5570, %v5588
        %v5619 = vsub.f32 %v5571, %v5590
        %v5620 = vsub.f32 %v5572, %v5592
        %v5621 = vsub.f32 %v5573, %v5594
        %v5622 = vsub.f32 %v5574, %v5596
        %v5623 = vsub.f32 %v5575, %v5598
        %v5624 = vsub.f32 %v5576, %v5600
        %v5625 = vsub.f32 %v5577, %v5602
        %v5626 = vsub.f32 %v5578, %v5604
        %v5627 = vsub.f32 %v5579, %v5606
        %v5628 = vsub.f32 %v5580, %v5608
        %v5629 = vsub.f32 %v5581, %v5610
        %v5630 = vsub.f32 %v5582, %v5612
        %v5631 = vsub.f32 %v5583, %v5614
        %v5632 = vsub.f32 %v5584, %v5616
        %v5633 = vmul.f32 %v5617, 1.442695
        %v5634 = vpow.pop %v5633
        %v5635 = vmul.f32 %v5618, 1.442695
        %v5636 = vpow.pop %v5635
        %v5637 = vmul.f32 %v5619, 1.442695
        %v5638 = vpow.pop %v5637
        %v5639 = vmul.f32 %v5620, 1.442695
        %v5640 = vpow.pop %v5639
        %v5641 = vmul.f32 %v5621, 1.442695
        %v5642 = vpow.pop %v5641
        %v5643 = vmul.f32 %v5622, 1.442695
        %v5644 = vpow.pop %v5643
        %v5645 = vmul.f32 %v5623, 1.442695
        %v5646 = vpow.pop %v5645
        %v5647 = vmul.f32 %v5624, 1.442695
        %v5648 = vpow.pop %v5647
        %v5649 = vmul.f32 %v5625, 1.442695
        %v5650 = vpow.pop %v5649
        %v5651 = vmul.f32 %v5626, 1.442695
        %v5652 = vpow.pop %v5651
        %v5653 = vmul.f32 %v5627, 1.442695
        %v5654 = vpow.pop %v5653
        %v5655 = vmul.f32 %v5628, 1.442695
        %v5656 = vpow.pop %v5655
        %v5657 = vmul.f32 %v5629, 1.442695
        %v5658 = vpow.pop %v5657
        %v5659 = vmul.f32 %v5630, 1.442695
        %v5660 = vpow.pop %v5659
        %v5661 = vmul.f32 %v5631, 1.442695
        %v5662 = vpow.pop %v5661
        %v5663 = vmul.f32 %v5632, 1.442695
        %v5664 = vpow.pop %v5663
        %5665 = vadd.xlane.f32.xlu0 %v5634
        %v5666 = vpop.xlane.xlu0 %5665
        %5667 = vadd.xlane.f32.xlu0 %v5636
        %v5668 = vpop.xlane.xlu0 %5667
        %5669 = vadd.xlane.f32.xlu0 %v5638
        %v5670 = vpop.xlane.xlu0 %5669
        %5671 = vadd.xlane.f32.xlu0 %v5640
        %v5672 = vpop.xlane.xlu0 %5671
        %5673 = vadd.xlane.f32.xlu0 %v5642
        %v5674 = vpop.xlane.xlu0 %5673
        %5675 = vadd.xlane.f32.xlu0 %v5644
        %v5676 = vpop.xlane.xlu0 %5675
        %5677 = vadd.xlane.f32.xlu0 %v5646
        %v5678 = vpop.xlane.xlu0 %5677
        %5679 = vadd.xlane.f32.xlu0 %v5648
        %v5680 = vpop.xlane.xlu0 %5679
        %5681 = vadd.xlane.f32.xlu0 %v5650
        %v5682 = vpop.xlane.xlu0 %5681
        %5683 = vadd.xlane.f32.xlu0 %v5652
        %v5684 = vpop.xlane.xlu0 %5683
        %5685 = vadd.xlane.f32.xlu0 %v5654
        %v5686 = vpop.xlane.xlu0 %5685
        %5687 = vadd.xlane.f32.xlu0 %v5656
        %v5688 = vpop.xlane.xlu0 %5687
        %5689 = vadd.xlane.f32.xlu0 %v5658
        %v5690 = vpop.xlane.xlu0 %5689
        %5691 = vadd.xlane.f32.xlu0 %v5660
        %v5692 = vpop.xlane.xlu0 %5691
        %5693 = vadd.xlane.f32.xlu0 %v5662
        %v5694 = vpop.xlane.xlu0 %5693
        %5695 = vadd.xlane.f32.xlu0 %v5664
        %v5696 = vpop.xlane.xlu0 %5695
        %v5697 = vrcp.pop %v5666
        %v5698 = vrcp.pop %v5668
        %v5699 = vrcp.pop %v5670
        %v5700 = vrcp.pop %v5672
        %v5701 = vrcp.pop %v5674
        %v5702 = vrcp.pop %v5676
        %v5703 = vrcp.pop %v5678
        %v5704 = vrcp.pop %v5680
        %v5705 = vrcp.pop %v5682
        %v5706 = vrcp.pop %v5684
        %v5707 = vrcp.pop %v5686
        %v5708 = vrcp.pop %v5688
        %v5709 = vrcp.pop %v5690
        %v5710 = vrcp.pop %v5692
        %v5711 = vrcp.pop %v5694
        %v5712 = vrcp.pop %v5696
        %v5713 = vmul.f32 %v5634, %v5697
        %v5714 = vmul.f32 %v5636, %v5698
        %v5715 = vmul.f32 %v5638, %v5699
        %v5716 = vmul.f32 %v5640, %v5700
        %v5717 = vmul.f32 %v5642, %v5701
        %v5718 = vmul.f32 %v5644, %v5702
        %v5719 = vmul.f32 %v5646, %v5703
        %v5720 = vmul.f32 %v5648, %v5704
        %v5721 = vmul.f32 %v5650, %v5705
        %v5722 = vmul.f32 %v5652, %v5706
        %v5723 = vmul.f32 %v5654, %v5707
        %v5724 = vmul.f32 %v5656, %v5708
        %v5725 = vmul.f32 %v5658, %v5709
        %v5726 = vmul.f32 %v5660, %v5710
        %v5727 = vmul.f32 %v5662, %v5711
        %v5728 = vmul.f32 %v5664, %v5712
        %v5729 = vadd.f32 %v5326, %v5713
        %v5730 = vadd.f32 %v5327, %v5714
        %v5731 = vadd.f32 %v5328, %v5715
        %v5732 = vadd.f32 %v5329, %v5716
        %v5733 = vadd.f32 %v5330, %v5717
        %v5734 = vadd.f32 %v5331, %v5718
        %v5735 = vadd.f32 %v5332, %v5719
        %v5736 = vadd.f32 %v5333, %v5720
        %v5737 = vadd.f32 %v5334, %v5721
        %v5738 = vadd.f32 %v5335, %v5722
        %v5739 = vadd.f32 %v5336, %v5723
        %v5740 = vadd.f32 %v5337, %v5724
        %v5741 = vadd.f32 %v5338, %v5725
        %v5742 = vadd.f32 %v5339, %v5726
        %v5743 = vadd.f32 %v5340, %v5727
        %v5744 = vadd.f32 %v5341, %v5728
        %v5745 = vld [vmem:[%s4953 + $0x10] sm:$0xff]
        %v5746 = vld [vmem:[%s4955 + $0x10] sm:$0xff]
        %5747 = vxpose.xlu0.b32.start [1/16] %v5745, 128
        %5748 = vxpose.xlu0.b32.cont [2/16] 0.0, 128
        %5749 = vxpose.xlu0.b32.cont [3/16] 0.0, 128
        %5750 = vxpose.xlu0.b32.cont [4/16] 0.0, 128
        %5751 = vxpose.xlu0.b32.cont [5/16] 0.0, 128
        %5752 = vxpose.xlu0.b32.cont [6/16] 0.0, 128
        %5753 = vxpose.xlu0.b32.cont [7/16] 0.0, 128
        %5754 = vxpose.xlu0.b32.cont [8/16] 0.0, 128
        %5755 = vxpose.xlu0.b32.cont [9/16] 0.0, 128
        %5756 = vxpose.xlu0.b32.cont [10/16] 0.0, 128
        %5757 = vxpose.xlu0.b32.cont [11/16] 0.0, 128
        %5758 = vxpose.xlu0.b32.cont [12/16] 0.0, 128
        %5759 = vxpose.xlu0.b32.cont [13/16] 0.0, 128
        %5760 = vxpose.xlu0.b32.cont [14/16] 0.0, 128
        %5761 = vxpose.xlu0.b32.cont [15/16] 0.0, 128
        %5762 = vxpose.xlu0.b32.end [16/16] 0.0, 128
        %v5763 = vpop.trf.xlu0
        %v5764 = vpop.trf.xlu0
        %v5765 = vpop.trf.xlu0
        %v5766 = vpop.trf.xlu0
        %v5767 = vpop.trf.xlu0
        %v5768 = vpop.trf.xlu0
        %v5769 = vpop.trf.xlu0
        %v5770 = vpop.trf.xlu0
        %v5771 = vpop.trf.xlu0
        %v5772 = vpop.trf.xlu0
        %v5773 = vpop.trf.xlu0
        %v5774 = vpop.trf.xlu0
        %v5775 = vpop.trf.xlu0
        %v5776 = vpop.trf.xlu0
        %v5777 = vpop.trf.xlu0
        %v5778 = vpop.trf.xlu0
        %v5780 = vsel %vm659, %v5763, 0
        %v5783 = vsel %vm659, %v5764, 0
        %v5786 = vsel %vm659, %v5765, 0
        %v5789 = vsel %vm659, %v5766, 0
        %v5792 = vsel %vm659, %v5767, 0
        %v5795 = vsel %vm659, %v5768, 0
        %v5798 = vsel %vm659, %v5769, 0
        %v5801 = vsel %vm659, %v5770, 0
        %v5804 = vsel %vm659, %v5771, 0
        %v5807 = vsel %vm659, %v5772, 0
        %v5810 = vsel %vm659, %v5773, 0
        %v5813 = vsel %vm659, %v5774, 0
        %v5816 = vsel %vm659, %v5775, 0
        %v5819 = vsel %vm659, %v5776, 0
        %v5822 = vsel %vm659, %v5777, 0
        %v5825 = vsel %vm659, %v5778, 0
        %5827 = vmatprep.subr.mxu0 0.0
        %5828 = vmatpush1.msra.mxu0 %v5746
        %5829 = vmatprep.subr.mxu0 0.0
        %5830 = vmatpush1.msra.mxu0 0.0
        %5831 = vmatprep.subr.mxu0 0.0
        %5832 = vmatpush1.msra.mxu0 0.0
        %5833 = vmatprep.subr.mxu0 0.0
        %5834 = vmatpush1.msra.mxu0 0.0
        %5835 = vmatprep.subr.mxu0 0.0
        %5836 = vmatpush1.msra.mxu0 0.0
        %5837 = vmatprep.subr.mxu0 0.0
        %5838 = vmatpush1.msra.mxu0 0.0
        %5839 = vmatprep.subr.mxu0 0.0
        %5840 = vmatpush1.msra.mxu0 0.0
        %5841 = vmatprep.subr.mxu0 0.0
        %5842 = vmatpush1.msra.mxu0 0.0
        %5843 = vmatprep.subr.mxu0 0.0
        %5844 = vmatpush1.msra.mxu0 0.0
        %5845 = vmatprep.subr.mxu0 0.0
        %5846 = vmatpush1.msra.mxu0 0.0
        %5847 = vmatprep.subr.mxu0 0.0
        %5848 = vmatpush1.msra.mxu0 0.0
        %5849 = vmatprep.subr.mxu0 0.0
        %5850 = vmatpush1.msra.mxu0 0.0
        %5851 = vmatprep.subr.mxu0 0.0
        %5852 = vmatpush1.msra.mxu0 0.0
        %5853 = vmatprep.subr.mxu0 0.0
        %5854 = vmatpush1.msra.mxu0 0.0
        %5855 = vmatprep.subr.mxu0 0.0
        %5856 = vmatpush1.msra.mxu0 0.0
        %5857 = vmatprep.subr.mxu0 0.0
        %5858 = vmatpush1.msra.mxu0 0.0
        %5859 = vmatprep.subr.mxu0 0.0
        %5860 = vmatpush1.msra.mxu0 0.0
        %5861 = vmatprep.subr.mxu0 0.0
        %5862 = vmatpush1.msra.mxu0 0.0
        %5863 = vmatprep.subr.mxu0 0.0
        %5864 = vmatpush1.msra.mxu0 0.0
        %5865 = vmatprep.subr.mxu0 0.0
        %5866 = vmatpush1.msra.mxu0 0.0
        %5867 = vmatprep.subr.mxu0 0.0
        %5868 = vmatpush1.msra.mxu0 0.0
        %5869 = vmatprep.subr.mxu0 0.0
        %5870 = vmatpush1.msra.mxu0 0.0
        %5871 = vmatprep.subr.mxu0 0.0
        %5872 = vmatpush1.msra.mxu0 0.0
        %5873 = vmatprep.subr.mxu0 0.0
        %5874 = vmatpush1.msra.mxu0 0.0
        %5875 = vmatprep.subr.mxu0 0.0
        %5876 = vmatpush1.msra.mxu0 0.0
        %5877 = vmatprep.subr.mxu0 0.0
        %5878 = vmatpush1.msra.mxu0 0.0
        %5879 = vmatprep.subr.mxu0 0.0
        %5880 = vmatpush1.msra.mxu0 0.0
        %5881 = vmatprep.subr.mxu0 0.0
        %5882 = vmatpush1.msra.mxu0 0.0
        %5883 = vmatprep.subr.mxu0 0.0
        %5884 = vmatpush1.msra.mxu0 0.0
        %5885 = vmatprep.subr.mxu0 0.0
        %5886 = vmatpush1.msra.mxu0 0.0
        %5887 = vmatprep.subr.mxu0 0.0
        %5888 = vmatpush1.msra.mxu0 0.0
        %5889 = vmatprep.subr.mxu0 0.0
        %5890 = vmatpush1.msra.mxu0 0.0
        %5891 = vmatprep.mubr.f32.mxu0 0.0
        %5892 = vmatmul.mubr.f32.gmra.mrb[0].mxu0 %v5780
        %v5893 = vpop.f32.mrb[0].mxu0
        %v5894 = vadd.f32 0.0, %v5893
        %v5895 = vpop.f32.mrb[0].mxu0
        %5896 = vmatprep.mubr.f32.mxu0 0.0
        %5897 = vmatmul.mubr.f32.gmra.mrb[0].mxu0 %v5783
        %v5898 = vpop.f32.mrb[0].mxu0
        %v5899 = vadd.f32 0.0, %v5898
        %v5900 = vpop.f32.mrb[0].mxu0
        %5901 = vmatprep.mubr.f32.mxu0 0.0
        %5902 = vmatmul.mubr.f32.gmra.mrb[0].mxu0 %v5786
        %v5903 = vpop.f32.mrb[0].mxu0
        %v5904 = vadd.f32 0.0, %v5903
        %v5905 = vpop.f32.mrb[0].mxu0
        %5906 = vmatprep.mubr.f32.mxu0 0.0
        %5907 = vmatmul.mubr.f32.gmra.mrb[0].mxu0 %v5789
        %v5908 = vpop.f32.mrb[0].mxu0
        %v5909 = vadd.f32 0.0, %v5908
        %v5910 = vpop.f32.mrb[0].mxu0
        %5911 = vmatprep.mubr.f32.mxu0 0.0
        %5912 = vmatmul.mubr.f32.gmra.mrb[0].mxu0 %v5792
        %v5913 = vpop.f32.mrb[0].mxu0
        %v5914 = vadd.f32 0.0, %v5913
        %v5915 = vpop.f32.mrb[0].mxu0
        %5916 = vmatprep.mubr.f32.mxu0 0.0
        %5917 = vmatmul.mubr.f32.gmra.mrb[0].mxu0 %v5795
        %v5918 = vpop.f32.mrb[0].mxu0
        %v5919 = vadd.f32 0.0, %v5918
        %v5920 = vpop.f32.mrb[0].mxu0
        %5921 = vmatprep.mubr.f32.mxu0 0.0
        %5922 = vmatmul.mubr.f32.gmra.mrb[0].mxu0 %v5798
        %v5923 = vpop.f32.mrb[0].mxu0
        %v5924 = vadd.f32 0.0, %v5923
        %v5925 = vpop.f32.mrb[0].mxu0
        %5926 = vmatprep.mubr.f32.mxu0 0.0
        %5927 = vmatmul.mubr.f32.gmra.mrb[0].mxu0 %v5801
        %v5928 = vpop.f32.mrb[0].mxu0
        %v5929 = vadd.f32 0.0, %v5928
        %v5930 = vpop.f32.mrb[0].mxu0
        %5931 = vmatprep.mubr.f32.mxu0 0.0
        %5932 = vmatmul.mubr.f32.gmra.mrb[0].mxu0 %v5804
        %v5933 = vpop.f32.mrb[0].mxu0
        %v5934 = vadd.f32 0.0, %v5933
        %v5935 = vpop.f32.mrb[0].mxu0
        %5936 = vmatprep.mubr.f32.mxu0 0.0
        %5937 = vmatmul.mubr.f32.gmra.mrb[0].mxu0 %v5807
        %v5938 = vpop.f32.mrb[0].mxu0
        %v5939 = vadd.f32 0.0, %v5938
        %v5940 = vpop.f32.mrb[0].mxu0
        %5941 = vmatprep.mubr.f32.mxu0 0.0
        %5942 = vmatmul.mubr.f32.gmra.mrb[0].mxu0 %v5810
        %v5943 = vpop.f32.mrb[0].mxu0
        %v5944 = vadd.f32 0.0, %v5943
        %v5945 = vpop.f32.mrb[0].mxu0
        %5946 = vmatprep.mubr.f32.mxu0 0.0
        %5947 = vmatmul.mubr.f32.gmra.mrb[0].mxu0 %v5813
        %v5948 = vpop.f32.mrb[0].mxu0
        %v5949 = vadd.f32 0.0, %v5948
        %v5950 = vpop.f32.mrb[0].mxu0
        %5951 = vmatprep.mubr.f32.mxu0 0.0
        %5952 = vmatmul.mubr.f32.gmra.mrb[0].mxu0 %v5816
        %v5953 = vpop.f32.mrb[0].mxu0
        %v5954 = vadd.f32 0.0, %v5953
        %v5955 = vpop.f32.mrb[0].mxu0
        %5956 = vmatprep.mubr.f32.mxu0 0.0
        %5957 = vmatmul.mubr.f32.gmra.mrb[0].mxu0 %v5819
        %v5958 = vpop.f32.mrb[0].mxu0
        %v5959 = vadd.f32 0.0, %v5958
        %v5960 = vpop.f32.mrb[0].mxu0
        %5961 = vmatprep.mubr.f32.mxu0 0.0
        %5962 = vmatmul.mubr.f32.gmra.mrb[0].mxu0 %v5822
        %v5963 = vpop.f32.mrb[0].mxu0
        %v5964 = vadd.f32 0.0, %v5963
        %v5965 = vpop.f32.mrb[0].mxu0
        %5966 = vmatprep.mubr.f32.mxu0 0.0
        %5967 = vmatmul.mubr.f32.gmra.mrb[0].mxu0 %v5825
        %v5968 = vpop.f32.mrb[0].mxu0
        %v5969 = vadd.f32 0.0, %v5968
        %v5970 = vpop.f32.mrb[0].mxu0
        %5971 = vdwg.mxu0
        %v5972 = vand.u32 2147483647, %v5894
        %v5973 = vand.u32 2147483647, %v5899
        %v5974 = vand.u32 2147483647, %v5904
        %v5975 = vand.u32 2147483647, %v5909
        %v5976 = vand.u32 2147483647, %v5914
        %v5977 = vand.u32 2147483647, %v5919
        %v5978 = vand.u32 2147483647, %v5924
        %v5979 = vand.u32 2147483647, %v5929
        %v5980 = vand.u32 2147483647, %v5934
        %v5981 = vand.u32 2147483647, %v5939
        %v5982 = vand.u32 2147483647, %v5944
        %v5983 = vand.u32 2147483647, %v5949
        %v5984 = vand.u32 2147483647, %v5954
        %v5985 = vand.u32 2147483647, %v5959
        %v5986 = vand.u32 2147483647, %v5964
        %v5987 = vand.u32 2147483647, %v5969
        %5988 = vmax.xlane.f32.xlu0 %v5972
        %v5989 = vpop.xlane.xlu0 %5988
        %5990 = vmax.xlane.f32.xlu0 %v5973
        %v5991 = vpop.xlane.xlu0 %5990
        %5992 = vmax.xlane.f32.xlu0 %v5974
        %v5993 = vpop.xlane.xlu0 %5992
        %5994 = vmax.xlane.f32.xlu0 %v5975
        %v5995 = vpop.xlane.xlu0 %5994
        %5996 = vmax.xlane.f32.xlu0 %v5976
        %v5997 = vpop.xlane.xlu0 %5996
        %5998 = vmax.xlane.f32.xlu0 %v5977
        %v5999 = vpop.xlane.xlu0 %5998
        %6000 = vmax.xlane.f32.xlu0 %v5978
        %v6001 = vpop.xlane.xlu0 %6000
        %6002 = vmax.xlane.f32.xlu0 %v5979
        %v6003 = vpop.xlane.xlu0 %6002
        %6004 = vmax.xlane.f32.xlu0 %v5980
        %v6005 = vpop.xlane.xlu0 %6004
        %6006 = vmax.xlane.f32.xlu0 %v5981
        %v6007 = vpop.xlane.xlu0 %6006
        %6008 = vmax.xlane.f32.xlu0 %v5982
        %v6009 = vpop.xlane.xlu0 %6008
        %6010 = vmax.xlane.f32.xlu0 %v5983
        %v6011 = vpop.xlane.xlu0 %6010
        %6012 = vmax.xlane.f32.xlu0 %v5984
        %v6013 = vpop.xlane.xlu0 %6012
        %6014 = vmax.xlane.f32.xlu0 %v5985
        %v6015 = vpop.xlane.xlu0 %6014
        %6016 = vmax.xlane.f32.xlu0 %v5986
        %v6017 = vpop.xlane.xlu0 %6016
        %6018 = vmax.xlane.f32.xlu0 %v5987
        %v6019 = vpop.xlane.xlu0 %6018
        %v6020 = vsub.f32 %v5972, %v5989
        %v6021 = vsub.f32 %v5973, %v5991
        %v6022 = vsub.f32 %v5974, %v5993
        %v6023 = vsub.f32 %v5975, %v5995
        %v6024 = vsub.f32 %v5976, %v5997
        %v6025 = vsub.f32 %v5977, %v5999
        %v6026 = vsub.f32 %v5978, %v6001
        %v6027 = vsub.f32 %v5979, %v6003
        %v6028 = vsub.f32 %v5980, %v6005
        %v6029 = vsub.f32 %v5981, %v6007
        %v6030 = vsub.f32 %v5982, %v6009
        %v6031 = vsub.f32 %v5983, %v6011
        %v6032 = vsub.f32 %v5984, %v6013
        %v6033 = vsub.f32 %v5985, %v6015
        %v6034 = vsub.f32 %v5986, %v6017
        %v6035 = vsub.f32 %v5987, %v6019
        %v6036 = vmul.f32 %v6020, 1.442695
        %v6037 = vpow.pop %v6036
        %v6038 = vmul.f32 %v6021, 1.442695
        %v6039 = vpow.pop %v6038
        %v6040 = vmul.f32 %v6022, 1.442695
        %v6041 = vpow.pop %v6040
        %v6042 = vmul.f32 %v6023, 1.442695
        %v6043 = vpow.pop %v6042
        %v6044 = vmul.f32 %v6024, 1.442695
        %v6045 = vpow.pop %v6044
        %v6046 = vmul.f32 %v6025, 1.442695
        %v6047 = vpow.pop %v6046
        %v6048 = vmul.f32 %v6026, 1.442695
        %v6049 = vpow.pop %v6048
        %v6050 = vmul.f32 %v6027, 1.442695
        %v6051 = vpow.pop %v6050
        %v6052 = vmul.f32 %v6028, 1.442695
        %v6053 = vpow.pop %v6052
        %v6054 = vmul.f32 %v6029, 1.442695
        %v6055 = vpow.pop %v6054
        %v6056 = vmul.f32 %v6030, 1.442695
        %v6057 = vpow.pop %v6056
        %v6058 = vmul.f32 %v6031, 1.442695
        %v6059 = vpow.pop %v6058
        %v6060 = vmul.f32 %v6032, 1.442695
        %v6061 = vpow.pop %v6060
        %v6062 = vmul.f32 %v6033, 1.442695
        %v6063 = vpow.pop %v6062
        %v6064 = vmul.f32 %v6034, 1.442695
        %v6065 = vpow.pop %v6064
        %v6066 = vmul.f32 %v6035, 1.442695
        %v6067 = vpow.pop %v6066
        %6068 = vadd.xlane.f32.xlu0 %v6037
        %v6069 = vpop.xlane.xlu0 %6068
        %6070 = vadd.xlane.f32.xlu0 %v6039
        %v6071 = vpop.xlane.xlu0 %6070
        %6072 = vadd.xlane.f32.xlu0 %v6041
        %v6073 = vpop.xlane.xlu0 %6072
        %6074 = vadd.xlane.f32.xlu0 %v6043
        %v6075 = vpop.xlane.xlu0 %6074
        %6076 = vadd.xlane.f32.xlu0 %v6045
        %v6077 = vpop.xlane.xlu0 %6076
        %6078 = vadd.xlane.f32.xlu0 %v6047
        %v6079 = vpop.xlane.xlu0 %6078
        %6080 = vadd.xlane.f32.xlu0 %v6049
        %v6081 = vpop.xlane.xlu0 %6080
        %6082 = vadd.xlane.f32.xlu0 %v6051
        %v6083 = vpop.xlane.xlu0 %6082
        %6084 = vadd.xlane.f32.xlu0 %v6053
        %v6085 = vpop.xlane.xlu0 %6084
        %6086 = vadd.xlane.f32.xlu0 %v6055
        %v6087 = vpop.xlane.xlu0 %6086
        %6088 = vadd.xlane.f32.xlu0 %v6057
        %v6089 = vpop.xlane.xlu0 %6088
        %6090 = vadd.xlane.f32.xlu0 %v6059
        %v6091 = vpop.xlane.xlu0 %6090
        %6092 = vadd.xlane.f32.xlu0 %v6061
        %v6093 = vpop.xlane.xlu0 %6092
        %6094 = vadd.xlane.f32.xlu0 %v6063
        %v6095 = vpop.xlane.xlu0 %6094
        %6096 = vadd.xlane.f32.xlu0 %v6065
        %v6097 = vpop.xlane.xlu0 %6096
        %6098 = vadd.xlane.f32.xlu0 %v6067
        %v6099 = vpop.xlane.xlu0 %6098
        %v6100 = vrcp.pop %v6069
        %v6101 = vrcp.pop %v6071
        %v6102 = vrcp.pop %v6073
        %v6103 = vrcp.pop %v6075
        %v6104 = vrcp.pop %v6077
        %v6105 = vrcp.pop %v6079
        %v6106 = vrcp.pop %v6081
        %v6107 = vrcp.pop %v6083
        %v6108 = vrcp.pop %v6085
        %v6109 = vrcp.pop %v6087
        %v6110 = vrcp.pop %v6089
        %v6111 = vrcp.pop %v6091
        %v6112 = vrcp.pop %v6093
        %v6113 = vrcp.pop %v6095
        %v6114 = vrcp.pop %v6097
        %v6115 = vrcp.pop %v6099
        %v6116 = vmul.f32 %v6037, %v6100
        %v6117 = vmul.f32 %v6039, %v6101
        %v6118 = vmul.f32 %v6041, %v6102
        %v6119 = vmul.f32 %v6043, %v6103
        %v6120 = vmul.f32 %v6045, %v6104
        %v6121 = vmul.f32 %v6047, %v6105
        %v6122 = vmul.f32 %v6049, %v6106
        %v6123 = vmul.f32 %v6051, %v6107
        %v6124 = vmul.f32 %v6053, %v6108
        %v6125 = vmul.f32 %v6055, %v6109
        %v6126 = vmul.f32 %v6057, %v6110
        %v6127 = vmul.f32 %v6059, %v6111
        %v6128 = vmul.f32 %v6061, %v6112
        %v6129 = vmul.f32 %v6063, %v6113
        %v6130 = vmul.f32 %v6065, %v6114
        %v6131 = vmul.f32 %v6067, %v6115
        %v6132 = vadd.f32 %v5729, %v6116
        %v6133 = vadd.f32 %v5730, %v6117
        %v6134 = vadd.f32 %v5731, %v6118
        %v6135 = vadd.f32 %v5732, %v6119
        %v6136 = vadd.f32 %v5733, %v6120
        %v6137 = vadd.f32 %v5734, %v6121
        %v6138 = vadd.f32 %v5735, %v6122
        %v6139 = vadd.f32 %v5736, %v6123
        %v6140 = vadd.f32 %v5737, %v6124
        %v6141 = vadd.f32 %v5738, %v6125
        %v6142 = vadd.f32 %v5739, %v6126
        %v6143 = vadd.f32 %v5740, %v6127
        %v6144 = vadd.f32 %v5741, %v6128
        %v6145 = vadd.f32 %v5742, %v6129
        %v6146 = vadd.f32 %v5743, %v6130
        %v6147 = vadd.f32 %v5744, %v6131
        %v6148 = vld [vmem:[%s4953 + $0x18] sm:$0xff]
        %v6149 = vld [vmem:[%s4955 + $0x18] sm:$0xff]
        %6150 = vxpose.xlu0.b32.start [1/16] %v6148, 128
        %6151 = vxpose.xlu0.b32.cont [2/16] 0.0, 128
        %6152 = vxpose.xlu0.b32.cont [3/16] 0.0, 128
        %6153 = vxpose.xlu0.b32.cont [4/16] 0.0, 128
        %6154 = vxpose.xlu0.b32.cont [5/16] 0.0, 128
        %6155 = vxpose.xlu0.b32.cont [6/16] 0.0, 128
        %6156 = vxpose.xlu0.b32.cont [7/16] 0.0, 128
        %6157 = vxpose.xlu0.b32.cont [8/16] 0.0, 128
        %6158 = vxpose.xlu0.b32.cont [9/16] 0.0, 128
        %6159 = vxpose.xlu0.b32.cont [10/16] 0.0, 128
        %6160 = vxpose.xlu0.b32.cont [11/16] 0.0, 128
        %6161 = vxpose.xlu0.b32.cont [12/16] 0.0, 128
        %6162 = vxpose.xlu0.b32.cont [13/16] 0.0, 128
        %6163 = vxpose.xlu0.b32.cont [14/16] 0.0, 128
        %6164 = vxpose.xlu0.b32.cont [15/16] 0.0, 128
        %6165 = vxpose.xlu0.b32.end [16/16] 0.0, 128
        %v6166 = vpop.trf.xlu0
        %v6167 = vpop.trf.xlu0
        %v6168 = vpop.trf.xlu0
        %v6169 = vpop.trf.xlu0
        %v6170 = vpop.trf.xlu0
        %v6171 = vpop.trf.xlu0
        %v6172 = vpop.trf.xlu0
        %v6173 = vpop.trf.xlu0
        %v6174 = vpop.trf.xlu0
        %v6175 = vpop.trf.xlu0
        %v6176 = vpop.trf.xlu0
        %v6177 = vpop.trf.xlu0
        %v6178 = vpop.trf.xlu0
        %v6179 = vpop.trf.xlu0
        %v6180 = vpop.trf.xlu0
        %v6181 = vpop.trf.xlu0
        %v6183 = vsel %vm659, %v6166, 0
        %v6186 = vsel %vm659, %v6167, 0
        %v6189 = vsel %vm659, %v6168, 0
        %v6192 = vsel %vm659, %v6169, 0
        %v6195 = vsel %vm659, %v6170, 0
        %v6198 = vsel %vm659, %v6171, 0
        %v6201 = vsel %vm659, %v6172, 0
        %v6204 = vsel %vm659, %v6173, 0
        %v6207 = vsel %vm659, %v6174, 0
        %v6210 = vsel %vm659, %v6175, 0
        %v6213 = vsel %vm659, %v6176, 0
        %v6216 = vsel %vm659, %v6177, 0
        %v6219 = vsel %vm659, %v6178, 0
        %v6222 = vsel %vm659, %v6179, 0
        %v6225 = vsel %vm659, %v6180, 0
        %v6228 = vsel %vm659, %v6181, 0
        %6230 = vmatprep.subr.mxu0 0.0
        %6231 = vmatpush1.msra.mxu0 %v6149
        %6232 = vmatprep.subr.mxu0 0.0
        %6233 = vmatpush1.msra.mxu0 0.0
        %6234 = vmatprep.subr.mxu0 0.0
        %6235 = vmatpush1.msra.mxu0 0.0
        %6236 = vmatprep.subr.mxu0 0.0
        %6237 = vmatpush1.msra.mxu0 0.0
        %6238 = vmatprep.subr.mxu0 0.0
        %6239 = vmatpush1.msra.mxu0 0.0
        %6240 = vmatprep.subr.mxu0 0.0
        %6241 = vmatpush1.msra.mxu0 0.0
        %6242 = vmatprep.subr.mxu0 0.0
        %6243 = vmatpush1.msra.mxu0 0.0
        %6244 = vmatprep.subr.mxu0 0.0
        %6245 = vmatpush1.msra.mxu0 0.0
        %6246 = vmatprep.subr.mxu0 0.0
        %6247 = vmatpush1.msra.mxu0 0.0
        %6248 = vmatprep.subr.mxu0 0.0
        %6249 = vmatpush1.msra.mxu0 0.0
        %6250 = vmatprep.subr.mxu0 0.0
        %6251 = vmatpush1.msra.mxu0 0.0
        %6252 = vmatprep.subr.mxu0 0.0
        %6253 = vmatpush1.msra.mxu0 0.0
        %6254 = vmatprep.subr.mxu0 0.0
        %6255 = vmatpush1.msra.mxu0 0.0
        %6256 = vmatprep.subr.mxu0 0.0
        %6257 = vmatpush1.msra.mxu0 0.0
        %6258 = vmatprep.subr.mxu0 0.0
        %6259 = vmatpush1.msra.mxu0 0.0
        %6260 = vmatprep.subr.mxu0 0.0
        %6261 = vmatpush1.msra.mxu0 0.0
        %6262 = vmatprep.subr.mxu0 0.0
        %6263 = vmatpush1.msra.mxu0 0.0
        %6264 = vmatprep.subr.mxu0 0.0
        %6265 = vmatpush1.msra.mxu0 0.0
        %6266 = vmatprep.subr.mxu0 0.0
        %6267 = vmatpush1.msra.mxu0 0.0
        %6268 = vmatprep.subr.mxu0 0.0
        %6269 = vmatpush1.msra.mxu0 0.0
        %6270 = vmatprep.subr.mxu0 0.0
        %6271 = vmatpush1.msra.mxu0 0.0
        %6272 = vmatprep.subr.mxu0 0.0
        %6273 = vmatpush1.msra.mxu0 0.0
        %6274 = vmatprep.subr.mxu0 0.0
        %6275 = vmatpush1.msra.mxu0 0.0
        %6276 = vmatprep.subr.mxu0 0.0
        %6277 = vmatpush1.msra.mxu0 0.0
        %6278 = vmatprep.subr.mxu0 0.0
        %6279 = vmatpush1.msra.mxu0 0.0
        %6280 = vmatprep.subr.mxu0 0.0
        %6281 = vmatpush1.msra.mxu0 0.0
        %6282 = vmatprep.subr.mxu0 0.0
        %6283 = vmatpush1.msra.mxu0 0.0
        %6284 = vmatprep.subr.mxu0 0.0
        %6285 = vmatpush1.msra.mxu0 0.0
        %6286 = vmatprep.subr.mxu0 0.0
        %6287 = vmatpush1.msra.mxu0 0.0
        %6288 = vmatprep.subr.mxu0 0.0
        %6289 = vmatpush1.msra.mxu0 0.0
        %6290 = vmatprep.subr.mxu0 0.0
        %6291 = vmatpush1.msra.mxu0 0.0
        %6292 = vmatprep.subr.mxu0 0.0
        %6293 = vmatpush1.msra.mxu0 0.0
        %6294 = vmatprep.mubr.f32.mxu0 0.0
        %6295 = vmatmul.mubr.f32.gmra.mrb[0].mxu0 %v6183
        %v6296 = vpop.f32.mrb[0].mxu0
        %v6297 = vadd.f32 0.0, %v6296
        %v6298 = vpop.f32.mrb[0].mxu0
        %6299 = vmatprep.mubr.f32.mxu0 0.0
        %6300 = vmatmul.mubr.f32.gmra.mrb[0].mxu0 %v6186
        %v6301 = vpop.f32.mrb[0].mxu0
        %v6302 = vadd.f32 0.0, %v6301
        %v6303 = vpop.f32.mrb[0].mxu0
        %6304 = vmatprep.mubr.f32.mxu0 0.0
        %6305 = vmatmul.mubr.f32.gmra.mrb[0].mxu0 %v6189
        %v6306 = vpop.f32.mrb[0].mxu0
        %v6307 = vadd.f32 0.0, %v6306
        %v6308 = vpop.f32.mrb[0].mxu0
        %6309 = vmatprep.mubr.f32.mxu0 0.0
        %6310 = vmatmul.mubr.f32.gmra.mrb[0].mxu0 %v6192
        %v6311 = vpop.f32.mrb[0].mxu0
        %v6312 = vadd.f32 0.0, %v6311
        %v6313 = vpop.f32.mrb[0].mxu0
        %6314 = vmatprep.mubr.f32.mxu0 0.0
        %6315 = vmatmul.mubr.f32.gmra.mrb[0].mxu0 %v6195
        %v6316 = vpop.f32.mrb[0].mxu0
        %v6317 = vadd.f32 0.0, %v6316
        %v6318 = vpop.f32.mrb[0].mxu0
        %6319 = vmatprep.mubr.f32.mxu0 0.0
        %6320 = vmatmul.mubr.f32.gmra.mrb[0].mxu0 %v6198
        %v6321 = vpop.f32.mrb[0].mxu0
        %v6322 = vadd.f32 0.0, %v6321
        %v6323 = vpop.f32.mrb[0].mxu0
        %6324 = vmatprep.mubr.f32.mxu0 0.0
        %6325 = vmatmul.mubr.f32.gmra.mrb[0].mxu0 %v6201
        %v6326 = vpop.f32.mrb[0].mxu0
        %v6327 = vadd.f32 0.0, %v6326
        %v6328 = vpop.f32.mrb[0].mxu0
        %6329 = vmatprep.mubr.f32.mxu0 0.0
        %6330 = vmatmul.mubr.f32.gmra.mrb[0].mxu0 %v6204
        %v6331 = vpop.f32.mrb[0].mxu0
        %v6332 = vadd.f32 0.0, %v6331
        %v6333 = vpop.f32.mrb[0].mxu0
        %6334 = vmatprep.mubr.f32.mxu0 0.0
        %6335 = vmatmul.mubr.f32.gmra.mrb[0].mxu0 %v6207
        %v6336 = vpop.f32.mrb[0].mxu0
        %v6337 = vadd.f32 0.0, %v6336
        %v6338 = vpop.f32.mrb[0].mxu0
        %6339 = vmatprep.mubr.f32.mxu0 0.0
        %6340 = vmatmul.mubr.f32.gmra.mrb[0].mxu0 %v6210
        %v6341 = vpop.f32.mrb[0].mxu0
        %v6342 = vadd.f32 0.0, %v6341
        %v6343 = vpop.f32.mrb[0].mxu0
        %6344 = vmatprep.mubr.f32.mxu0 0.0
        %6345 = vmatmul.mubr.f32.gmra.mrb[0].mxu0 %v6213
        %v6346 = vpop.f32.mrb[0].mxu0
        %v6347 = vadd.f32 0.0, %v6346
        %v6348 = vpop.f32.mrb[0].mxu0
        %6349 = vmatprep.mubr.f32.mxu0 0.0
        %6350 = vmatmul.mubr.f32.gmra.mrb[0].mxu0 %v6216
        %v6351 = vpop.f32.mrb[0].mxu0
        %v6352 = vadd.f32 0.0, %v6351
        %v6353 = vpop.f32.mrb[0].mxu0
        %6354 = vmatprep.mubr.f32.mxu0 0.0
        %6355 = vmatmul.mubr.f32.gmra.mrb[0].mxu0 %v6219
        %v6356 = vpop.f32.mrb[0].mxu0
        %v6357 = vadd.f32 0.0, %v6356
        %v6358 = vpop.f32.mrb[0].mxu0
        %6359 = vmatprep.mubr.f32.mxu0 0.0
        %6360 = vmatmul.mubr.f32.gmra.mrb[0].mxu0 %v6222
        %v6361 = vpop.f32.mrb[0].mxu0
        %v6362 = vadd.f32 0.0, %v6361
        %v6363 = vpop.f32.mrb[0].mxu0
        %6364 = vmatprep.mubr.f32.mxu0 0.0
        %6365 = vmatmul.mubr.f32.gmra.mrb[0].mxu0 %v6225
        %v6366 = vpop.f32.mrb[0].mxu0
        %v6367 = vadd.f32 0.0, %v6366
        %v6368 = vpop.f32.mrb[0].mxu0
        %6369 = vmatprep.mubr.f32.mxu0 0.0
        %6370 = vmatmul.mubr.f32.gmra.mrb[0].mxu0 %v6228
        %v6371 = vpop.f32.mrb[0].mxu0
        %v6372 = vadd.f32 0.0, %v6371
        %v6373 = vpop.f32.mrb[0].mxu0
        %6374 = vdwg.mxu0
        %v6375 = vand.u32 2147483647, %v6297
        %v6376 = vand.u32 2147483647, %v6302
        %v6377 = vand.u32 2147483647, %v6307
        %v6378 = vand.u32 2147483647, %v6312
        %v6379 = vand.u32 2147483647, %v6317
        %v6380 = vand.u32 2147483647, %v6322
        %v6381 = vand.u32 2147483647, %v6327
        %v6382 = vand.u32 2147483647, %v6332
        %v6383 = vand.u32 2147483647, %v6337
        %v6384 = vand.u32 2147483647, %v6342
        %v6385 = vand.u32 2147483647, %v6347
        %v6386 = vand.u32 2147483647, %v6352
        %v6387 = vand.u32 2147483647, %v6357
        %v6388 = vand.u32 2147483647, %v6362
        %v6389 = vand.u32 2147483647, %v6367
        %v6390 = vand.u32 2147483647, %v6372
        %6391 = vmax.xlane.f32.xlu0 %v6375
        %v6392 = vpop.xlane.xlu0 %6391
        %6393 = vmax.xlane.f32.xlu0 %v6376
        %v6394 = vpop.xlane.xlu0 %6393
        %6395 = vmax.xlane.f32.xlu0 %v6377
        %v6396 = vpop.xlane.xlu0 %6395
        %6397 = vmax.xlane.f32.xlu0 %v6378
        %v6398 = vpop.xlane.xlu0 %6397
        %6399 = vmax.xlane.f32.xlu0 %v6379
        %v6400 = vpop.xlane.xlu0 %6399
        %6401 = vmax.xlane.f32.xlu0 %v6380
        %v6402 = vpop.xlane.xlu0 %6401
        %6403 = vmax.xlane.f32.xlu0 %v6381
        %v6404 = vpop.xlane.xlu0 %6403
        %6405 = vmax.xlane.f32.xlu0 %v6382
        %v6406 = vpop.xlane.xlu0 %6405
        %6407 = vmax.xlane.f32.xlu0 %v6383
        %v6408 = vpop.xlane.xlu0 %6407
        %6409 = vmax.xlane.f32.xlu0 %v6384
        %v6410 = vpop.xlane.xlu0 %6409
        %6411 = vmax.xlane.f32.xlu0 %v6385
        %v6412 = vpop.xlane.xlu0 %6411
        %6413 = vmax.xlane.f32.xlu0 %v6386
        %v6414 = vpop.xlane.xlu0 %6413
        %6415 = vmax.xlane.f32.xlu0 %v6387
        %v6416 = vpop.xlane.xlu0 %6415
        %6417 = vmax.xlane.f32.xlu0 %v6388
        %v6418 = vpop.xlane.xlu0 %6417
        %6419 = vmax.xlane.f32.xlu0 %v6389
        %v6420 = vpop.xlane.xlu0 %6419
        %6421 = vmax.xlane.f32.xlu0 %v6390
        %v6422 = vpop.xlane.xlu0 %6421
        %v6423 = vsub.f32 %v6375, %v6392
        %v6424 = vsub.f32 %v6376, %v6394
        %v6425 = vsub.f32 %v6377, %v6396
        %v6426 = vsub.f32 %v6378, %v6398
        %v6427 = vsub.f32 %v6379, %v6400
        %v6428 = vsub.f32 %v6380, %v6402
        %v6429 = vsub.f32 %v6381, %v6404
        %v6430 = vsub.f32 %v6382, %v6406
        %v6431 = vsub.f32 %v6383, %v6408
        %v6432 = vsub.f32 %v6384, %v6410
        %v6433 = vsub.f32 %v6385, %v6412
        %v6434 = vsub.f32 %v6386, %v6414
        %v6435 = vsub.f32 %v6387, %v6416
        %v6436 = vsub.f32 %v6388, %v6418
        %v6437 = vsub.f32 %v6389, %v6420
        %v6438 = vsub.f32 %v6390, %v6422
        %v6439 = vmul.f32 %v6423, 1.442695
        %v6440 = vpow.pop %v6439
        %v6441 = vmul.f32 %v6424, 1.442695
        %v6442 = vpow.pop %v6441
        %v6443 = vmul.f32 %v6425, 1.442695
        %v6444 = vpow.pop %v6443
        %v6445 = vmul.f32 %v6426, 1.442695
        %v6446 = vpow.pop %v6445
        %v6447 = vmul.f32 %v6427, 1.442695
        %v6448 = vpow.pop %v6447
        %v6449 = vmul.f32 %v6428, 1.442695
        %v6450 = vpow.pop %v6449
        %v6451 = vmul.f32 %v6429, 1.442695
        %v6452 = vpow.pop %v6451
        %v6453 = vmul.f32 %v6430, 1.442695
        %v6454 = vpow.pop %v6453
        %v6455 = vmul.f32 %v6431, 1.442695
        %v6456 = vpow.pop %v6455
        %v6457 = vmul.f32 %v6432, 1.442695
        %v6458 = vpow.pop %v6457
        %v6459 = vmul.f32 %v6433, 1.442695
        %v6460 = vpow.pop %v6459
        %v6461 = vmul.f32 %v6434, 1.442695
        %v6462 = vpow.pop %v6461
        %v6463 = vmul.f32 %v6435, 1.442695
        %v6464 = vpow.pop %v6463
        %v6465 = vmul.f32 %v6436, 1.442695
        %v6466 = vpow.pop %v6465
        %v6467 = vmul.f32 %v6437, 1.442695
        %v6468 = vpow.pop %v6467
        %v6469 = vmul.f32 %v6438, 1.442695
        %v6470 = vpow.pop %v6469
        %6471 = vadd.xlane.f32.xlu0 %v6440
        %v6472 = vpop.xlane.xlu0 %6471
        %6473 = vadd.xlane.f32.xlu0 %v6442
        %v6474 = vpop.xlane.xlu0 %6473
        %6475 = vadd.xlane.f32.xlu0 %v6444
        %v6476 = vpop.xlane.xlu0 %6475
        %6477 = vadd.xlane.f32.xlu0 %v6446
        %v6478 = vpop.xlane.xlu0 %6477
        %6479 = vadd.xlane.f32.xlu0 %v6448
        %v6480 = vpop.xlane.xlu0 %6479
        %6481 = vadd.xlane.f32.xlu0 %v6450
        %v6482 = vpop.xlane.xlu0 %6481
        %6483 = vadd.xlane.f32.xlu0 %v6452
        %v6484 = vpop.xlane.xlu0 %6483
        %6485 = vadd.xlane.f32.xlu0 %v6454
        %v6486 = vpop.xlane.xlu0 %6485
        %6487 = vadd.xlane.f32.xlu0 %v6456
        %v6488 = vpop.xlane.xlu0 %6487
        %6489 = vadd.xlane.f32.xlu0 %v6458
        %v6490 = vpop.xlane.xlu0 %6489
        %6491 = vadd.xlane.f32.xlu0 %v6460
        %v6492 = vpop.xlane.xlu0 %6491
        %6493 = vadd.xlane.f32.xlu0 %v6462
        %v6494 = vpop.xlane.xlu0 %6493
        %6495 = vadd.xlane.f32.xlu0 %v6464
        %v6496 = vpop.xlane.xlu0 %6495
        %6497 = vadd.xlane.f32.xlu0 %v6466
        %v6498 = vpop.xlane.xlu0 %6497
        %6499 = vadd.xlane.f32.xlu0 %v6468
        %v6500 = vpop.xlane.xlu0 %6499
        %6501 = vadd.xlane.f32.xlu0 %v6470
        %v6502 = vpop.xlane.xlu0 %6501
        %v6503 = vrcp.pop %v6472
        %v6504 = vrcp.pop %v6474
        %v6505 = vrcp.pop %v6476
        %v6506 = vrcp.pop %v6478
        %v6507 = vrcp.pop %v6480
        %v6508 = vrcp.pop %v6482
        %v6509 = vrcp.pop %v6484
        %v6510 = vrcp.pop %v6486
        %v6511 = vrcp.pop %v6488
        %v6512 = vrcp.pop %v6490
        %v6513 = vrcp.pop %v6492
        %v6514 = vrcp.pop %v6494
        %v6515 = vrcp.pop %v6496
        %v6516 = vrcp.pop %v6498
        %v6517 = vrcp.pop %v6500
        %v6518 = vrcp.pop %v6502
        %v6519 = vmul.f32 %v6440, %v6503
        %v6520 = vmul.f32 %v6442, %v6504
        %v6521 = vmul.f32 %v6444, %v6505
        %v6522 = vmul.f32 %v6446, %v6506
        %v6523 = vmul.f32 %v6448, %v6507
        %v6524 = vmul.f32 %v6450, %v6508
        %v6525 = vmul.f32 %v6452, %v6509
        %v6526 = vmul.f32 %v6454, %v6510
        %v6527 = vmul.f32 %v6456, %v6511
        %v6528 = vmul.f32 %v6458, %v6512
        %v6529 = vmul.f32 %v6460, %v6513
        %v6530 = vmul.f32 %v6462, %v6514
        %v6531 = vmul.f32 %v6464, %v6515
        %v6532 = vmul.f32 %v6466, %v6516
        %v6533 = vmul.f32 %v6468, %v6517
        %v6534 = vmul.f32 %v6470, %v6518
        %v6535 = vadd.f32 %v6132, %v6519
        %v6536 = vadd.f32 %v6133, %v6520
        %v6537 = vadd.f32 %v6134, %v6521
        %v6538 = vadd.f32 %v6135, %v6522
        %v6539 = vadd.f32 %v6136, %v6523
        %v6540 = vadd.f32 %v6137, %v6524
        %v6541 = vadd.f32 %v6138, %v6525
        %v6542 = vadd.f32 %v6139, %v6526
        %v6543 = vadd.f32 %v6140, %v6527
        %v6544 = vadd.f32 %v6141, %v6528
        %v6545 = vadd.f32 %v6142, %v6529
        %v6546 = vadd.f32 %v6143, %v6530
        %v6547 = vadd.f32 %v6144, %v6531
        %v6548 = vadd.f32 %v6145, %v6532
        %v6549 = vadd.f32 %v6146, %v6533
        %v6550 = vadd.f32 %v6147, %v6534
        %v6551 = vld [vmem:[%s4953 + $0x20] sm:$0xff]
        %v6552 = vld [vmem:[%s4955 + $0x20] sm:$0xff]
        %6553 = vxpose.xlu0.b32.start [1/16] %v6551, 128
        %6554 = vxpose.xlu0.b32.cont [2/16] 0.0, 128
        %6555 = vxpose.xlu0.b32.cont [3/16] 0.0, 128
        %6556 = vxpose.xlu0.b32.cont [4/16] 0.0, 128
        %6557 = vxpose.xlu0.b32.cont [5/16] 0.0, 128
        %6558 = vxpose.xlu0.b32.cont [6/16] 0.0, 128
        %6559 = vxpose.xlu0.b32.cont [7/16] 0.0, 128
        %6560 = vxpose.xlu0.b32.cont [8/16] 0.0, 128
        %6561 = vxpose.xlu0.b32.cont [9/16] 0.0, 128
        %6562 = vxpose.xlu0.b32.cont [10/16] 0.0, 128
        %6563 = vxpose.xlu0.b32.cont [11/16] 0.0, 128
        %6564 = vxpose.xlu0.b32.cont [12/16] 0.0, 128
        %6565 = vxpose.xlu0.b32.cont [13/16] 0.0, 128
        %6566 = vxpose.xlu0.b32.cont [14/16] 0.0, 128
        %6567 = vxpose.xlu0.b32.cont [15/16] 0.0, 128
        %6568 = vxpose.xlu0.b32.end [16/16] 0.0, 128
        %v6569 = vpop.trf.xlu0
        %v6570 = vpop.trf.xlu0
        %v6571 = vpop.trf.xlu0
        %v6572 = vpop.trf.xlu0
        %v6573 = vpop.trf.xlu0
        %v6574 = vpop.trf.xlu0
        %v6575 = vpop.trf.xlu0
        %v6576 = vpop.trf.xlu0
        %v6577 = vpop.trf.xlu0
        %v6578 = vpop.trf.xlu0
        %v6579 = vpop.trf.xlu0
        %v6580 = vpop.trf.xlu0
        %v6581 = vpop.trf.xlu0
        %v6582 = vpop.trf.xlu0
        %v6583 = vpop.trf.xlu0
        %v6584 = vpop.trf.xlu0
        %v6586 = vsel %vm659, %v6569, 0
        %v6589 = vsel %vm659, %v6570, 0
        %v6592 = vsel %vm659, %v6571, 0
        %v6595 = vsel %vm659, %v6572, 0
        %v6598 = vsel %vm659, %v6573, 0
        %v6601 = vsel %vm659, %v6574, 0
        %v6604 = vsel %vm659, %v6575, 0
        %v6607 = vsel %vm659, %v6576, 0
        %v6610 = vsel %vm659, %v6577, 0
        %v6613 = vsel %vm659, %v6578, 0
        %v6616 = vsel %vm659, %v6579, 0
        %v6619 = vsel %vm659, %v6580, 0
        %v6622 = vsel %vm659, %v6581, 0
        %v6625 = vsel %vm659, %v6582, 0
        %v6628 = vsel %vm659, %v6583, 0
        %v6631 = vsel %vm659, %v6584, 0
        %6633 = vmatprep.subr.mxu0 0.0
        %6634 = vmatpush1.msra.mxu0 %v6552
        %6635 = vmatprep.subr.mxu0 0.0
        %6636 = vmatpush1.msra.mxu0 0.0
        %6637 = vmatprep.subr.mxu0 0.0
        %6638 = vmatpush1.msra.mxu0 0.0
        %6639 = vmatprep.subr.mxu0 0.0
        %6640 = vmatpush1.msra.mxu0 0.0
        %6641 = vmatprep.subr.mxu0 0.0
        %6642 = vmatpush1.msra.mxu0 0.0
        %6643 = vmatprep.subr.mxu0 0.0
        %6644 = vmatpush1.msra.mxu0 0.0
        %6645 = vmatprep.subr.mxu0 0.0
        %6646 = vmatpush1.msra.mxu0 0.0
        %6647 = vmatprep.subr.mxu0 0.0
        %6648 = vmatpush1.msra.mxu0 0.0
        %6649 = vmatprep.subr.mxu0 0.0
        %6650 = vmatpush1.msra.mxu0 0.0
        %6651 = vmatprep.subr.mxu0 0.0
        %6652 = vmatpush1.msra.mxu0 0.0
        %6653 = vmatprep.subr.mxu0 0.0
        %6654 = vmatpush1.msra.mxu0 0.0
        %6655 = vmatprep.subr.mxu0 0.0
        %6656 = vmatpush1.msra.mxu0 0.0
        %6657 = vmatprep.subr.mxu0 0.0
        %6658 = vmatpush1.msra.mxu0 0.0
        %6659 = vmatprep.subr.mxu0 0.0
        %6660 = vmatpush1.msra.mxu0 0.0
        %6661 = vmatprep.subr.mxu0 0.0
        %6662 = vmatpush1.msra.mxu0 0.0
        %6663 = vmatprep.subr.mxu0 0.0
        %6664 = vmatpush1.msra.mxu0 0.0
        %6665 = vmatprep.subr.mxu0 0.0
        %6666 = vmatpush1.msra.mxu0 0.0
        %6667 = vmatprep.subr.mxu0 0.0
        %6668 = vmatpush1.msra.mxu0 0.0
        %6669 = vmatprep.subr.mxu0 0.0
        %6670 = vmatpush1.msra.mxu0 0.0
        %6671 = vmatprep.subr.mxu0 0.0
        %6672 = vmatpush1.msra.mxu0 0.0
        %6673 = vmatprep.subr.mxu0 0.0
        %6674 = vmatpush1.msra.mxu0 0.0
        %6675 = vmatprep.subr.mxu0 0.0
        %6676 = vmatpush1.msra.mxu0 0.0
        %6677 = vmatprep.subr.mxu0 0.0
        %6678 = vmatpush1.msra.mxu0 0.0
        %6679 = vmatprep.subr.mxu0 0.0
        %6680 = vmatpush1.msra.mxu0 0.0
        %6681 = vmatprep.subr.mxu0 0.0
        %6682 = vmatpush1.msra.mxu0 0.0
        %6683 = vmatprep.subr.mxu0 0.0
        %6684 = vmatpush1.msra.mxu0 0.0
        %6685 = vmatprep.subr.mxu0 0.0
        %6686 = vmatpush1.msra.mxu0 0.0
        %6687 = vmatprep.subr.mxu0 0.0
        %6688 = vmatpush1.msra.mxu0 0.0
        %6689 = vmatprep.subr.mxu0 0.0
        %6690 = vmatpush1.msra.mxu0 0.0
        %6691 = vmatprep.subr.mxu0 0.0
        %6692 = vmatpush1.msra.mxu0 0.0
        %6693 = vmatprep.subr.mxu0 0.0
        %6694 = vmatpush1.msra.mxu0 0.0
        %6695 = vmatprep.subr.mxu0 0.0
        %6696 = vmatpush1.msra.mxu0 0.0
        %6697 = vmatprep.mubr.f32.mxu0 0.0
        %6698 = vmatmul.mubr.f32.gmra.mrb[0].mxu0 %v6586
        %v6699 = vpop.f32.mrb[0].mxu0
        %v6700 = vadd.f32 0.0, %v6699
        %v6701 = vpop.f32.mrb[0].mxu0
        %6702 = vmatprep.mubr.f32.mxu0 0.0
        %6703 = vmatmul.mubr.f32.gmra.mrb[0].mxu0 %v6589
        %v6704 = vpop.f32.mrb[0].mxu0
        %v6705 = vadd.f32 0.0, %v6704
        %v6706 = vpop.f32.mrb[0].mxu0
        %6707 = vmatprep.mubr.f32.mxu0 0.0
        %6708 = vmatmul.mubr.f32.gmra.mrb[0].mxu0 %v6592
        %v6709 = vpop.f32.mrb[0].mxu0
        %v6710 = vadd.f32 0.0, %v6709
        %v6711 = vpop.f32.mrb[0].mxu0
        %6712 = vmatprep.mubr.f32.mxu0 0.0
        %6713 = vmatmul.mubr.f32.gmra.mrb[0].mxu0 %v6595
        %v6714 = vpop.f32.mrb[0].mxu0
        %v6715 = vadd.f32 0.0, %v6714
        %v6716 = vpop.f32.mrb[0].mxu0
        %6717 = vmatprep.mubr.f32.mxu0 0.0
        %6718 = vmatmul.mubr.f32.gmra.mrb[0].mxu0 %v6598
        %v6719 = vpop.f32.mrb[0].mxu0
        %v6720 = vadd.f32 0.0, %v6719
        %v6721 = vpop.f32.mrb[0].mxu0
        %6722 = vmatprep.mubr.f32.mxu0 0.0
        %6723 = vmatmul.mubr.f32.gmra.mrb[0].mxu0 %v6601
        %v6724 = vpop.f32.mrb[0].mxu0
        %v6725 = vadd.f32 0.0, %v6724
        %v6726 = vpop.f32.mrb[0].mxu0
        %6727 = vmatprep.mubr.f32.mxu0 0.0
        %6728 = vmatmul.mubr.f32.gmra.mrb[0].mxu0 %v6604
        %v6729 = vpop.f32.mrb[0].mxu0
        %v6730 = vadd.f32 0.0, %v6729
        %v6731 = vpop.f32.mrb[0].mxu0
        %6732 = vmatprep.mubr.f32.mxu0 0.0
        %6733 = vmatmul.mubr.f32.gmra.mrb[0].mxu0 %v6607
        %v6734 = vpop.f32.mrb[0].mxu0
        %v6735 = vadd.f32 0.0, %v6734
        %v6736 = vpop.f32.mrb[0].mxu0
        %6737 = vmatprep.mubr.f32.mxu0 0.0
        %6738 = vmatmul.mubr.f32.gmra.mrb[0].mxu0 %v6610
        %v6739 = vpop.f32.mrb[0].mxu0
        %v6740 = vadd.f32 0.0, %v6739
        %v6741 = vpop.f32.mrb[0].mxu0
        %6742 = vmatprep.mubr.f32.mxu0 0.0
        %6743 = vmatmul.mubr.f32.gmra.mrb[0].mxu0 %v6613
        %v6744 = vpop.f32.mrb[0].mxu0
        %v6745 = vadd.f32 0.0, %v6744
        %v6746 = vpop.f32.mrb[0].mxu0
        %6747 = vmatprep.mubr.f32.mxu0 0.0
        %6748 = vmatmul.mubr.f32.gmra.mrb[0].mxu0 %v6616
        %v6749 = vpop.f32.mrb[0].mxu0
        %v6750 = vadd.f32 0.0, %v6749
        %v6751 = vpop.f32.mrb[0].mxu0
        %6752 = vmatprep.mubr.f32.mxu0 0.0
        %6753 = vmatmul.mubr.f32.gmra.mrb[0].mxu0 %v6619
        %v6754 = vpop.f32.mrb[0].mxu0
        %v6755 = vadd.f32 0.0, %v6754
        %v6756 = vpop.f32.mrb[0].mxu0
        %6757 = vmatprep.mubr.f32.mxu0 0.0
        %6758 = vmatmul.mubr.f32.gmra.mrb[0].mxu0 %v6622
        %v6759 = vpop.f32.mrb[0].mxu0
        %v6760 = vadd.f32 0.0, %v6759
        %v6761 = vpop.f32.mrb[0].mxu0
        %6762 = vmatprep.mubr.f32.mxu0 0.0
        %6763 = vmatmul.mubr.f32.gmra.mrb[0].mxu0 %v6625
        %v6764 = vpop.f32.mrb[0].mxu0
        %v6765 = vadd.f32 0.0, %v6764
        %v6766 = vpop.f32.mrb[0].mxu0
        %6767 = vmatprep.mubr.f32.mxu0 0.0
        %6768 = vmatmul.mubr.f32.gmra.mrb[0].mxu0 %v6628
        %v6769 = vpop.f32.mrb[0].mxu0
        %v6770 = vadd.f32 0.0, %v6769
        %v6771 = vpop.f32.mrb[0].mxu0
        %6772 = vmatprep.mubr.f32.mxu0 0.0
        %6773 = vmatmul.mubr.f32.gmra.mrb[0].mxu0 %v6631
        %v6774 = vpop.f32.mrb[0].mxu0
        %v6775 = vadd.f32 0.0, %v6774
        %v6776 = vpop.f32.mrb[0].mxu0
        %6777 = vdwg.mxu0
        %v6778 = vand.u32 2147483647, %v6700
        %v6779 = vand.u32 2147483647, %v6705
        %v6780 = vand.u32 2147483647, %v6710
        %v6781 = vand.u32 2147483647, %v6715
        %v6782 = vand.u32 2147483647, %v6720
        %v6783 = vand.u32 2147483647, %v6725
        %v6784 = vand.u32 2147483647, %v6730
        %v6785 = vand.u32 2147483647, %v6735
        %v6786 = vand.u32 2147483647, %v6740
        %v6787 = vand.u32 2147483647, %v6745
        %v6788 = vand.u32 2147483647, %v6750
        %v6789 = vand.u32 2147483647, %v6755
        %v6790 = vand.u32 2147483647, %v6760
        %v6791 = vand.u32 2147483647, %v6765
        %v6792 = vand.u32 2147483647, %v6770
        %v6793 = vand.u32 2147483647, %v6775
        %6794 = vmax.xlane.f32.xlu0 %v6778
        %v6795 = vpop.xlane.xlu0 %6794
        %6796 = vmax.xlane.f32.xlu0 %v6779
        %v6797 = vpop.xlane.xlu0 %6796
        %6798 = vmax.xlane.f32.xlu0 %v6780
        %v6799 = vpop.xlane.xlu0 %6798
        %6800 = vmax.xlane.f32.xlu0 %v6781
        %v6801 = vpop.xlane.xlu0 %6800
        %6802 = vmax.xlane.f32.xlu0 %v6782
        %v6803 = vpop.xlane.xlu0 %6802
        %6804 = vmax.xlane.f32.xlu0 %v6783
        %v6805 = vpop.xlane.xlu0 %6804
        %6806 = vmax.xlane.f32.xlu0 %v6784
        %v6807 = vpop.xlane.xlu0 %6806
        %6808 = vmax.xlane.f32.xlu0 %v6785
        %v6809 = vpop.xlane.xlu0 %6808
        %6810 = vmax.xlane.f32.xlu0 %v6786
        %v6811 = vpop.xlane.xlu0 %6810
        %6812 = vmax.xlane.f32.xlu0 %v6787
        %v6813 = vpop.xlane.xlu0 %6812
        %6814 = vmax.xlane.f32.xlu0 %v6788
        %v6815 = vpop.xlane.xlu0 %6814
        %6816 = vmax.xlane.f32.xlu0 %v6789
        %v6817 = vpop.xlane.xlu0 %6816
        %6818 = vmax.xlane.f32.xlu0 %v6790
        %v6819 = vpop.xlane.xlu0 %6818
        %6820 = vmax.xlane.f32.xlu0 %v6791
        %v6821 = vpop.xlane.xlu0 %6820
        %6822 = vmax.xlane.f32.xlu0 %v6792
        %v6823 = vpop.xlane.xlu0 %6822
        %6824 = vmax.xlane.f32.xlu0 %v6793
        %v6825 = vpop.xlane.xlu0 %6824
        %v6826 = vsub.f32 %v6778, %v6795
        %v6827 = vsub.f32 %v6779, %v6797
        %v6828 = vsub.f32 %v6780, %v6799
        %v6829 = vsub.f32 %v6781, %v6801
        %v6830 = vsub.f32 %v6782, %v6803
        %v6831 = vsub.f32 %v6783, %v6805
        %v6832 = vsub.f32 %v6784, %v6807
        %v6833 = vsub.f32 %v6785, %v6809
        %v6834 = vsub.f32 %v6786, %v6811
        %v6835 = vsub.f32 %v6787, %v6813
        %v6836 = vsub.f32 %v6788, %v6815
        %v6837 = vsub.f32 %v6789, %v6817
        %v6838 = vsub.f32 %v6790, %v6819
        %v6839 = vsub.f32 %v6791, %v6821
        %v6840 = vsub.f32 %v6792, %v6823
        %v6841 = vsub.f32 %v6793, %v6825
        %v6842 = vmul.f32 %v6826, 1.442695
        %v6843 = vpow.pop %v6842
        %v6844 = vmul.f32 %v6827, 1.442695
        %v6845 = vpow.pop %v6844
        %v6846 = vmul.f32 %v6828, 1.442695
        %v6847 = vpow.pop %v6846
        %v6848 = vmul.f32 %v6829, 1.442695
        %v6849 = vpow.pop %v6848
        %v6850 = vmul.f32 %v6830, 1.442695
        %v6851 = vpow.pop %v6850
        %v6852 = vmul.f32 %v6831, 1.442695
        %v6853 = vpow.pop %v6852
        %v6854 = vmul.f32 %v6832, 1.442695
        %v6855 = vpow.pop %v6854
        %v6856 = vmul.f32 %v6833, 1.442695
        %v6857 = vpow.pop %v6856
        %v6858 = vmul.f32 %v6834, 1.442695
        %v6859 = vpow.pop %v6858
        %v6860 = vmul.f32 %v6835, 1.442695
        %v6861 = vpow.pop %v6860
        %v6862 = vmul.f32 %v6836, 1.442695
        %v6863 = vpow.pop %v6862
        %v6864 = vmul.f32 %v6837, 1.442695
        %v6865 = vpow.pop %v6864
        %v6866 = vmul.f32 %v6838, 1.442695
        %v6867 = vpow.pop %v6866
        %v6868 = vmul.f32 %v6839, 1.442695
        %v6869 = vpow.pop %v6868
        %v6870 = vmul.f32 %v6840, 1.442695
        %v6871 = vpow.pop %v6870
        %v6872 = vmul.f32 %v6841, 1.442695
        %v6873 = vpow.pop %v6872
        %6874 = vadd.xlane.f32.xlu0 %v6843
        %v6875 = vpop.xlane.xlu0 %6874
        %6876 = vadd.xlane.f32.xlu0 %v6845
        %v6877 = vpop.xlane.xlu0 %6876
        %6878 = vadd.xlane.f32.xlu0 %v6847
        %v6879 = vpop.xlane.xlu0 %6878
        %6880 = vadd.xlane.f32.xlu0 %v6849
        %v6881 = vpop.xlane.xlu0 %6880
        %6882 = vadd.xlane.f32.xlu0 %v6851
        %v6883 = vpop.xlane.xlu0 %6882
        %6884 = vadd.xlane.f32.xlu0 %v6853
        %v6885 = vpop.xlane.xlu0 %6884
        %6886 = vadd.xlane.f32.xlu0 %v6855
        %v6887 = vpop.xlane.xlu0 %6886
        %6888 = vadd.xlane.f32.xlu0 %v6857
        %v6889 = vpop.xlane.xlu0 %6888
        %6890 = vadd.xlane.f32.xlu0 %v6859
        %v6891 = vpop.xlane.xlu0 %6890
        %6892 = vadd.xlane.f32.xlu0 %v6861
        %v6893 = vpop.xlane.xlu0 %6892
        %6894 = vadd.xlane.f32.xlu0 %v6863
        %v6895 = vpop.xlane.xlu0 %6894
        %6896 = vadd.xlane.f32.xlu0 %v6865
        %v6897 = vpop.xlane.xlu0 %6896
        %6898 = vadd.xlane.f32.xlu0 %v6867
        %v6899 = vpop.xlane.xlu0 %6898
        %6900 = vadd.xlane.f32.xlu0 %v6869
        %v6901 = vpop.xlane.xlu0 %6900
        %6902 = vadd.xlane.f32.xlu0 %v6871
        %v6903 = vpop.xlane.xlu0 %6902
        %6904 = vadd.xlane.f32.xlu0 %v6873
        %v6905 = vpop.xlane.xlu0 %6904
        %v6906 = vrcp.pop %v6875
        %v6907 = vrcp.pop %v6877
        %v6908 = vrcp.pop %v6879
        %v6909 = vrcp.pop %v6881
        %v6910 = vrcp.pop %v6883
        %v6911 = vrcp.pop %v6885
        %v6912 = vrcp.pop %v6887
        %v6913 = vrcp.pop %v6889
        %v6914 = vrcp.pop %v6891
        %v6915 = vrcp.pop %v6893
        %v6916 = vrcp.pop %v6895
        %v6917 = vrcp.pop %v6897
        %v6918 = vrcp.pop %v6899
        %v6919 = vrcp.pop %v6901
        %v6920 = vrcp.pop %v6903
        %v6921 = vrcp.pop %v6905
        %v6922 = vmul.f32 %v6843, %v6906
        %v6923 = vmul.f32 %v6845, %v6907
        %v6924 = vmul.f32 %v6847, %v6908
        %v6925 = vmul.f32 %v6849, %v6909
        %v6926 = vmul.f32 %v6851, %v6910
        %v6927 = vmul.f32 %v6853, %v6911
        %v6928 = vmul.f32 %v6855, %v6912
        %v6929 = vmul.f32 %v6857, %v6913
        %v6930 = vmul.f32 %v6859, %v6914
        %v6931 = vmul.f32 %v6861, %v6915
        %v6932 = vmul.f32 %v6863, %v6916
        %v6933 = vmul.f32 %v6865, %v6917
        %v6934 = vmul.f32 %v6867, %v6918
        %v6935 = vmul.f32 %v6869, %v6919
        %v6936 = vmul.f32 %v6871, %v6920
        %v6937 = vmul.f32 %v6873, %v6921
        %v6938 = vadd.f32 %v6535, %v6922
        %v6939 = vadd.f32 %v6536, %v6923
        %v6940 = vadd.f32 %v6537, %v6924
        %v6941 = vadd.f32 %v6538, %v6925
        %v6942 = vadd.f32 %v6539, %v6926
        %v6943 = vadd.f32 %v6540, %v6927
        %v6944 = vadd.f32 %v6541, %v6928
        %v6945 = vadd.f32 %v6542, %v6929
        %v6946 = vadd.f32 %v6543, %v6930
        %v6947 = vadd.f32 %v6544, %v6931
        %v6948 = vadd.f32 %v6545, %v6932
        %v6949 = vadd.f32 %v6546, %v6933
        %v6950 = vadd.f32 %v6547, %v6934
        %v6951 = vadd.f32 %v6548, %v6935
        %v6952 = vadd.f32 %v6549, %v6936
        %v6953 = vadd.f32 %v6550, %v6937
        %v6954 = vld [vmem:[%s4953 + $0x28] sm:$0xff]
        %v6955 = vld [vmem:[%s4955 + $0x28] sm:$0xff]
        %6956 = vxpose.xlu0.b32.start [1/16] %v6954, 128
        %6957 = vxpose.xlu0.b32.cont [2/16] 0.0, 128
        %6958 = vxpose.xlu0.b32.cont [3/16] 0.0, 128
        %6959 = vxpose.xlu0.b32.cont [4/16] 0.0, 128
        %6960 = vxpose.xlu0.b32.cont [5/16] 0.0, 128
        %6961 = vxpose.xlu0.b32.cont [6/16] 0.0, 128
        %6962 = vxpose.xlu0.b32.cont [7/16] 0.0, 128
        %6963 = vxpose.xlu0.b32.cont [8/16] 0.0, 128
        %6964 = vxpose.xlu0.b32.cont [9/16] 0.0, 128
        %6965 = vxpose.xlu0.b32.cont [10/16] 0.0, 128
        %6966 = vxpose.xlu0.b32.cont [11/16] 0.0, 128
        %6967 = vxpose.xlu0.b32.cont [12/16] 0.0, 128
        %6968 = vxpose.xlu0.b32.cont [13/16] 0.0, 128
        %6969 = vxpose.xlu0.b32.cont [14/16] 0.0, 128
        %6970 = vxpose.xlu0.b32.cont [15/16] 0.0, 128
        %6971 = vxpose.xlu0.b32.end [16/16] 0.0, 128
        %v6972 = vpop.trf.xlu0
        %v6973 = vpop.trf.xlu0
        %v6974 = vpop.trf.xlu0
        %v6975 = vpop.trf.xlu0
        %v6976 = vpop.trf.xlu0
        %v6977 = vpop.trf.xlu0
        %v6978 = vpop.trf.xlu0
        %v6979 = vpop.trf.xlu0
        %v6980 = vpop.trf.xlu0
        %v6981 = vpop.trf.xlu0
        %v6982 = vpop.trf.xlu0
        %v6983 = vpop.trf.xlu0
        %v6984 = vpop.trf.xlu0
        %v6985 = vpop.trf.xlu0
        %v6986 = vpop.trf.xlu0
        %v6987 = vpop.trf.xlu0
        %v6989 = vsel %vm659, %v6972, 0
        %v6992 = vsel %vm659, %v6973, 0
        %v6995 = vsel %vm659, %v6974, 0
        %v6998 = vsel %vm659, %v6975, 0
        %v7001 = vsel %vm659, %v6976, 0
        %v7004 = vsel %vm659, %v6977, 0
        %v7007 = vsel %vm659, %v6978, 0
        %v7010 = vsel %vm659, %v6979, 0
        %v7013 = vsel %vm659, %v6980, 0
        %v7016 = vsel %vm659, %v6981, 0
        %v7019 = vsel %vm659, %v6982, 0
        %v7022 = vsel %vm659, %v6983, 0
        %v7025 = vsel %vm659, %v6984, 0
        %v7028 = vsel %vm659, %v6985, 0
        %v7031 = vsel %vm659, %v6986, 0
        %v7034 = vsel %vm659, %v6987, 0
        %7036 = vmatprep.subr.mxu0 0.0
        %7037 = vmatpush1.msra.mxu0 %v6955
        %7038 = vmatprep.subr.mxu0 0.0
        %7039 = vmatpush1.msra.mxu0 0.0
        %7040 = vmatprep.subr.mxu0 0.0
        %7041 = vmatpush1.msra.mxu0 0.0
        %7042 = vmatprep.subr.mxu0 0.0
        %7043 = vmatpush1.msra.mxu0 0.0
        %7044 = vmatprep.subr.mxu0 0.0
        %7045 = vmatpush1.msra.mxu0 0.0
        %7046 = vmatprep.subr.mxu0 0.0
        %7047 = vmatpush1.msra.mxu0 0.0
        %7048 = vmatprep.subr.mxu0 0.0
        %7049 = vmatpush1.msra.mxu0 0.0
        %7050 = vmatprep.subr.mxu0 0.0
        %7051 = vmatpush1.msra.mxu0 0.0
        %7052 = vmatprep.subr.mxu0 0.0
        %7053 = vmatpush1.msra.mxu0 0.0
        %7054 = vmatprep.subr.mxu0 0.0
        %7055 = vmatpush1.msra.mxu0 0.0
        %7056 = vmatprep.subr.mxu0 0.0
        %7057 = vmatpush1.msra.mxu0 0.0
        %7058 = vmatprep.subr.mxu0 0.0
        %7059 = vmatpush1.msra.mxu0 0.0
        %7060 = vmatprep.subr.mxu0 0.0
        %7061 = vmatpush1.msra.mxu0 0.0
        %7062 = vmatprep.subr.mxu0 0.0
        %7063 = vmatpush1.msra.mxu0 0.0
        %7064 = vmatprep.subr.mxu0 0.0
        %7065 = vmatpush1.msra.mxu0 0.0
        %7066 = vmatprep.subr.mxu0 0.0
        %7067 = vmatpush1.msra.mxu0 0.0
        %7068 = vmatprep.subr.mxu0 0.0
        %7069 = vmatpush1.msra.mxu0 0.0
        %7070 = vmatprep.subr.mxu0 0.0
        %7071 = vmatpush1.msra.mxu0 0.0
        %7072 = vmatprep.subr.mxu0 0.0
        %7073 = vmatpush1.msra.mxu0 0.0
        %7074 = vmatprep.subr.mxu0 0.0
        %7075 = vmatpush1.msra.mxu0 0.0
        %7076 = vmatprep.subr.mxu0 0.0
        %7077 = vmatpush1.msra.mxu0 0.0
        %7078 = vmatprep.subr.mxu0 0.0
        %7079 = vmatpush1.msra.mxu0 0.0
        %7080 = vmatprep.subr.mxu0 0.0
        %7081 = vmatpush1.msra.mxu0 0.0
        %7082 = vmatprep.subr.mxu0 0.0
        %7083 = vmatpush1.msra.mxu0 0.0
        %7084 = vmatprep.subr.mxu0 0.0
        %7085 = vmatpush1.msra.mxu0 0.0
        %7086 = vmatprep.subr.mxu0 0.0
        %7087 = vmatpush1.msra.mxu0 0.0
        %7088 = vmatprep.subr.mxu0 0.0
        %7089 = vmatpush1.msra.mxu0 0.0
        %7090 = vmatprep.subr.mxu0 0.0
        %7091 = vmatpush1.msra.mxu0 0.0
        %7092 = vmatprep.subr.mxu0 0.0
        %7093 = vmatpush1.msra.mxu0 0.0
        %7094 = vmatprep.subr.mxu0 0.0
        %7095 = vmatpush1.msra.mxu0 0.0
        %7096 = vmatprep.subr.mxu0 0.0
        %7097 = vmatpush1.msra.mxu0 0.0
        %7098 = vmatprep.subr.mxu0 0.0
        %7099 = vmatpush1.msra.mxu0 0.0
        %7100 = vmatprep.mubr.f32.mxu0 0.0
        %7101 = vmatmul.mubr.f32.gmra.mrb[0].mxu0 %v6989
        %v7102 = vpop.f32.mrb[0].mxu0
        %v7103 = vadd.f32 0.0, %v7102
        %v7104 = vpop.f32.mrb[0].mxu0
        %7105 = vmatprep.mubr.f32.mxu0 0.0
        %7106 = vmatmul.mubr.f32.gmra.mrb[0].mxu0 %v6992
        %v7107 = vpop.f32.mrb[0].mxu0
        %v7108 = vadd.f32 0.0, %v7107
        %v7109 = vpop.f32.mrb[0].mxu0
        %7110 = vmatprep.mubr.f32.mxu0 0.0
        %7111 = vmatmul.mubr.f32.gmra.mrb[0].mxu0 %v6995
        %v7112 = vpop.f32.mrb[0].mxu0
        %v7113 = vadd.f32 0.0, %v7112
        %v7114 = vpop.f32.mrb[0].mxu0
        %7115 = vmatprep.mubr.f32.mxu0 0.0
        %7116 = vmatmul.mubr.f32.gmra.mrb[0].mxu0 %v6998
        %v7117 = vpop.f32.mrb[0].mxu0
        %v7118 = vadd.f32 0.0, %v7117
        %v7119 = vpop.f32.mrb[0].mxu0
        %7120 = vmatprep.mubr.f32.mxu0 0.0
        %7121 = vmatmul.mubr.f32.gmra.mrb[0].mxu0 %v7001
        %v7122 = vpop.f32.mrb[0].mxu0
        %v7123 = vadd.f32 0.0, %v7122
        %v7124 = vpop.f32.mrb[0].mxu0
        %7125 = vmatprep.mubr.f32.mxu0 0.0
        %7126 = vmatmul.mubr.f32.gmra.mrb[0].mxu0 %v7004
        %v7127 = vpop.f32.mrb[0].mxu0
        %v7128 = vadd.f32 0.0, %v7127
        %v7129 = vpop.f32.mrb[0].mxu0
        %7130 = vmatprep.mubr.f32.mxu0 0.0
        %7131 = vmatmul.mubr.f32.gmra.mrb[0].mxu0 %v7007
        %v7132 = vpop.f32.mrb[0].mxu0
        %v7133 = vadd.f32 0.0, %v7132
        %v7134 = vpop.f32.mrb[0].mxu0
        %7135 = vmatprep.mubr.f32.mxu0 0.0
        %7136 = vmatmul.mubr.f32.gmra.mrb[0].mxu0 %v7010
        %v7137 = vpop.f32.mrb[0].mxu0
        %v7138 = vadd.f32 0.0, %v7137
        %v7139 = vpop.f32.mrb[0].mxu0
        %7140 = vmatprep.mubr.f32.mxu0 0.0
        %7141 = vmatmul.mubr.f32.gmra.mrb[0].mxu0 %v7013
        %v7142 = vpop.f32.mrb[0].mxu0
        %v7143 = vadd.f32 0.0, %v7142
        %v7144 = vpop.f32.mrb[0].mxu0
        %7145 = vmatprep.mubr.f32.mxu0 0.0
        %7146 = vmatmul.mubr.f32.gmra.mrb[0].mxu0 %v7016
        %v7147 = vpop.f32.mrb[0].mxu0
        %v7148 = vadd.f32 0.0, %v7147
        %v7149 = vpop.f32.mrb[0].mxu0
        %7150 = vmatprep.mubr.f32.mxu0 0.0
        %7151 = vmatmul.mubr.f32.gmra.mrb[0].mxu0 %v7019
        %v7152 = vpop.f32.mrb[0].mxu0
        %v7153 = vadd.f32 0.0, %v7152
        %v7154 = vpop.f32.mrb[0].mxu0
        %7155 = vmatprep.mubr.f32.mxu0 0.0
        %7156 = vmatmul.mubr.f32.gmra.mrb[0].mxu0 %v7022
        %v7157 = vpop.f32.mrb[0].mxu0
        %v7158 = vadd.f32 0.0, %v7157
        %v7159 = vpop.f32.mrb[0].mxu0
        %7160 = vmatprep.mubr.f32.mxu0 0.0
        %7161 = vmatmul.mubr.f32.gmra.mrb[0].mxu0 %v7025
        %v7162 = vpop.f32.mrb[0].mxu0
        %v7163 = vadd.f32 0.0, %v7162
        %v7164 = vpop.f32.mrb[0].mxu0
        %7165 = vmatprep.mubr.f32.mxu0 0.0
        %7166 = vmatmul.mubr.f32.gmra.mrb[0].mxu0 %v7028
        %v7167 = vpop.f32.mrb[0].mxu0
        %v7168 = vadd.f32 0.0, %v7167
        %v7169 = vpop.f32.mrb[0].mxu0
        %7170 = vmatprep.mubr.f32.mxu0 0.0
        %7171 = vmatmul.mubr.f32.gmra.mrb[0].mxu0 %v7031
        %v7172 = vpop.f32.mrb[0].mxu0
        %v7173 = vadd.f32 0.0, %v7172
        %v7174 = vpop.f32.mrb[0].mxu0
        %7175 = vmatprep.mubr.f32.mxu0 0.0
        %7176 = vmatmul.mubr.f32.gmra.mrb[0].mxu0 %v7034
        %v7177 = vpop.f32.mrb[0].mxu0
        %v7178 = vadd.f32 0.0, %v7177
        %v7179 = vpop.f32.mrb[0].mxu0
        %7180 = vdwg.mxu0
        %v7181 = vand.u32 2147483647, %v7103
        %v7182 = vand.u32 2147483647, %v7108
        %v7183 = vand.u32 2147483647, %v7113
        %v7184 = vand.u32 2147483647, %v7118
        %v7185 = vand.u32 2147483647, %v7123
        %v7186 = vand.u32 2147483647, %v7128
        %v7187 = vand.u32 2147483647, %v7133
        %v7188 = vand.u32 2147483647, %v7138
        %v7189 = vand.u32 2147483647, %v7143
        %v7190 = vand.u32 2147483647, %v7148
        %v7191 = vand.u32 2147483647, %v7153
        %v7192 = vand.u32 2147483647, %v7158
        %v7193 = vand.u32 2147483647, %v7163
        %v7194 = vand.u32 2147483647, %v7168
        %v7195 = vand.u32 2147483647, %v7173
        %v7196 = vand.u32 2147483647, %v7178
        %7197 = vmax.xlane.f32.xlu0 %v7181
        %v7198 = vpop.xlane.xlu0 %7197
        %7199 = vmax.xlane.f32.xlu0 %v7182
        %v7200 = vpop.xlane.xlu0 %7199
        %7201 = vmax.xlane.f32.xlu0 %v7183
        %v7202 = vpop.xlane.xlu0 %7201
        %7203 = vmax.xlane.f32.xlu0 %v7184
        %v7204 = vpop.xlane.xlu0 %7203
        %7205 = vmax.xlane.f32.xlu0 %v7185
        %v7206 = vpop.xlane.xlu0 %7205
        %7207 = vmax.xlane.f32.xlu0 %v7186
        %v7208 = vpop.xlane.xlu0 %7207
        %7209 = vmax.xlane.f32.xlu0 %v7187
        %v7210 = vpop.xlane.xlu0 %7209
        %7211 = vmax.xlane.f32.xlu0 %v7188
        %v7212 = vpop.xlane.xlu0 %7211
        %7213 = vmax.xlane.f32.xlu0 %v7189
        %v7214 = vpop.xlane.xlu0 %7213
        %7215 = vmax.xlane.f32.xlu0 %v7190
        %v7216 = vpop.xlane.xlu0 %7215
        %7217 = vmax.xlane.f32.xlu0 %v7191
        %v7218 = vpop.xlane.xlu0 %7217
        %7219 = vmax.xlane.f32.xlu0 %v7192
        %v7220 = vpop.xlane.xlu0 %7219
        %7221 = vmax.xlane.f32.xlu0 %v7193
        %v7222 = vpop.xlane.xlu0 %7221
        %7223 = vmax.xlane.f32.xlu0 %v7194
        %v7224 = vpop.xlane.xlu0 %7223
        %7225 = vmax.xlane.f32.xlu0 %v7195
        %v7226 = vpop.xlane.xlu0 %7225
        %7227 = vmax.xlane.f32.xlu0 %v7196
        %v7228 = vpop.xlane.xlu0 %7227
        %v7229 = vsub.f32 %v7181, %v7198
        %v7230 = vsub.f32 %v7182, %v7200
        %v7231 = vsub.f32 %v7183, %v7202
        %v7232 = vsub.f32 %v7184, %v7204
        %v7233 = vsub.f32 %v7185, %v7206
        %v7234 = vsub.f32 %v7186, %v7208
        %v7235 = vsub.f32 %v7187, %v7210
        %v7236 = vsub.f32 %v7188, %v7212
        %v7237 = vsub.f32 %v7189, %v7214
        %v7238 = vsub.f32 %v7190, %v7216
        %v7239 = vsub.f32 %v7191, %v7218
        %v7240 = vsub.f32 %v7192, %v7220
        %v7241 = vsub.f32 %v7193, %v7222
        %v7242 = vsub.f32 %v7194, %v7224
        %v7243 = vsub.f32 %v7195, %v7226
        %v7244 = vsub.f32 %v7196, %v7228
        %v7245 = vmul.f32 %v7229, 1.442695
        %v7246 = vpow.pop %v7245
        %v7247 = vmul.f32 %v7230, 1.442695
        %v7248 = vpow.pop %v7247
        %v7249 = vmul.f32 %v7231, 1.442695
        %v7250 = vpow.pop %v7249
        %v7251 = vmul.f32 %v7232, 1.442695
        %v7252 = vpow.pop %v7251
        %v7253 = vmul.f32 %v7233, 1.442695
        %v7254 = vpow.pop %v7253
        %v7255 = vmul.f32 %v7234, 1.442695
        %v7256 = vpow.pop %v7255
        %v7257 = vmul.f32 %v7235, 1.442695
        %v7258 = vpow.pop %v7257
        %v7259 = vmul.f32 %v7236, 1.442695
        %v7260 = vpow.pop %v7259
        %v7261 = vmul.f32 %v7237, 1.442695
        %v7262 = vpow.pop %v7261
        %v7263 = vmul.f32 %v7238, 1.442695
        %v7264 = vpow.pop %v7263
        %v7265 = vmul.f32 %v7239, 1.442695
        %v7266 = vpow.pop %v7265
        %v7267 = vmul.f32 %v7240, 1.442695
        %v7268 = vpow.pop %v7267
        %v7269 = vmul.f32 %v7241, 1.442695
        %v7270 = vpow.pop %v7269
        %v7271 = vmul.f32 %v7242, 1.442695
        %v7272 = vpow.pop %v7271
        %v7273 = vmul.f32 %v7243, 1.442695
        %v7274 = vpow.pop %v7273
        %v7275 = vmul.f32 %v7244, 1.442695
        %v7276 = vpow.pop %v7275
        %7277 = vadd.xlane.f32.xlu0 %v7246
        %v7278 = vpop.xlane.xlu0 %7277
        %7279 = vadd.xlane.f32.xlu0 %v7248
        %v7280 = vpop.xlane.xlu0 %7279
        %7281 = vadd.xlane.f32.xlu0 %v7250
        %v7282 = vpop.xlane.xlu0 %7281
        %7283 = vadd.xlane.f32.xlu0 %v7252
        %v7284 = vpop.xlane.xlu0 %7283
        %7285 = vadd.xlane.f32.xlu0 %v7254
        %v7286 = vpop.xlane.xlu0 %7285
        %7287 = vadd.xlane.f32.xlu0 %v7256
        %v7288 = vpop.xlane.xlu0 %7287
        %7289 = vadd.xlane.f32.xlu0 %v7258
        %v7290 = vpop.xlane.xlu0 %7289
        %7291 = vadd.xlane.f32.xlu0 %v7260
        %v7292 = vpop.xlane.xlu0 %7291
        %7293 = vadd.xlane.f32.xlu0 %v7262
        %v7294 = vpop.xlane.xlu0 %7293
        %7295 = vadd.xlane.f32.xlu0 %v7264
        %v7296 = vpop.xlane.xlu0 %7295
        %7297 = vadd.xlane.f32.xlu0 %v7266
        %v7298 = vpop.xlane.xlu0 %7297
        %7299 = vadd.xlane.f32.xlu0 %v7268
        %v7300 = vpop.xlane.xlu0 %7299
        %7301 = vadd.xlane.f32.xlu0 %v7270
        %v7302 = vpop.xlane.xlu0 %7301
        %7303 = vadd.xlane.f32.xlu0 %v7272
        %v7304 = vpop.xlane.xlu0 %7303
        %7305 = vadd.xlane.f32.xlu0 %v7274
        %v7306 = vpop.xlane.xlu0 %7305
        %7307 = vadd.xlane.f32.xlu0 %v7276
        %v7308 = vpop.xlane.xlu0 %7307
        %v7309 = vrcp.pop %v7278
        %v7310 = vrcp.pop %v7280
        %v7311 = vrcp.pop %v7282
        %v7312 = vrcp.pop %v7284
        %v7313 = vrcp.pop %v7286
        %v7314 = vrcp.pop %v7288
        %v7315 = vrcp.pop %v7290
        %v7316 = vrcp.pop %v7292
        %v7317 = vrcp.pop %v7294
        %v7318 = vrcp.pop %v7296
        %v7319 = vrcp.pop %v7298
        %v7320 = vrcp.pop %v7300
        %v7321 = vrcp.pop %v7302
        %v7322 = vrcp.pop %v7304
        %v7323 = vrcp.pop %v7306
        %v7324 = vrcp.pop %v7308
        %v7325 = vmul.f32 %v7246, %v7309
        %v7326 = vmul.f32 %v7248, %v7310
        %v7327 = vmul.f32 %v7250, %v7311
        %v7328 = vmul.f32 %v7252, %v7312
        %v7329 = vmul.f32 %v7254, %v7313
        %v7330 = vmul.f32 %v7256, %v7314
        %v7331 = vmul.f32 %v7258, %v7315
        %v7332 = vmul.f32 %v7260, %v7316
        %v7333 = vmul.f32 %v7262, %v7317
        %v7334 = vmul.f32 %v7264, %v7318
        %v7335 = vmul.f32 %v7266, %v7319
        %v7336 = vmul.f32 %v7268, %v7320
        %v7337 = vmul.f32 %v7270, %v7321
        %v7338 = vmul.f32 %v7272, %v7322
        %v7339 = vmul.f32 %v7274, %v7323
        %v7340 = vmul.f32 %v7276, %v7324
        %v7341 = vadd.f32 %v6938, %v7325
        %v7342 = vadd.f32 %v6939, %v7326
        %v7343 = vadd.f32 %v6940, %v7327
        %v7344 = vadd.f32 %v6941, %v7328
        %v7345 = vadd.f32 %v6942, %v7329
        %v7346 = vadd.f32 %v6943, %v7330
        %v7347 = vadd.f32 %v6944, %v7331
        %v7348 = vadd.f32 %v6945, %v7332
        %v7349 = vadd.f32 %v6946, %v7333
        %v7350 = vadd.f32 %v6947, %v7334
        %v7351 = vadd.f32 %v6948, %v7335
        %v7352 = vadd.f32 %v6949, %v7336
        %v7353 = vadd.f32 %v6950, %v7337
        %v7354 = vadd.f32 %v6951, %v7338
        %v7355 = vadd.f32 %v6952, %v7339
        %v7356 = vadd.f32 %v6953, %v7340
        %v7357 = vld [vmem:[%s4953 + $0x30] sm:$0xff]
        %v7358 = vld [vmem:[%s4955 + $0x30] sm:$0xff]
        %7359 = vxpose.xlu0.b32.start [1/16] %v7357, 128
        %7360 = vxpose.xlu0.b32.cont [2/16] 0.0, 128
        %7361 = vxpose.xlu0.b32.cont [3/16] 0.0, 128
        %7362 = vxpose.xlu0.b32.cont [4/16] 0.0, 128
        %7363 = vxpose.xlu0.b32.cont [5/16] 0.0, 128
        %7364 = vxpose.xlu0.b32.cont [6/16] 0.0, 128
        %7365 = vxpose.xlu0.b32.cont [7/16] 0.0, 128
        %7366 = vxpose.xlu0.b32.cont [8/16] 0.0, 128
        %7367 = vxpose.xlu0.b32.cont [9/16] 0.0, 128
        %7368 = vxpose.xlu0.b32.cont [10/16] 0.0, 128
        %7369 = vxpose.xlu0.b32.cont [11/16] 0.0, 128
        %7370 = vxpose.xlu0.b32.cont [12/16] 0.0, 128
        %7371 = vxpose.xlu0.b32.cont [13/16] 0.0, 128
        %7372 = vxpose.xlu0.b32.cont [14/16] 0.0, 128
        %7373 = vxpose.xlu0.b32.cont [15/16] 0.0, 128
        %7374 = vxpose.xlu0.b32.end [16/16] 0.0, 128
        %v7375 = vpop.trf.xlu0
        %v7376 = vpop.trf.xlu0
        %v7377 = vpop.trf.xlu0
        %v7378 = vpop.trf.xlu0
        %v7379 = vpop.trf.xlu0
        %v7380 = vpop.trf.xlu0
        %v7381 = vpop.trf.xlu0
        %v7382 = vpop.trf.xlu0
        %v7383 = vpop.trf.xlu0
        %v7384 = vpop.trf.xlu0
        %v7385 = vpop.trf.xlu0
        %v7386 = vpop.trf.xlu0
        %v7387 = vpop.trf.xlu0
        %v7388 = vpop.trf.xlu0
        %v7389 = vpop.trf.xlu0
        %v7390 = vpop.trf.xlu0
        %v7392 = vsel %vm659, %v7375, 0
        %v7395 = vsel %vm659, %v7376, 0
        %v7398 = vsel %vm659, %v7377, 0
        %v7401 = vsel %vm659, %v7378, 0
        %v7404 = vsel %vm659, %v7379, 0
        %v7407 = vsel %vm659, %v7380, 0
        %v7410 = vsel %vm659, %v7381, 0
        %v7413 = vsel %vm659, %v7382, 0
        %v7416 = vsel %vm659, %v7383, 0
        %v7419 = vsel %vm659, %v7384, 0
        %v7422 = vsel %vm659, %v7385, 0
        %v7425 = vsel %vm659, %v7386, 0
        %v7428 = vsel %vm659, %v7387, 0
        %v7431 = vsel %vm659, %v7388, 0
        %v7434 = vsel %vm659, %v7389, 0
        %v7437 = vsel %vm659, %v7390, 0
        %7439 = vmatprep.subr.mxu0 0.0
        %7440 = vmatpush1.msra.mxu0 %v7358
        %7441 = vmatprep.subr.mxu0 0.0
        %7442 = vmatpush1.msra.mxu0 0.0
        %7443 = vmatprep.subr.mxu0 0.0
        %7444 = vmatpush1.msra.mxu0 0.0
        %7445 = vmatprep.subr.mxu0 0.0
        %7446 = vmatpush1.msra.mxu0 0.0
        %7447 = vmatprep.subr.mxu0 0.0
        %7448 = vmatpush1.msra.mxu0 0.0
        %7449 = vmatprep.subr.mxu0 0.0
        %7450 = vmatpush1.msra.mxu0 0.0
        %7451 = vmatprep.subr.mxu0 0.0
        %7452 = vmatpush1.msra.mxu0 0.0
        %7453 = vmatprep.subr.mxu0 0.0
        %7454 = vmatpush1.msra.mxu0 0.0
        %7455 = vmatprep.subr.mxu0 0.0
        %7456 = vmatpush1.msra.mxu0 0.0
        %7457 = vmatprep.subr.mxu0 0.0
        %7458 = vmatpush1.msra.mxu0 0.0
        %7459 = vmatprep.subr.mxu0 0.0
        %7460 = vmatpush1.msra.mxu0 0.0
        %7461 = vmatprep.subr.mxu0 0.0
        %7462 = vmatpush1.msra.mxu0 0.0
        %7463 = vmatprep.subr.mxu0 0.0
        %7464 = vmatpush1.msra.mxu0 0.0
        %7465 = vmatprep.subr.mxu0 0.0
        %7466 = vmatpush1.msra.mxu0 0.0
        %7467 = vmatprep.subr.mxu0 0.0
        %7468 = vmatpush1.msra.mxu0 0.0
        %7469 = vmatprep.subr.mxu0 0.0
        %7470 = vmatpush1.msra.mxu0 0.0
        %7471 = vmatprep.subr.mxu0 0.0
        %7472 = vmatpush1.msra.mxu0 0.0
        %7473 = vmatprep.subr.mxu0 0.0
        %7474 = vmatpush1.msra.mxu0 0.0
        %7475 = vmatprep.subr.mxu0 0.0
        %7476 = vmatpush1.msra.mxu0 0.0
        %7477 = vmatprep.subr.mxu0 0.0
        %7478 = vmatpush1.msra.mxu0 0.0
        %7479 = vmatprep.subr.mxu0 0.0
        %7480 = vmatpush1.msra.mxu0 0.0
        %7481 = vmatprep.subr.mxu0 0.0
        %7482 = vmatpush1.msra.mxu0 0.0
        %7483 = vmatprep.subr.mxu0 0.0
        %7484 = vmatpush1.msra.mxu0 0.0
        %7485 = vmatprep.subr.mxu0 0.0
        %7486 = vmatpush1.msra.mxu0 0.0
        %7487 = vmatprep.subr.mxu0 0.0
        %7488 = vmatpush1.msra.mxu0 0.0
        %7489 = vmatprep.subr.mxu0 0.0
        %7490 = vmatpush1.msra.mxu0 0.0
        %7491 = vmatprep.subr.mxu0 0.0
        %7492 = vmatpush1.msra.mxu0 0.0
        %7493 = vmatprep.subr.mxu0 0.0
        %7494 = vmatpush1.msra.mxu0 0.0
        %7495 = vmatprep.subr.mxu0 0.0
        %7496 = vmatpush1.msra.mxu0 0.0
        %7497 = vmatprep.subr.mxu0 0.0
        %7498 = vmatpush1.msra.mxu0 0.0
        %7499 = vmatprep.subr.mxu0 0.0
        %7500 = vmatpush1.msra.mxu0 0.0
        %7501 = vmatprep.subr.mxu0 0.0
        %7502 = vmatpush1.msra.mxu0 0.0
        %7503 = vmatprep.mubr.f32.mxu0 0.0
        %7504 = vmatmul.mubr.f32.gmra.mrb[0].mxu0 %v7392
        %v7505 = vpop.f32.mrb[0].mxu0
        %v7506 = vadd.f32 0.0, %v7505
        %v7507 = vpop.f32.mrb[0].mxu0
        %7508 = vmatprep.mubr.f32.mxu0 0.0
        %7509 = vmatmul.mubr.f32.gmra.mrb[0].mxu0 %v7395
        %v7510 = vpop.f32.mrb[0].mxu0
        %v7511 = vadd.f32 0.0, %v7510
        %v7512 = vpop.f32.mrb[0].mxu0
        %7513 = vmatprep.mubr.f32.mxu0 0.0
        %7514 = vmatmul.mubr.f32.gmra.mrb[0].mxu0 %v7398
        %v7515 = vpop.f32.mrb[0].mxu0
        %v7516 = vadd.f32 0.0, %v7515
        %v7517 = vpop.f32.mrb[0].mxu0
        %7518 = vmatprep.mubr.f32.mxu0 0.0
        %7519 = vmatmul.mubr.f32.gmra.mrb[0].mxu0 %v7401
        %v7520 = vpop.f32.mrb[0].mxu0
        %v7521 = vadd.f32 0.0, %v7520
        %v7522 = vpop.f32.mrb[0].mxu0
        %7523 = vmatprep.mubr.f32.mxu0 0.0
        %7524 = vmatmul.mubr.f32.gmra.mrb[0].mxu0 %v7404
        %v7525 = vpop.f32.mrb[0].mxu0
        %v7526 = vadd.f32 0.0, %v7525
        %v7527 = vpop.f32.mrb[0].mxu0
        %7528 = vmatprep.mubr.f32.mxu0 0.0
        %7529 = vmatmul.mubr.f32.gmra.mrb[0].mxu0 %v7407
        %v7530 = vpop.f32.mrb[0].mxu0
        %v7531 = vadd.f32 0.0, %v7530
        %v7532 = vpop.f32.mrb[0].mxu0
        %7533 = vmatprep.mubr.f32.mxu0 0.0
        %7534 = vmatmul.mubr.f32.gmra.mrb[0].mxu0 %v7410
        %v7535 = vpop.f32.mrb[0].mxu0
        %v7536 = vadd.f32 0.0, %v7535
        %v7537 = vpop.f32.mrb[0].mxu0
        %7538 = vmatprep.mubr.f32.mxu0 0.0
        %7539 = vmatmul.mubr.f32.gmra.mrb[0].mxu0 %v7413
        %v7540 = vpop.f32.mrb[0].mxu0
        %v7541 = vadd.f32 0.0, %v7540
        %v7542 = vpop.f32.mrb[0].mxu0
        %7543 = vmatprep.mubr.f32.mxu0 0.0
        %7544 = vmatmul.mubr.f32.gmra.mrb[0].mxu0 %v7416
        %v7545 = vpop.f32.mrb[0].mxu0
        %v7546 = vadd.f32 0.0, %v7545
        %v7547 = vpop.f32.mrb[0].mxu0
        %7548 = vmatprep.mubr.f32.mxu0 0.0
        %7549 = vmatmul.mubr.f32.gmra.mrb[0].mxu0 %v7419
        %v7550 = vpop.f32.mrb[0].mxu0
        %v7551 = vadd.f32 0.0, %v7550
        %v7552 = vpop.f32.mrb[0].mxu0
        %7553 = vmatprep.mubr.f32.mxu0 0.0
        %7554 = vmatmul.mubr.f32.gmra.mrb[0].mxu0 %v7422
        %v7555 = vpop.f32.mrb[0].mxu0
        %v7556 = vadd.f32 0.0, %v7555
        %v7557 = vpop.f32.mrb[0].mxu0
        %7558 = vmatprep.mubr.f32.mxu0 0.0
        %7559 = vmatmul.mubr.f32.gmra.mrb[0].mxu0 %v7425
        %v7560 = vpop.f32.mrb[0].mxu0
        %v7561 = vadd.f32 0.0, %v7560
        %v7562 = vpop.f32.mrb[0].mxu0
        %7563 = vmatprep.mubr.f32.mxu0 0.0
        %7564 = vmatmul.mubr.f32.gmra.mrb[0].mxu0 %v7428
        %v7565 = vpop.f32.mrb[0].mxu0
        %v7566 = vadd.f32 0.0, %v7565
        %v7567 = vpop.f32.mrb[0].mxu0
        %7568 = vmatprep.mubr.f32.mxu0 0.0
        %7569 = vmatmul.mubr.f32.gmra.mrb[0].mxu0 %v7431
        %v7570 = vpop.f32.mrb[0].mxu0
        %v7571 = vadd.f32 0.0, %v7570
        %v7572 = vpop.f32.mrb[0].mxu0
        %7573 = vmatprep.mubr.f32.mxu0 0.0
        %7574 = vmatmul.mubr.f32.gmra.mrb[0].mxu0 %v7434
        %v7575 = vpop.f32.mrb[0].mxu0
        %v7576 = vadd.f32 0.0, %v7575
        %v7577 = vpop.f32.mrb[0].mxu0
        %7578 = vmatprep.mubr.f32.mxu0 0.0
        %7579 = vmatmul.mubr.f32.gmra.mrb[0].mxu0 %v7437
        %v7580 = vpop.f32.mrb[0].mxu0
        %v7581 = vadd.f32 0.0, %v7580
        %v7582 = vpop.f32.mrb[0].mxu0
        %7583 = vdwg.mxu0
        %v7584 = vand.u32 2147483647, %v7506
        %v7585 = vand.u32 2147483647, %v7511
        %v7586 = vand.u32 2147483647, %v7516
        %v7587 = vand.u32 2147483647, %v7521
        %v7588 = vand.u32 2147483647, %v7526
        %v7589 = vand.u32 2147483647, %v7531
        %v7590 = vand.u32 2147483647, %v7536
        %v7591 = vand.u32 2147483647, %v7541
        %v7592 = vand.u32 2147483647, %v7546
        %v7593 = vand.u32 2147483647, %v7551
        %v7594 = vand.u32 2147483647, %v7556
        %v7595 = vand.u32 2147483647, %v7561
        %v7596 = vand.u32 2147483647, %v7566
        %v7597 = vand.u32 2147483647, %v7571
        %v7598 = vand.u32 2147483647, %v7576
        %v7599 = vand.u32 2147483647, %v7581
        %7600 = vmax.xlane.f32.xlu0 %v7584
        %v7601 = vpop.xlane.xlu0 %7600
        %7602 = vmax.xlane.f32.xlu0 %v7585
        %v7603 = vpop.xlane.xlu0 %7602
        %7604 = vmax.xlane.f32.xlu0 %v7586
        %v7605 = vpop.xlane.xlu0 %7604
        %7606 = vmax.xlane.f32.xlu0 %v7587
        %v7607 = vpop.xlane.xlu0 %7606
        %7608 = vmax.xlane.f32.xlu0 %v7588
        %v7609 = vpop.xlane.xlu0 %7608
        %7610 = vmax.xlane.f32.xlu0 %v7589
        %v7611 = vpop.xlane.xlu0 %7610
        %7612 = vmax.xlane.f32.xlu0 %v7590
        %v7613 = vpop.xlane.xlu0 %7612
        %7614 = vmax.xlane.f32.xlu0 %v7591
        %v7615 = vpop.xlane.xlu0 %7614
        %7616 = vmax.xlane.f32.xlu0 %v7592
        %v7617 = vpop.xlane.xlu0 %7616
        %7618 = vmax.xlane.f32.xlu0 %v7593
        %v7619 = vpop.xlane.xlu0 %7618
        %7620 = vmax.xlane.f32.xlu0 %v7594
        %v7621 = vpop.xlane.xlu0 %7620
        %7622 = vmax.xlane.f32.xlu0 %v7595
        %v7623 = vpop.xlane.xlu0 %7622
        %7624 = vmax.xlane.f32.xlu0 %v7596
        %v7625 = vpop.xlane.xlu0 %7624
        %7626 = vmax.xlane.f32.xlu0 %v7597
        %v7627 = vpop.xlane.xlu0 %7626
        %7628 = vmax.xlane.f32.xlu0 %v7598
        %v7629 = vpop.xlane.xlu0 %7628
        %7630 = vmax.xlane.f32.xlu0 %v7599
        %v7631 = vpop.xlane.xlu0 %7630
        %v7632 = vsub.f32 %v7584, %v7601
        %v7633 = vsub.f32 %v7585, %v7603
        %v7634 = vsub.f32 %v7586, %v7605
        %v7635 = vsub.f32 %v7587, %v7607
        %v7636 = vsub.f32 %v7588, %v7609
        %v7637 = vsub.f32 %v7589, %v7611
        %v7638 = vsub.f32 %v7590, %v7613
        %v7639 = vsub.f32 %v7591, %v7615
        %v7640 = vsub.f32 %v7592, %v7617
        %v7641 = vsub.f32 %v7593, %v7619
        %v7642 = vsub.f32 %v7594, %v7621
        %v7643 = vsub.f32 %v7595, %v7623
        %v7644 = vsub.f32 %v7596, %v7625
        %v7645 = vsub.f32 %v7597, %v7627
        %v7646 = vsub.f32 %v7598, %v7629
        %v7647 = vsub.f32 %v7599, %v7631
        %v7648 = vmul.f32 %v7632, 1.442695
        %v7649 = vpow.pop %v7648
        %v7650 = vmul.f32 %v7633, 1.442695
        %v7651 = vpow.pop %v7650
        %v7652 = vmul.f32 %v7634, 1.442695
        %v7653 = vpow.pop %v7652
        %v7654 = vmul.f32 %v7635, 1.442695
        %v7655 = vpow.pop %v7654
        %v7656 = vmul.f32 %v7636, 1.442695
        %v7657 = vpow.pop %v7656
        %v7658 = vmul.f32 %v7637, 1.442695
        %v7659 = vpow.pop %v7658
        %v7660 = vmul.f32 %v7638, 1.442695
        %v7661 = vpow.pop %v7660
        %v7662 = vmul.f32 %v7639, 1.442695
        %v7663 = vpow.pop %v7662
        %v7664 = vmul.f32 %v7640, 1.442695
        %v7665 = vpow.pop %v7664
        %v7666 = vmul.f32 %v7641, 1.442695
        %v7667 = vpow.pop %v7666
        %v7668 = vmul.f32 %v7642, 1.442695
        %v7669 = vpow.pop %v7668
        %v7670 = vmul.f32 %v7643, 1.442695
        %v7671 = vpow.pop %v7670
        %v7672 = vmul.f32 %v7644, 1.442695
        %v7673 = vpow.pop %v7672
        %v7674 = vmul.f32 %v7645, 1.442695
        %v7675 = vpow.pop %v7674
        %v7676 = vmul.f32 %v7646, 1.442695
        %v7677 = vpow.pop %v7676
        %v7678 = vmul.f32 %v7647, 1.442695
        %v7679 = vpow.pop %v7678
        %7680 = vadd.xlane.f32.xlu0 %v7649
        %v7681 = vpop.xlane.xlu0 %7680
        %7682 = vadd.xlane.f32.xlu0 %v7651
        %v7683 = vpop.xlane.xlu0 %7682
        %7684 = vadd.xlane.f32.xlu0 %v7653
        %v7685 = vpop.xlane.xlu0 %7684
        %7686 = vadd.xlane.f32.xlu0 %v7655
        %v7687 = vpop.xlane.xlu0 %7686
        %7688 = vadd.xlane.f32.xlu0 %v7657
        %v7689 = vpop.xlane.xlu0 %7688
        %7690 = vadd.xlane.f32.xlu0 %v7659
        %v7691 = vpop.xlane.xlu0 %7690
        %7692 = vadd.xlane.f32.xlu0 %v7661
        %v7693 = vpop.xlane.xlu0 %7692
        %7694 = vadd.xlane.f32.xlu0 %v7663
        %v7695 = vpop.xlane.xlu0 %7694
        %7696 = vadd.xlane.f32.xlu0 %v7665
        %v7697 = vpop.xlane.xlu0 %7696
        %7698 = vadd.xlane.f32.xlu0 %v7667
        %v7699 = vpop.xlane.xlu0 %7698
        %7700 = vadd.xlane.f32.xlu0 %v7669
        %v7701 = vpop.xlane.xlu0 %7700
        %7702 = vadd.xlane.f32.xlu0 %v7671
        %v7703 = vpop.xlane.xlu0 %7702
        %7704 = vadd.xlane.f32.xlu0 %v7673
        %v7705 = vpop.xlane.xlu0 %7704
        %7706 = vadd.xlane.f32.xlu0 %v7675
        %v7707 = vpop.xlane.xlu0 %7706
        %7708 = vadd.xlane.f32.xlu0 %v7677
        %v7709 = vpop.xlane.xlu0 %7708
        %7710 = vadd.xlane.f32.xlu0 %v7679
        %v7711 = vpop.xlane.xlu0 %7710
        %v7712 = vrcp.pop %v7681
        %v7713 = vrcp.pop %v7683
        %v7714 = vrcp.pop %v7685
        %v7715 = vrcp.pop %v7687
        %v7716 = vrcp.pop %v7689
        %v7717 = vrcp.pop %v7691
        %v7718 = vrcp.pop %v7693
        %v7719 = vrcp.pop %v7695
        %v7720 = vrcp.pop %v7697
        %v7721 = vrcp.pop %v7699
        %v7722 = vrcp.pop %v7701
        %v7723 = vrcp.pop %v7703
        %v7724 = vrcp.pop %v7705
        %v7725 = vrcp.pop %v7707
        %v7726 = vrcp.pop %v7709
        %v7727 = vrcp.pop %v7711
        %v7728 = vmul.f32 %v7649, %v7712
        %v7729 = vmul.f32 %v7651, %v7713
        %v7730 = vmul.f32 %v7653, %v7714
        %v7731 = vmul.f32 %v7655, %v7715
        %v7732 = vmul.f32 %v7657, %v7716
        %v7733 = vmul.f32 %v7659, %v7717
        %v7734 = vmul.f32 %v7661, %v7718
        %v7735 = vmul.f32 %v7663, %v7719
        %v7736 = vmul.f32 %v7665, %v7720
        %v7737 = vmul.f32 %v7667, %v7721
        %v7738 = vmul.f32 %v7669, %v7722
        %v7739 = vmul.f32 %v7671, %v7723
        %v7740 = vmul.f32 %v7673, %v7724
        %v7741 = vmul.f32 %v7675, %v7725
        %v7742 = vmul.f32 %v7677, %v7726
        %v7743 = vmul.f32 %v7679, %v7727
        %v7744 = vadd.f32 %v7341, %v7728
        %v7745 = vadd.f32 %v7342, %v7729
        %v7746 = vadd.f32 %v7343, %v7730
        %v7747 = vadd.f32 %v7344, %v7731
        %v7748 = vadd.f32 %v7345, %v7732
        %v7749 = vadd.f32 %v7346, %v7733
        %v7750 = vadd.f32 %v7347, %v7734
        %v7751 = vadd.f32 %v7348, %v7735
        %v7752 = vadd.f32 %v7349, %v7736
        %v7753 = vadd.f32 %v7350, %v7737
        %v7754 = vadd.f32 %v7351, %v7738
        %v7755 = vadd.f32 %v7352, %v7739
        %v7756 = vadd.f32 %v7353, %v7740
        %v7757 = vadd.f32 %v7354, %v7741
        %v7758 = vadd.f32 %v7355, %v7742
        %v7759 = vadd.f32 %v7356, %v7743
        %v7760 = vld [vmem:[%s4953 + $0x38] sm:$0xff]
        %v7761 = vld [vmem:[%s4955 + $0x38] sm:$0xff]
        %7762 = vxpose.xlu0.b32.start [1/16] %v7760, 128
        %7763 = vxpose.xlu0.b32.cont [2/16] 0.0, 128
        %7764 = vxpose.xlu0.b32.cont [3/16] 0.0, 128
        %7765 = vxpose.xlu0.b32.cont [4/16] 0.0, 128
        %7766 = vxpose.xlu0.b32.cont [5/16] 0.0, 128
        %7767 = vxpose.xlu0.b32.cont [6/16] 0.0, 128
        %7768 = vxpose.xlu0.b32.cont [7/16] 0.0, 128
        %7769 = vxpose.xlu0.b32.cont [8/16] 0.0, 128
        %7770 = vxpose.xlu0.b32.cont [9/16] 0.0, 128
        %7771 = vxpose.xlu0.b32.cont [10/16] 0.0, 128
        %7772 = vxpose.xlu0.b32.cont [11/16] 0.0, 128
        %7773 = vxpose.xlu0.b32.cont [12/16] 0.0, 128
        %7774 = vxpose.xlu0.b32.cont [13/16] 0.0, 128
        %7775 = vxpose.xlu0.b32.cont [14/16] 0.0, 128
        %7776 = vxpose.xlu0.b32.cont [15/16] 0.0, 128
        %7777 = vxpose.xlu0.b32.end [16/16] 0.0, 128
        %v7778 = vpop.trf.xlu0
        %v7779 = vpop.trf.xlu0
        %v7780 = vpop.trf.xlu0
        %v7781 = vpop.trf.xlu0
        %v7782 = vpop.trf.xlu0
        %v7783 = vpop.trf.xlu0
        %v7784 = vpop.trf.xlu0
        %v7785 = vpop.trf.xlu0
        %v7786 = vpop.trf.xlu0
        %v7787 = vpop.trf.xlu0
        %v7788 = vpop.trf.xlu0
        %v7789 = vpop.trf.xlu0
        %v7790 = vpop.trf.xlu0
        %v7791 = vpop.trf.xlu0
        %v7792 = vpop.trf.xlu0
        %v7793 = vpop.trf.xlu0
        %v7795 = vsel %vm659, %v7778, 0
        %v7798 = vsel %vm659, %v7779, 0
        %v7801 = vsel %vm659, %v7780, 0
        %v7804 = vsel %vm659, %v7781, 0
        %v7807 = vsel %vm659, %v7782, 0
        %v7810 = vsel %vm659, %v7783, 0
        %v7813 = vsel %vm659, %v7784, 0
        %v7816 = vsel %vm659, %v7785, 0
        %v7819 = vsel %vm659, %v7786, 0
        %v7822 = vsel %vm659, %v7787, 0
        %v7825 = vsel %vm659, %v7788, 0
        %v7828 = vsel %vm659, %v7789, 0
        %v7831 = vsel %vm659, %v7790, 0
        %v7834 = vsel %vm659, %v7791, 0
        %v7837 = vsel %vm659, %v7792, 0
        %v7840 = vsel %vm659, %v7793, 0
        %7842 = vmatprep.subr.mxu0 0.0
        %7843 = vmatpush1.msra.mxu0 %v7761
        %7844 = vmatprep.subr.mxu0 0.0
        %7845 = vmatpush1.msra.mxu0 0.0
        %7846 = vmatprep.subr.mxu0 0.0
        %7847 = vmatpush1.msra.mxu0 0.0
        %7848 = vmatprep.subr.mxu0 0.0
        %7849 = vmatpush1.msra.mxu0 0.0
        %7850 = vmatprep.subr.mxu0 0.0
        %7851 = vmatpush1.msra.mxu0 0.0
        %7852 = vmatprep.subr.mxu0 0.0
        %7853 = vmatpush1.msra.mxu0 0.0
        %7854 = vmatprep.subr.mxu0 0.0
        %7855 = vmatpush1.msra.mxu0 0.0
        %7856 = vmatprep.subr.mxu0 0.0
        %7857 = vmatpush1.msra.mxu0 0.0
        %7858 = vmatprep.subr.mxu0 0.0
        %7859 = vmatpush1.msra.mxu0 0.0
        %7860 = vmatprep.subr.mxu0 0.0
        %7861 = vmatpush1.msra.mxu0 0.0
        %7862 = vmatprep.subr.mxu0 0.0
        %7863 = vmatpush1.msra.mxu0 0.0
        %7864 = vmatprep.subr.mxu0 0.0
        %7865 = vmatpush1.msra.mxu0 0.0
        %7866 = vmatprep.subr.mxu0 0.0
        %7867 = vmatpush1.msra.mxu0 0.0
        %7868 = vmatprep.subr.mxu0 0.0
        %7869 = vmatpush1.msra.mxu0 0.0
        %7870 = vmatprep.subr.mxu0 0.0
        %7871 = vmatpush1.msra.mxu0 0.0
        %7872 = vmatprep.subr.mxu0 0.0
        %7873 = vmatpush1.msra.mxu0 0.0
        %7874 = vmatprep.subr.mxu0 0.0
        %7875 = vmatpush1.msra.mxu0 0.0
        %7876 = vmatprep.subr.mxu0 0.0
        %7877 = vmatpush1.msra.mxu0 0.0
        %7878 = vmatprep.subr.mxu0 0.0
        %7879 = vmatpush1.msra.mxu0 0.0
        %7880 = vmatprep.subr.mxu0 0.0
        %7881 = vmatpush1.msra.mxu0 0.0
        %7882 = vmatprep.subr.mxu0 0.0
        %7883 = vmatpush1.msra.mxu0 0.0
        %7884 = vmatprep.subr.mxu0 0.0
        %7885 = vmatpush1.msra.mxu0 0.0
        %7886 = vmatprep.subr.mxu0 0.0
        %7887 = vmatpush1.msra.mxu0 0.0
        %7888 = vmatprep.subr.mxu0 0.0
        %7889 = vmatpush1.msra.mxu0 0.0
        %7890 = vmatprep.subr.mxu0 0.0
        %7891 = vmatpush1.msra.mxu0 0.0
        %7892 = vmatprep.subr.mxu0 0.0
        %7893 = vmatpush1.msra.mxu0 0.0
        %7894 = vmatprep.subr.mxu0 0.0
        %7895 = vmatpush1.msra.mxu0 0.0
        %7896 = vmatprep.subr.mxu0 0.0
        %7897 = vmatpush1.msra.mxu0 0.0
        %7898 = vmatprep.subr.mxu0 0.0
        %7899 = vmatpush1.msra.mxu0 0.0
        %7900 = vmatprep.subr.mxu0 0.0
        %7901 = vmatpush1.msra.mxu0 0.0
        %7902 = vmatprep.subr.mxu0 0.0
        %7903 = vmatpush1.msra.mxu0 0.0
        %7904 = vmatprep.subr.mxu0 0.0
        %7905 = vmatpush1.msra.mxu0 0.0
        %7906 = vmatprep.mubr.f32.mxu0 0.0
        %7907 = vmatmul.mubr.f32.gmra.mrb[0].mxu0 %v7795
        %v7908 = vpop.f32.mrb[0].mxu0
        %v7909 = vadd.f32 0.0, %v7908
        %v7910 = vpop.f32.mrb[0].mxu0
        %7911 = vmatprep.mubr.f32.mxu0 0.0
        %7912 = vmatmul.mubr.f32.gmra.mrb[0].mxu0 %v7798
        %v7913 = vpop.f32.mrb[0].mxu0
        %v7914 = vadd.f32 0.0, %v7913
        %v7915 = vpop.f32.mrb[0].mxu0
        %7916 = vmatprep.mubr.f32.mxu0 0.0
        %7917 = vmatmul.mubr.f32.gmra.mrb[0].mxu0 %v7801
        %v7918 = vpop.f32.mrb[0].mxu0
        %v7919 = vadd.f32 0.0, %v7918
        %v7920 = vpop.f32.mrb[0].mxu0
        %7921 = vmatprep.mubr.f32.mxu0 0.0
        %7922 = vmatmul.mubr.f32.gmra.mrb[0].mxu0 %v7804
        %v7923 = vpop.f32.mrb[0].mxu0
        %v7924 = vadd.f32 0.0, %v7923
        %v7925 = vpop.f32.mrb[0].mxu0
        %7926 = vmatprep.mubr.f32.mxu0 0.0
        %7927 = vmatmul.mubr.f32.gmra.mrb[0].mxu0 %v7807
        %v7928 = vpop.f32.mrb[0].mxu0
        %v7929 = vadd.f32 0.0, %v7928
        %v7930 = vpop.f32.mrb[0].mxu0
        %7931 = vmatprep.mubr.f32.mxu0 0.0
        %7932 = vmatmul.mubr.f32.gmra.mrb[0].mxu0 %v7810
        %v7933 = vpop.f32.mrb[0].mxu0
        %v7934 = vadd.f32 0.0, %v7933
        %v7935 = vpop.f32.mrb[0].mxu0
        %7936 = vmatprep.mubr.f32.mxu0 0.0
        %7937 = vmatmul.mubr.f32.gmra.mrb[0].mxu0 %v7813
        %v7938 = vpop.f32.mrb[0].mxu0
        %v7939 = vadd.f32 0.0, %v7938
        %v7940 = vpop.f32.mrb[0].mxu0
        %7941 = vmatprep.mubr.f32.mxu0 0.0
        %7942 = vmatmul.mubr.f32.gmra.mrb[0].mxu0 %v7816
        %v7943 = vpop.f32.mrb[0].mxu0
        %v7944 = vadd.f32 0.0, %v7943
        %v7945 = vpop.f32.mrb[0].mxu0
        %7946 = vmatprep.mubr.f32.mxu0 0.0
        %7947 = vmatmul.mubr.f32.gmra.mrb[0].mxu0 %v7819
        %v7948 = vpop.f32.mrb[0].mxu0
        %v7949 = vadd.f32 0.0, %v7948
        %v7950 = vpop.f32.mrb[0].mxu0
        %7951 = vmatprep.mubr.f32.mxu0 0.0
        %7952 = vmatmul.mubr.f32.gmra.mrb[0].mxu0 %v7822
        %v7953 = vpop.f32.mrb[0].mxu0
        %v7954 = vadd.f32 0.0, %v7953
        %v7955 = vpop.f32.mrb[0].mxu0
        %7956 = vmatprep.mubr.f32.mxu0 0.0
        %7957 = vmatmul.mubr.f32.gmra.mrb[0].mxu0 %v7825
        %v7958 = vpop.f32.mrb[0].mxu0
        %v7959 = vadd.f32 0.0, %v7958
        %v7960 = vpop.f32.mrb[0].mxu0
        %7961 = vmatprep.mubr.f32.mxu0 0.0
        %7962 = vmatmul.mubr.f32.gmra.mrb[0].mxu0 %v7828
        %v7963 = vpop.f32.mrb[0].mxu0
        %v7964 = vadd.f32 0.0, %v7963
        %v7965 = vpop.f32.mrb[0].mxu0
        %7966 = vmatprep.mubr.f32.mxu0 0.0
        %7967 = vmatmul.mubr.f32.gmra.mrb[0].mxu0 %v7831
        %v7968 = vpop.f32.mrb[0].mxu0
        %v7969 = vadd.f32 0.0, %v7968
        %v7970 = vpop.f32.mrb[0].mxu0
        %7971 = vmatprep.mubr.f32.mxu0 0.0
        %7972 = vmatmul.mubr.f32.gmra.mrb[0].mxu0 %v7834
        %v7973 = vpop.f32.mrb[0].mxu0
        %v7974 = vadd.f32 0.0, %v7973
        %v7975 = vpop.f32.mrb[0].mxu0
        %7976 = vmatprep.mubr.f32.mxu0 0.0
        %7977 = vmatmul.mubr.f32.gmra.mrb[0].mxu0 %v7837
        %v7978 = vpop.f32.mrb[0].mxu0
        %v7979 = vadd.f32 0.0, %v7978
        %v7980 = vpop.f32.mrb[0].mxu0
        %7981 = vmatprep.mubr.f32.mxu0 0.0
        %7982 = vmatmul.mubr.f32.gmra.mrb[0].mxu0 %v7840
        %v7983 = vpop.f32.mrb[0].mxu0
        %v7984 = vadd.f32 0.0, %v7983
        %v7985 = vpop.f32.mrb[0].mxu0
        %7986 = vdwg.mxu0
        %v7987 = vand.u32 2147483647, %v7909
        %v7988 = vand.u32 2147483647, %v7914
        %v7989 = vand.u32 2147483647, %v7919
        %v7990 = vand.u32 2147483647, %v7924
        %v7991 = vand.u32 2147483647, %v7929
        %v7992 = vand.u32 2147483647, %v7934
        %v7993 = vand.u32 2147483647, %v7939
        %v7994 = vand.u32 2147483647, %v7944
        %v7995 = vand.u32 2147483647, %v7949
        %v7996 = vand.u32 2147483647, %v7954
        %v7997 = vand.u32 2147483647, %v7959
        %v7998 = vand.u32 2147483647, %v7964
        %v7999 = vand.u32 2147483647, %v7969
        %v8000 = vand.u32 2147483647, %v7974
        %v8001 = vand.u32 2147483647, %v7979
        %v8002 = vand.u32 2147483647, %v7984
        %8003 = vmax.xlane.f32.xlu0 %v7987
        %v8004 = vpop.xlane.xlu0 %8003
        %8005 = vmax.xlane.f32.xlu0 %v7988
        %v8006 = vpop.xlane.xlu0 %8005
        %8007 = vmax.xlane.f32.xlu0 %v7989
        %v8008 = vpop.xlane.xlu0 %8007
        %8009 = vmax.xlane.f32.xlu0 %v7990
        %v8010 = vpop.xlane.xlu0 %8009
        %8011 = vmax.xlane.f32.xlu0 %v7991
        %v8012 = vpop.xlane.xlu0 %8011
        %8013 = vmax.xlane.f32.xlu0 %v7992
        %v8014 = vpop.xlane.xlu0 %8013
        %8015 = vmax.xlane.f32.xlu0 %v7993
        %v8016 = vpop.xlane.xlu0 %8015
        %8017 = vmax.xlane.f32.xlu0 %v7994
        %v8018 = vpop.xlane.xlu0 %8017
        %8019 = vmax.xlane.f32.xlu0 %v7995
        %v8020 = vpop.xlane.xlu0 %8019
        %8021 = vmax.xlane.f32.xlu0 %v7996
        %v8022 = vpop.xlane.xlu0 %8021
        %8023 = vmax.xlane.f32.xlu0 %v7997
        %v8024 = vpop.xlane.xlu0 %8023
        %8025 = vmax.xlane.f32.xlu0 %v7998
        %v8026 = vpop.xlane.xlu0 %8025
        %8027 = vmax.xlane.f32.xlu0 %v7999
        %v8028 = vpop.xlane.xlu0 %8027
        %8029 = vmax.xlane.f32.xlu0 %v8000
        %v8030 = vpop.xlane.xlu0 %8029
        %8031 = vmax.xlane.f32.xlu0 %v8001
        %v8032 = vpop.xlane.xlu0 %8031
        %8033 = vmax.xlane.f32.xlu0 %v8002
        %v8034 = vpop.xlane.xlu0 %8033
        %v8035 = vsub.f32 %v7987, %v8004
        %v8036 = vsub.f32 %v7988, %v8006
        %v8037 = vsub.f32 %v7989, %v8008
        %v8038 = vsub.f32 %v7990, %v8010
        %v8039 = vsub.f32 %v7991, %v8012
        %v8040 = vsub.f32 %v7992, %v8014
        %v8041 = vsub.f32 %v7993, %v8016
        %v8042 = vsub.f32 %v7994, %v8018
        %v8043 = vsub.f32 %v7995, %v8020
        %v8044 = vsub.f32 %v7996, %v8022
        %v8045 = vsub.f32 %v7997, %v8024
        %v8046 = vsub.f32 %v7998, %v8026
        %v8047 = vsub.f32 %v7999, %v8028
        %v8048 = vsub.f32 %v8000, %v8030
        %v8049 = vsub.f32 %v8001, %v8032
        %v8050 = vsub.f32 %v8002, %v8034
        %v8051 = vmul.f32 %v8035, 1.442695
        %v8052 = vpow.pop %v8051
        %v8053 = vmul.f32 %v8036, 1.442695
        %v8054 = vpow.pop %v8053
        %v8055 = vmul.f32 %v8037, 1.442695
        %v8056 = vpow.pop %v8055
        %v8057 = vmul.f32 %v8038, 1.442695
        %v8058 = vpow.pop %v8057
        %v8059 = vmul.f32 %v8039, 1.442695
        %v8060 = vpow.pop %v8059
        %v8061 = vmul.f32 %v8040, 1.442695
        %v8062 = vpow.pop %v8061
        %v8063 = vmul.f32 %v8041, 1.442695
        %v8064 = vpow.pop %v8063
        %v8065 = vmul.f32 %v8042, 1.442695
        %v8066 = vpow.pop %v8065
        %v8067 = vmul.f32 %v8043, 1.442695
        %v8068 = vpow.pop %v8067
        %v8069 = vmul.f32 %v8044, 1.442695
        %v8070 = vpow.pop %v8069
        %v8071 = vmul.f32 %v8045, 1.442695
        %v8072 = vpow.pop %v8071
        %v8073 = vmul.f32 %v8046, 1.442695
        %v8074 = vpow.pop %v8073
        %v8075 = vmul.f32 %v8047, 1.442695
        %v8076 = vpow.pop %v8075
        %v8077 = vmul.f32 %v8048, 1.442695
        %v8078 = vpow.pop %v8077
        %v8079 = vmul.f32 %v8049, 1.442695
        %v8080 = vpow.pop %v8079
        %v8081 = vmul.f32 %v8050, 1.442695
        %v8082 = vpow.pop %v8081
        %8083 = vadd.xlane.f32.xlu0 %v8052
        %v8084 = vpop.xlane.xlu0 %8083
        %8085 = vadd.xlane.f32.xlu0 %v8054
        %v8086 = vpop.xlane.xlu0 %8085
        %8087 = vadd.xlane.f32.xlu0 %v8056
        %v8088 = vpop.xlane.xlu0 %8087
        %8089 = vadd.xlane.f32.xlu0 %v8058
        %v8090 = vpop.xlane.xlu0 %8089
        %8091 = vadd.xlane.f32.xlu0 %v8060
        %v8092 = vpop.xlane.xlu0 %8091
        %8093 = vadd.xlane.f32.xlu0 %v8062
        %v8094 = vpop.xlane.xlu0 %8093
        %8095 = vadd.xlane.f32.xlu0 %v8064
        %v8096 = vpop.xlane.xlu0 %8095
        %8097 = vadd.xlane.f32.xlu0 %v8066
        %v8098 = vpop.xlane.xlu0 %8097
        %8099 = vadd.xlane.f32.xlu0 %v8068
        %v8100 = vpop.xlane.xlu0 %8099
        %8101 = vadd.xlane.f32.xlu0 %v8070
        %v8102 = vpop.xlane.xlu0 %8101
        %8103 = vadd.xlane.f32.xlu0 %v8072
        %v8104 = vpop.xlane.xlu0 %8103
        %8105 = vadd.xlane.f32.xlu0 %v8074
        %v8106 = vpop.xlane.xlu0 %8105
        %8107 = vadd.xlane.f32.xlu0 %v8076
        %v8108 = vpop.xlane.xlu0 %8107
        %8109 = vadd.xlane.f32.xlu0 %v8078
        %v8110 = vpop.xlane.xlu0 %8109
        %8111 = vadd.xlane.f32.xlu0 %v8080
        %v8112 = vpop.xlane.xlu0 %8111
        %8113 = vadd.xlane.f32.xlu0 %v8082
        %v8114 = vpop.xlane.xlu0 %8113
        %v8115 = vrcp.pop %v8084
        %v8116 = vrcp.pop %v8086
        %v8117 = vrcp.pop %v8088
        %v8118 = vrcp.pop %v8090
        %v8119 = vrcp.pop %v8092
        %v8120 = vrcp.pop %v8094
        %v8121 = vrcp.pop %v8096
        %v8122 = vrcp.pop %v8098
        %v8123 = vrcp.pop %v8100
        %v8124 = vrcp.pop %v8102
        %v8125 = vrcp.pop %v8104
        %v8126 = vrcp.pop %v8106
        %v8127 = vrcp.pop %v8108
        %v8128 = vrcp.pop %v8110
        %v8129 = vrcp.pop %v8112
        %v8130 = vrcp.pop %v8114
        %v8131 = vmul.f32 %v8052, %v8115
        %v8132 = vmul.f32 %v8054, %v8116
        %v8133 = vmul.f32 %v8056, %v8117
        %v8134 = vmul.f32 %v8058, %v8118
        %v8135 = vmul.f32 %v8060, %v8119
        %v8136 = vmul.f32 %v8062, %v8120
        %v8137 = vmul.f32 %v8064, %v8121
        %v8138 = vmul.f32 %v8066, %v8122
        %v8139 = vmul.f32 %v8068, %v8123
        %v8140 = vmul.f32 %v8070, %v8124
        %v8141 = vmul.f32 %v8072, %v8125
        %v8142 = vmul.f32 %v8074, %v8126
        %v8143 = vmul.f32 %v8076, %v8127
        %v8144 = vmul.f32 %v8078, %v8128
        %v8145 = vmul.f32 %v8080, %v8129
        %v8146 = vmul.f32 %v8082, %v8130
        %v8147 = vadd.f32 %v7744, %v8131
        %v8148 = vadd.f32 %v7745, %v8132
        %v8149 = vadd.f32 %v7746, %v8133
        %v8150 = vadd.f32 %v7747, %v8134
        %v8151 = vadd.f32 %v7748, %v8135
        %v8152 = vadd.f32 %v7749, %v8136
        %v8153 = vadd.f32 %v7750, %v8137
        %v8154 = vadd.f32 %v7751, %v8138
        %v8155 = vadd.f32 %v7752, %v8139
        %v8156 = vadd.f32 %v7753, %v8140
        %v8157 = vadd.f32 %v7754, %v8141
        %v8158 = vadd.f32 %v7755, %v8142
        %v8159 = vadd.f32 %v7756, %v8143
        %v8160 = vadd.f32 %v7757, %v8144
        %v8161 = vadd.f32 %v7758, %v8145
        %v8162 = vadd.f32 %v7759, %v8146
        %s8163 = scalar_lea.vmem %s580, 128 [#allocation4]
        %v8164 = vld [vmem:[%s8163] sm:$0xff]
        %v8165 = vld [vmem:[%s8163 + $0x8] sm:$0xff]
        %v8166 = vld [vmem:[%s8163 + $0x10] sm:$0xff]
        %v8167 = vld [vmem:[%s8163 + $0x18] sm:$0xff]
        %v8168 = vld [vmem:[%s8163 + $0x20] sm:$0xff]
        %v8169 = vld [vmem:[%s8163 + $0x28] sm:$0xff]
        %v8170 = vld [vmem:[%s8163 + $0x30] sm:$0xff]
        %v8171 = vld [vmem:[%s8163 + $0x38] sm:$0xff]
        %v8172 = vld [vmem:[%s8163 + $0x40] sm:$0xff]
        %v8173 = vld [vmem:[%s8163 + $0x48] sm:$0xff]
        %v8174 = vld [vmem:[%s8163 + $0x50] sm:$0xff]
        %v8175 = vld [vmem:[%s8163 + $0x58] sm:$0xff]
        %v8176 = vld [vmem:[%s8163 + $0x60] sm:$0xff]
        %v8177 = vld [vmem:[%s8163 + $0x68] sm:$0xff]
        %v8178 = vld [vmem:[%s8163 + $0x70] sm:$0xff]
        %v8179 = vld [vmem:[%s8163 + $0x78] sm:$0xff]
        %8180 = vmatprep.subr.mxu0 0.0
        %8181 = vmatpush1.msra.mxu0 %v8164
        %8182 = vmatprep.subr.mxu0 0.0
        %8183 = vmatpush1.msra.mxu0 %v8165
        %8184 = vmatprep.subr.mxu0 0.0
        %8185 = vmatpush1.msra.mxu0 %v8166
        %8186 = vmatprep.subr.mxu0 0.0
        %8187 = vmatpush1.msra.mxu0 %v8167
        %8188 = vmatprep.subr.mxu0 0.0
        %8189 = vmatpush1.msra.mxu0 %v8168
        %8190 = vmatprep.subr.mxu0 0.0
        %8191 = vmatpush1.msra.mxu0 %v8169
        %8192 = vmatprep.subr.mxu0 0.0
        %8193 = vmatpush1.msra.mxu0 %v8170
        %8194 = vmatprep.subr.mxu0 0.0
        %8195 = vmatpush1.msra.mxu0 %v8171
        %8196 = vmatprep.subr.mxu0 0.0
        %8197 = vmatpush1.msra.mxu0 %v8172
        %8198 = vmatprep.subr.mxu0 0.0
        %8199 = vmatpush1.msra.mxu0 %v8173
        %8200 = vmatprep.subr.mxu0 0.0
        %8201 = vmatpush1.msra.mxu0 %v8174
        %8202 = vmatprep.subr.mxu0 0.0
        %8203 = vmatpush1.msra.mxu0 %v8175
        %8204 = vmatprep.subr.mxu0 0.0
        %8205 = vmatpush1.msra.mxu0 %v8176
        %8206 = vmatprep.subr.mxu0 0.0
        %8207 = vmatpush1.msra.mxu0 %v8177
        %8208 = vmatprep.subr.mxu0 0.0
        %8209 = vmatpush1.msra.mxu0 %v8178
        %8210 = vmatprep.subr.mxu0 0.0
        %8211 = vmatpush1.msra.mxu0 %v8179
        %8212 = vmatprep.subr.mxu0 0.0
        %8213 = vmatpush1.msra.mxu0 0.0
        %8214 = vmatprep.subr.mxu0 0.0
        %8215 = vmatpush1.msra.mxu0 0.0
        %8216 = vmatprep.subr.mxu0 0.0
        %8217 = vmatpush1.msra.mxu0 0.0
        %8218 = vmatprep.subr.mxu0 0.0
        %8219 = vmatpush1.msra.mxu0 0.0
        %8220 = vmatprep.subr.mxu0 0.0
        %8221 = vmatpush1.msra.mxu0 0.0
        %8222 = vmatprep.subr.mxu0 0.0
        %8223 = vmatpush1.msra.mxu0 0.0
        %8224 = vmatprep.subr.mxu0 0.0
        %8225 = vmatpush1.msra.mxu0 0.0
        %8226 = vmatprep.subr.mxu0 0.0
        %8227 = vmatpush1.msra.mxu0 0.0
        %8228 = vmatprep.subr.mxu0 0.0
        %8229 = vmatpush1.msra.mxu0 0.0
        %8230 = vmatprep.subr.mxu0 0.0
        %8231 = vmatpush1.msra.mxu0 0.0
        %8232 = vmatprep.subr.mxu0 0.0
        %8233 = vmatpush1.msra.mxu0 0.0
        %8234 = vmatprep.subr.mxu0 0.0
        %8235 = vmatpush1.msra.mxu0 0.0
        %8236 = vmatprep.subr.mxu0 0.0
        %8237 = vmatpush1.msra.mxu0 0.0
        %8238 = vmatprep.subr.mxu0 0.0
        %8239 = vmatpush1.msra.mxu0 0.0
        %8240 = vmatprep.subr.mxu0 0.0
        %8241 = vmatpush1.msra.mxu0 0.0
        %8242 = vmatprep.subr.mxu0 0.0
        %8243 = vmatpush1.msra.mxu0 0.0
        %8244 = vmatprep.mubr.f32.mxu0 0.0
        %8245 = vmatmul.mubr.f32.gmra.mrb[0].mxu0 %v8147
        %v8246 = vpop.f32.mrb[0].mxu0
        %v8247 = vadd.f32 0.0, %v8246
        %v8248 = vpop.f32.mrb[0].mxu0
        %8249 = vmatprep.mubr.f32.mxu0 0.0
        %8250 = vmatmul.mubr.f32.gmra.mrb[0].mxu0 %v8148
        %v8251 = vpop.f32.mrb[0].mxu0
        %v8252 = vadd.f32 0.0, %v8251
        %v8253 = vpop.f32.mrb[0].mxu0
        %8254 = vmatprep.mubr.f32.mxu0 0.0
        %8255 = vmatmul.mubr.f32.gmra.mrb[0].mxu0 %v8149
        %v8256 = vpop.f32.mrb[0].mxu0
        %v8257 = vadd.f32 0.0, %v8256
        %v8258 = vpop.f32.mrb[0].mxu0
        %8259 = vmatprep.mubr.f32.mxu0 0.0
        %8260 = vmatmul.mubr.f32.gmra.mrb[0].mxu0 %v8150
        %v8261 = vpop.f32.mrb[0].mxu0
        %v8262 = vadd.f32 0.0, %v8261
        %v8263 = vpop.f32.mrb[0].mxu0
        %8264 = vmatprep.mubr.f32.mxu0 0.0
        %8265 = vmatmul.mubr.f32.gmra.mrb[0].mxu0 %v8151
        %v8266 = vpop.f32.mrb[0].mxu0
        %v8267 = vadd.f32 0.0, %v8266
        %v8268 = vpop.f32.mrb[0].mxu0
        %8269 = vmatprep.mubr.f32.mxu0 0.0
        %8270 = vmatmul.mubr.f32.gmra.mrb[0].mxu0 %v8152
        %v8271 = vpop.f32.mrb[0].mxu0
        %v8272 = vadd.f32 0.0, %v8271
        %v8273 = vpop.f32.mrb[0].mxu0
        %8274 = vmatprep.mubr.f32.mxu0 0.0
        %8275 = vmatmul.mubr.f32.gmra.mrb[0].mxu0 %v8153
        %v8276 = vpop.f32.mrb[0].mxu0
        %v8277 = vadd.f32 0.0, %v8276
        %v8278 = vpop.f32.mrb[0].mxu0
        %8279 = vmatprep.mubr.f32.mxu0 0.0
        %8280 = vmatmul.mubr.f32.gmra.mrb[0].mxu0 %v8154
        %v8281 = vpop.f32.mrb[0].mxu0
        %v8282 = vadd.f32 0.0, %v8281
        %v8283 = vpop.f32.mrb[0].mxu0
        %8284 = vmatprep.mubr.f32.mxu0 0.0
        %8285 = vmatmul.mubr.f32.gmra.mrb[0].mxu0 %v8155
        %v8286 = vpop.f32.mrb[0].mxu0
        %v8287 = vadd.f32 0.0, %v8286
        %v8288 = vpop.f32.mrb[0].mxu0
        %8289 = vmatprep.mubr.f32.mxu0 0.0
        %8290 = vmatmul.mubr.f32.gmra.mrb[0].mxu0 %v8156
        %v8291 = vpop.f32.mrb[0].mxu0
        %v8292 = vadd.f32 0.0, %v8291
        %v8293 = vpop.f32.mrb[0].mxu0
        %8294 = vmatprep.mubr.f32.mxu0 0.0
        %8295 = vmatmul.mubr.f32.gmra.mrb[0].mxu0 %v8157
        %v8296 = vpop.f32.mrb[0].mxu0
        %v8297 = vadd.f32 0.0, %v8296
        %v8298 = vpop.f32.mrb[0].mxu0
        %8299 = vmatprep.mubr.f32.mxu0 0.0
        %8300 = vmatmul.mubr.f32.gmra.mrb[0].mxu0 %v8158
        %v8301 = vpop.f32.mrb[0].mxu0
        %v8302 = vadd.f32 0.0, %v8301
        %v8303 = vpop.f32.mrb[0].mxu0
        %8304 = vmatprep.mubr.f32.mxu0 0.0
        %8305 = vmatmul.mubr.f32.gmra.mrb[0].mxu0 %v8159
        %v8306 = vpop.f32.mrb[0].mxu0
        %v8307 = vadd.f32 0.0, %v8306
        %v8308 = vpop.f32.mrb[0].mxu0
        %8309 = vmatprep.mubr.f32.mxu0 0.0
        %8310 = vmatmul.mubr.f32.gmra.mrb[0].mxu0 %v8160
        %v8311 = vpop.f32.mrb[0].mxu0
        %v8312 = vadd.f32 0.0, %v8311
        %v8313 = vpop.f32.mrb[0].mxu0
        %8314 = vmatprep.mubr.f32.mxu0 0.0
        %8315 = vmatmul.mubr.f32.gmra.mrb[0].mxu0 %v8161
        %v8316 = vpop.f32.mrb[0].mxu0
        %v8317 = vadd.f32 0.0, %v8316
        %v8318 = vpop.f32.mrb[0].mxu0
        %8319 = vmatprep.mubr.f32.mxu0 0.0
        %8320 = vmatmul.mubr.f32.gmra.mrb[0].mxu0 %v8162
        %v8321 = vpop.f32.mrb[0].mxu0
        %v8322 = vadd.f32 0.0, %v8321
        %v8323 = vpop.f32.mrb[0].mxu0
        %8324 = vdwg.mxu0
        %8325 = vxpose.xlu0.b32.start [1/16] %v8247, 128
        %8326 = vxpose.xlu0.b32.cont [2/16] %v8252, 128
        %8327 = vxpose.xlu0.b32.cont [3/16] %v8257, 128
        %8328 = vxpose.xlu0.b32.cont [4/16] %v8262, 128
        %8329 = vxpose.xlu0.b32.cont [5/16] %v8267, 128
        %8330 = vxpose.xlu0.b32.cont [6/16] %v8272, 128
        %8331 = vxpose.xlu0.b32.cont [7/16] %v8277, 128
        %8332 = vxpose.xlu0.b32.cont [8/16] %v8282, 128
        %8333 = vxpose.xlu0.b32.cont [9/16] %v8287, 128
        %8334 = vxpose.xlu0.b32.cont [10/16] %v8292, 128
        %8335 = vxpose.xlu0.b32.cont [11/16] %v8297, 128
        %8336 = vxpose.xlu0.b32.cont [12/16] %v8302, 128
        %8337 = vxpose.xlu0.b32.cont [13/16] %v8307, 128
        %8338 = vxpose.xlu0.b32.cont [14/16] %v8312, 128
        %8339 = vxpose.xlu0.b32.cont [15/16] %v8317, 128
        %8340 = vxpose.xlu0.b32.end [16/16] %v8322, 128
        %v8341 = vpop.trf.xlu0
        %v8342 = vpop.trf.xlu0
        %v8343 = vpop.trf.xlu0
        %v8344 = vpop.trf.xlu0
        %v8345 = vpop.trf.xlu0
        %v8346 = vpop.trf.xlu0
        %v8347 = vpop.trf.xlu0
        %v8348 = vpop.trf.xlu0
        %v8349 = vpop.trf.xlu0
        %v8350 = vpop.trf.xlu0
        %v8351 = vpop.trf.xlu0
        %v8352 = vpop.trf.xlu0
        %v8353 = vpop.trf.xlu0
        %v8354 = vpop.trf.xlu0
        %v8355 = vpop.trf.xlu0
        %v8356 = vpop.trf.xlu0
        %v8357 = vld [vmem:[%s588] sm:$0xff]
        %v8358 = vld [vmem:[%s588 + $0x8] sm:$0xff]
        %v8359 = vld [vmem:[%s588 + $0x10] sm:$0xff]
        %v8360 = vld [vmem:[%s588 + $0x18] sm:$0xff]
        %v8361 = vld [vmem:[%s588 + $0x20] sm:$0xff]
        %v8362 = vld [vmem:[%s588 + $0x28] sm:$0xff]
        %v8363 = vld [vmem:[%s588 + $0x30] sm:$0xff]
        %v8364 = vld [vmem:[%s588 + $0x38] sm:$0xff]
        %v8366 = vcombine.high %v8341, %v8341
        %v8368 = vunpack.c.l.s4 1966171168
        %v8369 = vunpack.c.0.s8 %v8368
        %v8370 = vlaneseq
        %v8371 = vshrl.u32 %v8370, 7
        %v8372 = vsub.s32 %v8369, %v8371
        %v8373 = vrot.slane %v8341, %v8372
        %v8375 = vunpack.c.l.s4 1966171168
        %v8376 = vunpack.c.0.s8 %v8375
        %v8377 = vlaneseq
        %v8378 = vshrl.u32 %v8377, 7
        %v8379 = vsub.s32 %v8376, %v8378
        %v8380 = vrot.slane %v8366, %v8379
        %v8381 = vcombine.high %v8373, %v8373
        %v8382 = vcombine.high %v8380, %v8380
        %v8384 = vunpack.c.l.s4 1966171168
        %v8385 = vunpack.c.0.s8 %v8384
        %v8386 = vlaneseq
        %v8387 = vshrl.u32 %v8386, 7
        %v8388 = vsub.s32 %v8385, %v8387
        %v8389 = vrot.slane %v8373, %v8388
        %v8391 = vunpack.c.l.s4 1966171168
        %v8392 = vunpack.c.0.s8 %v8391
        %v8393 = vlaneseq
        %v8394 = vshrl.u32 %v8393, 7
        %v8395 = vsub.s32 %v8392, %v8394
        %v8396 = vrot.slane %v8380, %v8395
        %v8398 = vunpack.c.l.s4 1966171168
        %v8399 = vunpack.c.0.s8 %v8398
        %v8400 = vlaneseq
        %v8401 = vshrl.u32 %v8400, 7
        %v8402 = vsub.s32 %v8399, %v8401
        %v8403 = vrot.slane %v8381, %v8402
        %v8405 = vunpack.c.l.s4 1966171168
        %v8406 = vunpack.c.0.s8 %v8405
        %v8407 = vlaneseq
        %v8408 = vshrl.u32 %v8407, 7
        %v8409 = vsub.s32 %v8406, %v8408
        %v8410 = vrot.slane %v8382, %v8409
        %v8411 = vcombine.high %v8389, %v8389
        %v8412 = vcombine.high %v8396, %v8396
        %v8413 = vcombine.high %v8403, %v8403
        %v8414 = vcombine.high %v8410, %v8410
        %v8415 = vlaneseq
        %v8416 = vshrl.u32 %v8415, 7
        %v8417 = vsub.s32 0, %v8416
        %v8418 = vrot.slane %v8389, %v8417
        %v8419 = vlaneseq
        %v8420 = vshrl.u32 %v8419, 7
        %v8421 = vsub.s32 0, %v8420
        %v8422 = vrot.slane %v8403, %v8421
        %v8423 = vlaneseq
        %v8424 = vshrl.u32 %v8423, 7
        %v8425 = vsub.s32 0, %v8424
        %v8426 = vrot.slane %v8411, %v8425
        %v8427 = vlaneseq
        %v8428 = vshrl.u32 %v8427, 7
        %v8429 = vsub.s32 0, %v8428
        %v8430 = vrot.slane %v8413, %v8429
        %v8431 = vlaneseq
        %v8432 = vshrl.u32 %v8431, 7
        %v8433 = vsub.s32 0, %v8432
        %v8434 = vrot.slane %v8396, %v8433
        %v8435 = vlaneseq
        %v8436 = vshrl.u32 %v8435, 7
        %v8437 = vsub.s32 0, %v8436
        %v8438 = vrot.slane %v8410, %v8437
        %v8439 = vlaneseq
        %v8440 = vshrl.u32 %v8439, 7
        %v8441 = vsub.s32 0, %v8440
        %v8442 = vrot.slane %v8412, %v8441
        %v8443 = vlaneseq
        %v8444 = vshrl.u32 %v8443, 7
        %v8445 = vsub.s32 0, %v8444
        %v8446 = vrot.slane %v8414, %v8445
        %v8455 = vmul.f32 %v8357, %v8418
        %v8456 = vmul.f32 %v8358, %v8422
        %v8457 = vmul.f32 %v8359, %v8426
        %v8458 = vmul.f32 %v8360, %v8430
        %v8459 = vmul.f32 %v8361, %v8434
        %v8460 = vmul.f32 %v8362, %v8438
        %v8461 = vmul.f32 %v8363, %v8442
        %v8462 = vmul.f32 %v8364, %v8446
        %v8463 = vadd.f32 %v8455, %v8456
        %v8464 = vadd.f32 %v8463, %v8457
        %v8465 = vadd.f32 %v8464, %v8458
        %v8466 = vadd.f32 %v8465, %v8459
        %v8467 = vadd.f32 %v8466, %v8460
        %v8468 = vadd.f32 %v8467, %v8461
        %v8469 = vadd.f32 %v8468, %v8462
        %s8470 = scalar_lea.vmem %s624, 64 [#allocation8]
        %8471 = vst [vmem:[%s8470] sm:$0xff] %v8469
        %v8472 = vld [vmem:[%s4141] sm:$0xff]
        %v8473 = vld [vmem:[%s4141 + $0x8] sm:$0xff]
        %v8474 = vld [vmem:[%s4141 + $0x10] sm:$0xff]
        %v8475 = vld [vmem:[%s4141 + $0x18] sm:$0xff]
        %v8476 = vld [vmem:[%s4141 + $0x20] sm:$0xff]
        %v8477 = vld [vmem:[%s4141 + $0x28] sm:$0xff]
        %v8478 = vld [vmem:[%s4141 + $0x30] sm:$0xff]
        %v8479 = vld [vmem:[%s4141 + $0x38] sm:$0xff]
        %v8481 = vcombine.high %v8342, %v8342
        %v8483 = vunpack.c.l.s4 1966171168
        %v8484 = vunpack.c.0.s8 %v8483
        %v8485 = vlaneseq
        %v8486 = vshrl.u32 %v8485, 7
        %v8487 = vsub.s32 %v8484, %v8486
        %v8488 = vrot.slane %v8342, %v8487
        %v8490 = vunpack.c.l.s4 1966171168
        %v8491 = vunpack.c.0.s8 %v8490
        %v8492 = vlaneseq
        %v8493 = vshrl.u32 %v8492, 7
        %v8494 = vsub.s32 %v8491, %v8493
        %v8495 = vrot.slane %v8481, %v8494
        %v8496 = vcombine.high %v8488, %v8488
        %v8497 = vcombine.high %v8495, %v8495
        %v8499 = vunpack.c.l.s4 1966171168
        %v8500 = vunpack.c.0.s8 %v8499
        %v8501 = vlaneseq
        %v8502 = vshrl.u32 %v8501, 7
        %v8503 = vsub.s32 %v8500, %v8502
        %v8504 = vrot.slane %v8488, %v8503
        %v8506 = vunpack.c.l.s4 1966171168
        %v8507 = vunpack.c.0.s8 %v8506
        %v8508 = vlaneseq
        %v8509 = vshrl.u32 %v8508, 7
        %v8510 = vsub.s32 %v8507, %v8509
        %v8511 = vrot.slane %v8495, %v8510
        %v8513 = vunpack.c.l.s4 1966171168
        %v8514 = vunpack.c.0.s8 %v8513
        %v8515 = vlaneseq
        %v8516 = vshrl.u32 %v8515, 7
        %v8517 = vsub.s32 %v8514, %v8516
        %v8518 = vrot.slane %v8496, %v8517
        %v8520 = vunpack.c.l.s4 1966171168
        %v8521 = vunpack.c.0.s8 %v8520
        %v8522 = vlaneseq
        %v8523 = vshrl.u32 %v8522, 7
        %v8524 = vsub.s32 %v8521, %v8523
        %v8525 = vrot.slane %v8497, %v8524
        %v8526 = vcombine.high %v8504, %v8504
        %v8527 = vcombine.high %v8511, %v8511
        %v8528 = vcombine.high %v8518, %v8518
        %v8529 = vcombine.high %v8525, %v8525
        %v8530 = vlaneseq
        %v8531 = vshrl.u32 %v8530, 7
        %v8532 = vsub.s32 0, %v8531
        %v8533 = vrot.slane %v8504, %v8532
        %v8534 = vlaneseq
        %v8535 = vshrl.u32 %v8534, 7
        %v8536 = vsub.s32 0, %v8535
        %v8537 = vrot.slane %v8518, %v8536
        %v8538 = vlaneseq
        %v8539 = vshrl.u32 %v8538, 7
        %v8540 = vsub.s32 0, %v8539
        %v8541 = vrot.slane %v8526, %v8540
        %v8542 = vlaneseq
        %v8543 = vshrl.u32 %v8542, 7
        %v8544 = vsub.s32 0, %v8543
        %v8545 = vrot.slane %v8528, %v8544
        %v8546 = vlaneseq
        %v8547 = vshrl.u32 %v8546, 7
        %v8548 = vsub.s32 0, %v8547
        %v8549 = vrot.slane %v8511, %v8548
        %v8550 = vlaneseq
        %v8551 = vshrl.u32 %v8550, 7
        %v8552 = vsub.s32 0, %v8551
        %v8553 = vrot.slane %v8525, %v8552
        %v8554 = vlaneseq
        %v8555 = vshrl.u32 %v8554, 7
        %v8556 = vsub.s32 0, %v8555
        %v8557 = vrot.slane %v8527, %v8556
        %v8558 = vlaneseq
        %v8559 = vshrl.u32 %v8558, 7
        %v8560 = vsub.s32 0, %v8559
        %v8561 = vrot.slane %v8529, %v8560
        %v8570 = vmul.f32 %v8472, %v8533
        %v8571 = vmul.f32 %v8473, %v8537
        %v8572 = vmul.f32 %v8474, %v8541
        %v8573 = vmul.f32 %v8475, %v8545
        %v8574 = vmul.f32 %v8476, %v8549
        %v8575 = vmul.f32 %v8477, %v8553
        %v8576 = vmul.f32 %v8478, %v8557
        %v8577 = vmul.f32 %v8479, %v8561
        %v8578 = vadd.f32 %v8570, %v8571
        %v8579 = vadd.f32 %v8578, %v8572
        %v8580 = vadd.f32 %v8579, %v8573
        %v8581 = vadd.f32 %v8580, %v8574
        %v8582 = vadd.f32 %v8581, %v8575
        %v8583 = vadd.f32 %v8582, %v8576
        %v8584 = vadd.f32 %v8583, %v8577
        %s8585 = scalar_lea.vmem %s624, 72 [#allocation8]
        %8586 = vst [vmem:[%s8585] sm:$0xff] %v8584
        %v8587 = vld [vmem:[%s4257] sm:$0xff]
        %v8588 = vld [vmem:[%s4257 + $0x8] sm:$0xff]
        %v8589 = vld [vmem:[%s4257 + $0x10] sm:$0xff]
        %v8590 = vld [vmem:[%s4257 + $0x18] sm:$0xff]
        %v8591 = vld [vmem:[%s4257 + $0x20] sm:$0xff]
        %v8592 = vld [vmem:[%s4257 + $0x28] sm:$0xff]
        %v8593 = vld [vmem:[%s4257 + $0x30] sm:$0xff]
        %v8594 = vld [vmem:[%s4257 + $0x38] sm:$0xff]
        %v8596 = vcombine.high %v8343, %v8343
        %v8598 = vunpack.c.l.s4 1966171168
        %v8599 = vunpack.c.0.s8 %v8598
        %v8600 = vlaneseq
        %v8601 = vshrl.u32 %v8600, 7
        %v8602 = vsub.s32 %v8599, %v8601
        %v8603 = vrot.slane %v8343, %v8602
        %v8605 = vunpack.c.l.s4 1966171168
        %v8606 = vunpack.c.0.s8 %v8605
        %v8607 = vlaneseq
        %v8608 = vshrl.u32 %v8607, 7
        %v8609 = vsub.s32 %v8606, %v8608
        %v8610 = vrot.slane %v8596, %v8609
        %v8611 = vcombine.high %v8603, %v8603
        %v8612 = vcombine.high %v8610, %v8610
        %v8614 = vunpack.c.l.s4 1966171168
        %v8615 = vunpack.c.0.s8 %v8614
        %v8616 = vlaneseq
        %v8617 = vshrl.u32 %v8616, 7
        %v8618 = vsub.s32 %v8615, %v8617
        %v8619 = vrot.slane %v8603, %v8618
        %v8621 = vunpack.c.l.s4 1966171168
        %v8622 = vunpack.c.0.s8 %v8621
        %v8623 = vlaneseq
        %v8624 = vshrl.u32 %v8623, 7
        %v8625 = vsub.s32 %v8622, %v8624
        %v8626 = vrot.slane %v8610, %v8625
        %v8628 = vunpack.c.l.s4 1966171168
        %v8629 = vunpack.c.0.s8 %v8628
        %v8630 = vlaneseq
        %v8631 = vshrl.u32 %v8630, 7
        %v8632 = vsub.s32 %v8629, %v8631
        %v8633 = vrot.slane %v8611, %v8632
        %v8635 = vunpack.c.l.s4 1966171168
        %v8636 = vunpack.c.0.s8 %v8635
        %v8637 = vlaneseq
        %v8638 = vshrl.u32 %v8637, 7
        %v8639 = vsub.s32 %v8636, %v8638
        %v8640 = vrot.slane %v8612, %v8639
        %v8641 = vcombine.high %v8619, %v8619
        %v8642 = vcombine.high %v8626, %v8626
        %v8643 = vcombine.high %v8633, %v8633
        %v8644 = vcombine.high %v8640, %v8640
        %v8645 = vlaneseq
        %v8646 = vshrl.u32 %v8645, 7
        %v8647 = vsub.s32 0, %v8646
        %v8648 = vrot.slane %v8619, %v8647
        %v8649 = vlaneseq
        %v8650 = vshrl.u32 %v8649, 7
        %v8651 = vsub.s32 0, %v8650
        %v8652 = vrot.slane %v8633, %v8651
        %v8653 = vlaneseq
        %v8654 = vshrl.u32 %v8653, 7
        %v8655 = vsub.s32 0, %v8654
        %v8656 = vrot.slane %v8641, %v8655
        %v8657 = vlaneseq
        %v8658 = vshrl.u32 %v8657, 7
        %v8659 = vsub.s32 0, %v8658
        %v8660 = vrot.slane %v8643, %v8659
        %v8661 = vlaneseq
        %v8662 = vshrl.u32 %v8661, 7
        %v8663 = vsub.s32 0, %v8662
        %v8664 = vrot.slane %v8626, %v8663
        %v8665 = vlaneseq
        %v8666 = vshrl.u32 %v8665, 7
        %v8667 = vsub.s32 0, %v8666
        %v8668 = vrot.slane %v8640, %v8667
        %v8669 = vlaneseq
        %v8670 = vshrl.u32 %v8669, 7
        %v8671 = vsub.s32 0, %v8670
        %v8672 = vrot.slane %v8642, %v8671
        %v8673 = vlaneseq
        %v8674 = vshrl.u32 %v8673, 7
        %v8675 = vsub.s32 0, %v8674
        %v8676 = vrot.slane %v8644, %v8675
        %v8685 = vmul.f32 %v8587, %v8648
        %v8686 = vmul.f32 %v8588, %v8652
        %v8687 = vmul.f32 %v8589, %v8656
        %v8688 = vmul.f32 %v8590, %v8660
        %v8689 = vmul.f32 %v8591, %v8664
        %v8690 = vmul.f32 %v8592, %v8668
        %v8691 = vmul.f32 %v8593, %v8672
        %v8692 = vmul.f32 %v8594, %v8676
        %v8693 = vadd.f32 %v8685, %v8686
        %v8694 = vadd.f32 %v8693, %v8687
        %v8695 = vadd.f32 %v8694, %v8688
        %v8696 = vadd.f32 %v8695, %v8689
        %v8697 = vadd.f32 %v8696, %v8690
        %v8698 = vadd.f32 %v8697, %v8691
        %v8699 = vadd.f32 %v8698, %v8692
        %s8700 = scalar_lea.vmem %s624, 80 [#allocation8]
        %8701 = vst [vmem:[%s8700] sm:$0xff] %v8699
        %v8702 = vld [vmem:[%s4373] sm:$0xff]
        %v8703 = vld [vmem:[%s4373 + $0x8] sm:$0xff]
        %v8704 = vld [vmem:[%s4373 + $0x10] sm:$0xff]
        %v8705 = vld [vmem:[%s4373 + $0x18] sm:$0xff]
        %v8706 = vld [vmem:[%s4373 + $0x20] sm:$0xff]
        %v8707 = vld [vmem:[%s4373 + $0x28] sm:$0xff]
        %v8708 = vld [vmem:[%s4373 + $0x30] sm:$0xff]
        %v8709 = vld [vmem:[%s4373 + $0x38] sm:$0xff]
        %v8711 = vcombine.high %v8344, %v8344
        %v8713 = vunpack.c.l.s4 1966171168
        %v8714 = vunpack.c.0.s8 %v8713
        %v8715 = vlaneseq
        %v8716 = vshrl.u32 %v8715, 7
        %v8717 = vsub.s32 %v8714, %v8716
        %v8718 = vrot.slane %v8344, %v8717
        %v8720 = vunpack.c.l.s4 1966171168
        %v8721 = vunpack.c.0.s8 %v8720
        %v8722 = vlaneseq
        %v8723 = vshrl.u32 %v8722, 7
        %v8724 = vsub.s32 %v8721, %v8723
        %v8725 = vrot.slane %v8711, %v8724
        %v8726 = vcombine.high %v8718, %v8718
        %v8727 = vcombine.high %v8725, %v8725
        %v8729 = vunpack.c.l.s4 1966171168
        %v8730 = vunpack.c.0.s8 %v8729
        %v8731 = vlaneseq
        %v8732 = vshrl.u32 %v8731, 7
        %v8733 = vsub.s32 %v8730, %v8732
        %v8734 = vrot.slane %v8718, %v8733
        %v8736 = vunpack.c.l.s4 1966171168
        %v8737 = vunpack.c.0.s8 %v8736
        %v8738 = vlaneseq
        %v8739 = vshrl.u32 %v8738, 7
        %v8740 = vsub.s32 %v8737, %v8739
        %v8741 = vrot.slane %v8725, %v8740
        %v8743 = vunpack.c.l.s4 1966171168
        %v8744 = vunpack.c.0.s8 %v8743
        %v8745 = vlaneseq
        %v8746 = vshrl.u32 %v8745, 7
        %v8747 = vsub.s32 %v8744, %v8746
        %v8748 = vrot.slane %v8726, %v8747
        %v8750 = vunpack.c.l.s4 1966171168
        %v8751 = vunpack.c.0.s8 %v8750
        %v8752 = vlaneseq
        %v8753 = vshrl.u32 %v8752, 7
        %v8754 = vsub.s32 %v8751, %v8753
        %v8755 = vrot.slane %v8727, %v8754
        %v8756 = vcombine.high %v8734, %v8734
        %v8757 = vcombine.high %v8741, %v8741
        %v8758 = vcombine.high %v8748, %v8748
        %v8759 = vcombine.high %v8755, %v8755
        %v8760 = vlaneseq
        %v8761 = vshrl.u32 %v8760, 7
        %v8762 = vsub.s32 0, %v8761
        %v8763 = vrot.slane %v8734, %v8762
        %v8764 = vlaneseq
        %v8765 = vshrl.u32 %v8764, 7
        %v8766 = vsub.s32 0, %v8765
        %v8767 = vrot.slane %v8748, %v8766
        %v8768 = vlaneseq
        %v8769 = vshrl.u32 %v8768, 7
        %v8770 = vsub.s32 0, %v8769
        %v8771 = vrot.slane %v8756, %v8770
        %v8772 = vlaneseq
        %v8773 = vshrl.u32 %v8772, 7
        %v8774 = vsub.s32 0, %v8773
        %v8775 = vrot.slane %v8758, %v8774
        %v8776 = vlaneseq
        %v8777 = vshrl.u32 %v8776, 7
        %v8778 = vsub.s32 0, %v8777
        %v8779 = vrot.slane %v8741, %v8778
        %v8780 = vlaneseq
        %v8781 = vshrl.u32 %v8780, 7
        %v8782 = vsub.s32 0, %v8781
        %v8783 = vrot.slane %v8755, %v8782
        %v8784 = vlaneseq
        %v8785 = vshrl.u32 %v8784, 7
        %v8786 = vsub.s32 0, %v8785
        %v8787 = vrot.slane %v8757, %v8786
        %v8788 = vlaneseq
        %v8789 = vshrl.u32 %v8788, 7
        %v8790 = vsub.s32 0, %v8789
        %v8791 = vrot.slane %v8759, %v8790
        %v8800 = vmul.f32 %v8702, %v8763
        %v8801 = vmul.f32 %v8703, %v8767
        %v8802 = vmul.f32 %v8704, %v8771
        %v8803 = vmul.f32 %v8705, %v8775
        %v8804 = vmul.f32 %v8706, %v8779
        %v8805 = vmul.f32 %v8707, %v8783
        %v8806 = vmul.f32 %v8708, %v8787
        %v8807 = vmul.f32 %v8709, %v8791
        %v8808 = vadd.f32 %v8800, %v8801
        %v8809 = vadd.f32 %v8808, %v8802
        %v8810 = vadd.f32 %v8809, %v8803
        %v8811 = vadd.f32 %v8810, %v8804
        %v8812 = vadd.f32 %v8811, %v8805
        %v8813 = vadd.f32 %v8812, %v8806
        %v8814 = vadd.f32 %v8813, %v8807
        %s8815 = scalar_lea.vmem %s624, 88 [#allocation8]
        %8816 = vst [vmem:[%s8815] sm:$0xff] %v8814
        %v8817 = vld [vmem:[%s4489] sm:$0xff]
        %v8818 = vld [vmem:[%s4489 + $0x8] sm:$0xff]
        %v8819 = vld [vmem:[%s4489 + $0x10] sm:$0xff]
        %v8820 = vld [vmem:[%s4489 + $0x18] sm:$0xff]
        %v8821 = vld [vmem:[%s4489 + $0x20] sm:$0xff]
        %v8822 = vld [vmem:[%s4489 + $0x28] sm:$0xff]
        %v8823 = vld [vmem:[%s4489 + $0x30] sm:$0xff]
        %v8824 = vld [vmem:[%s4489 + $0x38] sm:$0xff]
        %v8826 = vcombine.high %v8345, %v8345
        %v8828 = vunpack.c.l.s4 1966171168
        %v8829 = vunpack.c.0.s8 %v8828
        %v8830 = vlaneseq
        %v8831 = vshrl.u32 %v8830, 7
        %v8832 = vsub.s32 %v8829, %v8831
        %v8833 = vrot.slane %v8345, %v8832
        %v8835 = vunpack.c.l.s4 1966171168
        %v8836 = vunpack.c.0.s8 %v8835
        %v8837 = vlaneseq
        %v8838 = vshrl.u32 %v8837, 7
        %v8839 = vsub.s32 %v8836, %v8838
        %v8840 = vrot.slane %v8826, %v8839
        %v8841 = vcombine.high %v8833, %v8833
        %v8842 = vcombine.high %v8840, %v8840
        %v8844 = vunpack.c.l.s4 1966171168
        %v8845 = vunpack.c.0.s8 %v8844
        %v8846 = vlaneseq
        %v8847 = vshrl.u32 %v8846, 7
        %v8848 = vsub.s32 %v8845, %v8847
        %v8849 = vrot.slane %v8833, %v8848
        %v8851 = vunpack.c.l.s4 1966171168
        %v8852 = vunpack.c.0.s8 %v8851
        %v8853 = vlaneseq
        %v8854 = vshrl.u32 %v8853, 7
        %v8855 = vsub.s32 %v8852, %v8854
        %v8856 = vrot.slane %v8840, %v8855
        %v8858 = vunpack.c.l.s4 1966171168
        %v8859 = vunpack.c.0.s8 %v8858
        %v8860 = vlaneseq
        %v8861 = vshrl.u32 %v8860, 7
        %v8862 = vsub.s32 %v8859, %v8861
        %v8863 = vrot.slane %v8841, %v8862
        %v8865 = vunpack.c.l.s4 1966171168
        %v8866 = vunpack.c.0.s8 %v8865
        %v8867 = vlaneseq
        %v8868 = vshrl.u32 %v8867, 7
        %v8869 = vsub.s32 %v8866, %v8868
        %v8870 = vrot.slane %v8842, %v8869
        %v8871 = vcombine.high %v8849, %v8849
        %v8872 = vcombine.high %v8856, %v8856
        %v8873 = vcombine.high %v8863, %v8863
        %v8874 = vcombine.high %v8870, %v8870
        %v8875 = vlaneseq
        %v8876 = vshrl.u32 %v8875, 7
        %v8877 = vsub.s32 0, %v8876
        %v8878 = vrot.slane %v8849, %v8877
        %v8879 = vlaneseq
        %v8880 = vshrl.u32 %v8879, 7
        %v8881 = vsub.s32 0, %v8880
        %v8882 = vrot.slane %v8863, %v8881
        %v8883 = vlaneseq
        %v8884 = vshrl.u32 %v8883, 7
        %v8885 = vsub.s32 0, %v8884
        %v8886 = vrot.slane %v8871, %v8885
        %v8887 = vlaneseq
        %v8888 = vshrl.u32 %v8887, 7
        %v8889 = vsub.s32 0, %v8888
        %v8890 = vrot.slane %v8873, %v8889
        %v8891 = vlaneseq
        %v8892 = vshrl.u32 %v8891, 7
        %v8893 = vsub.s32 0, %v8892
        %v8894 = vrot.slane %v8856, %v8893
        %v8895 = vlaneseq
        %v8896 = vshrl.u32 %v8895, 7
        %v8897 = vsub.s32 0, %v8896
        %v8898 = vrot.slane %v8870, %v8897
        %v8899 = vlaneseq
        %v8900 = vshrl.u32 %v8899, 7
        %v8901 = vsub.s32 0, %v8900
        %v8902 = vrot.slane %v8872, %v8901
        %v8903 = vlaneseq
        %v8904 = vshrl.u32 %v8903, 7
        %v8905 = vsub.s32 0, %v8904
        %v8906 = vrot.slane %v8874, %v8905
        %v8915 = vmul.f32 %v8817, %v8878
        %v8916 = vmul.f32 %v8818, %v8882
        %v8917 = vmul.f32 %v8819, %v8886
        %v8918 = vmul.f32 %v8820, %v8890
        %v8919 = vmul.f32 %v8821, %v8894
        %v8920 = vmul.f32 %v8822, %v8898
        %v8921 = vmul.f32 %v8823, %v8902
        %v8922 = vmul.f32 %v8824, %v8906
        %v8923 = vadd.f32 %v8915, %v8916
        %v8924 = vadd.f32 %v8923, %v8917
        %v8925 = vadd.f32 %v8924, %v8918
        %v8926 = vadd.f32 %v8925, %v8919
        %v8927 = vadd.f32 %v8926, %v8920
        %v8928 = vadd.f32 %v8927, %v8921
        %v8929 = vadd.f32 %v8928, %v8922
        %s8930 = scalar_lea.vmem %s624, 96 [#allocation8]
        %8931 = vst [vmem:[%s8930] sm:$0xff] %v8929
        %v8932 = vld [vmem:[%s4605] sm:$0xff]
        %v8933 = vld [vmem:[%s4605 + $0x8] sm:$0xff]
        %v8934 = vld [vmem:[%s4605 + $0x10] sm:$0xff]
        %v8935 = vld [vmem:[%s4605 + $0x18] sm:$0xff]
        %v8936 = vld [vmem:[%s4605 + $0x20] sm:$0xff]
        %v8937 = vld [vmem:[%s4605 + $0x28] sm:$0xff]
        %v8938 = vld [vmem:[%s4605 + $0x30] sm:$0xff]
        %v8939 = vld [vmem:[%s4605 + $0x38] sm:$0xff]
        %v8941 = vcombine.high %v8346, %v8346
        %v8943 = vunpack.c.l.s4 1966171168
        %v8944 = vunpack.c.0.s8 %v8943
        %v8945 = vlaneseq
        %v8946 = vshrl.u32 %v8945, 7
        %v8947 = vsub.s32 %v8944, %v8946
        %v8948 = vrot.slane %v8346, %v8947
        %v8950 = vunpack.c.l.s4 1966171168
        %v8951 = vunpack.c.0.s8 %v8950
        %v8952 = vlaneseq
        %v8953 = vshrl.u32 %v8952, 7
        %v8954 = vsub.s32 %v8951, %v8953
        %v8955 = vrot.slane %v8941, %v8954
        %v8956 = vcombine.high %v8948, %v8948
        %v8957 = vcombine.high %v8955, %v8955
        %v8959 = vunpack.c.l.s4 1966171168
        %v8960 = vunpack.c.0.s8 %v8959
        %v8961 = vlaneseq
        %v8962 = vshrl.u32 %v8961, 7
        %v8963 = vsub.s32 %v8960, %v8962
        %v8964 = vrot.slane %v8948, %v8963
        %v8966 = vunpack.c.l.s4 1966171168
        %v8967 = vunpack.c.0.s8 %v8966
        %v8968 = vlaneseq
        %v8969 = vshrl.u32 %v8968, 7
        %v8970 = vsub.s32 %v8967, %v8969
        %v8971 = vrot.slane %v8955, %v8970
        %v8973 = vunpack.c.l.s4 1966171168
        %v8974 = vunpack.c.0.s8 %v8973
        %v8975 = vlaneseq
        %v8976 = vshrl.u32 %v8975, 7
        %v8977 = vsub.s32 %v8974, %v8976
        %v8978 = vrot.slane %v8956, %v8977
        %v8980 = vunpack.c.l.s4 1966171168
        %v8981 = vunpack.c.0.s8 %v8980
        %v8982 = vlaneseq
        %v8983 = vshrl.u32 %v8982, 7
        %v8984 = vsub.s32 %v8981, %v8983
        %v8985 = vrot.slane %v8957, %v8984
        %v8986 = vcombine.high %v8964, %v8964
        %v8987 = vcombine.high %v8971, %v8971
        %v8988 = vcombine.high %v8978, %v8978
        %v8989 = vcombine.high %v8985, %v8985
        %v8990 = vlaneseq
        %v8991 = vshrl.u32 %v8990, 7
        %v8992 = vsub.s32 0, %v8991
        %v8993 = vrot.slane %v8964, %v8992
        %v8994 = vlaneseq
        %v8995 = vshrl.u32 %v8994, 7
        %v8996 = vsub.s32 0, %v8995
        %v8997 = vrot.slane %v8978, %v8996
        %v8998 = vlaneseq
        %v8999 = vshrl.u32 %v8998, 7
        %v9000 = vsub.s32 0, %v8999
        %v9001 = vrot.slane %v8986, %v9000
        %v9002 = vlaneseq
        %v9003 = vshrl.u32 %v9002, 7
        %v9004 = vsub.s32 0, %v9003
        %v9005 = vrot.slane %v8988, %v9004
        %v9006 = vlaneseq
        %v9007 = vshrl.u32 %v9006, 7
        %v9008 = vsub.s32 0, %v9007
        %v9009 = vrot.slane %v8971, %v9008
        %v9010 = vlaneseq
        %v9011 = vshrl.u32 %v9010, 7
        %v9012 = vsub.s32 0, %v9011
        %v9013 = vrot.slane %v8985, %v9012
        %v9014 = vlaneseq
        %v9015 = vshrl.u32 %v9014, 7
        %v9016 = vsub.s32 0, %v9015
        %v9017 = vrot.slane %v8987, %v9016
        %v9018 = vlaneseq
        %v9019 = vshrl.u32 %v9018, 7
        %v9020 = vsub.s32 0, %v9019
        %v9021 = vrot.slane %v8989, %v9020
        %v9030 = vmul.f32 %v8932, %v8993
        %v9031 = vmul.f32 %v8933, %v8997
        %v9032 = vmul.f32 %v8934, %v9001
        %v9033 = vmul.f32 %v8935, %v9005
        %v9034 = vmul.f32 %v8936, %v9009
        %v9035 = vmul.f32 %v8937, %v9013
        %v9036 = vmul.f32 %v8938, %v9017
        %v9037 = vmul.f32 %v8939, %v9021
        %v9038 = vadd.f32 %v9030, %v9031
        %v9039 = vadd.f32 %v9038, %v9032
        %v9040 = vadd.f32 %v9039, %v9033
        %v9041 = vadd.f32 %v9040, %v9034
        %v9042 = vadd.f32 %v9041, %v9035
        %v9043 = vadd.f32 %v9042, %v9036
        %v9044 = vadd.f32 %v9043, %v9037
        %s9045 = scalar_lea.vmem %s624, 104 [#allocation8]
        %9046 = vst [vmem:[%s9045] sm:$0xff] %v9044
        %v9047 = vld [vmem:[%s4721] sm:$0xff]
        %v9048 = vld [vmem:[%s4721 + $0x8] sm:$0xff]
        %v9049 = vld [vmem:[%s4721 + $0x10] sm:$0xff]
        %v9050 = vld [vmem:[%s4721 + $0x18] sm:$0xff]
        %v9051 = vld [vmem:[%s4721 + $0x20] sm:$0xff]
        %v9052 = vld [vmem:[%s4721 + $0x28] sm:$0xff]
        %v9053 = vld [vmem:[%s4721 + $0x30] sm:$0xff]
        %v9054 = vld [vmem:[%s4721 + $0x38] sm:$0xff]
        %v9056 = vcombine.high %v8347, %v8347
        %v9058 = vunpack.c.l.s4 1966171168
        %v9059 = vunpack.c.0.s8 %v9058
        %v9060 = vlaneseq
        %v9061 = vshrl.u32 %v9060, 7
        %v9062 = vsub.s32 %v9059, %v9061
        %v9063 = vrot.slane %v8347, %v9062
        %v9065 = vunpack.c.l.s4 1966171168
        %v9066 = vunpack.c.0.s8 %v9065
        %v9067 = vlaneseq
        %v9068 = vshrl.u32 %v9067, 7
        %v9069 = vsub.s32 %v9066, %v9068
        %v9070 = vrot.slane %v9056, %v9069
        %v9071 = vcombine.high %v9063, %v9063
        %v9072 = vcombine.high %v9070, %v9070
        %v9074 = vunpack.c.l.s4 1966171168
        %v9075 = vunpack.c.0.s8 %v9074
        %v9076 = vlaneseq
        %v9077 = vshrl.u32 %v9076, 7
        %v9078 = vsub.s32 %v9075, %v9077
        %v9079 = vrot.slane %v9063, %v9078
        %v9081 = vunpack.c.l.s4 1966171168
        %v9082 = vunpack.c.0.s8 %v9081
        %v9083 = vlaneseq
        %v9084 = vshrl.u32 %v9083, 7
        %v9085 = vsub.s32 %v9082, %v9084
        %v9086 = vrot.slane %v9070, %v9085
        %v9088 = vunpack.c.l.s4 1966171168
        %v9089 = vunpack.c.0.s8 %v9088
        %v9090 = vlaneseq
        %v9091 = vshrl.u32 %v9090, 7
        %v9092 = vsub.s32 %v9089, %v9091
        %v9093 = vrot.slane %v9071, %v9092
        %v9095 = vunpack.c.l.s4 1966171168
        %v9096 = vunpack.c.0.s8 %v9095
        %v9097 = vlaneseq
        %v9098 = vshrl.u32 %v9097, 7
        %v9099 = vsub.s32 %v9096, %v9098
        %v9100 = vrot.slane %v9072, %v9099
        %v9101 = vcombine.high %v9079, %v9079
        %v9102 = vcombine.high %v9086, %v9086
        %v9103 = vcombine.high %v9093, %v9093
        %v9104 = vcombine.high %v9100, %v9100
        %v9105 = vlaneseq
        %v9106 = vshrl.u32 %v9105, 7
        %v9107 = vsub.s32 0, %v9106
        %v9108 = vrot.slane %v9079, %v9107
        %v9109 = vlaneseq
        %v9110 = vshrl.u32 %v9109, 7
        %v9111 = vsub.s32 0, %v9110
        %v9112 = vrot.slane %v9093, %v9111
        %v9113 = vlaneseq
        %v9114 = vshrl.u32 %v9113, 7
        %v9115 = vsub.s32 0, %v9114
        %v9116 = vrot.slane %v9101, %v9115
        %v9117 = vlaneseq
        %v9118 = vshrl.u32 %v9117, 7
        %v9119 = vsub.s32 0, %v9118
        %v9120 = vrot.slane %v9103, %v9119
        %v9121 = vlaneseq
        %v9122 = vshrl.u32 %v9121, 7
        %v9123 = vsub.s32 0, %v9122
        %v9124 = vrot.slane %v9086, %v9123
        %v9125 = vlaneseq
        %v9126 = vshrl.u32 %v9125, 7
        %v9127 = vsub.s32 0, %v9126
        %v9128 = vrot.slane %v9100, %v9127
        %v9129 = vlaneseq
        %v9130 = vshrl.u32 %v9129, 7
        %v9131 = vsub.s32 0, %v9130
        %v9132 = vrot.slane %v9102, %v9131
        %v9133 = vlaneseq
        %v9134 = vshrl.u32 %v9133, 7
        %v9135 = vsub.s32 0, %v9134
        %v9136 = vrot.slane %v9104, %v9135
        %v9145 = vmul.f32 %v9047, %v9108
        %v9146 = vmul.f32 %v9048, %v9112
        %v9147 = vmul.f32 %v9049, %v9116
        %v9148 = vmul.f32 %v9050, %v9120
        %v9149 = vmul.f32 %v9051, %v9124
        %v9150 = vmul.f32 %v9052, %v9128
        %v9151 = vmul.f32 %v9053, %v9132
        %v9152 = vmul.f32 %v9054, %v9136
        %v9153 = vadd.f32 %v9145, %v9146
        %v9154 = vadd.f32 %v9153, %v9147
        %v9155 = vadd.f32 %v9154, %v9148
        %v9156 = vadd.f32 %v9155, %v9149
        %v9157 = vadd.f32 %v9156, %v9150
        %v9158 = vadd.f32 %v9157, %v9151
        %v9159 = vadd.f32 %v9158, %v9152
        %s9160 = scalar_lea.vmem %s624, 112 [#allocation8]
        %9161 = vst [vmem:[%s9160] sm:$0xff] %v9159
        %v9162 = vld [vmem:[%s4837] sm:$0xff]
        %v9163 = vld [vmem:[%s4837 + $0x8] sm:$0xff]
        %v9164 = vld [vmem:[%s4837 + $0x10] sm:$0xff]
        %v9165 = vld [vmem:[%s4837 + $0x18] sm:$0xff]
        %v9166 = vld [vmem:[%s4837 + $0x20] sm:$0xff]
        %v9167 = vld [vmem:[%s4837 + $0x28] sm:$0xff]
        %v9168 = vld [vmem:[%s4837 + $0x30] sm:$0xff]
        %v9169 = vld [vmem:[%s4837 + $0x38] sm:$0xff]
        %v9171 = vcombine.high %v8348, %v8348
        %v9173 = vunpack.c.l.s4 1966171168
        %v9174 = vunpack.c.0.s8 %v9173
        %v9175 = vlaneseq
        %v9176 = vshrl.u32 %v9175, 7
        %v9177 = vsub.s32 %v9174, %v9176
        %v9178 = vrot.slane %v8348, %v9177
        %v9180 = vunpack.c.l.s4 1966171168
        %v9181 = vunpack.c.0.s8 %v9180
        %v9182 = vlaneseq
        %v9183 = vshrl.u32 %v9182, 7
        %v9184 = vsub.s32 %v9181, %v9183
        %v9185 = vrot.slane %v9171, %v9184
        %v9186 = vcombine.high %v9178, %v9178
        %v9187 = vcombine.high %v9185, %v9185
        %v9189 = vunpack.c.l.s4 1966171168
        %v9190 = vunpack.c.0.s8 %v9189
        %v9191 = vlaneseq
        %v9192 = vshrl.u32 %v9191, 7
        %v9193 = vsub.s32 %v9190, %v9192
        %v9194 = vrot.slane %v9178, %v9193
        %v9196 = vunpack.c.l.s4 1966171168
        %v9197 = vunpack.c.0.s8 %v9196
        %v9198 = vlaneseq
        %v9199 = vshrl.u32 %v9198, 7
        %v9200 = vsub.s32 %v9197, %v9199
        %v9201 = vrot.slane %v9185, %v9200
        %v9203 = vunpack.c.l.s4 1966171168
        %v9204 = vunpack.c.0.s8 %v9203
        %v9205 = vlaneseq
        %v9206 = vshrl.u32 %v9205, 7
        %v9207 = vsub.s32 %v9204, %v9206
        %v9208 = vrot.slane %v9186, %v9207
        %v9210 = vunpack.c.l.s4 1966171168
        %v9211 = vunpack.c.0.s8 %v9210
        %v9212 = vlaneseq
        %v9213 = vshrl.u32 %v9212, 7
        %v9214 = vsub.s32 %v9211, %v9213
        %v9215 = vrot.slane %v9187, %v9214
        %v9216 = vcombine.high %v9194, %v9194
        %v9217 = vcombine.high %v9201, %v9201
        %v9218 = vcombine.high %v9208, %v9208
        %v9219 = vcombine.high %v9215, %v9215
        %v9220 = vlaneseq
        %v9221 = vshrl.u32 %v9220, 7
        %v9222 = vsub.s32 0, %v9221
        %v9223 = vrot.slane %v9194, %v9222
        %v9224 = vlaneseq
        %v9225 = vshrl.u32 %v9224, 7
        %v9226 = vsub.s32 0, %v9225
        %v9227 = vrot.slane %v9208, %v9226
        %v9228 = vlaneseq
        %v9229 = vshrl.u32 %v9228, 7
        %v9230 = vsub.s32 0, %v9229
        %v9231 = vrot.slane %v9216, %v9230
        %v9232 = vlaneseq
        %v9233 = vshrl.u32 %v9232, 7
        %v9234 = vsub.s32 0, %v9233
        %v9235 = vrot.slane %v9218, %v9234
        %v9236 = vlaneseq
        %v9237 = vshrl.u32 %v9236, 7
        %v9238 = vsub.s32 0, %v9237
        %v9239 = vrot.slane %v9201, %v9238
        %v9240 = vlaneseq
        %v9241 = vshrl.u32 %v9240, 7
        %v9242 = vsub.s32 0, %v9241
        %v9243 = vrot.slane %v9215, %v9242
        %v9244 = vlaneseq
        %v9245 = vshrl.u32 %v9244, 7
        %v9246 = vsub.s32 0, %v9245
        %v9247 = vrot.slane %v9217, %v9246
        %v9248 = vlaneseq
        %v9249 = vshrl.u32 %v9248, 7
        %v9250 = vsub.s32 0, %v9249
        %v9251 = vrot.slane %v9219, %v9250
        %v9260 = vmul.f32 %v9162, %v9223
        %v9261 = vmul.f32 %v9163, %v9227
        %v9262 = vmul.f32 %v9164, %v9231
        %v9263 = vmul.f32 %v9165, %v9235
        %v9264 = vmul.f32 %v9166, %v9239
        %v9265 = vmul.f32 %v9167, %v9243
        %v9266 = vmul.f32 %v9168, %v9247
        %v9267 = vmul.f32 %v9169, %v9251
        %v9268 = vadd.f32 %v9260, %v9261
        %v9269 = vadd.f32 %v9268, %v9262
        %v9270 = vadd.f32 %v9269, %v9263
        %v9271 = vadd.f32 %v9270, %v9264
        %v9272 = vadd.f32 %v9271, %v9265
        %v9273 = vadd.f32 %v9272, %v9266
        %v9274 = vadd.f32 %v9273, %v9267
        %s9275 = scalar_lea.vmem %s624, 120 [#allocation8]
        %9276 = vst [vmem:[%s9275] sm:$0xff] %v9274
        %s9277 = sand.u32 %s133, 1
        %s9278 = scalar_lea.sflag [#allocation7], %s9277
        %s9279 = sand.u32 %s133, 1
        %s9280 = smul.addr %s9279, 128
        %s9281 = scalar_lea.vmem [#allocation8], %s9280
        // Predicated region
        $region155: #{tpu_custom_call.1} parent=137 // pred_check
          %p9282 = pneg %p143
        $region156: #{tpu_custom_call.1} parent=137 // pred_check_branch
          %9284 = sbr.rel (%p9282) target = $region158
        $region157: #{tpu_custom_call.1} parent=137 // pred_region
          #allocation10 [shape = 'u32[6]{0}', space=smem, size = 0x18, scoped, tag = 'DMA stride descriptor']
          %s9286 = ssub.s32 2048, 2048
          %9287 = vsyncadd %s9278, %s9286
          %s9288 = smul.addr %s21, 8
          %s9289 = smul.addr %s9288, 128
          %s9290 = scalar_lea.hbm %s4, %s9289
          %s9292 = sshll.u32 1, 14
          %s9293 = sxor.u32 4294967295, %s9292
          %s9296 = sshll.u32 7, 18
          %s9297 = sxor.u32 4294967295, %s9296
          %s9298 = sand.u32 0, %s9297
          %s9300 = sor.u32 %s9298, 0
          %s9302 = sshll.u32 3, 24
          %s9303 = sxor.u32 4294967295, %s9302
          %s9304 = sand.u32 %s9300, %s9303
          %s9306 = sor.u32 %s9304, 0
          %s9307 = sshll.u32 %s9281, 4
          %s9308 = int_to_ptr.vmem [resolvable:$true] %s9307
          %9314 = sst [smem:[#allocation10]] 1024
          %s9315 = scalar_lea.smem [#allocation10], 1
          %9316 = sst [smem:[%s9315]] 4096
          %s9317 = scalar_lea.smem [#allocation10], 2
          %9318 = sst [smem:[%s9317]] 8
          %s9319 = scalar_lea.smem [#allocation10], 3
          %9320 = sst [smem:[%s9319]] 128
          %s9321 = scalar_lea.smem [#allocation10], 4
          %9322 = sst [smem:[%s9321]] 128
          %s9323 = scalar_lea.smem [#allocation10], 5
          %9324 = sst [smem:[%s9323]] 8
          %9326 = dma.general %s9308, 2048, %s9290, %s9278, [#allocation9], [#allocation10], %s9306, 0
        $region158: #{tpu_custom_call.1} parent=137 // pred_fallthru
          _
      $region138: #{tpu_custom_call.1} parent=5 // pred_fallthru
        _
      %p9327 = scmp.le.s32.totalorder 2, %s16
      // Predicated region
      $region159: #{tpu_custom_call.1} parent=5 // pred_check
        %p9328 = pneg %p9327
      $region160: #{tpu_custom_call.1} parent=5 // pred_check_branch
        %9330 = sbr.rel (%p9328) target = $region162
      $region161: #{tpu_custom_call.1} parent=5 // pred_region
        %s9331 = ssub.s32 %s16, 2
        // Predicated region
        $region163: #{tpu_custom_call.1} parent=161 // pred_check
          %p9332 = pneg %p149
        $region164: #{tpu_custom_call.1} parent=161 // pred_check_branch
          %9334 = sbr.rel (%p9332) target = $region166
        $region165: #{tpu_custom_call.1} parent=161 // pred_region
          %s9335 = sand.u32 %s134, 1
          %s9336 = scalar_lea.sflag [#allocation7], %s9335
          %s9337 = sand.u32 %s134, 1
          %s9338 = smul.addr %s9337, 128
          %s9339 = scalar_lea.vmem [#allocation8], %s9338
          %9340 = dma.done %s9336, 2048
        $region166: #{tpu_custom_call.1} parent=161 // pred_fallthru
          _
      $region162: #{tpu_custom_call.1} parent=5 // pred_fallthru
        _
    $region6: #{tpu_custom_call.1} parent=1 // loop_footer
      %s20 = sadd.s32 1, %s16
    $region7: #{tpu_custom_call.1} parent=1 // loop_footer_branch
      %15 = sbr.rel target = $region3
    $region8: #{tpu_custom_call.1} parent=1 // loop_exit
      _
    %9341 = vsyncpa [#allocation6], 1
    %s9342 = scalar_lea.sflag [#allocation6], 1
    %9343 = vsyncpa %s9342, 1
    %9344 = vsyncpa [#allocation7], 1
    %s9345 = scalar_lea.sflag [#allocation7], 1
    %9346 = vsyncpa %s9345, 1

</llo_original>
